<compile_context>
chip_gen: v7x
topology: tpu7x:2x2x1
jax: 0.10.0
libtpu: 0.0.40
codegen_flags: <defaults>
</compile_context>

<pallas_src>
import functools

import numpy as np
import jax
import jax.numpy as jnp
from jax.experimental import pallas as pl
from jax.experimental.pallas import tpu as pltpu  # noqa: F401  (kept for TPU-specific tuning hooks)

# ----------------------------- configuration -----------------------------
B = 2            # batch
C_IN = 3         # image channels
IMG_H, IMG_W = 8, 32
PATCH = 4
HP, WP = IMG_H // PATCH, IMG_W // PATCH
N_TOK = HP * WP                   # 16 tokens
PATCH_DIM = C_IN * PATCH * PATCH  # 48
D_ENC = 32                        # encoder.num_features
N_HEADS = 4
D_HEAD = D_ENC // N_HEADS
DEPTH = 2
MLP_HID = 4 * D_ENC
D_DEC = 32                        # rec_decoder.d_embedding
T_MAX = 8                         # decoder query length
N_CLASSES = 10
PIX_HID = 192                     # fixed in the module
PIX_OUT = 48                      # fixed in the module
NUM_MIM_SAMPLES = 1
DTYPE = jnp.float32

_N_BLK_REFS = 16                  # refs per encoder block (see _prep_weights)


# ----------------------------- fused Pallas kernel -----------------------------
def _fused_kernel(*refs, batch, mim_rows):
    """Whole MimRecModel forward on VMEM-resident tensors (single invocation)."""
    f32 = jnp.float32
    it = iter(refs)

    def nxt():
        return next(it)

    # ---- unpack refs (order must match the wrapper's flat input list) ----
    xp_r, mask_r, qin_r = nxt(), nxt(), nxt()
    patch_w_r, patch_b_r, pos_r, mtok_r = nxt(), nxt(), nxt(), nxt()
    blk_refs = [tuple(nxt() for _ in range(_N_BLK_REFS)) for _ in range(DEPTH)]
    norm_g_r, norm_b_r = nxt(), nxt()
    mim_r = tuple(nxt() for _ in range(8))
    pix_e2d_r = nxt()
    pix_r = tuple(nxt() for _ in range(5))
    lnorm_r = tuple(nxt() for _ in range(4))
    dec_r = tuple(nxt() for _ in range(8))
    pix_out_r, rec_out_r, attn_out_r = nxt(), nxt(), nxt()

    # ---- small helpers (all f32 epilogue math; v5e-safe) ----
    def matmul(a, w):
        return jnp.dot(a, w, preferred_element_type=f32)

    def layernorm(xv, g, b, eps):
        mu = jnp.mean(xv, axis=-1, keepdims=True)
        xc = xv - mu
        var = jnp.mean(xc * xc, axis=-1, keepdims=True)
        return xc * jax.lax.rsqrt(var + eps) * g + b

    def gelu(xv):  # torch.nn.GELU() default (erf form)
        return 0.5 * xv * (1.0 + jax.lax.erf(xv * 0.7071067811865476))

    def softmax_rows(s):
        m = jnp.max(s, axis=-1, keepdims=True)
        p = jnp.exp(s - m)
        return p * pl.reciprocal(jnp.sum(p, axis=-1, keepdims=True), approx=True)

    # ---- patch embedding + mask token + positional embedding ----
    tok = matmul(xp_r[...].astype(f32), patch_w_r[...]) + patch_b_r[...]
    m = mask_r[...]
    tok = tok * (1.0 - m) + mtok_r[...] * m
    tok = tok + pos_r[...]

    enc_scale = 1.0 / float(np.sqrt(D_HEAD))

    # ---- pre-LN transformer encoder blocks ----
    for (ln1_g, ln1_b, wq_h, wk_h, wv_h, bq_h, bk_h, bv_h,
         pw_h, proj_b, ln2_g, ln2_b, fc1_w, fc1_b, fc2_w, fc2_b) in blk_refs:
        h = layernorm(tok, ln1_g[...], ln1_b[...], 1e-6)
        attn_proj = None
        for hh in range(N_HEADS):
            q_h = matmul(h, wq_h[hh]) + bq_h[hh]     # [B*N, dh]
            k_h = matmul(h, wk_h[hh]) + bk_h[hh]
            v_h = matmul(h, wv_h[hh]) + bv_h[hh]
            o_rows = []
            for b_i in range(batch):
                lo, hi = b_i * N_TOK, (b_i + 1) * N_TOK
                s = matmul(q_h[lo:hi], k_h[lo:hi].T) * enc_scale   # [N, N]
                p = softmax_rows(s)                  # attention map NOT stored
                o_rows.append(matmul(p, v_h[lo:hi]))
            o_h = jnp.concatenate(o_rows, axis=0) if batch > 1 else o_rows[0]
            contrib = matmul(o_h, pw_h[hh])          # head-merged via proj slice
            attn_proj = contrib if attn_proj is None else attn_proj + contrib
        tok = tok + attn_proj + proj_b[...]
        h2 = layernorm(tok, ln2_g[...], ln2_b[...], 1e-6)
        h2 = gelu(matmul(h2, fc1_w[...]) + fc1_b[...])
        tok = tok + matmul(h2, fc2_w[...]) + fc2_b[...]

    temp = layernorm(tok, norm_g_r[...], norm_b_r[...], 1e-6)       # temp_enc_x

    # ---- mim_proj on the first num_mim_samples batch elements ----
    (mw1, mb1, mg1, mbe1, mw2, mb2, mg2, mbe2) = mim_r
    if mim_rows > 0:
        hm = matmul(temp[:mim_rows], mw1[...]) + mb1[...]
        hm = gelu(layernorm(hm, mg1[...], mbe1[...], 1e-6))
        hm = matmul(hm, mw2[...]) + mb2[...]
        mim_out = layernorm(hm, mg2[...], mbe2[...], 1e-6)
        if mim_rows < temp.shape[0]:
            enc_x = jnp.concatenate([mim_out, temp[mim_rows:]], axis=0)
        else:
            enc_x = mim_out
    else:
        enc_x = temp

    # ---- pixel reconstruction head (bias-free first two linears) ----
    (pw1, pg, pb, pw2, pb2) = pix_r
    hp = matmul(matmul(temp, pix_e2d_r[...]), pw1[...])
    hp = gelu(layernorm(hp, pg[...], pb[...], 1e-6))
    pix_out_r[...] = (matmul(hp, pw2[...]) + pb2[...]).astype(pix_out_r.dtype)

    # ---- linear_norm (Linear -> LayerNorm, default eps 1e-5) ----
    (lw, lb, lg, lbb) = lnorm_r
    enc = layernorm(matmul(enc_x, lw[...]) + lb[...], lg[...], lbb[...], 1e-5)

    # ---- cross-attention recognition decoder (teacher-forced) ----
    # TODO(synk): tgt_lens-based masking of the cross-attention is omitted.
    (wq, wk, wv, wo, dg, db, cw, cb) = dec_r
    qin = qin_r[...].astype(f32)                    # tok_embed[tgt] + query_pos
    q = matmul(qin, wq[...])
    k = matmul(enc, wk[...])
    v = matmul(enc, wv[...])
    dec_scale = 1.0 / float(np.sqrt(D_DEC))
    o_rows, a_rows = [], []
    for b_i in range(batch):
        qlo, qhi = b_i * T_MAX, (b_i + 1) * T_MAX
        klo, khi = b_i * N_TOK, (b_i + 1) * N_TOK
        s = matmul(q[qlo:qhi], k[klo:khi].T) * dec_scale            # [T, N]
        p = softmax_rows(s)
        a_rows.append(p)
        o_rows.append(matmul(p, v[klo:khi]))
    o = jnp.concatenate(o_rows, axis=0) if batch > 1 else o_rows[0]
    attn = jnp.concatenate(a_rows, axis=0) if batch > 1 else a_rows[0]
    hdec = layernorm(qin + matmul(o, wo[...]), dg[...], db[...], 1e-6)
    rec_out_r[...] = (matmul(hdec, cw[...]) + cb[...]).astype(rec_out_r.dtype)
    attn_out_r[...] = attn.astype(attn_out_r.dtype)


# ----------------------------- host-side weight preparation -----------------------------
def _prep_weights(params, batch):
    """Flatten params into the kernel's input order (per-head slices stacked,
    biases reshaped to [1, D]).  Params are jit constants, so this folds."""
    D, H, dh = D_ENC, N_HEADS, D_HEAD
    enc = params["encoder"]
    ins = [
        enc["patch_w"],
        enc["patch_b"].reshape(1, D),
        jnp.tile(enc["pos_embed"].reshape(N_TOK, D), (batch, 1)),
        enc["mask_token"].reshape(1, D),
    ]
    for bp in enc["blocks"]:
        qkv_w, qkv_b = bp["qkv_w"], bp["qkv_b"]
        wq, wk, wv = qkv_w[:, :D], qkv_w[:, D:2 * D], qkv_w[:, 2 * D:]
        bq, bk, bv = qkv_b[:D], qkv_b[D:2 * D], qkv_b[2 * D:]

        def split_w(w):
            return jnp.stack([w[:, h * dh:(h + 1) * dh] for h in range(H)], 0)

        def split_b(b_):
            return jnp.stack([b_[h * dh:(h + 1) * dh].reshape(1, dh) for h in range(H)], 0)

        pw_h = jnp.stack([bp["proj_w"][h * dh:(h + 1) * dh, :] for h in range(H)], 0)
        ins += [
            bp["ln1_g"].reshape(1, D), bp["ln1_b"].reshape(1, D),
            split_w(wq), split_w(wk), split_w(wv),
            split_b(bq), split_b(bk), split_b(bv),
            pw_h, bp["proj_b"].reshape(1, D),
            bp["ln2_g"].reshape(1, D), bp["ln2_b"].reshape(1, D),
            bp["fc1_w"], bp["fc1_b"].reshape(1, MLP_HID),
            bp["fc2_w"], bp["fc2_b"].reshape(1, D),
        ]
    ins += [enc["norm_g"].reshape(1, D), enc["norm_b"].reshape(1, D)]

    mp = params["mim_proj"]
    ins += [mp["w1"], mp["b1"].reshape(1, 2 * D),
            mp["ln1_g"].reshape(1, 2 * D), mp["ln1_b"].reshape(1, 2 * D),
            mp["w2"], mp["b2"].reshape(1, D),
            mp["ln2_g"].reshape(1, D), mp["ln2_b"].reshape(1, D)]

    ins += [params["pix_e2d_w"]]
    pd = params["pix_dec"]
    ins += [pd["w1"], pd["ln_g"].reshape(1, PIX_HID), pd["ln_b"].reshape(1, PIX_HID),
            pd["w2"], pd["b2"].reshape(1, PIX_OUT)]

    ln = params["linear_norm"]
    ins += [ln["w"], ln["b"].reshape(1, D_DEC), ln["g"].reshape(1, D_DEC),
            ln["bb"].reshape(1, D_DEC)]

    rd = params["rec_decoder"]
    ins += [rd["wq"], rd["wk"], rd["wv"], rd["wo"],
            rd["ln_g"].reshape(1, D_DEC), rd["ln_b"].reshape(1, D_DEC),
            rd["cls_w"], rd["cls_b"].reshape(1, N_CLASSES)]
    return ins


# ----------------------------- parameter init -----------------------------
def init_params(seed=42):
    key = jax.random.PRNGKey(seed)
    keys = iter(jax.random.split(key, 512))

    def nrm(shape, scale=0.02):
        return scale * jax.random.normal(next(keys), shape, dtype=DTYPE)

    def zeros(shape):
        return jnp.zeros(shape, dtype=DTYPE)

    def ones(shape):
        return jnp.ones(shape, dtype=DTYPE)

    enc_blocks = []
    for _ in range(DEPTH):
        enc_blocks.append(dict(
            ln1_g=ones((D_ENC,)), ln1_b=zeros((D_ENC,)),
            qkv_w=nrm((D_ENC, 3 * D_ENC)), qkv_b=zeros((3 * D_ENC,)),
            proj_w=nrm((D_ENC, D_ENC)), proj_b=zeros((D_ENC,)),
            ln2_g=ones((D_ENC,)), ln2_b=zeros((D_ENC,)),
            fc1_w=nrm((D_ENC, MLP_HID)), fc1_b=zeros((MLP_HID,)),
            fc2_w=nrm((MLP_HID, D_ENC)), fc2_b=zeros((D_ENC,)),
        ))
    encoder = dict(
        patch_w=nrm((PATCH_DIM, D_ENC)), patch_b=zeros((D_ENC,)),
        pos_embed=nrm((1, N_TOK, D_ENC)),
        mask_token=nrm((D_ENC,)),
        blocks=enc_blocks,
        norm_g=ones((D_ENC,)), norm_b=zeros((D_ENC,)),
    )

    rec_decoder = dict(
        tok_embed=nrm((N_CLASSES, D_DEC)),
        query_pos=nrm((T_MAX, D_DEC)),
        wq=nrm((D_DEC, D_DEC)), wk=nrm((D_DEC, D_DEC)),
        wv=nrm((D_DEC, D_DEC)), wo=nrm((D_DEC, D_DEC)),
        ln_g=ones((D_DEC,)), ln_b=zeros((D_DEC,)),
        cls_w=nrm((D_DEC, N_CLASSES)), cls_b=zeros((N_CLASSES,)),
    )

    params = dict(
        encoder=encoder,
        rec_decoder=rec_decoder,
        pix_e2d_w=nrm((D_ENC, PIX_HID)),                     # Linear(D, 192, bias=False)
        pix_dec=dict(                                        # Linear(192,192,no bias), LN(1e-6), GELU, Linear(192,48)
            w1=nrm((PIX_HID, PIX_HID)),
            ln_g=ones((PIX_HID,)), ln_b=zeros((PIX_HID,)),
            w2=nrm((PIX_HID, PIX_OUT)), b2=zeros((PIX_OUT,)),
        ),
        mim_proj=dict(                                       # Linear(D,2D), LN(1e-6), GELU, Linear(2D,D), LN(1e-6)
            w1=nrm((D_ENC, 2 * D_ENC)), b1=zeros((2 * D_ENC,)),
            ln1_g=ones((2 * D_ENC,)), ln1_b=zeros((2 * D_ENC,)),
            w2=nrm((2 * D_ENC, D_ENC)), b2=zeros((D_ENC,)),
            ln2_g=ones((D_ENC,)), ln2_b=zeros((D_ENC,)),
        ),
        linear_norm=dict(                                    # Linear(D, d_emb), LayerNorm(d_emb) (eps 1e-5)
            w=nrm((D_ENC, D_DEC)), b=zeros((D_DEC,)),
            g=ones((D_DEC,)), bb=zeros((D_DEC,)),
        ),
    )
    return params


# ----------------------------- model forward -----------------------------
def mim_rec_forward(params, x, mask, tgt, tgt_lens, *, num_mim_samples):
    del tgt_lens  # TODO(synk): tgt_lens masking of decoder cross-attention omitted.
    Bn = x.shape[0]

    # im2col over non-overlapping PATCH x PATCH windows (NCHW input); token
    # order matches conv(x).flatten(2).transpose(1, 2).  Layout plumbing in XLA.
    xp = x.reshape(Bn, C_IN, HP, PATCH, WP, PATCH)
    xp = jnp.transpose(xp, (0, 2, 4, 1, 3, 5)).reshape(Bn * N_TOK, PATCH_DIM)
    mask_flat = mask.reshape(Bn * N_TOK, 1).astype(DTYPE)

    # decoder queries: token-embedding gather + learned query positions.
    rd = params["rec_decoder"]
    q_in = jnp.take(rd["tok_embed"], tgt, axis=0) + rd["query_pos"][None]
    q_in = q_in.reshape(Bn * T_MAX, D_DEC).astype(DTYPE)

    flat_inputs = [xp.astype(DTYPE), mask_flat, q_in] + _prep_weights(params, Bn)

    pix_flat, rec_flat, attn_flat = pl.pallas_call(
        functools.partial(_fused_kernel, batch=Bn,
                          mim_rows=num_mim_samples * N_TOK),
        out_shape=(
            jax.ShapeDtypeStruct((Bn * N_TOK, PIX_OUT), DTYPE),
            jax.ShapeDtypeStruct((Bn * T_MAX, N_CLASSES), DTYPE),
            jax.ShapeDtypeStruct((Bn * T_MAX, N_TOK), DTYPE),
        ),
    )(*flat_inputs)

    out_dict = {
        "pix_pred": pix_flat.reshape(Bn, N_TOK, PIX_OUT),
        "rec_pred": rec_flat.reshape(Bn, T_MAX, N_CLASSES),
    }
    dec_attn_maps = attn_flat.reshape(Bn, T_MAX, N_TOK)
    return out_dict, dec_attn_maps


# ----------------------------- main -----------------------------
if __name__ == "__main__":
    params = init_params(seed=42)

    key = jax.random.PRNGKey(0)
    kx, km, kt, kl = jax.random.split(key, 4)
    x = jax.random.normal(kx, (B, C_IN, IMG_H, IMG_W), dtype=DTYPE)       # NCHW
    mask = jax.random.bernoulli(km, 0.4, (B, N_TOK)).astype(DTYPE)        # per-patch mask
    tgt = jax.random.randint(kt, (B, T_MAX), 0, N_CLASSES, dtype=jnp.int32)
    tgt_lens = jax.random.randint(kl, (B,), 1, T_MAX + 1, dtype=jnp.int32)

    fwd = jax.jit(functools.partial(mim_rec_forward, params,
                                    num_mim_samples=NUM_MIM_SAMPLES))
    out_dict, attn = fwd(x, mask, tgt, tgt_lens)
    jax.block_until_ready(out_dict)
    jax.block_until_ready(attn)

    assert out_dict["pix_pred"].shape == (B, N_TOK, PIX_OUT)
    assert out_dict["rec_pred"].shape == (B, T_MAX, N_CLASSES)
    assert attn.shape == (B, T_MAX, N_TOK)
    assert bool(jnp.all(jnp.isfinite(out_dict["pix_pred"])))
    assert bool(jnp.all(jnp.isfinite(out_dict["rec_pred"])))
    assert bool(jnp.all(jnp.isfinite(attn)))
    print("KERNEL_OK")
</pallas_src>

<mosaic_0001>
module attributes {stable_mosaic.version = 11 : i64} {
  func.func @_fused_kernel(%arg0: memref<32x48xf32, #tpu.memory_space<vmem>>, %arg1: memref<32x1xf32, #tpu.memory_space<vmem>>, %arg2: memref<16x32xf32, #tpu.memory_space<vmem>>, %arg3: memref<48x32xf32, #tpu.memory_space<vmem>>, %arg4: memref<1x32xf32, #tpu.memory_space<vmem>>, %arg5: memref<32x32xf32, #tpu.memory_space<vmem>>, %arg6: memref<1x32xf32, #tpu.memory_space<vmem>>, %arg7: memref<1x32xf32, #tpu.memory_space<vmem>>, %arg8: memref<1x32xf32, #tpu.memory_space<vmem>>, %arg9: memref<4x32x8xf32, #tpu.memory_space<vmem>>, %arg10: memref<4x32x8xf32, #tpu.memory_space<vmem>>, %arg11: memref<4x32x8xf32, #tpu.memory_space<vmem>>, %arg12: memref<4x1x8xf32, #tpu.memory_space<vmem>>, %arg13: memref<4x1x8xf32, #tpu.memory_space<vmem>>, %arg14: memref<4x1x8xf32, #tpu.memory_space<vmem>>, %arg15: memref<4x8x32xf32, #tpu.memory_space<vmem>>, %arg16: memref<1x32xf32, #tpu.memory_space<vmem>>, %arg17: memref<1x32xf32, #tpu.memory_space<vmem>>, %arg18: memref<1x32xf32, #tpu.memory_space<vmem>>, %arg19: memref<32x128xf32, #tpu.memory_space<vmem>>, %arg20: memref<1x128xf32, #tpu.memory_space<vmem>>, %arg21: memref<128x32xf32, #tpu.memory_space<vmem>>, %arg22: memref<1x32xf32, #tpu.memory_space<vmem>>, %arg23: memref<1x32xf32, #tpu.memory_space<vmem>>, %arg24: memref<1x32xf32, #tpu.memory_space<vmem>>, %arg25: memref<4x32x8xf32, #tpu.memory_space<vmem>>, %arg26: memref<4x32x8xf32, #tpu.memory_space<vmem>>, %arg27: memref<4x32x8xf32, #tpu.memory_space<vmem>>, %arg28: memref<4x1x8xf32, #tpu.memory_space<vmem>>, %arg29: memref<4x1x8xf32, #tpu.memory_space<vmem>>, %arg30: memref<4x1x8xf32, #tpu.memory_space<vmem>>, %arg31: memref<4x8x32xf32, #tpu.memory_space<vmem>>, %arg32: memref<1x32xf32, #tpu.memory_space<vmem>>, %arg33: memref<1x32xf32, #tpu.memory_space<vmem>>, %arg34: memref<1x32xf32, #tpu.memory_space<vmem>>, %arg35: memref<32x128xf32, #tpu.memory_space<vmem>>, %arg36: memref<1x128xf32, #tpu.memory_space<vmem>>, %arg37: memref<128x32xf32, #tpu.memory_space<vmem>>, %arg38: memref<1x32xf32, #tpu.memory_space<vmem>>, %arg39: memref<1x32xf32, #tpu.memory_space<vmem>>, %arg40: memref<1x32xf32, #tpu.memory_space<vmem>>, %arg41: memref<32x64xf32, #tpu.memory_space<vmem>>, %arg42: memref<1x64xf32, #tpu.memory_space<vmem>>, %arg43: memref<1x64xf32, #tpu.memory_space<vmem>>, %arg44: memref<1x64xf32, #tpu.memory_space<vmem>>, %arg45: memref<64x32xf32, #tpu.memory_space<vmem>>, %arg46: memref<1x32xf32, #tpu.memory_space<vmem>>, %arg47: memref<1x32xf32, #tpu.memory_space<vmem>>, %arg48: memref<1x32xf32, #tpu.memory_space<vmem>>, %arg49: memref<32x192xf32, #tpu.memory_space<vmem>>, %arg50: memref<192x192xf32, #tpu.memory_space<vmem>>, %arg51: memref<1x192xf32, #tpu.memory_space<vmem>>, %arg52: memref<1x192xf32, #tpu.memory_space<vmem>>, %arg53: memref<192x48xf32, #tpu.memory_space<vmem>>, %arg54: memref<1x48xf32, #tpu.memory_space<vmem>>, %arg55: memref<32x32xf32, #tpu.memory_space<vmem>>, %arg56: memref<1x32xf32, #tpu.memory_space<vmem>>, %arg57: memref<1x32xf32, #tpu.memory_space<vmem>>, %arg58: memref<1x32xf32, #tpu.memory_space<vmem>>, %arg59: memref<32x32xf32, #tpu.memory_space<vmem>>, %arg60: memref<32x32xf32, #tpu.memory_space<vmem>>, %arg61: memref<32x32xf32, #tpu.memory_space<vmem>>, %arg62: memref<32x32xf32, #tpu.memory_space<vmem>>, %arg63: memref<1x32xf32, #tpu.memory_space<vmem>>, %arg64: memref<1x32xf32, #tpu.memory_space<vmem>>, %arg65: memref<32x10xf32, #tpu.memory_space<vmem>>, %arg66: memref<1x10xf32, #tpu.memory_space<vmem>>, %arg67: memref<32x48xf32, #tpu.memory_space<vmem>>, %arg68: memref<16x10xf32, #tpu.memory_space<vmem>>, %arg69: memref<16x16xf32, #tpu.memory_space<vmem>>) attributes {dimension_semantics = [], scalar_prefetch = 0 : i64, scratch_operands = 0 : i64, tpu.core_type = #tpu.core_type<tc>} {
    %c0 = arith.constant 0 : index
    %c0_0 = arith.constant 0 : index
    %0 = vector.load %arg0[%c0, %c0_0] : memref<32x48xf32, #tpu.memory_space<vmem>>, vector<32x48xf32>
    %c0_1 = arith.constant 0 : index
    %c0_2 = arith.constant 0 : index
    %1 = vector.load %arg3[%c0_1, %c0_2] : memref<48x32xf32, #tpu.memory_space<vmem>>, vector<48x32xf32>
    %cst = arith.constant dense<0.000000e+00> : vector<32x32xf32>
    %2 = tpu.matmul %0, %1, %cst {dimension_numbers = #tpu.dot_dimension_numbers<[1], [0], [0], [1], [0, 0, 1, 1], [], []>} : vector<32x48xf32>, vector<48x32xf32>, vector<32x32xf32> -> vector<32x32xf32>
    %c0_3 = arith.constant 0 : index
    %c0_4 = arith.constant 0 : index
    %3 = vector.load %arg4[%c0_3, %c0_4] : memref<1x32xf32, #tpu.memory_space<vmem>>, vector<1x32xf32>
    %4 = vector.broadcast %3 : vector<1x32xf32> to vector<32x32xf32>
    %5 = arith.addf %2, %4 : vector<32x32xf32>
    %c0_5 = arith.constant 0 : index
    %c0_6 = arith.constant 0 : index
    %6 = vector.load %arg1[%c0_5, %c0_6] : memref<32x1xf32, #tpu.memory_space<vmem>>, vector<32x1xf32>
    %cst_7 = arith.constant 1.000000e+00 : f32
    %7 = vector.broadcast %cst_7 : f32 to vector<32x1xf32>
    %8 = arith.subf %7, %6 : vector<32x1xf32>
    %9 = vector.broadcast %8 : vector<32x1xf32> to vector<32x32xf32>
    %10 = arith.mulf %5, %9 : vector<32x32xf32>
    %c0_8 = arith.constant 0 : index
    %c0_9 = arith.constant 0 : index
    %11 = vector.load %arg6[%c0_8, %c0_9] : memref<1x32xf32, #tpu.memory_space<vmem>>, vector<1x32xf32>
    %12 = vector.broadcast %11 : vector<1x32xf32> to vector<32x32xf32>
    %13 = vector.broadcast %6 : vector<32x1xf32> to vector<32x32xf32>
    %14 = arith.mulf %12, %13 : vector<32x32xf32>
    %15 = arith.addf %10, %14 : vector<32x32xf32>
    %c0_10 = arith.constant 0 : index
    %c0_11 = arith.constant 0 : index
    %16 = vector.load %arg5[%c0_10, %c0_11] : memref<32x32xf32, #tpu.memory_space<vmem>>, vector<32x32xf32>
    %17 = arith.addf %15, %16 : vector<32x32xf32>
    %c0_12 = arith.constant 0 : index
    %c0_13 = arith.constant 0 : index
    %18 = vector.load %arg7[%c0_12, %c0_13] : memref<1x32xf32, #tpu.memory_space<vmem>>, vector<1x32xf32>
    %c0_14 = arith.constant 0 : index
    %c0_15 = arith.constant 0 : index
    %19 = vector.load %arg8[%c0_14, %c0_15] : memref<1x32xf32, #tpu.memory_space<vmem>>, vector<1x32xf32>
    %cst_16 = arith.constant dense<0.000000e+00> : vector<32xf32>
    %20 = vector.multi_reduction <add>, %17, %cst_16 [1] : vector<32x32xf32> to vector<32xf32>
    %21 = vector.shape_cast %20 : vector<32xf32> to vector<32x1xf32>
    %cst_17 = arith.constant 3.200000e+01 : f32
    %22 = vector.broadcast %cst_17 : f32 to vector<32x1xf32>
    %23 = arith.divf %21, %22 : vector<32x1xf32>
    %24 = vector.broadcast %23 : vector<32x1xf32> to vector<32x32xf32>
    %25 = arith.subf %17, %24 : vector<32x32xf32>
    %26 = arith.mulf %25, %25 : vector<32x32xf32>
    %cst_18 = arith.constant dense<0.000000e+00> : vector<32xf32>
    %27 = vector.multi_reduction <add>, %26, %cst_18 [1] : vector<32x32xf32> to vector<32xf32>
    %28 = vector.shape_cast %27 : vector<32xf32> to vector<32x1xf32>
    %cst_19 = arith.constant 3.200000e+01 : f32
    %29 = vector.broadcast %cst_19 : f32 to vector<32x1xf32>
    %30 = arith.divf %28, %29 : vector<32x1xf32>
    %cst_20 = arith.constant 9.99999997E-7 : f32
    %31 = vector.broadcast %cst_20 : f32 to vector<32x1xf32>
    %32 = arith.addf %30, %31 : vector<32x1xf32>
    %33 = math.rsqrt %32 : vector<32x1xf32>
    %34 = vector.broadcast %33 : vector<32x1xf32> to vector<32x32xf32>
    %35 = arith.mulf %25, %34 : vector<32x32xf32>
    %36 = vector.broadcast %18 : vector<1x32xf32> to vector<32x32xf32>
    %37 = arith.mulf %35, %36 : vector<32x32xf32>
    %38 = vector.broadcast %19 : vector<1x32xf32> to vector<32x32xf32>
    %39 = arith.addf %37, %38 : vector<32x32xf32>
    %c0_21 = arith.constant 0 : index
    %c0_22 = arith.constant 0 : index
    %c0_23 = arith.constant 0 : index
    %40 = vector.load %arg9[%c0_21, %c0_22, %c0_23] : memref<4x32x8xf32, #tpu.memory_space<vmem>>, vector<1x32x8xf32>
    %41 = vector.shape_cast %40 : vector<1x32x8xf32> to vector<32x8xf32>
    %cst_24 = arith.constant dense<0.000000e+00> : vector<32x8xf32>
    %42 = tpu.matmul %39, %41, %cst_24 {dimension_numbers = #tpu.dot_dimension_numbers<[1], [0], [0], [1], [0, 0, 1, 1], [], []>} : vector<32x32xf32>, vector<32x8xf32>, vector<32x8xf32> -> vector<32x8xf32>
    %c0_25 = arith.constant 0 : index
    %c0_26 = arith.constant 0 : index
    %c0_27 = arith.constant 0 : index
    %43 = vector.load %arg12[%c0_25, %c0_26, %c0_27] : memref<4x1x8xf32, #tpu.memory_space<vmem>>, vector<1x1x8xf32>
    %44 = vector.shape_cast %43 : vector<1x1x8xf32> to vector<1x8xf32>
    %45 = vector.broadcast %44 : vector<1x8xf32> to vector<32x8xf32>
    %46 = arith.addf %42, %45 : vector<32x8xf32>
    %c0_28 = arith.constant 0 : index
    %c0_29 = arith.constant 0 : index
    %c0_30 = arith.constant 0 : index
    %47 = vector.load %arg10[%c0_28, %c0_29, %c0_30] : memref<4x32x8xf32, #tpu.memory_space<vmem>>, vector<1x32x8xf32>
    %48 = vector.shape_cast %47 : vector<1x32x8xf32> to vector<32x8xf32>
    %cst_31 = arith.constant dense<0.000000e+00> : vector<32x8xf32>
    %49 = tpu.matmul %39, %48, %cst_31 {dimension_numbers = #tpu.dot_dimension_numbers<[1], [0], [0], [1], [0, 0, 1, 1], [], []>} : vector<32x32xf32>, vector<32x8xf32>, vector<32x8xf32> -> vector<32x8xf32>
    %c0_32 = arith.constant 0 : index
    %c0_33 = arith.constant 0 : index
    %c0_34 = arith.constant 0 : index
    %50 = vector.load %arg13[%c0_32, %c0_33, %c0_34] : memref<4x1x8xf32, #tpu.memory_space<vmem>>, vector<1x1x8xf32>
    %51 = vector.shape_cast %50 : vector<1x1x8xf32> to vector<1x8xf32>
    %52 = vector.broadcast %51 : vector<1x8xf32> to vector<32x8xf32>
    %53 = arith.addf %49, %52 : vector<32x8xf32>
    %c0_35 = arith.constant 0 : index
    %c0_36 = arith.constant 0 : index
    %c0_37 = arith.constant 0 : index
    %54 = vector.load %arg11[%c0_35, %c0_36, %c0_37] : memref<4x32x8xf32, #tpu.memory_space<vmem>>, vector<1x32x8xf32>
    %55 = vector.shape_cast %54 : vector<1x32x8xf32> to vector<32x8xf32>
    %cst_38 = arith.constant dense<0.000000e+00> : vector<32x8xf32>
    %56 = tpu.matmul %39, %55, %cst_38 {dimension_numbers = #tpu.dot_dimension_numbers<[1], [0], [0], [1], [0, 0, 1, 1], [], []>} : vector<32x32xf32>, vector<32x8xf32>, vector<32x8xf32> -> vector<32x8xf32>
    %c0_39 = arith.constant 0 : index
    %c0_40 = arith.constant 0 : index
    %c0_41 = arith.constant 0 : index
    %57 = vector.load %arg14[%c0_39, %c0_40, %c0_41] : memref<4x1x8xf32, #tpu.memory_space<vmem>>, vector<1x1x8xf32>
    %58 = vector.shape_cast %57 : vector<1x1x8xf32> to vector<1x8xf32>
    %59 = vector.broadcast %58 : vector<1x8xf32> to vector<32x8xf32>
    %60 = arith.addf %56, %59 : vector<32x8xf32>
    %61 = vector.extract_strided_slice %46 {offsets = [0, 0], sizes = [16, 8], strides = [1, 1]} : vector<32x8xf32> to vector<16x8xf32>
    %62 = vector.extract_strided_slice %53 {offsets = [0, 0], sizes = [16, 8], strides = [1, 1]} : vector<32x8xf32> to vector<16x8xf32>
    %63 = tpu.transpose %62, [1, 0] : vector<16x8xf32> -> vector<8x16xf32>
    %cst_42 = arith.constant dense<0.000000e+00> : vector<16x16xf32>
    %64 = tpu.matmul %61, %63, %cst_42 {dimension_numbers = #tpu.dot_dimension_numbers<[1], [0], [0], [1], [0, 0, 1, 1], [], []>} : vector<16x8xf32>, vector<8x16xf32>, vector<16x16xf32> -> vector<16x16xf32>
    %cst_43 = arith.constant 0.353553385 : f32
    %65 = vector.broadcast %cst_43 : f32 to vector<16x16xf32>
    %66 = arith.mulf %64, %65 : vector<16x16xf32>
    %cst_44 = arith.constant dense<0xFF800000> : vector<16xf32>
    %67 = vector.multi_reduction <maximumf>, %66, %cst_44 [1] : vector<16x16xf32> to vector<16xf32>
    %68 = vector.shape_cast %67 : vector<16xf32> to vector<16x1xf32>
    %69 = vector.broadcast %68 : vector<16x1xf32> to vector<16x16xf32>
    %70 = arith.subf %66, %69 : vector<16x16xf32>
    %71 = math.exp %70 : vector<16x16xf32>
    %cst_45 = arith.constant dense<0.000000e+00> : vector<16xf32>
    %72 = vector.multi_reduction <add>, %71, %cst_45 [1] : vector<16x16xf32> to vector<16xf32>
    %73 = vector.shape_cast %72 : vector<16xf32> to vector<16x1xf32>
    %74 = tpu.reciprocal %73 {approx = true} : vector<16x1xf32> -> vector<16x1xf32>
    %75 = vector.broadcast %74 : vector<16x1xf32> to vector<16x16xf32>
    %76 = arith.mulf %71, %75 : vector<16x16xf32>
    %77 = vector.extract_strided_slice %60 {offsets = [0, 0], sizes = [16, 8], strides = [1, 1]} : vector<32x8xf32> to vector<16x8xf32>
    %cst_46 = arith.constant dense<0.000000e+00> : vector<16x8xf32>
    %78 = tpu.matmul %76, %77, %cst_46 {dimension_numbers = #tpu.dot_dimension_numbers<[1], [0], [0], [1], [0, 0, 1, 1], [], []>} : vector<16x16xf32>, vector<16x8xf32>, vector<16x8xf32> -> vector<16x8xf32>
    %79 = vector.extract_strided_slice %46 {offsets = [16, 0], sizes = [16, 8], strides = [1, 1]} : vector<32x8xf32> to vector<16x8xf32>
    %80 = vector.extract_strided_slice %53 {offsets = [16, 0], sizes = [16, 8], strides = [1, 1]} : vector<32x8xf32> to vector<16x8xf32>
    %81 = tpu.transpose %80, [1, 0] : vector<16x8xf32> -> vector<8x16xf32>
    %cst_47 = arith.constant dense<0.000000e+00> : vector<16x16xf32>
    %82 = tpu.matmul %79, %81, %cst_47 {dimension_numbers = #tpu.dot_dimension_numbers<[1], [0], [0], [1], [0, 0, 1, 1], [], []>} : vector<16x8xf32>, vector<8x16xf32>, vector<16x16xf32> -> vector<16x16xf32>
    %cst_48 = arith.constant 0.353553385 : f32
    %83 = vector.broadcast %cst_48 : f32 to vector<16x16xf32>
    %84 = arith.mulf %82, %83 : vector<16x16xf32>
    %cst_49 = arith.constant dense<0xFF800000> : vector<16xf32>
    %85 = vector.multi_reduction <maximumf>, %84, %cst_49 [1] : vector<16x16xf32> to vector<16xf32>
    %86 = vector.shape_cast %85 : vector<16xf32> to vector<16x1xf32>
    %87 = vector.broadcast %86 : vector<16x1xf32> to vector<16x16xf32>
    %88 = arith.subf %84, %87 : vector<16x16xf32>
    %89 = math.exp %88 : vector<16x16xf32>
    %cst_50 = arith.constant dense<0.000000e+00> : vector<16xf32>
    %90 = vector.multi_reduction <add>, %89, %cst_50 [1] : vector<16x16xf32> to vector<16xf32>
    %91 = vector.shape_cast %90 : vector<16xf32> to vector<16x1xf32>
    %92 = tpu.reciprocal %91 {approx = true} : vector<16x1xf32> -> vector<16x1xf32>
    %93 = vector.broadcast %92 : vector<16x1xf32> to vector<16x16xf32>
    %94 = arith.mulf %89, %93 : vector<16x16xf32>
    %95 = vector.extract_strided_slice %60 {offsets = [16, 0], sizes = [16, 8], strides = [1, 1]} : vector<32x8xf32> to vector<16x8xf32>
    %cst_51 = arith.constant dense<0.000000e+00> : vector<16x8xf32>
    %96 = tpu.matmul %94, %95, %cst_51 {dimension_numbers = #tpu.dot_dimension_numbers<[1], [0], [0], [1], [0, 0, 1, 1], [], []>} : vector<16x16xf32>, vector<16x8xf32>, vector<16x8xf32> -> vector<16x8xf32>
    %97 = tpu.concatenate %78, %96 in 0 : vector<16x8xf32>, vector<16x8xf32> -> vector<32x8xf32>
    %c0_52 = arith.constant 0 : index
    %c0_53 = arith.constant 0 : index
    %c0_54 = arith.constant 0 : index
    %98 = vector.load %arg15[%c0_52, %c0_53, %c0_54] : memref<4x8x32xf32, #tpu.memory_space<vmem>>, vector<1x8x32xf32>
    %99 = vector.shape_cast %98 : vector<1x8x32xf32> to vector<8x32xf32>
    %cst_55 = arith.constant dense<0.000000e+00> : vector<32x32xf32>
    %100 = tpu.matmul %97, %99, %cst_55 {dimension_numbers = #tpu.dot_dimension_numbers<[1], [0], [0], [1], [0, 0, 1, 1], [], []>} : vector<32x8xf32>, vector<8x32xf32>, vector<32x32xf32> -> vector<32x32xf32>
    %c1 = arith.constant 1 : index
    %c0_56 = arith.constant 0 : index
    %c0_57 = arith.constant 0 : index
    %101 = vector.load %arg9[%c1, %c0_56, %c0_57] : memref<4x32x8xf32, #tpu.memory_space<vmem>>, vector<1x32x8xf32>
    %102 = vector.shape_cast %101 : vector<1x32x8xf32> to vector<32x8xf32>
    %cst_58 = arith.constant dense<0.000000e+00> : vector<32x8xf32>
    %103 = tpu.matmul %39, %102, %cst_58 {dimension_numbers = #tpu.dot_dimension_numbers<[1], [0], [0], [1], [0, 0, 1, 1], [], []>} : vector<32x32xf32>, vector<32x8xf32>, vector<32x8xf32> -> vector<32x8xf32>
    %c1_59 = arith.constant 1 : index
    %c0_60 = arith.constant 0 : index
    %c0_61 = arith.constant 0 : index
    %104 = vector.load %arg12[%c1_59, %c0_60, %c0_61] : memref<4x1x8xf32, #tpu.memory_space<vmem>>, vector<1x1x8xf32>
    %105 = vector.shape_cast %104 : vector<1x1x8xf32> to vector<1x8xf32>
    %106 = vector.broadcast %105 : vector<1x8xf32> to vector<32x8xf32>
    %107 = arith.addf %103, %106 : vector<32x8xf32>
    %c1_62 = arith.constant 1 : index
    %c0_63 = arith.constant 0 : index
    %c0_64 = arith.constant 0 : index
    %108 = vector.load %arg10[%c1_62, %c0_63, %c0_64] : memref<4x32x8xf32, #tpu.memory_space<vmem>>, vector<1x32x8xf32>
    %109 = vector.shape_cast %108 : vector<1x32x8xf32> to vector<32x8xf32>
    %cst_65 = arith.constant dense<0.000000e+00> : vector<32x8xf32>
    %110 = tpu.matmul %39, %109, %cst_65 {dimension_numbers = #tpu.dot_dimension_numbers<[1], [0], [0], [1], [0, 0, 1, 1], [], []>} : vector<32x32xf32>, vector<32x8xf32>, vector<32x8xf32> -> vector<32x8xf32>
    %c1_66 = arith.constant 1 : index
    %c0_67 = arith.constant 0 : index
    %c0_68 = arith.constant 0 : index
    %111 = vector.load %arg13[%c1_66, %c0_67, %c0_68] : memref<4x1x8xf32, #tpu.memory_space<vmem>>, vector<1x1x8xf32>
    %112 = vector.shape_cast %111 : vector<1x1x8xf32> to vector<1x8xf32>
    %113 = vector.broadcast %112 : vector<1x8xf32> to vector<32x8xf32>
    %114 = arith.addf %110, %113 : vector<32x8xf32>
    %c1_69 = arith.constant 1 : index
    %c0_70 = arith.constant 0 : index
    %c0_71 = arith.constant 0 : index
    %115 = vector.load %arg11[%c1_69, %c0_70, %c0_71] : memref<4x32x8xf32, #tpu.memory_space<vmem>>, vector<1x32x8xf32>
    %116 = vector.shape_cast %115 : vector<1x32x8xf32> to vector<32x8xf32>
    %cst_72 = arith.constant dense<0.000000e+00> : vector<32x8xf32>
    %117 = tpu.matmul %39, %116, %cst_72 {dimension_numbers = #tpu.dot_dimension_numbers<[1], [0], [0], [1], [0, 0, 1, 1], [], []>} : vector<32x32xf32>, vector<32x8xf32>, vector<32x8xf32> -> vector<32x8xf32>
    %c1_73 = arith.constant 1 : index
    %c0_74 = arith.constant 0 : index
    %c0_75 = arith.constant 0 : index
    %118 = vector.load %arg14[%c1_73, %c0_74, %c0_75] : memref<4x1x8xf32, #tpu.memory_space<vmem>>, vector<1x1x8xf32>
    %119 = vector.shape_cast %118 : vector<1x1x8xf32> to vector<1x8xf32>
    %120 = vector.broadcast %119 : vector<1x8xf32> to vector<32x8xf32>
    %121 = arith.addf %117, %120 : vector<32x8xf32>
    %122 = vector.extract_strided_slice %107 {offsets = [0, 0], sizes = [16, 8], strides = [1, 1]} : vector<32x8xf32> to vector<16x8xf32>
    %123 = vector.extract_strided_slice %114 {offsets = [0, 0], sizes = [16, 8], strides = [1, 1]} : vector<32x8xf32> to vector<16x8xf32>
    %124 = tpu.transpose %123, [1, 0] : vector<16x8xf32> -> vector<8x16xf32>
    %cst_76 = arith.constant dense<0.000000e+00> : vector<16x16xf32>
    %125 = tpu.matmul %122, %124, %cst_76 {dimension_numbers = #tpu.dot_dimension_numbers<[1], [0], [0], [1], [0, 0, 1, 1], [], []>} : vector<16x8xf32>, vector<8x16xf32>, vector<16x16xf32> -> vector<16x16xf32>
    %cst_77 = arith.constant 0.353553385 : f32
    %126 = vector.broadcast %cst_77 : f32 to vector<16x16xf32>
    %127 = arith.mulf %125, %126 : vector<16x16xf32>
    %cst_78 = arith.constant dense<0xFF800000> : vector<16xf32>
    %128 = vector.multi_reduction <maximumf>, %127, %cst_78 [1] : vector<16x16xf32> to vector<16xf32>
    %129 = vector.shape_cast %128 : vector<16xf32> to vector<16x1xf32>
    %130 = vector.broadcast %129 : vector<16x1xf32> to vector<16x16xf32>
    %131 = arith.subf %127, %130 : vector<16x16xf32>
    %132 = math.exp %131 : vector<16x16xf32>
    %cst_79 = arith.constant dense<0.000000e+00> : vector<16xf32>
    %133 = vector.multi_reduction <add>, %132, %cst_79 [1] : vector<16x16xf32> to vector<16xf32>
    %134 = vector.shape_cast %133 : vector<16xf32> to vector<16x1xf32>
    %135 = tpu.reciprocal %134 {approx = true} : vector<16x1xf32> -> vector<16x1xf32>
    %136 = vector.broadcast %135 : vector<16x1xf32> to vector<16x16xf32>
    %137 = arith.mulf %132, %136 : vector<16x16xf32>
    %138 = vector.extract_strided_slice %121 {offsets = [0, 0], sizes = [16, 8], strides = [1, 1]} : vector<32x8xf32> to vector<16x8xf32>
    %cst_80 = arith.constant dense<0.000000e+00> : vector<16x8xf32>
    %139 = tpu.matmul %137, %138, %cst_80 {dimension_numbers = #tpu.dot_dimension_numbers<[1], [0], [0], [1], [0, 0, 1, 1], [], []>} : vector<16x16xf32>, vector<16x8xf32>, vector<16x8xf32> -> vector<16x8xf32>
    %140 = vector.extract_strided_slice %107 {offsets = [16, 0], sizes = [16, 8], strides = [1, 1]} : vector<32x8xf32> to vector<16x8xf32>
    %141 = vector.extract_strided_slice %114 {offsets = [16, 0], sizes = [16, 8], strides = [1, 1]} : vector<32x8xf32> to vector<16x8xf32>
    %142 = tpu.transpose %141, [1, 0] : vector<16x8xf32> -> vector<8x16xf32>
    %cst_81 = arith.constant dense<0.000000e+00> : vector<16x16xf32>
    %143 = tpu.matmul %140, %142, %cst_81 {dimension_numbers = #tpu.dot_dimension_numbers<[1], [0], [0], [1], [0, 0, 1, 1], [], []>} : vector<16x8xf32>, vector<8x16xf32>, vector<16x16xf32> -> vector<16x16xf32>
    %cst_82 = arith.constant 0.353553385 : f32
    %144 = vector.broadcast %cst_82 : f32 to vector<16x16xf32>
    %145 = arith.mulf %143, %144 : vector<16x16xf32>
    %cst_83 = arith.constant dense<0xFF800000> : vector<16xf32>
    %146 = vector.multi_reduction <maximumf>, %145, %cst_83 [1] : vector<16x16xf32> to vector<16xf32>
    %147 = vector.shape_cast %146 : vector<16xf32> to vector<16x1xf32>
    %148 = vector.broadcast %147 : vector<16x1xf32> to vector<16x16xf32>
    %149 = arith.subf %145, %148 : vector<16x16xf32>
    %150 = math.exp %149 : vector<16x16xf32>
    %cst_84 = arith.constant dense<0.000000e+00> : vector<16xf32>
    %151 = vector.multi_reduction <add>, %150, %cst_84 [1] : vector<16x16xf32> to vector<16xf32>
    %152 = vector.shape_cast %151 : vector<16xf32> to vector<16x1xf32>
    %153 = tpu.reciprocal %152 {approx = true} : vector<16x1xf32> -> vector<16x1xf32>
    %154 = vector.broadcast %153 : vector<16x1xf32> to vector<16x16xf32>
    %155 = arith.mulf %150, %154 : vector<16x16xf32>
    %156 = vector.extract_strided_slice %121 {offsets = [16, 0], sizes = [16, 8], strides = [1, 1]} : vector<32x8xf32> to vector<16x8xf32>
    %cst_85 = arith.constant dense<0.000000e+00> : vector<16x8xf32>
    %157 = tpu.matmul %155, %156, %cst_85 {dimension_numbers = #tpu.dot_dimension_numbers<[1], [0], [0], [1], [0, 0, 1, 1], [], []>} : vector<16x16xf32>, vector<16x8xf32>, vector<16x8xf32> -> vector<16x8xf32>
    %158 = tpu.concatenate %139, %157 in 0 : vector<16x8xf32>, vector<16x8xf32> -> vector<32x8xf32>
    %c1_86 = arith.constant 1 : index
    %c0_87 = arith.constant 0 : index
    %c0_88 = arith.constant 0 : index
    %159 = vector.load %arg15[%c1_86, %c0_87, %c0_88] : memref<4x8x32xf32, #tpu.memory_space<vmem>>, vector<1x8x32xf32>
    %160 = vector.shape_cast %159 : vector<1x8x32xf32> to vector<8x32xf32>
    %cst_89 = arith.constant dense<0.000000e+00> : vector<32x32xf32>
    %161 = tpu.matmul %158, %160, %cst_89 {dimension_numbers = #tpu.dot_dimension_numbers<[1], [0], [0], [1], [0, 0, 1, 1], [], []>} : vector<32x8xf32>, vector<8x32xf32>, vector<32x32xf32> -> vector<32x32xf32>
    %162 = arith.addf %100, %161 : vector<32x32xf32>
    %c2 = arith.constant 2 : index
    %c0_90 = arith.constant 0 : index
    %c0_91 = arith.constant 0 : index
    %163 = vector.load %arg9[%c2, %c0_90, %c0_91] : memref<4x32x8xf32, #tpu.memory_space<vmem>>, vector<1x32x8xf32>
    %164 = vector.shape_cast %163 : vector<1x32x8xf32> to vector<32x8xf32>
    %cst_92 = arith.constant dense<0.000000e+00> : vector<32x8xf32>
    %165 = tpu.matmul %39, %164, %cst_92 {dimension_numbers = #tpu.dot_dimension_numbers<[1], [0], [0], [1], [0, 0, 1, 1], [], []>} : vector<32x32xf32>, vector<32x8xf32>, vector<32x8xf32> -> vector<32x8xf32>
    %c2_93 = arith.constant 2 : index
    %c0_94 = arith.constant 0 : index
    %c0_95 = arith.constant 0 : index
    %166 = vector.load %arg12[%c2_93, %c0_94, %c0_95] : memref<4x1x8xf32, #tpu.memory_space<vmem>>, vector<1x1x8xf32>
    %167 = vector.shape_cast %166 : vector<1x1x8xf32> to vector<1x8xf32>
    %168 = vector.broadcast %167 : vector<1x8xf32> to vector<32x8xf32>
    %169 = arith.addf %165, %168 : vector<32x8xf32>
    %c2_96 = arith.constant 2 : index
    %c0_97 = arith.constant 0 : index
    %c0_98 = arith.constant 0 : index
    %170 = vector.load %arg10[%c2_96, %c0_97, %c0_98] : memref<4x32x8xf32, #tpu.memory_space<vmem>>, vector<1x32x8xf32>
    %171 = vector.shape_cast %170 : vector<1x32x8xf32> to vector<32x8xf32>
    %cst_99 = arith.constant dense<0.000000e+00> : vector<32x8xf32>
    %172 = tpu.matmul %39, %171, %cst_99 {dimension_numbers = #tpu.dot_dimension_numbers<[1], [0], [0], [1], [0, 0, 1, 1], [], []>} : vector<32x32xf32>, vector<32x8xf32>, vector<32x8xf32> -> vector<32x8xf32>
    %c2_100 = arith.constant 2 : index
    %c0_101 = arith.constant 0 : index
    %c0_102 = arith.constant 0 : index
    %173 = vector.load %arg13[%c2_100, %c0_101, %c0_102] : memref<4x1x8xf32, #tpu.memory_space<vmem>>, vector<1x1x8xf32>
    %174 = vector.shape_cast %173 : vector<1x1x8xf32> to vector<1x8xf32>
    %175 = vector.broadcast %174 : vector<1x8xf32> to vector<32x8xf32>
    %176 = arith.addf %172, %175 : vector<32x8xf32>
    %c2_103 = arith.constant 2 : index
    %c0_104 = arith.constant 0 : index
    %c0_105 = arith.constant 0 : index
    %177 = vector.load %arg11[%c2_103, %c0_104, %c0_105] : memref<4x32x8xf32, #tpu.memory_space<vmem>>, vector<1x32x8xf32>
    %178 = vector.shape_cast %177 : vector<1x32x8xf32> to vector<32x8xf32>
    %cst_106 = arith.constant dense<0.000000e+00> : vector<32x8xf32>
    %179 = tpu.matmul %39, %178, %cst_106 {dimension_numbers = #tpu.dot_dimension_numbers<[1], [0], [0], [1], [0, 0, 1, 1], [], []>} : vector<32x32xf32>, vector<32x8xf32>, vector<32x8xf32> -> vector<32x8xf32>
    %c2_107 = arith.constant 2 : index
    %c0_108 = arith.constant 0 : index
    %c0_109 = arith.constant 0 : index
    %180 = vector.load %arg14[%c2_107, %c0_108, %c0_109] : memref<4x1x8xf32, #tpu.memory_space<vmem>>, vector<1x1x8xf32>
    %181 = vector.shape_cast %180 : vector<1x1x8xf32> to vector<1x8xf32>
    %182 = vector.broadcast %181 : vector<1x8xf32> to vector<32x8xf32>
    %183 = arith.addf %179, %182 : vector<32x8xf32>
    %184 = vector.extract_strided_slice %169 {offsets = [0, 0], sizes = [16, 8], strides = [1, 1]} : vector<32x8xf32> to vector<16x8xf32>
    %185 = vector.extract_strided_slice %176 {offsets = [0, 0], sizes = [16, 8], strides = [1, 1]} : vector<32x8xf32> to vector<16x8xf32>
    %186 = tpu.transpose %185, [1, 0] : vector<16x8xf32> -> vector<8x16xf32>
    %cst_110 = arith.constant dense<0.000000e+00> : vector<16x16xf32>
    %187 = tpu.matmul %184, %186, %cst_110 {dimension_numbers = #tpu.dot_dimension_numbers<[1], [0], [0], [1], [0, 0, 1, 1], [], []>} : vector<16x8xf32>, vector<8x16xf32>, vector<16x16xf32> -> vector<16x16xf32>
    %cst_111 = arith.constant 0.353553385 : f32
    %188 = vector.broadcast %cst_111 : f32 to vector<16x16xf32>
    %189 = arith.mulf %187, %188 : vector<16x16xf32>
    %cst_112 = arith.constant dense<0xFF800000> : vector<16xf32>
    %190 = vector.multi_reduction <maximumf>, %189, %cst_112 [1] : vector<16x16xf32> to vector<16xf32>
    %191 = vector.shape_cast %190 : vector<16xf32> to vector<16x1xf32>
    %192 = vector.broadcast %191 : vector<16x1xf32> to vector<16x16xf32>
    %193 = arith.subf %189, %192 : vector<16x16xf32>
    %194 = math.exp %193 : vector<16x16xf32>
    %cst_113 = arith.constant dense<0.000000e+00> : vector<16xf32>
    %195 = vector.multi_reduction <add>, %194, %cst_113 [1] : vector<16x16xf32> to vector<16xf32>
    %196 = vector.shape_cast %195 : vector<16xf32> to vector<16x1xf32>
    %197 = tpu.reciprocal %196 {approx = true} : vector<16x1xf32> -> vector<16x1xf32>
    %198 = vector.broadcast %197 : vector<16x1xf32> to vector<16x16xf32>
    %199 = arith.mulf %194, %198 : vector<16x16xf32>
    %200 = vector.extract_strided_slice %183 {offsets = [0, 0], sizes = [16, 8], strides = [1, 1]} : vector<32x8xf32> to vector<16x8xf32>
    %cst_114 = arith.constant dense<0.000000e+00> : vector<16x8xf32>
    %201 = tpu.matmul %199, %200, %cst_114 {dimension_numbers = #tpu.dot_dimension_numbers<[1], [0], [0], [1], [0, 0, 1, 1], [], []>} : vector<16x16xf32>, vector<16x8xf32>, vector<16x8xf32> -> vector<16x8xf32>
    %202 = vector.extract_strided_slice %169 {offsets = [16, 0], sizes = [16, 8], strides = [1, 1]} : vector<32x8xf32> to vector<16x8xf32>
    %203 = vector.extract_strided_slice %176 {offsets = [16, 0], sizes = [16, 8], strides = [1, 1]} : vector<32x8xf32> to vector<16x8xf32>
    %204 = tpu.transpose %203, [1, 0] : vector<16x8xf32> -> vector<8x16xf32>
    %cst_115 = arith.constant dense<0.000000e+00> : vector<16x16xf32>
    %205 = tpu.matmul %202, %204, %cst_115 {dimension_numbers = #tpu.dot_dimension_numbers<[1], [0], [0], [1], [0, 0, 1, 1], [], []>} : vector<16x8xf32>, vector<8x16xf32>, vector<16x16xf32> -> vector<16x16xf32>
    %cst_116 = arith.constant 0.353553385 : f32
    %206 = vector.broadcast %cst_116 : f32 to vector<16x16xf32>
    %207 = arith.mulf %205, %206 : vector<16x16xf32>
    %cst_117 = arith.constant dense<0xFF800000> : vector<16xf32>
    %208 = vector.multi_reduction <maximumf>, %207, %cst_117 [1] : vector<16x16xf32> to vector<16xf32>
    %209 = vector.shape_cast %208 : vector<16xf32> to vector<16x1xf32>
    %210 = vector.broadcast %209 : vector<16x1xf32> to vector<16x16xf32>
    %211 = arith.subf %207, %210 : vector<16x16xf32>
    %212 = math.exp %211 : vector<16x16xf32>
    %cst_118 = arith.constant dense<0.000000e+00> : vector<16xf32>
    %213 = vector.multi_reduction <add>, %212, %cst_118 [1] : vector<16x16xf32> to vector<16xf32>
    %214 = vector.shape_cast %213 : vector<16xf32> to vector<16x1xf32>
    %215 = tpu.reciprocal %214 {approx = true} : vector<16x1xf32> -> vector<16x1xf32>
    %216 = vector.broadcast %215 : vector<16x1xf32> to vector<16x16xf32>
    %217 = arith.mulf %212, %216 : vector<16x16xf32>
    %218 = vector.extract_strided_slice %183 {offsets = [16, 0], sizes = [16, 8], strides = [1, 1]} : vector<32x8xf32> to vector<16x8xf32>
    %cst_119 = arith.constant dense<0.000000e+00> : vector<16x8xf32>
    %219 = tpu.matmul %217, %218, %cst_119 {dimension_numbers = #tpu.dot_dimension_numbers<[1], [0], [0], [1], [0, 0, 1, 1], [], []>} : vector<16x16xf32>, vector<16x8xf32>, vector<16x8xf32> -> vector<16x8xf32>
    %220 = tpu.concatenate %201, %219 in 0 : vector<16x8xf32>, vector<16x8xf32> -> vector<32x8xf32>
    %c2_120 = arith.constant 2 : index
    %c0_121 = arith.constant 0 : index
    %c0_122 = arith.constant 0 : index
    %221 = vector.load %arg15[%c2_120, %c0_121, %c0_122] : memref<4x8x32xf32, #tpu.memory_space<vmem>>, vector<1x8x32xf32>
    %222 = vector.shape_cast %221 : vector<1x8x32xf32> to vector<8x32xf32>
    %cst_123 = arith.constant dense<0.000000e+00> : vector<32x32xf32>
    %223 = tpu.matmul %220, %222, %cst_123 {dimension_numbers = #tpu.dot_dimension_numbers<[1], [0], [0], [1], [0, 0, 1, 1], [], []>} : vector<32x8xf32>, vector<8x32xf32>, vector<32x32xf32> -> vector<32x32xf32>
    %224 = arith.addf %162, %223 : vector<32x32xf32>
    %c3 = arith.constant 3 : index
    %c0_124 = arith.constant 0 : index
    %c0_125 = arith.constant 0 : index
    %225 = vector.load %arg9[%c3, %c0_124, %c0_125] : memref<4x32x8xf32, #tpu.memory_space<vmem>>, vector<1x32x8xf32>
    %226 = vector.shape_cast %225 : vector<1x32x8xf32> to vector<32x8xf32>
    %cst_126 = arith.constant dense<0.000000e+00> : vector<32x8xf32>
    %227 = tpu.matmul %39, %226, %cst_126 {dimension_numbers = #tpu.dot_dimension_numbers<[1], [0], [0], [1], [0, 0, 1, 1], [], []>} : vector<32x32xf32>, vector<32x8xf32>, vector<32x8xf32> -> vector<32x8xf32>
    %c3_127 = arith.constant 3 : index
    %c0_128 = arith.constant 0 : index
    %c0_129 = arith.constant 0 : index
    %228 = vector.load %arg12[%c3_127, %c0_128, %c0_129] : memref<4x1x8xf32, #tpu.memory_space<vmem>>, vector<1x1x8xf32>
    %229 = vector.shape_cast %228 : vector<1x1x8xf32> to vector<1x8xf32>
    %230 = vector.broadcast %229 : vector<1x8xf32> to vector<32x8xf32>
    %231 = arith.addf %227, %230 : vector<32x8xf32>
    %c3_130 = arith.constant 3 : index
    %c0_131 = arith.constant 0 : index
    %c0_132 = arith.constant 0 : index
    %232 = vector.load %arg10[%c3_130, %c0_131, %c0_132] : memref<4x32x8xf32, #tpu.memory_space<vmem>>, vector<1x32x8xf32>
    %233 = vector.shape_cast %232 : vector<1x32x8xf32> to vector<32x8xf32>
    %cst_133 = arith.constant dense<0.000000e+00> : vector<32x8xf32>
    %234 = tpu.matmul %39, %233, %cst_133 {dimension_numbers = #tpu.dot_dimension_numbers<[1], [0], [0], [1], [0, 0, 1, 1], [], []>} : vector<32x32xf32>, vector<32x8xf32>, vector<32x8xf32> -> vector<32x8xf32>
    %c3_134 = arith.constant 3 : index
    %c0_135 = arith.constant 0 : index
    %c0_136 = arith.constant 0 : index
    %235 = vector.load %arg13[%c3_134, %c0_135, %c0_136] : memref<4x1x8xf32, #tpu.memory_space<vmem>>, vector<1x1x8xf32>
    %236 = vector.shape_cast %235 : vector<1x1x8xf32> to vector<1x8xf32>
    %237 = vector.broadcast %236 : vector<1x8xf32> to vector<32x8xf32>
    %238 = arith.addf %234, %237 : vector<32x8xf32>
    %c3_137 = arith.constant 3 : index
    %c0_138 = arith.constant 0 : index
    %c0_139 = arith.constant 0 : index
    %239 = vector.load %arg11[%c3_137, %c0_138, %c0_139] : memref<4x32x8xf32, #tpu.memory_space<vmem>>, vector<1x32x8xf32>
    %240 = vector.shape_cast %239 : vector<1x32x8xf32> to vector<32x8xf32>
    %cst_140 = arith.constant dense<0.000000e+00> : vector<32x8xf32>
    %241 = tpu.matmul %39, %240, %cst_140 {dimension_numbers = #tpu.dot_dimension_numbers<[1], [0], [0], [1], [0, 0, 1, 1], [], []>} : vector<32x32xf32>, vector<32x8xf32>, vector<32x8xf32> -> vector<32x8xf32>
    %c3_141 = arith.constant 3 : index
    %c0_142 = arith.constant 0 : index
    %c0_143 = arith.constant 0 : index
    %242 = vector.load %arg14[%c3_141, %c0_142, %c0_143] : memref<4x1x8xf32, #tpu.memory_space<vmem>>, vector<1x1x8xf32>
    %243 = vector.shape_cast %242 : vector<1x1x8xf32> to vector<1x8xf32>
    %244 = vector.broadcast %243 : vector<1x8xf32> to vector<32x8xf32>
    %245 = arith.addf %241, %244 : vector<32x8xf32>
    %246 = vector.extract_strided_slice %231 {offsets = [0, 0], sizes = [16, 8], strides = [1, 1]} : vector<32x8xf32> to vector<16x8xf32>
    %247 = vector.extract_strided_slice %238 {offsets = [0, 0], sizes = [16, 8], strides = [1, 1]} : vector<32x8xf32> to vector<16x8xf32>
    %248 = tpu.transpose %247, [1, 0] : vector<16x8xf32> -> vector<8x16xf32>
    %cst_144 = arith.constant dense<0.000000e+00> : vector<16x16xf32>
    %249 = tpu.matmul %246, %248, %cst_144 {dimension_numbers = #tpu.dot_dimension_numbers<[1], [0], [0], [1], [0, 0, 1, 1], [], []>} : vector<16x8xf32>, vector<8x16xf32>, vector<16x16xf32> -> vector<16x16xf32>
    %cst_145 = arith.constant 0.353553385 : f32
    %250 = vector.broadcast %cst_145 : f32 to vector<16x16xf32>
    %251 = arith.mulf %249, %250 : vector<16x16xf32>
    %cst_146 = arith.constant dense<0xFF800000> : vector<16xf32>
    %252 = vector.multi_reduction <maximumf>, %251, %cst_146 [1] : vector<16x16xf32> to vector<16xf32>
    %253 = vector.shape_cast %252 : vector<16xf32> to vector<16x1xf32>
    %254 = vector.broadcast %253 : vector<16x1xf32> to vector<16x16xf32>
    %255 = arith.subf %251, %254 : vector<16x16xf32>
    %256 = math.exp %255 : vector<16x16xf32>
    %cst_147 = arith.constant dense<0.000000e+00> : vector<16xf32>
    %257 = vector.multi_reduction <add>, %256, %cst_147 [1] : vector<16x16xf32> to vector<16xf32>
    %258 = vector.shape_cast %257 : vector<16xf32> to vector<16x1xf32>
    %259 = tpu.reciprocal %258 {approx = true} : vector<16x1xf32> -> vector<16x1xf32>
    %260 = vector.broadcast %259 : vector<16x1xf32> to vector<16x16xf32>
    %261 = arith.mulf %256, %260 : vector<16x16xf32>
    %262 = vector.extract_strided_slice %245 {offsets = [0, 0], sizes = [16, 8], strides = [1, 1]} : vector<32x8xf32> to vector<16x8xf32>
    %cst_148 = arith.constant dense<0.000000e+00> : vector<16x8xf32>
    %263 = tpu.matmul %261, %262, %cst_148 {dimension_numbers = #tpu.dot_dimension_numbers<[1], [0], [0], [1], [0, 0, 1, 1], [], []>} : vector<16x16xf32>, vector<16x8xf32>, vector<16x8xf32> -> vector<16x8xf32>
    %264 = vector.extract_strided_slice %231 {offsets = [16, 0], sizes = [16, 8], strides = [1, 1]} : vector<32x8xf32> to vector<16x8xf32>
    %265 = vector.extract_strided_slice %238 {offsets = [16, 0], sizes = [16, 8], strides = [1, 1]} : vector<32x8xf32> to vector<16x8xf32>
    %266 = tpu.transpose %265, [1, 0] : vector<16x8xf32> -> vector<8x16xf32>
    %cst_149 = arith.constant dense<0.000000e+00> : vector<16x16xf32>
    %267 = tpu.matmul %264, %266, %cst_149 {dimension_numbers = #tpu.dot_dimension_numbers<[1], [0], [0], [1], [0, 0, 1, 1], [], []>} : vector<16x8xf32>, vector<8x16xf32>, vector<16x16xf32> -> vector<16x16xf32>
    %cst_150 = arith.constant 0.353553385 : f32
    %268 = vector.broadcast %cst_150 : f32 to vector<16x16xf32>
    %269 = arith.mulf %267, %268 : vector<16x16xf32>
    %cst_151 = arith.constant dense<0xFF800000> : vector<16xf32>
    %270 = vector.multi_reduction <maximumf>, %269, %cst_151 [1] : vector<16x16xf32> to vector<16xf32>
    %271 = vector.shape_cast %270 : vector<16xf32> to vector<16x1xf32>
    %272 = vector.broadcast %271 : vector<16x1xf32> to vector<16x16xf32>
    %273 = arith.subf %269, %272 : vector<16x16xf32>
    %274 = math.exp %273 : vector<16x16xf32>
    %cst_152 = arith.constant dense<0.000000e+00> : vector<16xf32>
    %275 = vector.multi_reduction <add>, %274, %cst_152 [1] : vector<16x16xf32> to vector<16xf32>
    %276 = vector.shape_cast %275 : vector<16xf32> to vector<16x1xf32>
    %277 = tpu.reciprocal %276 {approx = true} : vector<16x1xf32> -> vector<16x1xf32>
    %278 = vector.broadcast %277 : vector<16x1xf32> to vector<16x16xf32>
    %279 = arith.mulf %274, %278 : vector<16x16xf32>
    %280 = vector.extract_strided_slice %245 {offsets = [16, 0], sizes = [16, 8], strides = [1, 1]} : vector<32x8xf32> to vector<16x8xf32>
    %cst_153 = arith.constant dense<0.000000e+00> : vector<16x8xf32>
    %281 = tpu.matmul %279, %280, %cst_153 {dimension_numbers = #tpu.dot_dimension_numbers<[1], [0], [0], [1], [0, 0, 1, 1], [], []>} : vector<16x16xf32>, vector<16x8xf32>, vector<16x8xf32> -> vector<16x8xf32>
    %282 = tpu.concatenate %263, %281 in 0 : vector<16x8xf32>, vector<16x8xf32> -> vector<32x8xf32>
    %c3_154 = arith.constant 3 : index
    %c0_155 = arith.constant 0 : index
    %c0_156 = arith.constant 0 : index
    %283 = vector.load %arg15[%c3_154, %c0_155, %c0_156] : memref<4x8x32xf32, #tpu.memory_space<vmem>>, vector<1x8x32xf32>
    %284 = vector.shape_cast %283 : vector<1x8x32xf32> to vector<8x32xf32>
    %cst_157 = arith.constant dense<0.000000e+00> : vector<32x32xf32>
    %285 = tpu.matmul %282, %284, %cst_157 {dimension_numbers = #tpu.dot_dimension_numbers<[1], [0], [0], [1], [0, 0, 1, 1], [], []>} : vector<32x8xf32>, vector<8x32xf32>, vector<32x32xf32> -> vector<32x32xf32>
    %286 = arith.addf %224, %285 : vector<32x32xf32>
    %287 = arith.addf %17, %286 : vector<32x32xf32>
    %c0_158 = arith.constant 0 : index
    %c0_159 = arith.constant 0 : index
    %288 = vector.load %arg16[%c0_158, %c0_159] : memref<1x32xf32, #tpu.memory_space<vmem>>, vector<1x32xf32>
    %289 = vector.broadcast %288 : vector<1x32xf32> to vector<32x32xf32>
    %290 = arith.addf %287, %289 : vector<32x32xf32>
    %c0_160 = arith.constant 0 : index
    %c0_161 = arith.constant 0 : index
    %291 = vector.load %arg17[%c0_160, %c0_161] : memref<1x32xf32, #tpu.memory_space<vmem>>, vector<1x32xf32>
    %c0_162 = arith.constant 0 : index
    %c0_163 = arith.constant 0 : index
    %292 = vector.load %arg18[%c0_162, %c0_163] : memref<1x32xf32, #tpu.memory_space<vmem>>, vector<1x32xf32>
    %cst_164 = arith.constant dense<0.000000e+00> : vector<32xf32>
    %293 = vector.multi_reduction <add>, %290, %cst_164 [1] : vector<32x32xf32> to vector<32xf32>
    %294 = vector.shape_cast %293 : vector<32xf32> to vector<32x1xf32>
    %cst_165 = arith.constant 3.200000e+01 : f32
    %295 = vector.broadcast %cst_165 : f32 to vector<32x1xf32>
    %296 = arith.divf %294, %295 : vector<32x1xf32>
    %297 = vector.broadcast %296 : vector<32x1xf32> to vector<32x32xf32>
    %298 = arith.subf %290, %297 : vector<32x32xf32>
    %299 = arith.mulf %298, %298 : vector<32x32xf32>
    %cst_166 = arith.constant dense<0.000000e+00> : vector<32xf32>
    %300 = vector.multi_reduction <add>, %299, %cst_166 [1] : vector<32x32xf32> to vector<32xf32>
    %301 = vector.shape_cast %300 : vector<32xf32> to vector<32x1xf32>
    %cst_167 = arith.constant 3.200000e+01 : f32
    %302 = vector.broadcast %cst_167 : f32 to vector<32x1xf32>
    %303 = arith.divf %301, %302 : vector<32x1xf32>
    %cst_168 = arith.constant 9.99999997E-7 : f32
    %304 = vector.broadcast %cst_168 : f32 to vector<32x1xf32>
    %305 = arith.addf %303, %304 : vector<32x1xf32>
    %306 = math.rsqrt %305 : vector<32x1xf32>
    %307 = vector.broadcast %306 : vector<32x1xf32> to vector<32x32xf32>
    %308 = arith.mulf %298, %307 : vector<32x32xf32>
    %309 = vector.broadcast %291 : vector<1x32xf32> to vector<32x32xf32>
    %310 = arith.mulf %308, %309 : vector<32x32xf32>
    %311 = vector.broadcast %292 : vector<1x32xf32> to vector<32x32xf32>
    %312 = arith.addf %310, %311 : vector<32x32xf32>
    %c0_169 = arith.constant 0 : index
    %c0_170 = arith.constant 0 : index
    %313 = vector.load %arg19[%c0_169, %c0_170] : memref<32x128xf32, #tpu.memory_space<vmem>>, vector<32x128xf32>
    %cst_171 = arith.constant dense<0.000000e+00> : vector<32x128xf32>
    %314 = tpu.matmul %312, %313, %cst_171 {dimension_numbers = #tpu.dot_dimension_numbers<[1], [0], [0], [1], [0, 0, 1, 1], [], []>} : vector<32x32xf32>, vector<32x128xf32>, vector<32x128xf32> -> vector<32x128xf32>
    %c0_172 = arith.constant 0 : index
    %c0_173 = arith.constant 0 : index
    %315 = vector.load %arg20[%c0_172, %c0_173] : memref<1x128xf32, #tpu.memory_space<vmem>>, vector<1x128xf32>
    %316 = vector.broadcast %315 : vector<1x128xf32> to vector<32x128xf32>
    %317 = arith.addf %314, %316 : vector<32x128xf32>
    %cst_174 = arith.constant 5.000000e-01 : f32
    %318 = vector.broadcast %cst_174 : f32 to vector<32x128xf32>
    %319 = arith.mulf %318, %317 : vector<32x128xf32>
    %cst_175 = arith.constant 0.707106769 : f32
    %320 = vector.broadcast %cst_175 : f32 to vector<32x128xf32>
    %321 = arith.mulf %317, %320 : vector<32x128xf32>
    %322 = math.erf %321 : vector<32x128xf32>
    %cst_176 = arith.constant 1.000000e+00 : f32
    %323 = vector.broadcast %cst_176 : f32 to vector<32x128xf32>
    %324 = arith.addf %323, %322 : vector<32x128xf32>
    %325 = arith.mulf %319, %324 : vector<32x128xf32>
    %c0_177 = arith.constant 0 : index
    %c0_178 = arith.constant 0 : index
    %326 = vector.load %arg21[%c0_177, %c0_178] : memref<128x32xf32, #tpu.memory_space<vmem>>, vector<128x32xf32>
    %cst_179 = arith.constant dense<0.000000e+00> : vector<32x32xf32>
    %327 = tpu.matmul %325, %326, %cst_179 {dimension_numbers = #tpu.dot_dimension_numbers<[1], [0], [0], [1], [0, 0, 1, 1], [], []>} : vector<32x128xf32>, vector<128x32xf32>, vector<32x32xf32> -> vector<32x32xf32>
    %328 = arith.addf %290, %327 : vector<32x32xf32>
    %c0_180 = arith.constant 0 : index
    %c0_181 = arith.constant 0 : index
    %329 = vector.load %arg22[%c0_180, %c0_181] : memref<1x32xf32, #tpu.memory_space<vmem>>, vector<1x32xf32>
    %330 = vector.broadcast %329 : vector<1x32xf32> to vector<32x32xf32>
    %331 = arith.addf %328, %330 : vector<32x32xf32>
    %c0_182 = arith.constant 0 : index
    %c0_183 = arith.constant 0 : index
    %332 = vector.load %arg23[%c0_182, %c0_183] : memref<1x32xf32, #tpu.memory_space<vmem>>, vector<1x32xf32>
    %c0_184 = arith.constant 0 : index
    %c0_185 = arith.constant 0 : index
    %333 = vector.load %arg24[%c0_184, %c0_185] : memref<1x32xf32, #tpu.memory_space<vmem>>, vector<1x32xf32>
    %cst_186 = arith.constant dense<0.000000e+00> : vector<32xf32>
    %334 = vector.multi_reduction <add>, %331, %cst_186 [1] : vector<32x32xf32> to vector<32xf32>
    %335 = vector.shape_cast %334 : vector<32xf32> to vector<32x1xf32>
    %cst_187 = arith.constant 3.200000e+01 : f32
    %336 = vector.broadcast %cst_187 : f32 to vector<32x1xf32>
    %337 = arith.divf %335, %336 : vector<32x1xf32>
    %338 = vector.broadcast %337 : vector<32x1xf32> to vector<32x32xf32>
    %339 = arith.subf %331, %338 : vector<32x32xf32>
    %340 = arith.mulf %339, %339 : vector<32x32xf32>
    %cst_188 = arith.constant dense<0.000000e+00> : vector<32xf32>
    %341 = vector.multi_reduction <add>, %340, %cst_188 [1] : vector<32x32xf32> to vector<32xf32>
    %342 = vector.shape_cast %341 : vector<32xf32> to vector<32x1xf32>
    %cst_189 = arith.constant 3.200000e+01 : f32
    %343 = vector.broadcast %cst_189 : f32 to vector<32x1xf32>
    %344 = arith.divf %342, %343 : vector<32x1xf32>
    %cst_190 = arith.constant 9.99999997E-7 : f32
    %345 = vector.broadcast %cst_190 : f32 to vector<32x1xf32>
    %346 = arith.addf %344, %345 : vector<32x1xf32>
    %347 = math.rsqrt %346 : vector<32x1xf32>
    %348 = vector.broadcast %347 : vector<32x1xf32> to vector<32x32xf32>
    %349 = arith.mulf %339, %348 : vector<32x32xf32>
    %350 = vector.broadcast %332 : vector<1x32xf32> to vector<32x32xf32>
    %351 = arith.mulf %349, %350 : vector<32x32xf32>
    %352 = vector.broadcast %333 : vector<1x32xf32> to vector<32x32xf32>
    %353 = arith.addf %351, %352 : vector<32x32xf32>
    %c0_191 = arith.constant 0 : index
    %c0_192 = arith.constant 0 : index
    %c0_193 = arith.constant 0 : index
    %354 = vector.load %arg25[%c0_191, %c0_192, %c0_193] : memref<4x32x8xf32, #tpu.memory_space<vmem>>, vector<1x32x8xf32>
    %355 = vector.shape_cast %354 : vector<1x32x8xf32> to vector<32x8xf32>
    %cst_194 = arith.constant dense<0.000000e+00> : vector<32x8xf32>
    %356 = tpu.matmul %353, %355, %cst_194 {dimension_numbers = #tpu.dot_dimension_numbers<[1], [0], [0], [1], [0, 0, 1, 1], [], []>} : vector<32x32xf32>, vector<32x8xf32>, vector<32x8xf32> -> vector<32x8xf32>
    %c0_195 = arith.constant 0 : index
    %c0_196 = arith.constant 0 : index
    %c0_197 = arith.constant 0 : index
    %357 = vector.load %arg28[%c0_195, %c0_196, %c0_197] : memref<4x1x8xf32, #tpu.memory_space<vmem>>, vector<1x1x8xf32>
    %358 = vector.shape_cast %357 : vector<1x1x8xf32> to vector<1x8xf32>
    %359 = vector.broadcast %358 : vector<1x8xf32> to vector<32x8xf32>
    %360 = arith.addf %356, %359 : vector<32x8xf32>
    %c0_198 = arith.constant 0 : index
    %c0_199 = arith.constant 0 : index
    %c0_200 = arith.constant 0 : index
    %361 = vector.load %arg26[%c0_198, %c0_199, %c0_200] : memref<4x32x8xf32, #tpu.memory_space<vmem>>, vector<1x32x8xf32>
    %362 = vector.shape_cast %361 : vector<1x32x8xf32> to vector<32x8xf32>
    %cst_201 = arith.constant dense<0.000000e+00> : vector<32x8xf32>
    %363 = tpu.matmul %353, %362, %cst_201 {dimension_numbers = #tpu.dot_dimension_numbers<[1], [0], [0], [1], [0, 0, 1, 1], [], []>} : vector<32x32xf32>, vector<32x8xf32>, vector<32x8xf32> -> vector<32x8xf32>
    %c0_202 = arith.constant 0 : index
    %c0_203 = arith.constant 0 : index
    %c0_204 = arith.constant 0 : index
    %364 = vector.load %arg29[%c0_202, %c0_203, %c0_204] : memref<4x1x8xf32, #tpu.memory_space<vmem>>, vector<1x1x8xf32>
    %365 = vector.shape_cast %364 : vector<1x1x8xf32> to vector<1x8xf32>
    %366 = vector.broadcast %365 : vector<1x8xf32> to vector<32x8xf32>
    %367 = arith.addf %363, %366 : vector<32x8xf32>
    %c0_205 = arith.constant 0 : index
    %c0_206 = arith.constant 0 : index
    %c0_207 = arith.constant 0 : index
    %368 = vector.load %arg27[%c0_205, %c0_206, %c0_207] : memref<4x32x8xf32, #tpu.memory_space<vmem>>, vector<1x32x8xf32>
    %369 = vector.shape_cast %368 : vector<1x32x8xf32> to vector<32x8xf32>
    %cst_208 = arith.constant dense<0.000000e+00> : vector<32x8xf32>
    %370 = tpu.matmul %353, %369, %cst_208 {dimension_numbers = #tpu.dot_dimension_numbers<[1], [0], [0], [1], [0, 0, 1, 1], [], []>} : vector<32x32xf32>, vector<32x8xf32>, vector<32x8xf32> -> vector<32x8xf32>
    %c0_209 = arith.constant 0 : index
    %c0_210 = arith.constant 0 : index
    %c0_211 = arith.constant 0 : index
    %371 = vector.load %arg30[%c0_209, %c0_210, %c0_211] : memref<4x1x8xf32, #tpu.memory_space<vmem>>, vector<1x1x8xf32>
    %372 = vector.shape_cast %371 : vector<1x1x8xf32> to vector<1x8xf32>
    %373 = vector.broadcast %372 : vector<1x8xf32> to vector<32x8xf32>
    %374 = arith.addf %370, %373 : vector<32x8xf32>
    %375 = vector.extract_strided_slice %360 {offsets = [0, 0], sizes = [16, 8], strides = [1, 1]} : vector<32x8xf32> to vector<16x8xf32>
    %376 = vector.extract_strided_slice %367 {offsets = [0, 0], sizes = [16, 8], strides = [1, 1]} : vector<32x8xf32> to vector<16x8xf32>
    %377 = tpu.transpose %376, [1, 0] : vector<16x8xf32> -> vector<8x16xf32>
    %cst_212 = arith.constant dense<0.000000e+00> : vector<16x16xf32>
    %378 = tpu.matmul %375, %377, %cst_212 {dimension_numbers = #tpu.dot_dimension_numbers<[1], [0], [0], [1], [0, 0, 1, 1], [], []>} : vector<16x8xf32>, vector<8x16xf32>, vector<16x16xf32> -> vector<16x16xf32>
    %cst_213 = arith.constant 0.353553385 : f32
    %379 = vector.broadcast %cst_213 : f32 to vector<16x16xf32>
    %380 = arith.mulf %378, %379 : vector<16x16xf32>
    %cst_214 = arith.constant dense<0xFF800000> : vector<16xf32>
    %381 = vector.multi_reduction <maximumf>, %380, %cst_214 [1] : vector<16x16xf32> to vector<16xf32>
    %382 = vector.shape_cast %381 : vector<16xf32> to vector<16x1xf32>
    %383 = vector.broadcast %382 : vector<16x1xf32> to vector<16x16xf32>
    %384 = arith.subf %380, %383 : vector<16x16xf32>
    %385 = math.exp %384 : vector<16x16xf32>
    %cst_215 = arith.constant dense<0.000000e+00> : vector<16xf32>
    %386 = vector.multi_reduction <add>, %385, %cst_215 [1] : vector<16x16xf32> to vector<16xf32>
    %387 = vector.shape_cast %386 : vector<16xf32> to vector<16x1xf32>
    %388 = tpu.reciprocal %387 {approx = true} : vector<16x1xf32> -> vector<16x1xf32>
    %389 = vector.broadcast %388 : vector<16x1xf32> to vector<16x16xf32>
    %390 = arith.mulf %385, %389 : vector<16x16xf32>
    %391 = vector.extract_strided_slice %374 {offsets = [0, 0], sizes = [16, 8], strides = [1, 1]} : vector<32x8xf32> to vector<16x8xf32>
    %cst_216 = arith.constant dense<0.000000e+00> : vector<16x8xf32>
    %392 = tpu.matmul %390, %391, %cst_216 {dimension_numbers = #tpu.dot_dimension_numbers<[1], [0], [0], [1], [0, 0, 1, 1], [], []>} : vector<16x16xf32>, vector<16x8xf32>, vector<16x8xf32> -> vector<16x8xf32>
    %393 = vector.extract_strided_slice %360 {offsets = [16, 0], sizes = [16, 8], strides = [1, 1]} : vector<32x8xf32> to vector<16x8xf32>
    %394 = vector.extract_strided_slice %367 {offsets = [16, 0], sizes = [16, 8], strides = [1, 1]} : vector<32x8xf32> to vector<16x8xf32>
    %395 = tpu.transpose %394, [1, 0] : vector<16x8xf32> -> vector<8x16xf32>
    %cst_217 = arith.constant dense<0.000000e+00> : vector<16x16xf32>
    %396 = tpu.matmul %393, %395, %cst_217 {dimension_numbers = #tpu.dot_dimension_numbers<[1], [0], [0], [1], [0, 0, 1, 1], [], []>} : vector<16x8xf32>, vector<8x16xf32>, vector<16x16xf32> -> vector<16x16xf32>
    %cst_218 = arith.constant 0.353553385 : f32
    %397 = vector.broadcast %cst_218 : f32 to vector<16x16xf32>
    %398 = arith.mulf %396, %397 : vector<16x16xf32>
    %cst_219 = arith.constant dense<0xFF800000> : vector<16xf32>
    %399 = vector.multi_reduction <maximumf>, %398, %cst_219 [1] : vector<16x16xf32> to vector<16xf32>
    %400 = vector.shape_cast %399 : vector<16xf32> to vector<16x1xf32>
    %401 = vector.broadcast %400 : vector<16x1xf32> to vector<16x16xf32>
    %402 = arith.subf %398, %401 : vector<16x16xf32>
    %403 = math.exp %402 : vector<16x16xf32>
    %cst_220 = arith.constant dense<0.000000e+00> : vector<16xf32>
    %404 = vector.multi_reduction <add>, %403, %cst_220 [1] : vector<16x16xf32> to vector<16xf32>
    %405 = vector.shape_cast %404 : vector<16xf32> to vector<16x1xf32>
    %406 = tpu.reciprocal %405 {approx = true} : vector<16x1xf32> -> vector<16x1xf32>
    %407 = vector.broadcast %406 : vector<16x1xf32> to vector<16x16xf32>
    %408 = arith.mulf %403, %407 : vector<16x16xf32>
    %409 = vector.extract_strided_slice %374 {offsets = [16, 0], sizes = [16, 8], strides = [1, 1]} : vector<32x8xf32> to vector<16x8xf32>
    %cst_221 = arith.constant dense<0.000000e+00> : vector<16x8xf32>
    %410 = tpu.matmul %408, %409, %cst_221 {dimension_numbers = #tpu.dot_dimension_numbers<[1], [0], [0], [1], [0, 0, 1, 1], [], []>} : vector<16x16xf32>, vector<16x8xf32>, vector<16x8xf32> -> vector<16x8xf32>
    %411 = tpu.concatenate %392, %410 in 0 : vector<16x8xf32>, vector<16x8xf32> -> vector<32x8xf32>
    %c0_222 = arith.constant 0 : index
    %c0_223 = arith.constant 0 : index
    %c0_224 = arith.constant 0 : index
    %412 = vector.load %arg31[%c0_222, %c0_223, %c0_224] : memref<4x8x32xf32, #tpu.memory_space<vmem>>, vector<1x8x32xf32>
    %413 = vector.shape_cast %412 : vector<1x8x32xf32> to vector<8x32xf32>
    %cst_225 = arith.constant dense<0.000000e+00> : vector<32x32xf32>
    %414 = tpu.matmul %411, %413, %cst_225 {dimension_numbers = #tpu.dot_dimension_numbers<[1], [0], [0], [1], [0, 0, 1, 1], [], []>} : vector<32x8xf32>, vector<8x32xf32>, vector<32x32xf32> -> vector<32x32xf32>
    %c1_226 = arith.constant 1 : index
    %c0_227 = arith.constant 0 : index
    %c0_228 = arith.constant 0 : index
    %415 = vector.load %arg25[%c1_226, %c0_227, %c0_228] : memref<4x32x8xf32, #tpu.memory_space<vmem>>, vector<1x32x8xf32>
    %416 = vector.shape_cast %415 : vector<1x32x8xf32> to vector<32x8xf32>
    %cst_229 = arith.constant dense<0.000000e+00> : vector<32x8xf32>
    %417 = tpu.matmul %353, %416, %cst_229 {dimension_numbers = #tpu.dot_dimension_numbers<[1], [0], [0], [1], [0, 0, 1, 1], [], []>} : vector<32x32xf32>, vector<32x8xf32>, vector<32x8xf32> -> vector<32x8xf32>
    %c1_230 = arith.constant 1 : index
    %c0_231 = arith.constant 0 : index
    %c0_232 = arith.constant 0 : index
    %418 = vector.load %arg28[%c1_230, %c0_231, %c0_232] : memref<4x1x8xf32, #tpu.memory_space<vmem>>, vector<1x1x8xf32>
    %419 = vector.shape_cast %418 : vector<1x1x8xf32> to vector<1x8xf32>
    %420 = vector.broadcast %419 : vector<1x8xf32> to vector<32x8xf32>
    %421 = arith.addf %417, %420 : vector<32x8xf32>
    %c1_233 = arith.constant 1 : index
    %c0_234 = arith.constant 0 : index
    %c0_235 = arith.constant 0 : index
    %422 = vector.load %arg26[%c1_233, %c0_234, %c0_235] : memref<4x32x8xf32, #tpu.memory_space<vmem>>, vector<1x32x8xf32>
    %423 = vector.shape_cast %422 : vector<1x32x8xf32> to vector<32x8xf32>
    %cst_236 = arith.constant dense<0.000000e+00> : vector<32x8xf32>
    %424 = tpu.matmul %353, %423, %cst_236 {dimension_numbers = #tpu.dot_dimension_numbers<[1], [0], [0], [1], [0, 0, 1, 1], [], []>} : vector<32x32xf32>, vector<32x8xf32>, vector<32x8xf32> -> vector<32x8xf32>
    %c1_237 = arith.constant 1 : index
    %c0_238 = arith.constant 0 : index
    %c0_239 = arith.constant 0 : index
    %425 = vector.load %arg29[%c1_237, %c0_238, %c0_239] : memref<4x1x8xf32, #tpu.memory_space<vmem>>, vector<1x1x8xf32>
    %426 = vector.shape_cast %425 : vector<1x1x8xf32> to vector<1x8xf32>
    %427 = vector.broadcast %426 : vector<1x8xf32> to vector<32x8xf32>
    %428 = arith.addf %424, %427 : vector<32x8xf32>
    %c1_240 = arith.constant 1 : index
    %c0_241 = arith.constant 0 : index
    %c0_242 = arith.constant 0 : index
    %429 = vector.load %arg27[%c1_240, %c0_241, %c0_242] : memref<4x32x8xf32, #tpu.memory_space<vmem>>, vector<1x32x8xf32>
    %430 = vector.shape_cast %429 : vector<1x32x8xf32> to vector<32x8xf32>
    %cst_243 = arith.constant dense<0.000000e+00> : vector<32x8xf32>
    %431 = tpu.matmul %353, %430, %cst_243 {dimension_numbers = #tpu.dot_dimension_numbers<[1], [0], [0], [1], [0, 0, 1, 1], [], []>} : vector<32x32xf32>, vector<32x8xf32>, vector<32x8xf32> -> vector<32x8xf32>
    %c1_244 = arith.constant 1 : index
    %c0_245 = arith.constant 0 : index
    %c0_246 = arith.constant 0 : index
    %432 = vector.load %arg30[%c1_244, %c0_245, %c0_246] : memref<4x1x8xf32, #tpu.memory_space<vmem>>, vector<1x1x8xf32>
    %433 = vector.shape_cast %432 : vector<1x1x8xf32> to vector<1x8xf32>
    %434 = vector.broadcast %433 : vector<1x8xf32> to vector<32x8xf32>
    %435 = arith.addf %431, %434 : vector<32x8xf32>
    %436 = vector.extract_strided_slice %421 {offsets = [0, 0], sizes = [16, 8], strides = [1, 1]} : vector<32x8xf32> to vector<16x8xf32>
    %437 = vector.extract_strided_slice %428 {offsets = [0, 0], sizes = [16, 8], strides = [1, 1]} : vector<32x8xf32> to vector<16x8xf32>
    %438 = tpu.transpose %437, [1, 0] : vector<16x8xf32> -> vector<8x16xf32>
    %cst_247 = arith.constant dense<0.000000e+00> : vector<16x16xf32>
    %439 = tpu.matmul %436, %438, %cst_247 {dimension_numbers = #tpu.dot_dimension_numbers<[1], [0], [0], [1], [0, 0, 1, 1], [], []>} : vector<16x8xf32>, vector<8x16xf32>, vector<16x16xf32> -> vector<16x16xf32>
    %cst_248 = arith.constant 0.353553385 : f32
    %440 = vector.broadcast %cst_248 : f32 to vector<16x16xf32>
    %441 = arith.mulf %439, %440 : vector<16x16xf32>
    %cst_249 = arith.constant dense<0xFF800000> : vector<16xf32>
    %442 = vector.multi_reduction <maximumf>, %441, %cst_249 [1] : vector<16x16xf32> to vector<16xf32>
    %443 = vector.shape_cast %442 : vector<16xf32> to vector<16x1xf32>
    %444 = vector.broadcast %443 : vector<16x1xf32> to vector<16x16xf32>
    %445 = arith.subf %441, %444 : vector<16x16xf32>
    %446 = math.exp %445 : vector<16x16xf32>
    %cst_250 = arith.constant dense<0.000000e+00> : vector<16xf32>
    %447 = vector.multi_reduction <add>, %446, %cst_250 [1] : vector<16x16xf32> to vector<16xf32>
    %448 = vector.shape_cast %447 : vector<16xf32> to vector<16x1xf32>
    %449 = tpu.reciprocal %448 {approx = true} : vector<16x1xf32> -> vector<16x1xf32>
    %450 = vector.broadcast %449 : vector<16x1xf32> to vector<16x16xf32>
    %451 = arith.mulf %446, %450 : vector<16x16xf32>
    %452 = vector.extract_strided_slice %435 {offsets = [0, 0], sizes = [16, 8], strides = [1, 1]} : vector<32x8xf32> to vector<16x8xf32>
    %cst_251 = arith.constant dense<0.000000e+00> : vector<16x8xf32>
    %453 = tpu.matmul %451, %452, %cst_251 {dimension_numbers = #tpu.dot_dimension_numbers<[1], [0], [0], [1], [0, 0, 1, 1], [], []>} : vector<16x16xf32>, vector<16x8xf32>, vector<16x8xf32> -> vector<16x8xf32>
    %454 = vector.extract_strided_slice %421 {offsets = [16, 0], sizes = [16, 8], strides = [1, 1]} : vector<32x8xf32> to vector<16x8xf32>
    %455 = vector.extract_strided_slice %428 {offsets = [16, 0], sizes = [16, 8], strides = [1, 1]} : vector<32x8xf32> to vector<16x8xf32>
    %456 = tpu.transpose %455, [1, 0] : vector<16x8xf32> -> vector<8x16xf32>
    %cst_252 = arith.constant dense<0.000000e+00> : vector<16x16xf32>
    %457 = tpu.matmul %454, %456, %cst_252 {dimension_numbers = #tpu.dot_dimension_numbers<[1], [0], [0], [1], [0, 0, 1, 1], [], []>} : vector<16x8xf32>, vector<8x16xf32>, vector<16x16xf32> -> vector<16x16xf32>
    %cst_253 = arith.constant 0.353553385 : f32
    %458 = vector.broadcast %cst_253 : f32 to vector<16x16xf32>
    %459 = arith.mulf %457, %458 : vector<16x16xf32>
    %cst_254 = arith.constant dense<0xFF800000> : vector<16xf32>
    %460 = vector.multi_reduction <maximumf>, %459, %cst_254 [1] : vector<16x16xf32> to vector<16xf32>
    %461 = vector.shape_cast %460 : vector<16xf32> to vector<16x1xf32>
    %462 = vector.broadcast %461 : vector<16x1xf32> to vector<16x16xf32>
    %463 = arith.subf %459, %462 : vector<16x16xf32>
    %464 = math.exp %463 : vector<16x16xf32>
    %cst_255 = arith.constant dense<0.000000e+00> : vector<16xf32>
    %465 = vector.multi_reduction <add>, %464, %cst_255 [1] : vector<16x16xf32> to vector<16xf32>
    %466 = vector.shape_cast %465 : vector<16xf32> to vector<16x1xf32>
    %467 = tpu.reciprocal %466 {approx = true} : vector<16x1xf32> -> vector<16x1xf32>
    %468 = vector.broadcast %467 : vector<16x1xf32> to vector<16x16xf32>
    %469 = arith.mulf %464, %468 : vector<16x16xf32>
    %470 = vector.extract_strided_slice %435 {offsets = [16, 0], sizes = [16, 8], strides = [1, 1]} : vector<32x8xf32> to vector<16x8xf32>
    %cst_256 = arith.constant dense<0.000000e+00> : vector<16x8xf32>
    %471 = tpu.matmul %469, %470, %cst_256 {dimension_numbers = #tpu.dot_dimension_numbers<[1], [0], [0], [1], [0, 0, 1, 1], [], []>} : vector<16x16xf32>, vector<16x8xf32>, vector<16x8xf32> -> vector<16x8xf32>
    %472 = tpu.concatenate %453, %471 in 0 : vector<16x8xf32>, vector<16x8xf32> -> vector<32x8xf32>
    %c1_257 = arith.constant 1 : index
    %c0_258 = arith.constant 0 : index
    %c0_259 = arith.constant 0 : index
    %473 = vector.load %arg31[%c1_257, %c0_258, %c0_259] : memref<4x8x32xf32, #tpu.memory_space<vmem>>, vector<1x8x32xf32>
    %474 = vector.shape_cast %473 : vector<1x8x32xf32> to vector<8x32xf32>
    %cst_260 = arith.constant dense<0.000000e+00> : vector<32x32xf32>
    %475 = tpu.matmul %472, %474, %cst_260 {dimension_numbers = #tpu.dot_dimension_numbers<[1], [0], [0], [1], [0, 0, 1, 1], [], []>} : vector<32x8xf32>, vector<8x32xf32>, vector<32x32xf32> -> vector<32x32xf32>
    %476 = arith.addf %414, %475 : vector<32x32xf32>
    %c2_261 = arith.constant 2 : index
    %c0_262 = arith.constant 0 : index
    %c0_263 = arith.constant 0 : index
    %477 = vector.load %arg25[%c2_261, %c0_262, %c0_263] : memref<4x32x8xf32, #tpu.memory_space<vmem>>, vector<1x32x8xf32>
    %478 = vector.shape_cast %477 : vector<1x32x8xf32> to vector<32x8xf32>
    %cst_264 = arith.constant dense<0.000000e+00> : vector<32x8xf32>
    %479 = tpu.matmul %353, %478, %cst_264 {dimension_numbers = #tpu.dot_dimension_numbers<[1], [0], [0], [1], [0, 0, 1, 1], [], []>} : vector<32x32xf32>, vector<32x8xf32>, vector<32x8xf32> -> vector<32x8xf32>
    %c2_265 = arith.constant 2 : index
    %c0_266 = arith.constant 0 : index
    %c0_267 = arith.constant 0 : index
    %480 = vector.load %arg28[%c2_265, %c0_266, %c0_267] : memref<4x1x8xf32, #tpu.memory_space<vmem>>, vector<1x1x8xf32>
    %481 = vector.shape_cast %480 : vector<1x1x8xf32> to vector<1x8xf32>
    %482 = vector.broadcast %481 : vector<1x8xf32> to vector<32x8xf32>
    %483 = arith.addf %479, %482 : vector<32x8xf32>
    %c2_268 = arith.constant 2 : index
    %c0_269 = arith.constant 0 : index
    %c0_270 = arith.constant 0 : index
    %484 = vector.load %arg26[%c2_268, %c0_269, %c0_270] : memref<4x32x8xf32, #tpu.memory_space<vmem>>, vector<1x32x8xf32>
    %485 = vector.shape_cast %484 : vector<1x32x8xf32> to vector<32x8xf32>
    %cst_271 = arith.constant dense<0.000000e+00> : vector<32x8xf32>
    %486 = tpu.matmul %353, %485, %cst_271 {dimension_numbers = #tpu.dot_dimension_numbers<[1], [0], [0], [1], [0, 0, 1, 1], [], []>} : vector<32x32xf32>, vector<32x8xf32>, vector<32x8xf32> -> vector<32x8xf32>
    %c2_272 = arith.constant 2 : index
    %c0_273 = arith.constant 0 : index
    %c0_274 = arith.constant 0 : index
    %487 = vector.load %arg29[%c2_272, %c0_273, %c0_274] : memref<4x1x8xf32, #tpu.memory_space<vmem>>, vector<1x1x8xf32>
    %488 = vector.shape_cast %487 : vector<1x1x8xf32> to vector<1x8xf32>
    %489 = vector.broadcast %488 : vector<1x8xf32> to vector<32x8xf32>
    %490 = arith.addf %486, %489 : vector<32x8xf32>
    %c2_275 = arith.constant 2 : index
    %c0_276 = arith.constant 0 : index
    %c0_277 = arith.constant 0 : index
    %491 = vector.load %arg27[%c2_275, %c0_276, %c0_277] : memref<4x32x8xf32, #tpu.memory_space<vmem>>, vector<1x32x8xf32>
    %492 = vector.shape_cast %491 : vector<1x32x8xf32> to vector<32x8xf32>
    %cst_278 = arith.constant dense<0.000000e+00> : vector<32x8xf32>
    %493 = tpu.matmul %353, %492, %cst_278 {dimension_numbers = #tpu.dot_dimension_numbers<[1], [0], [0], [1], [0, 0, 1, 1], [], []>} : vector<32x32xf32>, vector<32x8xf32>, vector<32x8xf32> -> vector<32x8xf32>
    %c2_279 = arith.constant 2 : index
    %c0_280 = arith.constant 0 : index
    %c0_281 = arith.constant 0 : index
    %494 = vector.load %arg30[%c2_279, %c0_280, %c0_281] : memref<4x1x8xf32, #tpu.memory_space<vmem>>, vector<1x1x8xf32>
    %495 = vector.shape_cast %494 : vector<1x1x8xf32> to vector<1x8xf32>
    %496 = vector.broadcast %495 : vector<1x8xf32> to vector<32x8xf32>
    %497 = arith.addf %493, %496 : vector<32x8xf32>
    %498 = vector.extract_strided_slice %483 {offsets = [0, 0], sizes = [16, 8], strides = [1, 1]} : vector<32x8xf32> to vector<16x8xf32>
    %499 = vector.extract_strided_slice %490 {offsets = [0, 0], sizes = [16, 8], strides = [1, 1]} : vector<32x8xf32> to vector<16x8xf32>
    %500 = tpu.transpose %499, [1, 0] : vector<16x8xf32> -> vector<8x16xf32>
    %cst_282 = arith.constant dense<0.000000e+00> : vector<16x16xf32>
    %501 = tpu.matmul %498, %500, %cst_282 {dimension_numbers = #tpu.dot_dimension_numbers<[1], [0], [0], [1], [0, 0, 1, 1], [], []>} : vector<16x8xf32>, vector<8x16xf32>, vector<16x16xf32> -> vector<16x16xf32>
    %cst_283 = arith.constant 0.353553385 : f32
    %502 = vector.broadcast %cst_283 : f32 to vector<16x16xf32>
    %503 = arith.mulf %501, %502 : vector<16x16xf32>
    %cst_284 = arith.constant dense<0xFF800000> : vector<16xf32>
    %504 = vector.multi_reduction <maximumf>, %503, %cst_284 [1] : vector<16x16xf32> to vector<16xf32>
    %505 = vector.shape_cast %504 : vector<16xf32> to vector<16x1xf32>
    %506 = vector.broadcast %505 : vector<16x1xf32> to vector<16x16xf32>
    %507 = arith.subf %503, %506 : vector<16x16xf32>
    %508 = math.exp %507 : vector<16x16xf32>
    %cst_285 = arith.constant dense<0.000000e+00> : vector<16xf32>
    %509 = vector.multi_reduction <add>, %508, %cst_285 [1] : vector<16x16xf32> to vector<16xf32>
    %510 = vector.shape_cast %509 : vector<16xf32> to vector<16x1xf32>
    %511 = tpu.reciprocal %510 {approx = true} : vector<16x1xf32> -> vector<16x1xf32>
    %512 = vector.broadcast %511 : vector<16x1xf32> to vector<16x16xf32>
    %513 = arith.mulf %508, %512 : vector<16x16xf32>
    %514 = vector.extract_strided_slice %497 {offsets = [0, 0], sizes = [16, 8], strides = [1, 1]} : vector<32x8xf32> to vector<16x8xf32>
    %cst_286 = arith.constant dense<0.000000e+00> : vector<16x8xf32>
    %515 = tpu.matmul %513, %514, %cst_286 {dimension_numbers = #tpu.dot_dimension_numbers<[1], [0], [0], [1], [0, 0, 1, 1], [], []>} : vector<16x16xf32>, vector<16x8xf32>, vector<16x8xf32> -> vector<16x8xf32>
    %516 = vector.extract_strided_slice %483 {offsets = [16, 0], sizes = [16, 8], strides = [1, 1]} : vector<32x8xf32> to vector<16x8xf32>
    %517 = vector.extract_strided_slice %490 {offsets = [16, 0], sizes = [16, 8], strides = [1, 1]} : vector<32x8xf32> to vector<16x8xf32>
    %518 = tpu.transpose %517, [1, 0] : vector<16x8xf32> -> vector<8x16xf32>
    %cst_287 = arith.constant dense<0.000000e+00> : vector<16x16xf32>
    %519 = tpu.matmul %516, %518, %cst_287 {dimension_numbers = #tpu.dot_dimension_numbers<[1], [0], [0], [1], [0, 0, 1, 1], [], []>} : vector<16x8xf32>, vector<8x16xf32>, vector<16x16xf32> -> vector<16x16xf32>
    %cst_288 = arith.constant 0.353553385 : f32
    %520 = vector.broadcast %cst_288 : f32 to vector<16x16xf32>
    %521 = arith.mulf %519, %520 : vector<16x16xf32>
    %cst_289 = arith.constant dense<0xFF800000> : vector<16xf32>
    %522 = vector.multi_reduction <maximumf>, %521, %cst_289 [1] : vector<16x16xf32> to vector<16xf32>
    %523 = vector.shape_cast %522 : vector<16xf32> to vector<16x1xf32>
    %524 = vector.broadcast %523 : vector<16x1xf32> to vector<16x16xf32>
    %525 = arith.subf %521, %524 : vector<16x16xf32>
    %526 = math.exp %525 : vector<16x16xf32>
    %cst_290 = arith.constant dense<0.000000e+00> : vector<16xf32>
    %527 = vector.multi_reduction <add>, %526, %cst_290 [1] : vector<16x16xf32> to vector<16xf32>
    %528 = vector.shape_cast %527 : vector<16xf32> to vector<16x1xf32>
    %529 = tpu.reciprocal %528 {approx = true} : vector<16x1xf32> -> vector<16x1xf32>
    %530 = vector.broadcast %529 : vector<16x1xf32> to vector<16x16xf32>
    %531 = arith.mulf %526, %530 : vector<16x16xf32>
    %532 = vector.extract_strided_slice %497 {offsets = [16, 0], sizes = [16, 8], strides = [1, 1]} : vector<32x8xf32> to vector<16x8xf32>
    %cst_291 = arith.constant dense<0.000000e+00> : vector<16x8xf32>
    %533 = tpu.matmul %531, %532, %cst_291 {dimension_numbers = #tpu.dot_dimension_numbers<[1], [0], [0], [1], [0, 0, 1, 1], [], []>} : vector<16x16xf32>, vector<16x8xf32>, vector<16x8xf32> -> vector<16x8xf32>
    %534 = tpu.concatenate %515, %533 in 0 : vector<16x8xf32>, vector<16x8xf32> -> vector<32x8xf32>
    %c2_292 = arith.constant 2 : index
    %c0_293 = arith.constant 0 : index
    %c0_294 = arith.constant 0 : index
    %535 = vector.load %arg31[%c2_292, %c0_293, %c0_294] : memref<4x8x32xf32, #tpu.memory_space<vmem>>, vector<1x8x32xf32>
    %536 = vector.shape_cast %535 : vector<1x8x32xf32> to vector<8x32xf32>
    %cst_295 = arith.constant dense<0.000000e+00> : vector<32x32xf32>
    %537 = tpu.matmul %534, %536, %cst_295 {dimension_numbers = #tpu.dot_dimension_numbers<[1], [0], [0], [1], [0, 0, 1, 1], [], []>} : vector<32x8xf32>, vector<8x32xf32>, vector<32x32xf32> -> vector<32x32xf32>
    %538 = arith.addf %476, %537 : vector<32x32xf32>
    %c3_296 = arith.constant 3 : index
    %c0_297 = arith.constant 0 : index
    %c0_298 = arith.constant 0 : index
    %539 = vector.load %arg25[%c3_296, %c0_297, %c0_298] : memref<4x32x8xf32, #tpu.memory_space<vmem>>, vector<1x32x8xf32>
    %540 = vector.shape_cast %539 : vector<1x32x8xf32> to vector<32x8xf32>
    %cst_299 = arith.constant dense<0.000000e+00> : vector<32x8xf32>
    %541 = tpu.matmul %353, %540, %cst_299 {dimension_numbers = #tpu.dot_dimension_numbers<[1], [0], [0], [1], [0, 0, 1, 1], [], []>} : vector<32x32xf32>, vector<32x8xf32>, vector<32x8xf32> -> vector<32x8xf32>
    %c3_300 = arith.constant 3 : index
    %c0_301 = arith.constant 0 : index
    %c0_302 = arith.constant 0 : index
    %542 = vector.load %arg28[%c3_300, %c0_301, %c0_302] : memref<4x1x8xf32, #tpu.memory_space<vmem>>, vector<1x1x8xf32>
    %543 = vector.shape_cast %542 : vector<1x1x8xf32> to vector<1x8xf32>
    %544 = vector.broadcast %543 : vector<1x8xf32> to vector<32x8xf32>
    %545 = arith.addf %541, %544 : vector<32x8xf32>
    %c3_303 = arith.constant 3 : index
    %c0_304 = arith.constant 0 : index
    %c0_305 = arith.constant 0 : index
    %546 = vector.load %arg26[%c3_303, %c0_304, %c0_305] : memref<4x32x8xf32, #tpu.memory_space<vmem>>, vector<1x32x8xf32>
    %547 = vector.shape_cast %546 : vector<1x32x8xf32> to vector<32x8xf32>
    %cst_306 = arith.constant dense<0.000000e+00> : vector<32x8xf32>
    %548 = tpu.matmul %353, %547, %cst_306 {dimension_numbers = #tpu.dot_dimension_numbers<[1], [0], [0], [1], [0, 0, 1, 1], [], []>} : vector<32x32xf32>, vector<32x8xf32>, vector<32x8xf32> -> vector<32x8xf32>
    %c3_307 = arith.constant 3 : index
    %c0_308 = arith.constant 0 : index
    %c0_309 = arith.constant 0 : index
    %549 = vector.load %arg29[%c3_307, %c0_308, %c0_309] : memref<4x1x8xf32, #tpu.memory_space<vmem>>, vector<1x1x8xf32>
    %550 = vector.shape_cast %549 : vector<1x1x8xf32> to vector<1x8xf32>
    %551 = vector.broadcast %550 : vector<1x8xf32> to vector<32x8xf32>
    %552 = arith.addf %548, %551 : vector<32x8xf32>
    %c3_310 = arith.constant 3 : index
    %c0_311 = arith.constant 0 : index
    %c0_312 = arith.constant 0 : index
    %553 = vector.load %arg27[%c3_310, %c0_311, %c0_312] : memref<4x32x8xf32, #tpu.memory_space<vmem>>, vector<1x32x8xf32>
    %554 = vector.shape_cast %553 : vector<1x32x8xf32> to vector<32x8xf32>
    %cst_313 = arith.constant dense<0.000000e+00> : vector<32x8xf32>
    %555 = tpu.matmul %353, %554, %cst_313 {dimension_numbers = #tpu.dot_dimension_numbers<[1], [0], [0], [1], [0, 0, 1, 1], [], []>} : vector<32x32xf32>, vector<32x8xf32>, vector<32x8xf32> -> vector<32x8xf32>
    %c3_314 = arith.constant 3 : index
    %c0_315 = arith.constant 0 : index
    %c0_316 = arith.constant 0 : index
    %556 = vector.load %arg30[%c3_314, %c0_315, %c0_316] : memref<4x1x8xf32, #tpu.memory_space<vmem>>, vector<1x1x8xf32>
    %557 = vector.shape_cast %556 : vector<1x1x8xf32> to vector<1x8xf32>
    %558 = vector.broadcast %557 : vector<1x8xf32> to vector<32x8xf32>
    %559 = arith.addf %555, %558 : vector<32x8xf32>
    %560 = vector.extract_strided_slice %545 {offsets = [0, 0], sizes = [16, 8], strides = [1, 1]} : vector<32x8xf32> to vector<16x8xf32>
    %561 = vector.extract_strided_slice %552 {offsets = [0, 0], sizes = [16, 8], strides = [1, 1]} : vector<32x8xf32> to vector<16x8xf32>
    %562 = tpu.transpose %561, [1, 0] : vector<16x8xf32> -> vector<8x16xf32>
    %cst_317 = arith.constant dense<0.000000e+00> : vector<16x16xf32>
    %563 = tpu.matmul %560, %562, %cst_317 {dimension_numbers = #tpu.dot_dimension_numbers<[1], [0], [0], [1], [0, 0, 1, 1], [], []>} : vector<16x8xf32>, vector<8x16xf32>, vector<16x16xf32> -> vector<16x16xf32>
    %cst_318 = arith.constant 0.353553385 : f32
    %564 = vector.broadcast %cst_318 : f32 to vector<16x16xf32>
    %565 = arith.mulf %563, %564 : vector<16x16xf32>
    %cst_319 = arith.constant dense<0xFF800000> : vector<16xf32>
    %566 = vector.multi_reduction <maximumf>, %565, %cst_319 [1] : vector<16x16xf32> to vector<16xf32>
    %567 = vector.shape_cast %566 : vector<16xf32> to vector<16x1xf32>
    %568 = vector.broadcast %567 : vector<16x1xf32> to vector<16x16xf32>
    %569 = arith.subf %565, %568 : vector<16x16xf32>
    %570 = math.exp %569 : vector<16x16xf32>
    %cst_320 = arith.constant dense<0.000000e+00> : vector<16xf32>
    %571 = vector.multi_reduction <add>, %570, %cst_320 [1] : vector<16x16xf32> to vector<16xf32>
    %572 = vector.shape_cast %571 : vector<16xf32> to vector<16x1xf32>
    %573 = tpu.reciprocal %572 {approx = true} : vector<16x1xf32> -> vector<16x1xf32>
    %574 = vector.broadcast %573 : vector<16x1xf32> to vector<16x16xf32>
    %575 = arith.mulf %570, %574 : vector<16x16xf32>
    %576 = vector.extract_strided_slice %559 {offsets = [0, 0], sizes = [16, 8], strides = [1, 1]} : vector<32x8xf32> to vector<16x8xf32>
    %cst_321 = arith.constant dense<0.000000e+00> : vector<16x8xf32>
    %577 = tpu.matmul %575, %576, %cst_321 {dimension_numbers = #tpu.dot_dimension_numbers<[1], [0], [0], [1], [0, 0, 1, 1], [], []>} : vector<16x16xf32>, vector<16x8xf32>, vector<16x8xf32> -> vector<16x8xf32>
    %578 = vector.extract_strided_slice %545 {offsets = [16, 0], sizes = [16, 8], strides = [1, 1]} : vector<32x8xf32> to vector<16x8xf32>
    %579 = vector.extract_strided_slice %552 {offsets = [16, 0], sizes = [16, 8], strides = [1, 1]} : vector<32x8xf32> to vector<16x8xf32>
    %580 = tpu.transpose %579, [1, 0] : vector<16x8xf32> -> vector<8x16xf32>
    %cst_322 = arith.constant dense<0.000000e+00> : vector<16x16xf32>
    %581 = tpu.matmul %578, %580, %cst_322 {dimension_numbers = #tpu.dot_dimension_numbers<[1], [0], [0], [1], [0, 0, 1, 1], [], []>} : vector<16x8xf32>, vector<8x16xf32>, vector<16x16xf32> -> vector<16x16xf32>
    %cst_323 = arith.constant 0.353553385 : f32
    %582 = vector.broadcast %cst_323 : f32 to vector<16x16xf32>
    %583 = arith.mulf %581, %582 : vector<16x16xf32>
    %cst_324 = arith.constant dense<0xFF800000> : vector<16xf32>
    %584 = vector.multi_reduction <maximumf>, %583, %cst_324 [1] : vector<16x16xf32> to vector<16xf32>
    %585 = vector.shape_cast %584 : vector<16xf32> to vector<16x1xf32>
    %586 = vector.broadcast %585 : vector<16x1xf32> to vector<16x16xf32>
    %587 = arith.subf %583, %586 : vector<16x16xf32>
    %588 = math.exp %587 : vector<16x16xf32>
    %cst_325 = arith.constant dense<0.000000e+00> : vector<16xf32>
    %589 = vector.multi_reduction <add>, %588, %cst_325 [1] : vector<16x16xf32> to vector<16xf32>
    %590 = vector.shape_cast %589 : vector<16xf32> to vector<16x1xf32>
    %591 = tpu.reciprocal %590 {approx = true} : vector<16x1xf32> -> vector<16x1xf32>
    %592 = vector.broadcast %591 : vector<16x1xf32> to vector<16x16xf32>
    %593 = arith.mulf %588, %592 : vector<16x16xf32>
    %594 = vector.extract_strided_slice %559 {offsets = [16, 0], sizes = [16, 8], strides = [1, 1]} : vector<32x8xf32> to vector<16x8xf32>
    %cst_326 = arith.constant dense<0.000000e+00> : vector<16x8xf32>
    %595 = tpu.matmul %593, %594, %cst_326 {dimension_numbers = #tpu.dot_dimension_numbers<[1], [0], [0], [1], [0, 0, 1, 1], [], []>} : vector<16x16xf32>, vector<16x8xf32>, vector<16x8xf32> -> vector<16x8xf32>
    %596 = tpu.concatenate %577, %595 in 0 : vector<16x8xf32>, vector<16x8xf32> -> vector<32x8xf32>
    %c3_327 = arith.constant 3 : index
    %c0_328 = arith.constant 0 : index
    %c0_329 = arith.constant 0 : index
    %597 = vector.load %arg31[%c3_327, %c0_328, %c0_329] : memref<4x8x32xf32, #tpu.memory_space<vmem>>, vector<1x8x32xf32>
    %598 = vector.shape_cast %597 : vector<1x8x32xf32> to vector<8x32xf32>
    %cst_330 = arith.constant dense<0.000000e+00> : vector<32x32xf32>
    %599 = tpu.matmul %596, %598, %cst_330 {dimension_numbers = #tpu.dot_dimension_numbers<[1], [0], [0], [1], [0, 0, 1, 1], [], []>} : vector<32x8xf32>, vector<8x32xf32>, vector<32x32xf32> -> vector<32x32xf32>
    %600 = arith.addf %538, %599 : vector<32x32xf32>
    %601 = arith.addf %331, %600 : vector<32x32xf32>
    %c0_331 = arith.constant 0 : index
    %c0_332 = arith.constant 0 : index
    %602 = vector.load %arg32[%c0_331, %c0_332] : memref<1x32xf32, #tpu.memory_space<vmem>>, vector<1x32xf32>
    %603 = vector.broadcast %602 : vector<1x32xf32> to vector<32x32xf32>
    %604 = arith.addf %601, %603 : vector<32x32xf32>
    %c0_333 = arith.constant 0 : index
    %c0_334 = arith.constant 0 : index
    %605 = vector.load %arg33[%c0_333, %c0_334] : memref<1x32xf32, #tpu.memory_space<vmem>>, vector<1x32xf32>
    %c0_335 = arith.constant 0 : index
    %c0_336 = arith.constant 0 : index
    %606 = vector.load %arg34[%c0_335, %c0_336] : memref<1x32xf32, #tpu.memory_space<vmem>>, vector<1x32xf32>
    %cst_337 = arith.constant dense<0.000000e+00> : vector<32xf32>
    %607 = vector.multi_reduction <add>, %604, %cst_337 [1] : vector<32x32xf32> to vector<32xf32>
    %608 = vector.shape_cast %607 : vector<32xf32> to vector<32x1xf32>
    %cst_338 = arith.constant 3.200000e+01 : f32
    %609 = vector.broadcast %cst_338 : f32 to vector<32x1xf32>
    %610 = arith.divf %608, %609 : vector<32x1xf32>
    %611 = vector.broadcast %610 : vector<32x1xf32> to vector<32x32xf32>
    %612 = arith.subf %604, %611 : vector<32x32xf32>
    %613 = arith.mulf %612, %612 : vector<32x32xf32>
    %cst_339 = arith.constant dense<0.000000e+00> : vector<32xf32>
    %614 = vector.multi_reduction <add>, %613, %cst_339 [1] : vector<32x32xf32> to vector<32xf32>
    %615 = vector.shape_cast %614 : vector<32xf32> to vector<32x1xf32>
    %cst_340 = arith.constant 3.200000e+01 : f32
    %616 = vector.broadcast %cst_340 : f32 to vector<32x1xf32>
    %617 = arith.divf %615, %616 : vector<32x1xf32>
    %cst_341 = arith.constant 9.99999997E-7 : f32
    %618 = vector.broadcast %cst_341 : f32 to vector<32x1xf32>
    %619 = arith.addf %617, %618 : vector<32x1xf32>
    %620 = math.rsqrt %619 : vector<32x1xf32>
    %621 = vector.broadcast %620 : vector<32x1xf32> to vector<32x32xf32>
    %622 = arith.mulf %612, %621 : vector<32x32xf32>
    %623 = vector.broadcast %605 : vector<1x32xf32> to vector<32x32xf32>
    %624 = arith.mulf %622, %623 : vector<32x32xf32>
    %625 = vector.broadcast %606 : vector<1x32xf32> to vector<32x32xf32>
    %626 = arith.addf %624, %625 : vector<32x32xf32>
    %c0_342 = arith.constant 0 : index
    %c0_343 = arith.constant 0 : index
    %627 = vector.load %arg35[%c0_342, %c0_343] : memref<32x128xf32, #tpu.memory_space<vmem>>, vector<32x128xf32>
    %cst_344 = arith.constant dense<0.000000e+00> : vector<32x128xf32>
    %628 = tpu.matmul %626, %627, %cst_344 {dimension_numbers = #tpu.dot_dimension_numbers<[1], [0], [0], [1], [0, 0, 1, 1], [], []>} : vector<32x32xf32>, vector<32x128xf32>, vector<32x128xf32> -> vector<32x128xf32>
    %c0_345 = arith.constant 0 : index
    %c0_346 = arith.constant 0 : index
    %629 = vector.load %arg36[%c0_345, %c0_346] : memref<1x128xf32, #tpu.memory_space<vmem>>, vector<1x128xf32>
    %630 = vector.broadcast %629 : vector<1x128xf32> to vector<32x128xf32>
    %631 = arith.addf %628, %630 : vector<32x128xf32>
    %cst_347 = arith.constant 5.000000e-01 : f32
    %632 = vector.broadcast %cst_347 : f32 to vector<32x128xf32>
    %633 = arith.mulf %632, %631 : vector<32x128xf32>
    %cst_348 = arith.constant 0.707106769 : f32
    %634 = vector.broadcast %cst_348 : f32 to vector<32x128xf32>
    %635 = arith.mulf %631, %634 : vector<32x128xf32>
    %636 = math.erf %635 : vector<32x128xf32>
    %cst_349 = arith.constant 1.000000e+00 : f32
    %637 = vector.broadcast %cst_349 : f32 to vector<32x128xf32>
    %638 = arith.addf %637, %636 : vector<32x128xf32>
    %639 = arith.mulf %633, %638 : vector<32x128xf32>
    %c0_350 = arith.constant 0 : index
    %c0_351 = arith.constant 0 : index
    %640 = vector.load %arg37[%c0_350, %c0_351] : memref<128x32xf32, #tpu.memory_space<vmem>>, vector<128x32xf32>
    %cst_352 = arith.constant dense<0.000000e+00> : vector<32x32xf32>
    %641 = tpu.matmul %639, %640, %cst_352 {dimension_numbers = #tpu.dot_dimension_numbers<[1], [0], [0], [1], [0, 0, 1, 1], [], []>} : vector<32x128xf32>, vector<128x32xf32>, vector<32x32xf32> -> vector<32x32xf32>
    %642 = arith.addf %604, %641 : vector<32x32xf32>
    %c0_353 = arith.constant 0 : index
    %c0_354 = arith.constant 0 : index
    %643 = vector.load %arg38[%c0_353, %c0_354] : memref<1x32xf32, #tpu.memory_space<vmem>>, vector<1x32xf32>
    %644 = vector.broadcast %643 : vector<1x32xf32> to vector<32x32xf32>
    %645 = arith.addf %642, %644 : vector<32x32xf32>
    %c0_355 = arith.constant 0 : index
    %c0_356 = arith.constant 0 : index
    %646 = vector.load %arg39[%c0_355, %c0_356] : memref<1x32xf32, #tpu.memory_space<vmem>>, vector<1x32xf32>
    %c0_357 = arith.constant 0 : index
    %c0_358 = arith.constant 0 : index
    %647 = vector.load %arg40[%c0_357, %c0_358] : memref<1x32xf32, #tpu.memory_space<vmem>>, vector<1x32xf32>
    %cst_359 = arith.constant dense<0.000000e+00> : vector<32xf32>
    %648 = vector.multi_reduction <add>, %645, %cst_359 [1] : vector<32x32xf32> to vector<32xf32>
    %649 = vector.shape_cast %648 : vector<32xf32> to vector<32x1xf32>
    %cst_360 = arith.constant 3.200000e+01 : f32
    %650 = vector.broadcast %cst_360 : f32 to vector<32x1xf32>
    %651 = arith.divf %649, %650 : vector<32x1xf32>
    %652 = vector.broadcast %651 : vector<32x1xf32> to vector<32x32xf32>
    %653 = arith.subf %645, %652 : vector<32x32xf32>
    %654 = arith.mulf %653, %653 : vector<32x32xf32>
    %cst_361 = arith.constant dense<0.000000e+00> : vector<32xf32>
    %655 = vector.multi_reduction <add>, %654, %cst_361 [1] : vector<32x32xf32> to vector<32xf32>
    %656 = vector.shape_cast %655 : vector<32xf32> to vector<32x1xf32>
    %cst_362 = arith.constant 3.200000e+01 : f32
    %657 = vector.broadcast %cst_362 : f32 to vector<32x1xf32>
    %658 = arith.divf %656, %657 : vector<32x1xf32>
    %cst_363 = arith.constant 9.99999997E-7 : f32
    %659 = vector.broadcast %cst_363 : f32 to vector<32x1xf32>
    %660 = arith.addf %658, %659 : vector<32x1xf32>
    %661 = math.rsqrt %660 : vector<32x1xf32>
    %662 = vector.broadcast %661 : vector<32x1xf32> to vector<32x32xf32>
    %663 = arith.mulf %653, %662 : vector<32x32xf32>
    %664 = vector.broadcast %646 : vector<1x32xf32> to vector<32x32xf32>
    %665 = arith.mulf %663, %664 : vector<32x32xf32>
    %666 = vector.broadcast %647 : vector<1x32xf32> to vector<32x32xf32>
    %667 = arith.addf %665, %666 : vector<32x32xf32>
    %668 = vector.extract_strided_slice %667 {offsets = [0, 0], sizes = [16, 32], strides = [1, 1]} : vector<32x32xf32> to vector<16x32xf32>
    %c0_364 = arith.constant 0 : index
    %c0_365 = arith.constant 0 : index
    %669 = vector.load %arg41[%c0_364, %c0_365] : memref<32x64xf32, #tpu.memory_space<vmem>>, vector<32x64xf32>
    %cst_366 = arith.constant dense<0.000000e+00> : vector<16x64xf32>
    %670 = tpu.matmul %668, %669, %cst_366 {dimension_numbers = #tpu.dot_dimension_numbers<[1], [0], [0], [1], [0, 0, 1, 1], [], []>} : vector<16x32xf32>, vector<32x64xf32>, vector<16x64xf32> -> vector<16x64xf32>
    %c0_367 = arith.constant 0 : index
    %c0_368 = arith.constant 0 : index
    %671 = vector.load %arg42[%c0_367, %c0_368] : memref<1x64xf32, #tpu.memory_space<vmem>>, vector<1x64xf32>
    %672 = vector.broadcast %671 : vector<1x64xf32> to vector<16x64xf32>
    %673 = arith.addf %670, %672 : vector<16x64xf32>
    %c0_369 = arith.constant 0 : index
    %c0_370 = arith.constant 0 : index
    %674 = vector.load %arg43[%c0_369, %c0_370] : memref<1x64xf32, #tpu.memory_space<vmem>>, vector<1x64xf32>
    %c0_371 = arith.constant 0 : index
    %c0_372 = arith.constant 0 : index
    %675 = vector.load %arg44[%c0_371, %c0_372] : memref<1x64xf32, #tpu.memory_space<vmem>>, vector<1x64xf32>
    %cst_373 = arith.constant dense<0.000000e+00> : vector<16xf32>
    %676 = vector.multi_reduction <add>, %673, %cst_373 [1] : vector<16x64xf32> to vector<16xf32>
    %677 = vector.shape_cast %676 : vector<16xf32> to vector<16x1xf32>
    %cst_374 = arith.constant 6.400000e+01 : f32
    %678 = vector.broadcast %cst_374 : f32 to vector<16x1xf32>
    %679 = arith.divf %677, %678 : vector<16x1xf32>
    %680 = vector.broadcast %679 : vector<16x1xf32> to vector<16x64xf32>
    %681 = arith.subf %673, %680 : vector<16x64xf32>
    %682 = arith.mulf %681, %681 : vector<16x64xf32>
    %cst_375 = arith.constant dense<0.000000e+00> : vector<16xf32>
    %683 = vector.multi_reduction <add>, %682, %cst_375 [1] : vector<16x64xf32> to vector<16xf32>
    %684 = vector.shape_cast %683 : vector<16xf32> to vector<16x1xf32>
    %cst_376 = arith.constant 6.400000e+01 : f32
    %685 = vector.broadcast %cst_376 : f32 to vector<16x1xf32>
    %686 = arith.divf %684, %685 : vector<16x1xf32>
    %cst_377 = arith.constant 9.99999997E-7 : f32
    %687 = vector.broadcast %cst_377 : f32 to vector<16x1xf32>
    %688 = arith.addf %686, %687 : vector<16x1xf32>
    %689 = math.rsqrt %688 : vector<16x1xf32>
    %690 = vector.broadcast %689 : vector<16x1xf32> to vector<16x64xf32>
    %691 = arith.mulf %681, %690 : vector<16x64xf32>
    %692 = vector.broadcast %674 : vector<1x64xf32> to vector<16x64xf32>
    %693 = arith.mulf %691, %692 : vector<16x64xf32>
    %694 = vector.broadcast %675 : vector<1x64xf32> to vector<16x64xf32>
    %695 = arith.addf %693, %694 : vector<16x64xf32>
    %cst_378 = arith.constant 5.000000e-01 : f32
    %696 = vector.broadcast %cst_378 : f32 to vector<16x64xf32>
    %697 = arith.mulf %696, %695 : vector<16x64xf32>
    %cst_379 = arith.constant 0.707106769 : f32
    %698 = vector.broadcast %cst_379 : f32 to vector<16x64xf32>
    %699 = arith.mulf %695, %698 : vector<16x64xf32>
    %700 = math.erf %699 : vector<16x64xf32>
    %cst_380 = arith.constant 1.000000e+00 : f32
    %701 = vector.broadcast %cst_380 : f32 to vector<16x64xf32>
    %702 = arith.addf %701, %700 : vector<16x64xf32>
    %703 = arith.mulf %697, %702 : vector<16x64xf32>
    %c0_381 = arith.constant 0 : index
    %c0_382 = arith.constant 0 : index
    %704 = vector.load %arg45[%c0_381, %c0_382] : memref<64x32xf32, #tpu.memory_space<vmem>>, vector<64x32xf32>
    %cst_383 = arith.constant dense<0.000000e+00> : vector<16x32xf32>
    %705 = tpu.matmul %703, %704, %cst_383 {dimension_numbers = #tpu.dot_dimension_numbers<[1], [0], [0], [1], [0, 0, 1, 1], [], []>} : vector<16x64xf32>, vector<64x32xf32>, vector<16x32xf32> -> vector<16x32xf32>
    %c0_384 = arith.constant 0 : index
    %c0_385 = arith.constant 0 : index
    %706 = vector.load %arg46[%c0_384, %c0_385] : memref<1x32xf32, #tpu.memory_space<vmem>>, vector<1x32xf32>
    %707 = vector.broadcast %706 : vector<1x32xf32> to vector<16x32xf32>
    %708 = arith.addf %705, %707 : vector<16x32xf32>
    %c0_386 = arith.constant 0 : index
    %c0_387 = arith.constant 0 : index
    %709 = vector.load %arg47[%c0_386, %c0_387] : memref<1x32xf32, #tpu.memory_space<vmem>>, vector<1x32xf32>
    %c0_388 = arith.constant 0 : index
    %c0_389 = arith.constant 0 : index
    %710 = vector.load %arg48[%c0_388, %c0_389] : memref<1x32xf32, #tpu.memory_space<vmem>>, vector<1x32xf32>
    %cst_390 = arith.constant dense<0.000000e+00> : vector<16xf32>
    %711 = vector.multi_reduction <add>, %708, %cst_390 [1] : vector<16x32xf32> to vector<16xf32>
    %712 = vector.shape_cast %711 : vector<16xf32> to vector<16x1xf32>
    %cst_391 = arith.constant 3.200000e+01 : f32
    %713 = vector.broadcast %cst_391 : f32 to vector<16x1xf32>
    %714 = arith.divf %712, %713 : vector<16x1xf32>
    %715 = vector.broadcast %714 : vector<16x1xf32> to vector<16x32xf32>
    %716 = arith.subf %708, %715 : vector<16x32xf32>
    %717 = arith.mulf %716, %716 : vector<16x32xf32>
    %cst_392 = arith.constant dense<0.000000e+00> : vector<16xf32>
    %718 = vector.multi_reduction <add>, %717, %cst_392 [1] : vector<16x32xf32> to vector<16xf32>
    %719 = vector.shape_cast %718 : vector<16xf32> to vector<16x1xf32>
    %cst_393 = arith.constant 3.200000e+01 : f32
    %720 = vector.broadcast %cst_393 : f32 to vector<16x1xf32>
    %721 = arith.divf %719, %720 : vector<16x1xf32>
    %cst_394 = arith.constant 9.99999997E-7 : f32
    %722 = vector.broadcast %cst_394 : f32 to vector<16x1xf32>
    %723 = arith.addf %721, %722 : vector<16x1xf32>
    %724 = math.rsqrt %723 : vector<16x1xf32>
    %725 = vector.broadcast %724 : vector<16x1xf32> to vector<16x32xf32>
    %726 = arith.mulf %716, %725 : vector<16x32xf32>
    %727 = vector.broadcast %709 : vector<1x32xf32> to vector<16x32xf32>
    %728 = arith.mulf %726, %727 : vector<16x32xf32>
    %729 = vector.broadcast %710 : vector<1x32xf32> to vector<16x32xf32>
    %730 = arith.addf %728, %729 : vector<16x32xf32>
    %731 = vector.extract_strided_slice %667 {offsets = [16, 0], sizes = [16, 32], strides = [1, 1]} : vector<32x32xf32> to vector<16x32xf32>
    %732 = tpu.concatenate %730, %731 in 0 : vector<16x32xf32>, vector<16x32xf32> -> vector<32x32xf32>
    %c0_395 = arith.constant 0 : index
    %c0_396 = arith.constant 0 : index
    %733 = vector.load %arg49[%c0_395, %c0_396] : memref<32x192xf32, #tpu.memory_space<vmem>>, vector<32x192xf32>
    %cst_397 = arith.constant dense<0.000000e+00> : vector<32x192xf32>
    %734 = tpu.matmul %667, %733, %cst_397 {dimension_numbers = #tpu.dot_dimension_numbers<[1], [0], [0], [1], [0, 0, 1, 1], [], []>} : vector<32x32xf32>, vector<32x192xf32>, vector<32x192xf32> -> vector<32x192xf32>
    %c0_398 = arith.constant 0 : index
    %c0_399 = arith.constant 0 : index
    %735 = vector.load %arg50[%c0_398, %c0_399] : memref<192x192xf32, #tpu.memory_space<vmem>>, vector<192x192xf32>
    %cst_400 = arith.constant dense<0.000000e+00> : vector<32x192xf32>
    %736 = tpu.matmul %734, %735, %cst_400 {dimension_numbers = #tpu.dot_dimension_numbers<[1], [0], [0], [1], [0, 0, 1, 1], [], []>} : vector<32x192xf32>, vector<192x192xf32>, vector<32x192xf32> -> vector<32x192xf32>
    %c0_401 = arith.constant 0 : index
    %c0_402 = arith.constant 0 : index
    %737 = vector.load %arg51[%c0_401, %c0_402] : memref<1x192xf32, #tpu.memory_space<vmem>>, vector<1x192xf32>
    %c0_403 = arith.constant 0 : index
    %c0_404 = arith.constant 0 : index
    %738 = vector.load %arg52[%c0_403, %c0_404] : memref<1x192xf32, #tpu.memory_space<vmem>>, vector<1x192xf32>
    %cst_405 = arith.constant dense<0.000000e+00> : vector<32xf32>
    %739 = vector.multi_reduction <add>, %736, %cst_405 [1] : vector<32x192xf32> to vector<32xf32>
    %740 = vector.shape_cast %739 : vector<32xf32> to vector<32x1xf32>
    %cst_406 = arith.constant 1.920000e+02 : f32
    %741 = vector.broadcast %cst_406 : f32 to vector<32x1xf32>
    %742 = arith.divf %740, %741 : vector<32x1xf32>
    %743 = vector.broadcast %742 : vector<32x1xf32> to vector<32x192xf32>
    %744 = arith.subf %736, %743 : vector<32x192xf32>
    %745 = arith.mulf %744, %744 : vector<32x192xf32>
    %cst_407 = arith.constant dense<0.000000e+00> : vector<32xf32>
    %746 = vector.multi_reduction <add>, %745, %cst_407 [1] : vector<32x192xf32> to vector<32xf32>
    %747 = vector.shape_cast %746 : vector<32xf32> to vector<32x1xf32>
    %cst_408 = arith.constant 1.920000e+02 : f32
    %748 = vector.broadcast %cst_408 : f32 to vector<32x1xf32>
    %749 = arith.divf %747, %748 : vector<32x1xf32>
    %cst_409 = arith.constant 9.99999997E-7 : f32
    %750 = vector.broadcast %cst_409 : f32 to vector<32x1xf32>
    %751 = arith.addf %749, %750 : vector<32x1xf32>
    %752 = math.rsqrt %751 : vector<32x1xf32>
    %753 = vector.broadcast %752 : vector<32x1xf32> to vector<32x192xf32>
    %754 = arith.mulf %744, %753 : vector<32x192xf32>
    %755 = vector.broadcast %737 : vector<1x192xf32> to vector<32x192xf32>
    %756 = arith.mulf %754, %755 : vector<32x192xf32>
    %757 = vector.broadcast %738 : vector<1x192xf32> to vector<32x192xf32>
    %758 = arith.addf %756, %757 : vector<32x192xf32>
    %cst_410 = arith.constant 5.000000e-01 : f32
    %759 = vector.broadcast %cst_410 : f32 to vector<32x192xf32>
    %760 = arith.mulf %759, %758 : vector<32x192xf32>
    %cst_411 = arith.constant 0.707106769 : f32
    %761 = vector.broadcast %cst_411 : f32 to vector<32x192xf32>
    %762 = arith.mulf %758, %761 : vector<32x192xf32>
    %763 = math.erf %762 : vector<32x192xf32>
    %cst_412 = arith.constant 1.000000e+00 : f32
    %764 = vector.broadcast %cst_412 : f32 to vector<32x192xf32>
    %765 = arith.addf %764, %763 : vector<32x192xf32>
    %766 = arith.mulf %760, %765 : vector<32x192xf32>
    %c0_413 = arith.constant 0 : index
    %c0_414 = arith.constant 0 : index
    %767 = vector.load %arg53[%c0_413, %c0_414] : memref<192x48xf32, #tpu.memory_space<vmem>>, vector<192x48xf32>
    %cst_415 = arith.constant dense<0.000000e+00> : vector<32x48xf32>
    %768 = tpu.matmul %766, %767, %cst_415 {dimension_numbers = #tpu.dot_dimension_numbers<[1], [0], [0], [1], [0, 0, 1, 1], [], []>} : vector<32x192xf32>, vector<192x48xf32>, vector<32x48xf32> -> vector<32x48xf32>
    %c0_416 = arith.constant 0 : index
    %c0_417 = arith.constant 0 : index
    %769 = vector.load %arg54[%c0_416, %c0_417] : memref<1x48xf32, #tpu.memory_space<vmem>>, vector<1x48xf32>
    %770 = vector.broadcast %769 : vector<1x48xf32> to vector<32x48xf32>
    %771 = arith.addf %768, %770 : vector<32x48xf32>
    %c0_418 = arith.constant 0 : index
    %c0_419 = arith.constant 0 : index
    %772 = vector.load %arg67[%c0_418, %c0_419] : memref<32x48xf32, #tpu.memory_space<vmem>>, vector<32x48xf32>
    tpu.vector_store %arg67[%c0_418, %c0_419], %771 {strides = array<i32>} : memref<32x48xf32, #tpu.memory_space<vmem>>, vector<32x48xf32>,
    %c0_420 = arith.constant 0 : index
    %c0_421 = arith.constant 0 : index
    %773 = vector.load %arg55[%c0_420, %c0_421] : memref<32x32xf32, #tpu.memory_space<vmem>>, vector<32x32xf32>
    %cst_422 = arith.constant dense<0.000000e+00> : vector<32x32xf32>
    %774 = tpu.matmul %732, %773, %cst_422 {dimension_numbers = #tpu.dot_dimension_numbers<[1], [0], [0], [1], [0, 0, 1, 1], [], []>} : vector<32x32xf32>, vector<32x32xf32>, vector<32x32xf32> -> vector<32x32xf32>
    %c0_423 = arith.constant 0 : index
    %c0_424 = arith.constant 0 : index
    %775 = vector.load %arg56[%c0_423, %c0_424] : memref<1x32xf32, #tpu.memory_space<vmem>>, vector<1x32xf32>
    %776 = vector.broadcast %775 : vector<1x32xf32> to vector<32x32xf32>
    %777 = arith.addf %774, %776 : vector<32x32xf32>
    %c0_425 = arith.constant 0 : index
    %c0_426 = arith.constant 0 : index
    %778 = vector.load %arg57[%c0_425, %c0_426] : memref<1x32xf32, #tpu.memory_space<vmem>>, vector<1x32xf32>
    %c0_427 = arith.constant 0 : index
    %c0_428 = arith.constant 0 : index
    %779 = vector.load %arg58[%c0_427, %c0_428] : memref<1x32xf32, #tpu.memory_space<vmem>>, vector<1x32xf32>
    %cst_429 = arith.constant dense<0.000000e+00> : vector<32xf32>
    %780 = vector.multi_reduction <add>, %777, %cst_429 [1] : vector<32x32xf32> to vector<32xf32>
    %781 = vector.shape_cast %780 : vector<32xf32> to vector<32x1xf32>
    %cst_430 = arith.constant 3.200000e+01 : f32
    %782 = vector.broadcast %cst_430 : f32 to vector<32x1xf32>
    %783 = arith.divf %781, %782 : vector<32x1xf32>
    %784 = vector.broadcast %783 : vector<32x1xf32> to vector<32x32xf32>
    %785 = arith.subf %777, %784 : vector<32x32xf32>
    %786 = arith.mulf %785, %785 : vector<32x32xf32>
    %cst_431 = arith.constant dense<0.000000e+00> : vector<32xf32>
    %787 = vector.multi_reduction <add>, %786, %cst_431 [1] : vector<32x32xf32> to vector<32xf32>
    %788 = vector.shape_cast %787 : vector<32xf32> to vector<32x1xf32>
    %cst_432 = arith.constant 3.200000e+01 : f32
    %789 = vector.broadcast %cst_432 : f32 to vector<32x1xf32>
    %790 = arith.divf %788, %789 : vector<32x1xf32>
    %cst_433 = arith.constant 9.99999974E-6 : f32
    %791 = vector.broadcast %cst_433 : f32 to vector<32x1xf32>
    %792 = arith.addf %790, %791 : vector<32x1xf32>
    %793 = math.rsqrt %792 : vector<32x1xf32>
    %794 = vector.broadcast %793 : vector<32x1xf32> to vector<32x32xf32>
    %795 = arith.mulf %785, %794 : vector<32x32xf32>
    %796 = vector.broadcast %778 : vector<1x32xf32> to vector<32x32xf32>
    %797 = arith.mulf %795, %796 : vector<32x32xf32>
    %798 = vector.broadcast %779 : vector<1x32xf32> to vector<32x32xf32>
    %799 = arith.addf %797, %798 : vector<32x32xf32>
    %c0_434 = arith.constant 0 : index
    %c0_435 = arith.constant 0 : index
    %800 = vector.load %arg2[%c0_434, %c0_435] : memref<16x32xf32, #tpu.memory_space<vmem>>, vector<16x32xf32>
    %c0_436 = arith.constant 0 : index
    %c0_437 = arith.constant 0 : index
    %801 = vector.load %arg59[%c0_436, %c0_437] : memref<32x32xf32, #tpu.memory_space<vmem>>, vector<32x32xf32>
    %cst_438 = arith.constant dense<0.000000e+00> : vector<16x32xf32>
    %802 = tpu.matmul %800, %801, %cst_438 {dimension_numbers = #tpu.dot_dimension_numbers<[1], [0], [0], [1], [0, 0, 1, 1], [], []>} : vector<16x32xf32>, vector<32x32xf32>, vector<16x32xf32> -> vector<16x32xf32>
    %c0_439 = arith.constant 0 : index
    %c0_440 = arith.constant 0 : index
    %803 = vector.load %arg60[%c0_439, %c0_440] : memref<32x32xf32, #tpu.memory_space<vmem>>, vector<32x32xf32>
    %cst_441 = arith.constant dense<0.000000e+00> : vector<32x32xf32>
    %804 = tpu.matmul %799, %803, %cst_441 {dimension_numbers = #tpu.dot_dimension_numbers<[1], [0], [0], [1], [0, 0, 1, 1], [], []>} : vector<32x32xf32>, vector<32x32xf32>, vector<32x32xf32> -> vector<32x32xf32>
    %c0_442 = arith.constant 0 : index
    %c0_443 = arith.constant 0 : index
    %805 = vector.load %arg61[%c0_442, %c0_443] : memref<32x32xf32, #tpu.memory_space<vmem>>, vector<32x32xf32>
    %cst_444 = arith.constant dense<0.000000e+00> : vector<32x32xf32>
    %806 = tpu.matmul %799, %805, %cst_444 {dimension_numbers = #tpu.dot_dimension_numbers<[1], [0], [0], [1], [0, 0, 1, 1], [], []>} : vector<32x32xf32>, vector<32x32xf32>, vector<32x32xf32> -> vector<32x32xf32>
    %807 = vector.extract_strided_slice %802 {offsets = [0, 0], sizes = [8, 32], strides = [1, 1]} : vector<16x32xf32> to vector<8x32xf32>
    %808 = vector.extract_strided_slice %804 {offsets = [0, 0], sizes = [16, 32], strides = [1, 1]} : vector<32x32xf32> to vector<16x32xf32>
    %809 = tpu.transpose %808, [1, 0] : vector<16x32xf32> -> vector<32x16xf32>
    %cst_445 = arith.constant dense<0.000000e+00> : vector<8x16xf32>
    %810 = tpu.matmul %807, %809, %cst_445 {dimension_numbers = #tpu.dot_dimension_numbers<[1], [0], [0], [1], [0, 0, 1, 1], [], []>} : vector<8x32xf32>, vector<32x16xf32>, vector<8x16xf32> -> vector<8x16xf32>
    %cst_446 = arith.constant 0.176776692 : f32
    %811 = vector.broadcast %cst_446 : f32 to vector<8x16xf32>
    %812 = arith.mulf %810, %811 : vector<8x16xf32>
    %cst_447 = arith.constant dense<0xFF800000> : vector<8xf32>
    %813 = vector.multi_reduction <maximumf>, %812, %cst_447 [1] : vector<8x16xf32> to vector<8xf32>
    %814 = vector.shape_cast %813 : vector<8xf32> to vector<8x1xf32>
    %815 = vector.broadcast %814 : vector<8x1xf32> to vector<8x16xf32>
    %816 = arith.subf %812, %815 : vector<8x16xf32>
    %817 = math.exp %816 : vector<8x16xf32>
    %cst_448 = arith.constant dense<0.000000e+00> : vector<8xf32>
    %818 = vector.multi_reduction <add>, %817, %cst_448 [1] : vector<8x16xf32> to vector<8xf32>
    %819 = vector.shape_cast %818 : vector<8xf32> to vector<8x1xf32>
    %820 = tpu.reciprocal %819 {approx = true} : vector<8x1xf32> -> vector<8x1xf32>
    %821 = vector.broadcast %820 : vector<8x1xf32> to vector<8x16xf32>
    %822 = arith.mulf %817, %821 : vector<8x16xf32>
    %823 = vector.extract_strided_slice %806 {offsets = [0, 0], sizes = [16, 32], strides = [1, 1]} : vector<32x32xf32> to vector<16x32xf32>
    %cst_449 = arith.constant dense<0.000000e+00> : vector<8x32xf32>
    %824 = tpu.matmul %822, %823, %cst_449 {dimension_numbers = #tpu.dot_dimension_numbers<[1], [0], [0], [1], [0, 0, 1, 1], [], []>} : vector<8x16xf32>, vector<16x32xf32>, vector<8x32xf32> -> vector<8x32xf32>
    %825 = vector.extract_strided_slice %802 {offsets = [8, 0], sizes = [8, 32], strides = [1, 1]} : vector<16x32xf32> to vector<8x32xf32>
    %826 = vector.extract_strided_slice %804 {offsets = [16, 0], sizes = [16, 32], strides = [1, 1]} : vector<32x32xf32> to vector<16x32xf32>
    %827 = tpu.transpose %826, [1, 0] : vector<16x32xf32> -> vector<32x16xf32>
    %cst_450 = arith.constant dense<0.000000e+00> : vector<8x16xf32>
    %828 = tpu.matmul %825, %827, %cst_450 {dimension_numbers = #tpu.dot_dimension_numbers<[1], [0], [0], [1], [0, 0, 1, 1], [], []>} : vector<8x32xf32>, vector<32x16xf32>, vector<8x16xf32> -> vector<8x16xf32>
    %cst_451 = arith.constant 0.176776692 : f32
    %829 = vector.broadcast %cst_451 : f32 to vector<8x16xf32>
    %830 = arith.mulf %828, %829 : vector<8x16xf32>
    %cst_452 = arith.constant dense<0xFF800000> : vector<8xf32>
    %831 = vector.multi_reduction <maximumf>, %830, %cst_452 [1] : vector<8x16xf32> to vector<8xf32>
    %832 = vector.shape_cast %831 : vector<8xf32> to vector<8x1xf32>
    %833 = vector.broadcast %832 : vector<8x1xf32> to vector<8x16xf32>
    %834 = arith.subf %830, %833 : vector<8x16xf32>
    %835 = math.exp %834 : vector<8x16xf32>
    %cst_453 = arith.constant dense<0.000000e+00> : vector<8xf32>
    %836 = vector.multi_reduction <add>, %835, %cst_453 [1] : vector<8x16xf32> to vector<8xf32>
    %837 = vector.shape_cast %836 : vector<8xf32> to vector<8x1xf32>
    %838 = tpu.reciprocal %837 {approx = true} : vector<8x1xf32> -> vector<8x1xf32>
    %839 = vector.broadcast %838 : vector<8x1xf32> to vector<8x16xf32>
    %840 = arith.mulf %835, %839 : vector<8x16xf32>
    %841 = vector.extract_strided_slice %806 {offsets = [16, 0], sizes = [16, 32], strides = [1, 1]} : vector<32x32xf32> to vector<16x32xf32>
    %cst_454 = arith.constant dense<0.000000e+00> : vector<8x32xf32>
    %842 = tpu.matmul %840, %841, %cst_454 {dimension_numbers = #tpu.dot_dimension_numbers<[1], [0], [0], [1], [0, 0, 1, 1], [], []>} : vector<8x16xf32>, vector<16x32xf32>, vector<8x32xf32> -> vector<8x32xf32>
    %843 = tpu.concatenate %824, %842 in 0 : vector<8x32xf32>, vector<8x32xf32> -> vector<16x32xf32>
    %844 = tpu.concatenate %822, %840 in 0 : vector<8x16xf32>, vector<8x16xf32> -> vector<16x16xf32>
    %c0_455 = arith.constant 0 : index
    %c0_456 = arith.constant 0 : index
    %845 = vector.load %arg62[%c0_455, %c0_456] : memref<32x32xf32, #tpu.memory_space<vmem>>, vector<32x32xf32>
    %cst_457 = arith.constant dense<0.000000e+00> : vector<16x32xf32>
    %846 = tpu.matmul %843, %845, %cst_457 {dimension_numbers = #tpu.dot_dimension_numbers<[1], [0], [0], [1], [0, 0, 1, 1], [], []>} : vector<16x32xf32>, vector<32x32xf32>, vector<16x32xf32> -> vector<16x32xf32>
    %847 = arith.addf %800, %846 : vector<16x32xf32>
    %c0_458 = arith.constant 0 : index
    %c0_459 = arith.constant 0 : index
    %848 = vector.load %arg63[%c0_458, %c0_459] : memref<1x32xf32, #tpu.memory_space<vmem>>, vector<1x32xf32>
    %c0_460 = arith.constant 0 : index
    %c0_461 = arith.constant 0 : index
    %849 = vector.load %arg64[%c0_460, %c0_461] : memref<1x32xf32, #tpu.memory_space<vmem>>, vector<1x32xf32>
    %cst_462 = arith.constant dense<0.000000e+00> : vector<16xf32>
    %850 = vector.multi_reduction <add>, %847, %cst_462 [1] : vector<16x32xf32> to vector<16xf32>
    %851 = vector.shape_cast %850 : vector<16xf32> to vector<16x1xf32>
    %cst_463 = arith.constant 3.200000e+01 : f32
    %852 = vector.broadcast %cst_463 : f32 to vector<16x1xf32>
    %853 = arith.divf %851, %852 : vector<16x1xf32>
    %854 = vector.broadcast %853 : vector<16x1xf32> to vector<16x32xf32>
    %855 = arith.subf %847, %854 : vector<16x32xf32>
    %856 = arith.mulf %855, %855 : vector<16x32xf32>
    %cst_464 = arith.constant dense<0.000000e+00> : vector<16xf32>
    %857 = vector.multi_reduction <add>, %856, %cst_464 [1] : vector<16x32xf32> to vector<16xf32>
    %858 = vector.shape_cast %857 : vector<16xf32> to vector<16x1xf32>
    %cst_465 = arith.constant 3.200000e+01 : f32
    %859 = vector.broadcast %cst_465 : f32 to vector<16x1xf32>
    %860 = arith.divf %858, %859 : vector<16x1xf32>
    %cst_466 = arith.constant 9.99999997E-7 : f32
    %861 = vector.broadcast %cst_466 : f32 to vector<16x1xf32>
    %862 = arith.addf %860, %861 : vector<16x1xf32>
    %863 = math.rsqrt %862 : vector<16x1xf32>
    %864 = vector.broadcast %863 : vector<16x1xf32> to vector<16x32xf32>
    %865 = arith.mulf %855, %864 : vector<16x32xf32>
    %866 = vector.broadcast %848 : vector<1x32xf32> to vector<16x32xf32>
    %867 = arith.mulf %865, %866 : vector<16x32xf32>
    %868 = vector.broadcast %849 : vector<1x32xf32> to vector<16x32xf32>
    %869 = arith.addf %867, %868 : vector<16x32xf32>
    %c0_467 = arith.constant 0 : index
    %c0_468 = arith.constant 0 : index
    %870 = vector.load %arg65[%c0_467, %c0_468] : memref<32x10xf32, #tpu.memory_space<vmem>>, vector<32x10xf32>
    %cst_469 = arith.constant dense<0.000000e+00> : vector<16x10xf32>
    %871 = tpu.matmul %869, %870, %cst_469 {dimension_numbers = #tpu.dot_dimension_numbers<[1], [0], [0], [1], [0, 0, 1, 1], [], []>} : vector<16x32xf32>, vector<32x10xf32>, vector<16x10xf32> -> vector<16x10xf32>
    %c0_470 = arith.constant 0 : index
    %c0_471 = arith.constant 0 : index
    %872 = vector.load %arg66[%c0_470, %c0_471] : memref<1x10xf32, #tpu.memory_space<vmem>>, vector<1x10xf32>
    %873 = vector.broadcast %872 : vector<1x10xf32> to vector<16x10xf32>
    %874 = arith.addf %871, %873 : vector<16x10xf32>
    %c0_472 = arith.constant 0 : index
    %c0_473 = arith.constant 0 : index
    %875 = vector.load %arg68[%c0_472, %c0_473] : memref<16x10xf32, #tpu.memory_space<vmem>>, vector<16x10xf32>
    tpu.vector_store %arg68[%c0_472, %c0_473], %874 {strides = array<i32>} : memref<16x10xf32, #tpu.memory_space<vmem>>, vector<16x10xf32>,
    %c0_474 = arith.constant 0 : index
    %c0_475 = arith.constant 0 : index
    %876 = vector.load %arg69[%c0_474, %c0_475] : memref<16x16xf32, #tpu.memory_space<vmem>>, vector<16x16xf32>
    tpu.vector_store %arg69[%c0_474, %c0_475], %844 {strides = array<i32>} : memref<16x16xf32, #tpu.memory_space<vmem>>, vector<16x16xf32>,
    return
  }
}

</mosaic_0001>

<llo_original>
// kernel: mim_rec_forward.1
$region0: #{mim_rec_forward.1}
  #allocation0 [shape = 'u32[]', space=smem, size = 0x4, offset = 0x4, fixed_abs, tag = 'smem constant byte address 0x4 - core index']
  #allocation1 [shape = 'u32[144,128]{1,0:T(1,128)}', space=vmem, size = 0x12000, scoped, tag = 'internal scratch']
  %s0 = inlined_call_operand.smem [shape: u32[70], index: -1, kind: input, shape index: {}]
  %s1 = sld [smem:[%s0]]
  %s2 = scalar_lea.smem %s0, 1
  %s3 = sld [smem:[%s2]]
  %s4 = scalar_lea.smem %s0, 2
  %s5 = sld [smem:[%s4]]
  %s6 = scalar_lea.smem %s0, 3
  %s7 = sld [smem:[%s6]]
  %s8 = scalar_lea.smem %s0, 4
  %s9 = sld [smem:[%s8]]
  %s10 = scalar_lea.smem %s0, 5
  %s11 = sld [smem:[%s10]]
  %s12 = scalar_lea.smem %s0, 6
  %s13 = sld [smem:[%s12]]
  %s14 = scalar_lea.smem %s0, 7
  %s15 = sld [smem:[%s14]]
  %s16 = scalar_lea.smem %s0, 8
  %s17 = sld [smem:[%s16]]
  %s18 = scalar_lea.smem %s0, 9
  %s19 = sld [smem:[%s18]]
  %s20 = scalar_lea.smem %s0, 10
  %s21 = sld [smem:[%s20]]
  %s22 = scalar_lea.smem %s0, 11
  %s23 = sld [smem:[%s22]]
  %s24 = scalar_lea.smem %s0, 12
  %s25 = sld [smem:[%s24]]
  %s26 = scalar_lea.smem %s0, 13
  %s27 = sld [smem:[%s26]]
  %s28 = scalar_lea.smem %s0, 14
  %s29 = sld [smem:[%s28]]
  %s30 = scalar_lea.smem %s0, 15
  %s31 = sld [smem:[%s30]]
  %s32 = scalar_lea.smem %s0, 16
  %s33 = sld [smem:[%s32]]
  %s34 = scalar_lea.smem %s0, 17
  %s35 = sld [smem:[%s34]]
  %s36 = scalar_lea.smem %s0, 18
  %s37 = sld [smem:[%s36]]
  %s38 = scalar_lea.smem %s0, 19
  %s39 = sld [smem:[%s38]]
  %s40 = scalar_lea.smem %s0, 20
  %s41 = sld [smem:[%s40]]
  %s42 = scalar_lea.smem %s0, 21
  %s43 = sld [smem:[%s42]]
  %s44 = scalar_lea.smem %s0, 22
  %s45 = sld [smem:[%s44]]
  %s46 = scalar_lea.smem %s0, 23
  %s47 = sld [smem:[%s46]]
  %s48 = scalar_lea.smem %s0, 24
  %s49 = sld [smem:[%s48]]
  %s50 = scalar_lea.smem %s0, 25
  %s51 = sld [smem:[%s50]]
  %s52 = scalar_lea.smem %s0, 26
  %s53 = sld [smem:[%s52]]
  %s54 = scalar_lea.smem %s0, 27
  %s55 = sld [smem:[%s54]]
  %s56 = scalar_lea.smem %s0, 28
  %s57 = sld [smem:[%s56]]
  %s58 = scalar_lea.smem %s0, 29
  %s59 = sld [smem:[%s58]]
  %s60 = scalar_lea.smem %s0, 30
  %s61 = sld [smem:[%s60]]
  %s62 = scalar_lea.smem %s0, 31
  %s63 = sld [smem:[%s62]]
  %s64 = scalar_lea.smem %s0, 32
  %s65 = sld [smem:[%s64]]
  %s66 = scalar_lea.smem %s0, 33
  %s67 = sld [smem:[%s66]]
  %s68 = scalar_lea.smem %s0, 34
  %s69 = sld [smem:[%s68]]
  %s70 = scalar_lea.smem %s0, 35
  %s71 = sld [smem:[%s70]]
  %s72 = scalar_lea.smem %s0, 36
  %s73 = sld [smem:[%s72]]
  %s74 = scalar_lea.smem %s0, 37
  %s75 = sld [smem:[%s74]]
  %s76 = scalar_lea.smem %s0, 38
  %s77 = sld [smem:[%s76]]
  %s78 = scalar_lea.smem %s0, 39
  %s79 = sld [smem:[%s78]]
  %s80 = scalar_lea.smem %s0, 40
  %s81 = sld [smem:[%s80]]
  %s82 = scalar_lea.smem %s0, 41
  %s83 = sld [smem:[%s82]]
  %s84 = scalar_lea.smem %s0, 42
  %s85 = sld [smem:[%s84]]
  %s86 = scalar_lea.smem %s0, 43
  %s87 = sld [smem:[%s86]]
  %s88 = scalar_lea.smem %s0, 44
  %s89 = sld [smem:[%s88]]
  %s90 = scalar_lea.smem %s0, 45
  %s91 = sld [smem:[%s90]]
  %s92 = scalar_lea.smem %s0, 46
  %s93 = sld [smem:[%s92]]
  %s94 = scalar_lea.smem %s0, 47
  %s95 = sld [smem:[%s94]]
  %s96 = scalar_lea.smem %s0, 48
  %s97 = sld [smem:[%s96]]
  %s98 = scalar_lea.smem %s0, 49
  %s99 = sld [smem:[%s98]]
  %s100 = scalar_lea.smem %s0, 50
  %s101 = sld [smem:[%s100]]
  %s102 = scalar_lea.smem %s0, 51
  %s103 = sld [smem:[%s102]]
  %s104 = scalar_lea.smem %s0, 52
  %s105 = sld [smem:[%s104]]
  %s106 = scalar_lea.smem %s0, 53
  %s107 = sld [smem:[%s106]]
  %s108 = scalar_lea.smem %s0, 54
  %s109 = sld [smem:[%s108]]
  %s110 = scalar_lea.smem %s0, 55
  %s111 = sld [smem:[%s110]]
  %s112 = scalar_lea.smem %s0, 56
  %s113 = sld [smem:[%s112]]
  %s114 = scalar_lea.smem %s0, 57
  %s115 = sld [smem:[%s114]]
  %s116 = scalar_lea.smem %s0, 58
  %s117 = sld [smem:[%s116]]
  %s118 = scalar_lea.smem %s0, 59
  %s119 = sld [smem:[%s118]]
  %s120 = scalar_lea.smem %s0, 60
  %s121 = sld [smem:[%s120]]
  %s122 = scalar_lea.smem %s0, 61
  %s123 = sld [smem:[%s122]]
  %s124 = scalar_lea.smem %s0, 62
  %s125 = sld [smem:[%s124]]
  %s126 = scalar_lea.smem %s0, 63
  %s127 = sld [smem:[%s126]]
  %s128 = scalar_lea.smem %s0, 64
  %s129 = sld [smem:[%s128]]
  %s130 = scalar_lea.smem %s0, 65
  %s131 = sld [smem:[%s130]]
  %s132 = scalar_lea.smem %s0, 66
  %s133 = sld [smem:[%s132]]
  %s134 = scalar_lea.smem %s0, 67
  %s135 = sld [smem:[%s134]]
  %s136 = scalar_lea.smem %s0, 68
  %s137 = sld [smem:[%s136]]
  %s138 = scalar_lea.smem %s0, 69
  %s139 = sld [smem:[%s138]]
  %140 = xla_tuple %s135, %s137, %s139
  %s141 = sld [smem:[#allocation0]]
  $region346: #{mim_rec_forward.1} parent=0
    _
  %s143 = ssub.s32 1, %s141
  %s144 = scalar_select 0, %s143, %s141
  $region1: #{mim_rec_forward.1} parent=0
    #allocation2 [shape = 'u8[24576]{0}', space=vmem, size = 0x6000, scoped, tag = 'input window, operand 3, single buffered']
    #allocation3 [shape = 's32[1]{0}', space=sflag, size = 0x4, scoped, tag = 'scoped memory for mim_rec_forward.1']
    #allocation4 [shape = 's32[1]{0}', space=sflag, size = 0x4, scoped, tag = 'scoped memory for mim_rec_forward.1']
    #allocation5 [shape = 'u8[512]{0}', space=vmem, size = 0x400, scoped, tag = 'input window, operand 6, single buffered']
    #allocation6 [shape = 's32[1]{0}', space=sflag, size = 0x4, scoped, tag = 'scoped memory for mim_rec_forward.1']
    #allocation7 [shape = 'u8[16384]{0}', space=vmem, size = 0x4000, scoped, tag = 'input window, operand 15, single buffered']
    #allocation8 [shape = 'u8[16384]{0}', space=vmem, size = 0x4000, scoped, tag = 'input window, operand 19, single buffered']
    #allocation9 [shape = 's32[1]{0}', space=sflag, size = 0x4, scoped, tag = 'scoped memory for mim_rec_forward.1']
    #allocation10 [shape = 'u8[16384]{0}', space=vmem, size = 0x4000, scoped, tag = 'input window, operand 35, single buffered']
    #allocation11 [shape = 'u8[16384]{0}', space=vmem, size = 0x4000, scoped, tag = 'input window, operand 41, single buffered']
    #allocation12 [shape = 's32[1]{0}', space=sflag, size = 0x4, scoped, tag = 'scoped memory for mim_rec_forward.1']
    #allocation13 [shape = 'u8[32768]{0}', space=vmem, size = 0x8000, scoped, tag = 'input window, operand 49, single buffered']
    #allocation14 [shape = 'u8[16384]{0}', space=vmem, size = 0x4000, scoped, tag = 'input window, operand 55, single buffered']
    #allocation15 [shape = 's32[1]{0}', space=sflag, size = 0x4, scoped, tag = 'scoped memory for mim_rec_forward.1']
    #allocation16 [shape = 'u8[16384]{0}', space=vmem, size = 0x4000, scoped, tag = 'input window, operand 59, single buffered']
    #allocation17 [shape = 'u8[16384]{0}', space=vmem, size = 0x4000, scoped, tag = 'input window, operand 60, single buffered']
    #allocation18 [shape = 's32[1]{0}', space=sflag, size = 0x4, scoped, tag = 'scoped memory for mim_rec_forward.1']
    #allocation19 [shape = 'u8[16384]{0}', space=vmem, size = 0x4000, scoped, tag = 'input window, operand 61, single buffered']
    #allocation20 [shape = 'u8[16384]{0}', space=vmem, size = 0x4000, scoped, tag = 'input window, operand 62, single buffered']
    #allocation21 [shape = 's32[1]{0}', space=sflag, size = 0x4, scoped, tag = 'scoped memory for mim_rec_forward.1']
    #allocation22 [shape = 'u8[16384]{0}', space=vmem, size = 0x4000, scoped, tag = 'input window, operand 65, single buffered']
    #allocation23 [shape = 'u8[16384]{0}', space=vmem, size = 0x4000, scoped, tag = 'output window, operand 0, single buffered']
    #allocation24 [shape = 'u8[8192]{0}', space=vmem, size = 0x2000, scoped, tag = 'output window, operand 1, single buffered']
    #allocation25 [shape = 's32[1]{0}', space=sflag, size = 0x4, scoped, tag = 'scoped memory for mim_rec_forward.1']
    #allocation26 [shape = 'u8[8192]{0}', space=vmem, size = 0x2000, scoped, tag = 'output window, operand 2, single buffered']
    %145 = vsyncpa [#allocation3], 0
    %146 = vsyncpa [#allocation6], 0
    %147 = vsyncpa [#allocation9], 0
    %148 = vsyncpa [#allocation12], 0
    %149 = vsyncpa [#allocation15], 0
    %150 = vsyncpa [#allocation18], 0
    %151 = vsyncpa [#allocation21], 0
    %152 = vsyncpa [#allocation4], 0
    %153 = vsyncpa [#allocation25], 0
    // Predicated region
    $region2: #{mim_rec_forward.1} parent=1 // pred_check
      _
    $region3: #{mim_rec_forward.1} parent=1 // pred_check_branch
      %155 = sbr.rel (0) target = $region5
    $region4: #{mim_rec_forward.1} parent=1 // pred_region
      _
    $region5: #{mim_rec_forward.1} parent=1 // pred_fallthru
      _
    // Predicated region
    $region6: #{mim_rec_forward.1} parent=1 // pred_check
      _
    $region7: #{mim_rec_forward.1} parent=1 // pred_check_branch
      %157 = sbr.rel (0) target = $region9
    $region8: #{mim_rec_forward.1} parent=1 // pred_region
      _
    $region9: #{mim_rec_forward.1} parent=1 // pred_fallthru
      _
    // Predicated region
    $region10: #{mim_rec_forward.1} parent=1 // pred_check
      _
    $region11: #{mim_rec_forward.1} parent=1 // pred_check_branch
      %159 = sbr.rel (0) target = $region13
    $region12: #{mim_rec_forward.1} parent=1 // pred_region
      _
    $region13: #{mim_rec_forward.1} parent=1 // pred_fallthru
      _
    // Predicated region
    $region14: #{mim_rec_forward.1} parent=1 // pred_check
      _
    $region15: #{mim_rec_forward.1} parent=1 // pred_check_branch
      %161 = sbr.rel (0) target = $region17
    $region16: #{mim_rec_forward.1} parent=1 // pred_region
      %s163 = ssub.s32 768, 768
      %164 = vsyncadd [#allocation3], %s163
      %s165 = sshll.u32 [#allocation2], 4
      %s166 = int_to_ptr.vmem [resolvable:$true] %s165
      %171 = dma.hbm_to_vmem [thread:$0]  %s7, 768, %s166, [#allocation3], 128, 128, 8
    $region17: #{mim_rec_forward.1} parent=1 // pred_fallthru
      _
    // Predicated region
    $region18: #{mim_rec_forward.1} parent=1 // pred_check
      _
    $region19: #{mim_rec_forward.1} parent=1 // pred_check_branch
      %173 = sbr.rel (0) target = $region21
    $region20: #{mim_rec_forward.1} parent=1 // pred_region
      _
    $region21: #{mim_rec_forward.1} parent=1 // pred_fallthru
      _
    // Predicated region
    $region22: #{mim_rec_forward.1} parent=1 // pred_check
      _
    $region23: #{mim_rec_forward.1} parent=1 // pred_check_branch
      %175 = sbr.rel (0) target = $region25
    $region24: #{mim_rec_forward.1} parent=1 // pred_region
      _
    $region25: #{mim_rec_forward.1} parent=1 // pred_fallthru
      _
    // Predicated region
    $region26: #{mim_rec_forward.1} parent=1 // pred_check
      _
    $region27: #{mim_rec_forward.1} parent=1 // pred_check_branch
      %177 = sbr.rel (0) target = $region29
    $region28: #{mim_rec_forward.1} parent=1 // pred_region
      %s179 = ssub.s32 16, 16
      %180 = vsyncadd [#allocation6], %s179
      %s182 = sshll.u32 [#allocation5], 4
      %s183 = int_to_ptr.vmem [resolvable:$true] %s182
      %185 = dma.hbm_to_vmem [thread:$0]  %s13, 16, %s183, [#allocation6]
    $region29: #{mim_rec_forward.1} parent=1 // pred_fallthru
      _
    // Predicated region
    $region30: #{mim_rec_forward.1} parent=1 // pred_check
      _
    $region31: #{mim_rec_forward.1} parent=1 // pred_check_branch
      %187 = sbr.rel (0) target = $region33
    $region32: #{mim_rec_forward.1} parent=1 // pred_region
      _
    $region33: #{mim_rec_forward.1} parent=1 // pred_fallthru
      _
    // Predicated region
    $region34: #{mim_rec_forward.1} parent=1 // pred_check
      _
    $region35: #{mim_rec_forward.1} parent=1 // pred_check_branch
      %189 = sbr.rel (0) target = $region37
    $region36: #{mim_rec_forward.1} parent=1 // pred_region
      _
    $region37: #{mim_rec_forward.1} parent=1 // pred_fallthru
      _
    // Predicated region
    $region38: #{mim_rec_forward.1} parent=1 // pred_check
      _
    $region39: #{mim_rec_forward.1} parent=1 // pred_check_branch
      %191 = sbr.rel (0) target = $region41
    $region40: #{mim_rec_forward.1} parent=1 // pred_region
      _
    $region41: #{mim_rec_forward.1} parent=1 // pred_fallthru
      _
    // Predicated region
    $region42: #{mim_rec_forward.1} parent=1 // pred_check
      _
    $region43: #{mim_rec_forward.1} parent=1 // pred_check_branch
      %193 = sbr.rel (0) target = $region45
    $region44: #{mim_rec_forward.1} parent=1 // pred_region
      _
    $region45: #{mim_rec_forward.1} parent=1 // pred_fallthru
      _
    // Predicated region
    $region46: #{mim_rec_forward.1} parent=1 // pred_check
      _
    $region47: #{mim_rec_forward.1} parent=1 // pred_check_branch
      %195 = sbr.rel (0) target = $region49
    $region48: #{mim_rec_forward.1} parent=1 // pred_region
      _
    $region49: #{mim_rec_forward.1} parent=1 // pred_fallthru
      _
    // Predicated region
    $region50: #{mim_rec_forward.1} parent=1 // pred_check
      _
    $region51: #{mim_rec_forward.1} parent=1 // pred_check_branch
      %197 = sbr.rel (0) target = $region53
    $region52: #{mim_rec_forward.1} parent=1 // pred_region
      _
    $region53: #{mim_rec_forward.1} parent=1 // pred_fallthru
      _
    // Predicated region
    $region54: #{mim_rec_forward.1} parent=1 // pred_check
      _
    $region55: #{mim_rec_forward.1} parent=1 // pred_check_branch
      %199 = sbr.rel (0) target = $region57
    $region56: #{mim_rec_forward.1} parent=1 // pred_region
      _
    $region57: #{mim_rec_forward.1} parent=1 // pred_fallthru
      _
    // Predicated region
    $region58: #{mim_rec_forward.1} parent=1 // pred_check
      _
    $region59: #{mim_rec_forward.1} parent=1 // pred_check_branch
      %201 = sbr.rel (0) target = $region61
    $region60: #{mim_rec_forward.1} parent=1 // pred_region
      _
    $region61: #{mim_rec_forward.1} parent=1 // pred_fallthru
      _
    // Predicated region
    $region62: #{mim_rec_forward.1} parent=1 // pred_check
      _
    $region63: #{mim_rec_forward.1} parent=1 // pred_check_branch
      %203 = sbr.rel (0) target = $region65
    $region64: #{mim_rec_forward.1} parent=1 // pred_region
      %s205 = ssub.s32 512, 512
      %206 = vsyncadd [#allocation6], %s205
      %s207 = sshll.u32 [#allocation7], 4
      %s208 = int_to_ptr.vmem [resolvable:$true] %s207
      %213 = dma.hbm_to_vmem [thread:$0]  %s31, 512, %s208, [#allocation6], 128, 128, 8
    $region65: #{mim_rec_forward.1} parent=1 // pred_fallthru
      _
    // Predicated region
    $region66: #{mim_rec_forward.1} parent=1 // pred_check
      _
    $region67: #{mim_rec_forward.1} parent=1 // pred_check_branch
      %215 = sbr.rel (0) target = $region69
    $region68: #{mim_rec_forward.1} parent=1 // pred_region
      _
    $region69: #{mim_rec_forward.1} parent=1 // pred_fallthru
      _
    // Predicated region
    $region70: #{mim_rec_forward.1} parent=1 // pred_check
      _
    $region71: #{mim_rec_forward.1} parent=1 // pred_check_branch
      %217 = sbr.rel (0) target = $region73
    $region72: #{mim_rec_forward.1} parent=1 // pred_region
      _
    $region73: #{mim_rec_forward.1} parent=1 // pred_fallthru
      _
    // Predicated region
    $region74: #{mim_rec_forward.1} parent=1 // pred_check
      _
    $region75: #{mim_rec_forward.1} parent=1 // pred_check_branch
      %219 = sbr.rel (0) target = $region77
    $region76: #{mim_rec_forward.1} parent=1 // pred_region
      _
    $region77: #{mim_rec_forward.1} parent=1 // pred_fallthru
      _
    // Predicated region
    $region78: #{mim_rec_forward.1} parent=1 // pred_check
      _
    $region79: #{mim_rec_forward.1} parent=1 // pred_check_branch
      %221 = sbr.rel (0) target = $region81
    $region80: #{mim_rec_forward.1} parent=1 // pred_region
      %s223 = ssub.s32 512, 512
      %224 = vsyncadd [#allocation9], %s223
      %s225 = sshll.u32 [#allocation8], 4
      %s226 = int_to_ptr.vmem [resolvable:$true] %s225
      %231 = dma.hbm_to_vmem [thread:$0]  %s39, 512, %s226, [#allocation9], 128, 128, 8
    $region81: #{mim_rec_forward.1} parent=1 // pred_fallthru
      _
    // Predicated region
    $region82: #{mim_rec_forward.1} parent=1 // pred_check
      _
    $region83: #{mim_rec_forward.1} parent=1 // pred_check_branch
      %233 = sbr.rel (0) target = $region85
    $region84: #{mim_rec_forward.1} parent=1 // pred_region
      _
    $region85: #{mim_rec_forward.1} parent=1 // pred_fallthru
      _
    // Predicated region
    $region86: #{mim_rec_forward.1} parent=1 // pred_check
      _
    $region87: #{mim_rec_forward.1} parent=1 // pred_check_branch
      %235 = sbr.rel (0) target = $region89
    $region88: #{mim_rec_forward.1} parent=1 // pred_region
      _
    $region89: #{mim_rec_forward.1} parent=1 // pred_fallthru
      _
    // Predicated region
    $region90: #{mim_rec_forward.1} parent=1 // pred_check
      _
    $region91: #{mim_rec_forward.1} parent=1 // pred_check_branch
      %237 = sbr.rel (0) target = $region93
    $region92: #{mim_rec_forward.1} parent=1 // pred_region
      _
    $region93: #{mim_rec_forward.1} parent=1 // pred_fallthru
      _
    // Predicated region
    $region94: #{mim_rec_forward.1} parent=1 // pred_check
      _
    $region95: #{mim_rec_forward.1} parent=1 // pred_check_branch
      %239 = sbr.rel (0) target = $region97
    $region96: #{mim_rec_forward.1} parent=1 // pred_region
      _
    $region97: #{mim_rec_forward.1} parent=1 // pred_fallthru
      _
    // Predicated region
    $region98: #{mim_rec_forward.1} parent=1 // pred_check
      _
    $region99: #{mim_rec_forward.1} parent=1 // pred_check_branch
      %241 = sbr.rel (0) target = $region101
    $region100: #{mim_rec_forward.1} parent=1 // pred_region
      _
    $region101: #{mim_rec_forward.1} parent=1 // pred_fallthru
      _
    // Predicated region
    $region102: #{mim_rec_forward.1} parent=1 // pred_check
      _
    $region103: #{mim_rec_forward.1} parent=1 // pred_check_branch
      %243 = sbr.rel (0) target = $region105
    $region104: #{mim_rec_forward.1} parent=1 // pred_region
      _
    $region105: #{mim_rec_forward.1} parent=1 // pred_fallthru
      _
    // Predicated region
    $region106: #{mim_rec_forward.1} parent=1 // pred_check
      _
    $region107: #{mim_rec_forward.1} parent=1 // pred_check_branch
      %245 = sbr.rel (0) target = $region109
    $region108: #{mim_rec_forward.1} parent=1 // pred_region
      _
    $region109: #{mim_rec_forward.1} parent=1 // pred_fallthru
      _
    // Predicated region
    $region110: #{mim_rec_forward.1} parent=1 // pred_check
      _
    $region111: #{mim_rec_forward.1} parent=1 // pred_check_branch
      %247 = sbr.rel (0) target = $region113
    $region112: #{mim_rec_forward.1} parent=1 // pred_region
      _
    $region113: #{mim_rec_forward.1} parent=1 // pred_fallthru
      _
    // Predicated region
    $region114: #{mim_rec_forward.1} parent=1 // pred_check
      _
    $region115: #{mim_rec_forward.1} parent=1 // pred_check_branch
      %249 = sbr.rel (0) target = $region117
    $region116: #{mim_rec_forward.1} parent=1 // pred_region
      _
    $region117: #{mim_rec_forward.1} parent=1 // pred_fallthru
      _
    // Predicated region
    $region118: #{mim_rec_forward.1} parent=1 // pred_check
      _
    $region119: #{mim_rec_forward.1} parent=1 // pred_check_branch
      %251 = sbr.rel (0) target = $region121
    $region120: #{mim_rec_forward.1} parent=1 // pred_region
      _
    $region121: #{mim_rec_forward.1} parent=1 // pred_fallthru
      _
    // Predicated region
    $region122: #{mim_rec_forward.1} parent=1 // pred_check
      _
    $region123: #{mim_rec_forward.1} parent=1 // pred_check_branch
      %253 = sbr.rel (0) target = $region125
    $region124: #{mim_rec_forward.1} parent=1 // pred_region
      _
    $region125: #{mim_rec_forward.1} parent=1 // pred_fallthru
      _
    // Predicated region
    $region126: #{mim_rec_forward.1} parent=1 // pred_check
      _
    $region127: #{mim_rec_forward.1} parent=1 // pred_check_branch
      %255 = sbr.rel (0) target = $region129
    $region128: #{mim_rec_forward.1} parent=1 // pred_region
      _
    $region129: #{mim_rec_forward.1} parent=1 // pred_fallthru
      _
    // Predicated region
    $region130: #{mim_rec_forward.1} parent=1 // pred_check
      _
    $region131: #{mim_rec_forward.1} parent=1 // pred_check_branch
      %257 = sbr.rel (0) target = $region133
    $region132: #{mim_rec_forward.1} parent=1 // pred_region
      _
    $region133: #{mim_rec_forward.1} parent=1 // pred_fallthru
      _
    // Predicated region
    $region134: #{mim_rec_forward.1} parent=1 // pred_check
      _
    $region135: #{mim_rec_forward.1} parent=1 // pred_check_branch
      %259 = sbr.rel (0) target = $region137
    $region136: #{mim_rec_forward.1} parent=1 // pred_region
      _
    $region137: #{mim_rec_forward.1} parent=1 // pred_fallthru
      _
    // Predicated region
    $region138: #{mim_rec_forward.1} parent=1 // pred_check
      _
    $region139: #{mim_rec_forward.1} parent=1 // pred_check_branch
      %261 = sbr.rel (0) target = $region141
    $region140: #{mim_rec_forward.1} parent=1 // pred_region
      _
    $region141: #{mim_rec_forward.1} parent=1 // pred_fallthru
      _
    // Predicated region
    $region142: #{mim_rec_forward.1} parent=1 // pred_check
      _
    $region143: #{mim_rec_forward.1} parent=1 // pred_check_branch
      %263 = sbr.rel (0) target = $region145
    $region144: #{mim_rec_forward.1} parent=1 // pred_region
      %s265 = ssub.s32 512, 512
      %266 = vsyncadd [#allocation9], %s265
      %s267 = sshll.u32 [#allocation10], 4
      %s268 = int_to_ptr.vmem [resolvable:$true] %s267
      %273 = dma.hbm_to_vmem [thread:$0]  %s71, 512, %s268, [#allocation9], 128, 128, 8
    $region145: #{mim_rec_forward.1} parent=1 // pred_fallthru
      _
    // Predicated region
    $region146: #{mim_rec_forward.1} parent=1 // pred_check
      _
    $region147: #{mim_rec_forward.1} parent=1 // pred_check_branch
      %275 = sbr.rel (0) target = $region149
    $region148: #{mim_rec_forward.1} parent=1 // pred_region
      _
    $region149: #{mim_rec_forward.1} parent=1 // pred_fallthru
      _
    // Predicated region
    $region150: #{mim_rec_forward.1} parent=1 // pred_check
      _
    $region151: #{mim_rec_forward.1} parent=1 // pred_check_branch
      %277 = sbr.rel (0) target = $region153
    $region152: #{mim_rec_forward.1} parent=1 // pred_region
      _
    $region153: #{mim_rec_forward.1} parent=1 // pred_fallthru
      _
    // Predicated region
    $region154: #{mim_rec_forward.1} parent=1 // pred_check
      _
    $region155: #{mim_rec_forward.1} parent=1 // pred_check_branch
      %279 = sbr.rel (0) target = $region157
    $region156: #{mim_rec_forward.1} parent=1 // pred_region
      _
    $region157: #{mim_rec_forward.1} parent=1 // pred_fallthru
      _
    // Predicated region
    $region158: #{mim_rec_forward.1} parent=1 // pred_check
      _
    $region159: #{mim_rec_forward.1} parent=1 // pred_check_branch
      %281 = sbr.rel (0) target = $region161
    $region160: #{mim_rec_forward.1} parent=1 // pred_region
      _
    $region161: #{mim_rec_forward.1} parent=1 // pred_fallthru
      _
    // Predicated region
    $region162: #{mim_rec_forward.1} parent=1 // pred_check
      _
    $region163: #{mim_rec_forward.1} parent=1 // pred_check_branch
      %283 = sbr.rel (0) target = $region165
    $region164: #{mim_rec_forward.1} parent=1 // pred_region
      _
    $region165: #{mim_rec_forward.1} parent=1 // pred_fallthru
      _
    // Predicated region
    $region166: #{mim_rec_forward.1} parent=1 // pred_check
      _
    $region167: #{mim_rec_forward.1} parent=1 // pred_check_branch
      %285 = sbr.rel (0) target = $region169
    $region168: #{mim_rec_forward.1} parent=1 // pred_region
      %s287 = ssub.s32 512, 512
      %288 = vsyncadd [#allocation12], %s287
      %s289 = sshll.u32 [#allocation11], 4
      %s290 = int_to_ptr.vmem [resolvable:$true] %s289
      %295 = dma.hbm_to_vmem [thread:$0]  %s83, 512, %s290, [#allocation12], 128, 128, 8
    $region169: #{mim_rec_forward.1} parent=1 // pred_fallthru
      _
    // Predicated region
    $region170: #{mim_rec_forward.1} parent=1 // pred_check
      _
    $region171: #{mim_rec_forward.1} parent=1 // pred_check_branch
      %297 = sbr.rel (0) target = $region173
    $region172: #{mim_rec_forward.1} parent=1 // pred_region
      _
    $region173: #{mim_rec_forward.1} parent=1 // pred_fallthru
      _
    // Predicated region
    $region174: #{mim_rec_forward.1} parent=1 // pred_check
      _
    $region175: #{mim_rec_forward.1} parent=1 // pred_check_branch
      %299 = sbr.rel (0) target = $region177
    $region176: #{mim_rec_forward.1} parent=1 // pred_region
      _
    $region177: #{mim_rec_forward.1} parent=1 // pred_fallthru
      _
    // Predicated region
    $region178: #{mim_rec_forward.1} parent=1 // pred_check
      _
    $region179: #{mim_rec_forward.1} parent=1 // pred_check_branch
      %301 = sbr.rel (0) target = $region181
    $region180: #{mim_rec_forward.1} parent=1 // pred_region
      _
    $region181: #{mim_rec_forward.1} parent=1 // pred_fallthru
      _
    // Predicated region
    $region182: #{mim_rec_forward.1} parent=1 // pred_check
      _
    $region183: #{mim_rec_forward.1} parent=1 // pred_check_branch
      %303 = sbr.rel (0) target = $region185
    $region184: #{mim_rec_forward.1} parent=1 // pred_region
      _
    $region185: #{mim_rec_forward.1} parent=1 // pred_fallthru
      _
    // Predicated region
    $region186: #{mim_rec_forward.1} parent=1 // pred_check
      _
    $region187: #{mim_rec_forward.1} parent=1 // pred_check_branch
      %305 = sbr.rel (0) target = $region189
    $region188: #{mim_rec_forward.1} parent=1 // pred_region
      _
    $region189: #{mim_rec_forward.1} parent=1 // pred_fallthru
      _
    // Predicated region
    $region190: #{mim_rec_forward.1} parent=1 // pred_check
      _
    $region191: #{mim_rec_forward.1} parent=1 // pred_check_branch
      %307 = sbr.rel (0) target = $region193
    $region192: #{mim_rec_forward.1} parent=1 // pred_region
      _
    $region193: #{mim_rec_forward.1} parent=1 // pred_fallthru
      _
    // Predicated region
    $region194: #{mim_rec_forward.1} parent=1 // pred_check
      _
    $region195: #{mim_rec_forward.1} parent=1 // pred_check_branch
      %309 = sbr.rel (0) target = $region197
    $region196: #{mim_rec_forward.1} parent=1 // pred_region
      _
    $region197: #{mim_rec_forward.1} parent=1 // pred_fallthru
      _
    // Predicated region
    $region198: #{mim_rec_forward.1} parent=1 // pred_check
      _
    $region199: #{mim_rec_forward.1} parent=1 // pred_check_branch
      %311 = sbr.rel (0) target = $region201
    $region200: #{mim_rec_forward.1} parent=1 // pred_region
      %s313 = ssub.s32 1024, 1024
      %314 = vsyncadd [#allocation12], %s313
      %s315 = sshll.u32 [#allocation13], 4
      %s316 = int_to_ptr.vmem [resolvable:$true] %s315
      %321 = dma.hbm_to_vmem [thread:$0]  %s99, 1024, %s316, [#allocation12], 256, 256, 16
    $region201: #{mim_rec_forward.1} parent=1 // pred_fallthru
      _
    // Predicated region
    $region202: #{mim_rec_forward.1} parent=1 // pred_check
      _
    $region203: #{mim_rec_forward.1} parent=1 // pred_check_branch
      %323 = sbr.rel (0) target = $region205
    $region204: #{mim_rec_forward.1} parent=1 // pred_region
      _
    $region205: #{mim_rec_forward.1} parent=1 // pred_fallthru
      _
    // Predicated region
    $region206: #{mim_rec_forward.1} parent=1 // pred_check
      _
    $region207: #{mim_rec_forward.1} parent=1 // pred_check_branch
      %325 = sbr.rel (0) target = $region209
    $region208: #{mim_rec_forward.1} parent=1 // pred_region
      _
    $region209: #{mim_rec_forward.1} parent=1 // pred_fallthru
      _
    // Predicated region
    $region210: #{mim_rec_forward.1} parent=1 // pred_check
      _
    $region211: #{mim_rec_forward.1} parent=1 // pred_check_branch
      %327 = sbr.rel (0) target = $region213
    $region212: #{mim_rec_forward.1} parent=1 // pred_region
      _
    $region213: #{mim_rec_forward.1} parent=1 // pred_fallthru
      _
    // Predicated region
    $region214: #{mim_rec_forward.1} parent=1 // pred_check
      _
    $region215: #{mim_rec_forward.1} parent=1 // pred_check_branch
      %329 = sbr.rel (0) target = $region217
    $region216: #{mim_rec_forward.1} parent=1 // pred_region
      _
    $region217: #{mim_rec_forward.1} parent=1 // pred_fallthru
      _
    // Predicated region
    $region218: #{mim_rec_forward.1} parent=1 // pred_check
      _
    $region219: #{mim_rec_forward.1} parent=1 // pred_check_branch
      %331 = sbr.rel (0) target = $region221
    $region220: #{mim_rec_forward.1} parent=1 // pred_region
      _
    $region221: #{mim_rec_forward.1} parent=1 // pred_fallthru
      _
    // Predicated region
    $region222: #{mim_rec_forward.1} parent=1 // pred_check
      _
    $region223: #{mim_rec_forward.1} parent=1 // pred_check_branch
      %333 = sbr.rel (0) target = $region225
    $region224: #{mim_rec_forward.1} parent=1 // pred_region
      %s335 = ssub.s32 512, 512
      %336 = vsyncadd [#allocation15], %s335
      %s337 = sshll.u32 [#allocation14], 4
      %s338 = int_to_ptr.vmem [resolvable:$true] %s337
      %343 = dma.hbm_to_vmem [thread:$0]  %s111, 512, %s338, [#allocation15], 128, 128, 8
    $region225: #{mim_rec_forward.1} parent=1 // pred_fallthru
      _
    // Predicated region
    $region226: #{mim_rec_forward.1} parent=1 // pred_check
      _
    $region227: #{mim_rec_forward.1} parent=1 // pred_check_branch
      %345 = sbr.rel (0) target = $region229
    $region228: #{mim_rec_forward.1} parent=1 // pred_region
      _
    $region229: #{mim_rec_forward.1} parent=1 // pred_fallthru
      _
    // Predicated region
    $region230: #{mim_rec_forward.1} parent=1 // pred_check
      _
    $region231: #{mim_rec_forward.1} parent=1 // pred_check_branch
      %347 = sbr.rel (0) target = $region233
    $region232: #{mim_rec_forward.1} parent=1 // pred_region
      _
    $region233: #{mim_rec_forward.1} parent=1 // pred_fallthru
      _
    // Predicated region
    $region234: #{mim_rec_forward.1} parent=1 // pred_check
      _
    $region235: #{mim_rec_forward.1} parent=1 // pred_check_branch
      %349 = sbr.rel (0) target = $region237
    $region236: #{mim_rec_forward.1} parent=1 // pred_region
      _
    $region237: #{mim_rec_forward.1} parent=1 // pred_fallthru
      _
    // Predicated region
    $region238: #{mim_rec_forward.1} parent=1 // pred_check
      _
    $region239: #{mim_rec_forward.1} parent=1 // pred_check_branch
      %351 = sbr.rel (0) target = $region241
    $region240: #{mim_rec_forward.1} parent=1 // pred_region
      %s353 = ssub.s32 512, 512
      %354 = vsyncadd [#allocation15], %s353
      %s355 = sshll.u32 [#allocation16], 4
      %s356 = int_to_ptr.vmem [resolvable:$true] %s355
      %361 = dma.hbm_to_vmem [thread:$0]  %s119, 512, %s356, [#allocation15], 128, 128, 8
    $region241: #{mim_rec_forward.1} parent=1 // pred_fallthru
      _
    // Predicated region
    $region242: #{mim_rec_forward.1} parent=1 // pred_check
      _
    $region243: #{mim_rec_forward.1} parent=1 // pred_check_branch
      %363 = sbr.rel (0) target = $region245
    $region244: #{mim_rec_forward.1} parent=1 // pred_region
      %s365 = ssub.s32 512, 512
      %366 = vsyncadd [#allocation18], %s365
      %s367 = sshll.u32 [#allocation17], 4
      %s368 = int_to_ptr.vmem [resolvable:$true] %s367
      %373 = dma.hbm_to_vmem [thread:$0]  %s121, 512, %s368, [#allocation18], 128, 128, 8
    $region245: #{mim_rec_forward.1} parent=1 // pred_fallthru
      _
    // Predicated region
    $region246: #{mim_rec_forward.1} parent=1 // pred_check
      _
    $region247: #{mim_rec_forward.1} parent=1 // pred_check_branch
      %375 = sbr.rel (0) target = $region249
    $region248: #{mim_rec_forward.1} parent=1 // pred_region
      %s377 = ssub.s32 512, 512
      %378 = vsyncadd [#allocation18], %s377
      %s379 = sshll.u32 [#allocation19], 4
      %s380 = int_to_ptr.vmem [resolvable:$true] %s379
      %385 = dma.hbm_to_vmem [thread:$0]  %s123, 512, %s380, [#allocation18], 128, 128, 8
    $region249: #{mim_rec_forward.1} parent=1 // pred_fallthru
      _
    // Predicated region
    $region250: #{mim_rec_forward.1} parent=1 // pred_check
      _
    $region251: #{mim_rec_forward.1} parent=1 // pred_check_branch
      %387 = sbr.rel (0) target = $region253
    $region252: #{mim_rec_forward.1} parent=1 // pred_region
      %s389 = ssub.s32 512, 512
      %390 = vsyncadd [#allocation21], %s389
      %s391 = sshll.u32 [#allocation20], 4
      %s392 = int_to_ptr.vmem [resolvable:$true] %s391
      %397 = dma.hbm_to_vmem [thread:$0]  %s125, 512, %s392, [#allocation21], 128, 128, 8
    $region253: #{mim_rec_forward.1} parent=1 // pred_fallthru
      _
    // Predicated region
    $region254: #{mim_rec_forward.1} parent=1 // pred_check
      _
    $region255: #{mim_rec_forward.1} parent=1 // pred_check_branch
      %399 = sbr.rel (0) target = $region257
    $region256: #{mim_rec_forward.1} parent=1 // pred_region
      _
    $region257: #{mim_rec_forward.1} parent=1 // pred_fallthru
      _
    // Predicated region
    $region258: #{mim_rec_forward.1} parent=1 // pred_check
      _
    $region259: #{mim_rec_forward.1} parent=1 // pred_check_branch
      %401 = sbr.rel (0) target = $region261
    $region260: #{mim_rec_forward.1} parent=1 // pred_region
      _
    $region261: #{mim_rec_forward.1} parent=1 // pred_fallthru
      _
    // Predicated region
    $region262: #{mim_rec_forward.1} parent=1 // pred_check
      _
    $region263: #{mim_rec_forward.1} parent=1 // pred_check_branch
      %403 = sbr.rel (0) target = $region265
    $region264: #{mim_rec_forward.1} parent=1 // pred_region
      %s405 = ssub.s32 512, 512
      %406 = vsyncadd [#allocation21], %s405
      %s407 = sshll.u32 [#allocation22], 4
      %s408 = int_to_ptr.vmem [resolvable:$true] %s407
      %413 = dma.hbm_to_vmem [thread:$0]  %s131, 512, %s408, [#allocation21], 128, 128, 8
    $region265: #{mim_rec_forward.1} parent=1 // pred_fallthru
      _
    // Predicated region
    $region266: #{mim_rec_forward.1} parent=1 // pred_check
      _
    $region267: #{mim_rec_forward.1} parent=1 // pred_check_branch
      %415 = sbr.rel (0) target = $region269
    $region268: #{mim_rec_forward.1} parent=1 // pred_region
      _
    $region269: #{mim_rec_forward.1} parent=1 // pred_fallthru
      _
    // Predicated region
    $region270: #{mim_rec_forward.1} parent=1 // pred_check
      _
    $region271: #{mim_rec_forward.1} parent=1 // pred_check_branch
      %417 = sbr.rel (0) target = $region273
    $region272: #{mim_rec_forward.1} parent=1 // pred_region
      %418 = dma.done [#allocation3], 768
    $region273: #{mim_rec_forward.1} parent=1 // pred_fallthru
      _
    // Predicated region
    $region274: #{mim_rec_forward.1} parent=1 // pred_check
      _
    $region275: #{mim_rec_forward.1} parent=1 // pred_check_branch
      %420 = sbr.rel (0) target = $region277
    $region276: #{mim_rec_forward.1} parent=1 // pred_region
      %421 = dma.done [#allocation6], 16
    $region277: #{mim_rec_forward.1} parent=1 // pred_fallthru
      _
    // Predicated region
    $region278: #{mim_rec_forward.1} parent=1 // pred_check
      _
    $region279: #{mim_rec_forward.1} parent=1 // pred_check_branch
      %423 = sbr.rel (0) target = $region281
    $region280: #{mim_rec_forward.1} parent=1 // pred_region
      %424 = dma.done [#allocation6], 512
    $region281: #{mim_rec_forward.1} parent=1 // pred_fallthru
      _
    // Predicated region
    $region282: #{mim_rec_forward.1} parent=1 // pred_check
      _
    $region283: #{mim_rec_forward.1} parent=1 // pred_check_branch
      %426 = sbr.rel (0) target = $region285
    $region284: #{mim_rec_forward.1} parent=1 // pred_region
      %427 = dma.done [#allocation9], 512
    $region285: #{mim_rec_forward.1} parent=1 // pred_fallthru
      _
    // Predicated region
    $region286: #{mim_rec_forward.1} parent=1 // pred_check
      _
    $region287: #{mim_rec_forward.1} parent=1 // pred_check_branch
      %429 = sbr.rel (0) target = $region289
    $region288: #{mim_rec_forward.1} parent=1 // pred_region
      %430 = dma.done [#allocation9], 512
    $region289: #{mim_rec_forward.1} parent=1 // pred_fallthru
      _
    // Predicated region
    $region290: #{mim_rec_forward.1} parent=1 // pred_check
      _
    $region291: #{mim_rec_forward.1} parent=1 // pred_check_branch
      %432 = sbr.rel (0) target = $region293
    $region292: #{mim_rec_forward.1} parent=1 // pred_region
      %433 = dma.done [#allocation12], 512
    $region293: #{mim_rec_forward.1} parent=1 // pred_fallthru
      _
    // Predicated region
    $region294: #{mim_rec_forward.1} parent=1 // pred_check
      _
    $region295: #{mim_rec_forward.1} parent=1 // pred_check_branch
      %435 = sbr.rel (0) target = $region297
    $region296: #{mim_rec_forward.1} parent=1 // pred_region
      %436 = dma.done [#allocation12], 1024
    $region297: #{mim_rec_forward.1} parent=1 // pred_fallthru
      _
    // Predicated region
    $region298: #{mim_rec_forward.1} parent=1 // pred_check
      _
    $region299: #{mim_rec_forward.1} parent=1 // pred_check_branch
      %438 = sbr.rel (0) target = $region301
    $region300: #{mim_rec_forward.1} parent=1 // pred_region
      %439 = dma.done [#allocation15], 512
    $region301: #{mim_rec_forward.1} parent=1 // pred_fallthru
      _
    // Predicated region
    $region302: #{mim_rec_forward.1} parent=1 // pred_check
      _
    $region303: #{mim_rec_forward.1} parent=1 // pred_check_branch
      %441 = sbr.rel (0) target = $region305
    $region304: #{mim_rec_forward.1} parent=1 // pred_region
      %442 = dma.done [#allocation15], 512
    $region305: #{mim_rec_forward.1} parent=1 // pred_fallthru
      _
    // Predicated region
    $region306: #{mim_rec_forward.1} parent=1 // pred_check
      _
    $region307: #{mim_rec_forward.1} parent=1 // pred_check_branch
      %444 = sbr.rel (0) target = $region309
    $region308: #{mim_rec_forward.1} parent=1 // pred_region
      %445 = dma.done [#allocation18], 512
    $region309: #{mim_rec_forward.1} parent=1 // pred_fallthru
      _
    // Predicated region
    $region310: #{mim_rec_forward.1} parent=1 // pred_check
      _
    $region311: #{mim_rec_forward.1} parent=1 // pred_check_branch
      %447 = sbr.rel (0) target = $region313
    $region312: #{mim_rec_forward.1} parent=1 // pred_region
      %448 = dma.done [#allocation18], 512
    $region313: #{mim_rec_forward.1} parent=1 // pred_fallthru
      _
    // Predicated region
    $region314: #{mim_rec_forward.1} parent=1 // pred_check
      _
    $region315: #{mim_rec_forward.1} parent=1 // pred_check_branch
      %450 = sbr.rel (0) target = $region317
    $region316: #{mim_rec_forward.1} parent=1 // pred_region
      %451 = dma.done [#allocation21], 512
    $region317: #{mim_rec_forward.1} parent=1 // pred_fallthru
      _
    // Predicated region
    $region318: #{mim_rec_forward.1} parent=1 // pred_check
      _
    $region319: #{mim_rec_forward.1} parent=1 // pred_check_branch
      %453 = sbr.rel (0) target = $region321
    $region320: #{mim_rec_forward.1} parent=1 // pred_region
      %454 = dma.done [#allocation21], 512
    $region321: #{mim_rec_forward.1} parent=1 // pred_fallthru
      _
    %v455 = vld [vmem:[%s1] sm:$0xff]
    %v456 = vld [vmem:[%s1 + $0x8] sm:$0xff]
    %v457 = vld [vmem:[%s1 + $0x10] sm:$0xff]
    %v458 = vld [vmem:[%s1 + $0x18] sm:$0xff]
    %v459 = vld [vmem:[#allocation2] sm:$0xff]
    %v460 = vld [vmem:[#allocation2 + $0x8] sm:$0xff]
    %v461 = vld [vmem:[#allocation2 + $0x10] sm:$0xff]
    %v462 = vld [vmem:[#allocation2 + $0x18] sm:$0xff]
    %v463 = vld [vmem:[#allocation2 + $0x20] sm:$0xff]
    %v464 = vld [vmem:[#allocation2 + $0x28] sm:$0xff]
    %v465 = vld [vmem:[%s9] sm:$0x1]
    %v467 = vlaneseq
    %v468 = vshrl.u32 %v467, 7
    %v469 = vsub.s32 0, %v468
    %v470 = vrot.slane %v465, %v469
    %vm472 = vcmask 392192
    %v474 = vsel %vm472, %v455, 0
    %v477 = vsel %vm472, %v456, 0
    %v480 = vsel %vm472, %v457, 0
    %v483 = vsel %vm472, %v458, 0
    %485 = vmatprep.subr.mxu0 0.0
    %486 = vmatpush1.msra.mxu0 %v459
    %487 = vmatprep.subr.mxu0 0.0
    %488 = vmatpush1.msra.mxu0 %v460
    %489 = vmatprep.subr.mxu0 0.0
    %490 = vmatpush1.msra.mxu0 %v461
    %491 = vmatprep.subr.mxu0 0.0
    %492 = vmatpush1.msra.mxu0 %v462
    %493 = vmatprep.subr.mxu0 0.0
    %494 = vmatpush1.msra.mxu0 %v463
    %495 = vmatprep.subr.mxu0 0.0
    %496 = vmatpush1.msra.mxu0 %v464
    %497 = vmatprep.subr.mxu0 0.0
    %498 = vmatpush1.msra.mxu0 0.0
    %499 = vmatprep.subr.mxu0 0.0
    %500 = vmatpush1.msra.mxu0 0.0
    %501 = vmatprep.subr.mxu0 0.0
    %502 = vmatpush1.msra.mxu0 0.0
    %503 = vmatprep.subr.mxu0 0.0
    %504 = vmatpush1.msra.mxu0 0.0
    %505 = vmatprep.subr.mxu0 0.0
    %506 = vmatpush1.msra.mxu0 0.0
    %507 = vmatprep.subr.mxu0 0.0
    %508 = vmatpush1.msra.mxu0 0.0
    %509 = vmatprep.subr.mxu0 0.0
    %510 = vmatpush1.msra.mxu0 0.0
    %511 = vmatprep.subr.mxu0 0.0
    %512 = vmatpush1.msra.mxu0 0.0
    %513 = vmatprep.subr.mxu0 0.0
    %514 = vmatpush1.msra.mxu0 0.0
    %515 = vmatprep.subr.mxu0 0.0
    %516 = vmatpush1.msra.mxu0 0.0
    %517 = vmatprep.subr.mxu0 0.0
    %518 = vmatpush1.msra.mxu0 0.0
    %519 = vmatprep.subr.mxu0 0.0
    %520 = vmatpush1.msra.mxu0 0.0
    %521 = vmatprep.subr.mxu0 0.0
    %522 = vmatpush1.msra.mxu0 0.0
    %523 = vmatprep.subr.mxu0 0.0
    %524 = vmatpush1.msra.mxu0 0.0
    %525 = vmatprep.subr.mxu0 0.0
    %526 = vmatpush1.msra.mxu0 0.0
    %527 = vmatprep.subr.mxu0 0.0
    %528 = vmatpush1.msra.mxu0 0.0
    %529 = vmatprep.subr.mxu0 0.0
    %530 = vmatpush1.msra.mxu0 0.0
    %531 = vmatprep.subr.mxu0 0.0
    %532 = vmatpush1.msra.mxu0 0.0
    %533 = vmatprep.subr.mxu0 0.0
    %534 = vmatpush1.msra.mxu0 0.0
    %535 = vmatprep.subr.mxu0 0.0
    %536 = vmatpush1.msra.mxu0 0.0
    %537 = vmatprep.subr.mxu0 0.0
    %538 = vmatpush1.msra.mxu0 0.0
    %539 = vmatprep.subr.mxu0 0.0
    %540 = vmatpush1.msra.mxu0 0.0
    %541 = vmatprep.subr.mxu0 0.0
    %542 = vmatpush1.msra.mxu0 0.0
    %543 = vmatprep.subr.mxu0 0.0
    %544 = vmatpush1.msra.mxu0 0.0
    %545 = vmatprep.subr.mxu0 0.0
    %546 = vmatpush1.msra.mxu0 0.0
    %547 = vmatprep.subr.mxu0 0.0
    %548 = vmatpush1.msra.mxu0 0.0
    %549 = vmatprep.mubr.f32.mxu0 0.0
    %550 = vmatmul.mubr.f32.gmra.mrb[0].mxu0 %v474
    %v551 = vpop.f32.mrb[0].mxu0
    %v552 = vadd.f32 %v470, %v551
    %v553 = vpop.f32.mrb[0].mxu0
    %554 = vmatprep.mubr.f32.mxu0 0.0
    %555 = vmatmul.mubr.f32.gmra.mrb[0].mxu0 %v477
    %v556 = vpop.f32.mrb[0].mxu0
    %v557 = vadd.f32 %v470, %v556
    %v558 = vpop.f32.mrb[0].mxu0
    %559 = vmatprep.mubr.f32.mxu0 0.0
    %560 = vmatmul.mubr.f32.gmra.mrb[0].mxu0 %v480
    %v561 = vpop.f32.mrb[0].mxu0
    %v562 = vadd.f32 %v470, %v561
    %v563 = vpop.f32.mrb[0].mxu0
    %564 = vmatprep.mubr.f32.mxu0 0.0
    %565 = vmatmul.mubr.f32.gmra.mrb[0].mxu0 %v483
    %v566 = vpop.f32.mrb[0].mxu0
    %v567 = vadd.f32 %v470, %v566
    %v568 = vpop.f32.mrb[0].mxu0
    %569 = vdwg.mxu0
    %v570 = vld [vmem:[%s3] sm:$0xff]
    %v571 = vld [vmem:[%s3 + $0x8] sm:$0xff]
    %v572 = vld [vmem:[%s3 + $0x10] sm:$0xff]
    %v573 = vld [vmem:[%s3 + $0x18] sm:$0xff]
    %v574 = vsub.f32 1.0, %v570
    %v575 = vsub.f32 1.0, %v571
    %v576 = vsub.f32 1.0, %v572
    %v577 = vsub.f32 1.0, %v573
    %579 = vset.pattern.permute.xlu0 0
    %580 = vperm.xlu0 %579, %v574
    %v581 = vpop.permute.xlu0 %580
    %584 = vset.pattern.permute.xlu0 0
    %585 = vperm.xlu0 %584, %v575
    %v586 = vpop.permute.xlu0 %585
    %589 = vset.pattern.permute.xlu0 0
    %590 = vperm.xlu0 %589, %v576
    %v591 = vpop.permute.xlu0 %590
    %594 = vset.pattern.permute.xlu0 0
    %595 = vperm.xlu0 %594, %v577
    %v596 = vpop.permute.xlu0 %595
    %v598 = vmul.f32 %v552, %v581
    %v599 = vmul.f32 %v557, %v586
    %v600 = vmul.f32 %v562, %v591
    %v601 = vmul.f32 %v567, %v596
    %v602 = vld [vmem:[#allocation5] sm:$0x1]
    %v604 = vlaneseq
    %v605 = vshrl.u32 %v604, 7
    %v606 = vsub.s32 0, %v605
    %v607 = vrot.slane %v602, %v606
    %610 = vset.pattern.permute.xlu0 0
    %611 = vperm.xlu0 %610, %v570
    %v612 = vpop.permute.xlu0 %611
    %615 = vset.pattern.permute.xlu0 0
    %616 = vperm.xlu0 %615, %v571
    %v617 = vpop.permute.xlu0 %616
    %620 = vset.pattern.permute.xlu0 0
    %621 = vperm.xlu0 %620, %v572
    %v622 = vpop.permute.xlu0 %621
    %625 = vset.pattern.permute.xlu0 0
    %626 = vperm.xlu0 %625, %v573
    %v627 = vpop.permute.xlu0 %626
    %v629 = vmul.f32 %v607, %v612
    %v630 = vmul.f32 %v607, %v617
    %v631 = vmul.f32 %v607, %v622
    %v632 = vmul.f32 %v607, %v627
    %v633 = vadd.f32 %v598, %v629
    %v634 = vadd.f32 %v599, %v630
    %v635 = vadd.f32 %v600, %v631
    %v636 = vadd.f32 %v601, %v632
    %v637 = vld [vmem:[%s11] sm:$0xff]
    %v638 = vld [vmem:[%s11 + $0x8] sm:$0xff]
    %v639 = vld [vmem:[%s11 + $0x10] sm:$0xff]
    %v640 = vld [vmem:[%s11 + $0x18] sm:$0xff]
    %v641 = vadd.f32 %v633, %v637
    %v642 = vadd.f32 %v634, %v638
    %v643 = vadd.f32 %v635, %v639
    %v644 = vadd.f32 %v636, %v640
    %v645 = vld [vmem:[%s15] sm:$0x1]
    %v646 = vld [vmem:[%s17] sm:$0x1]
    %vm647 = vcmask 261120
    %v648 = vsel %vm647, %v641, 0.0
    %649 = vadd.xlane.f32.xlu0 %v648
    %v650 = vpop.xlane.xlu0 %649
    %v651 = vsel %vm647, %v642, 0.0
    %652 = vadd.xlane.f32.xlu0 %v651
    %v653 = vpop.xlane.xlu0 %652
    %v654 = vsel %vm647, %v643, 0.0
    %655 = vadd.xlane.f32.xlu0 %v654
    %v656 = vpop.xlane.xlu0 %655
    %v657 = vsel %vm647, %v644, 0.0
    %658 = vadd.xlane.f32.xlu0 %v657
    %v659 = vpop.xlane.xlu0 %658
    %v660 = vrcp.pop 32.0
    %v661 = vmul.f32 %v650, %v660
    %v662 = vmul.f32 %v653, %v660
    %v663 = vmul.f32 %v656, %v660
    %v664 = vmul.f32 %v659, %v660
    %v665 = vsub.f32 %v641, %v661
    %v666 = vsub.f32 %v642, %v662
    %v667 = vsub.f32 %v643, %v663
    %v668 = vsub.f32 %v644, %v664
    %v669 = vmul.f32 %v665, %v665
    %v670 = vmul.f32 %v666, %v666
    %v671 = vmul.f32 %v667, %v667
    %v672 = vmul.f32 %v668, %v668
    %v673 = vsel %vm647, %v669, 0.0
    %674 = vadd.xlane.f32.xlu0 %v673
    %v675 = vpop.xlane.xlu0 %674
    %v676 = vsel %vm647, %v670, 0.0
    %677 = vadd.xlane.f32.xlu0 %v676
    %v678 = vpop.xlane.xlu0 %677
    %v679 = vsel %vm647, %v671, 0.0
    %680 = vadd.xlane.f32.xlu0 %v679
    %v681 = vpop.xlane.xlu0 %680
    %v682 = vsel %vm647, %v672, 0.0
    %683 = vadd.xlane.f32.xlu0 %v682
    %v684 = vpop.xlane.xlu0 %683
    %v685 = vmul.f32 %v675, %v660
    %v686 = vmul.f32 %v678, %v660
    %v687 = vmul.f32 %v681, %v660
    %v688 = vmul.f32 %v684, %v660
    %v689 = vadd.f32 %v685, 1e-06
    %v690 = vadd.f32 %v686, 1e-06
    %v691 = vadd.f32 %v687, 1e-06
    %v692 = vadd.f32 %v688, 1e-06
    %v693 = vrsqrt.pop %v689
    %v694 = vrsqrt.pop %v690
    %v695 = vrsqrt.pop %v691
    %v696 = vrsqrt.pop %v692
    %v697 = vmul.f32 %v665, %v693
    %v698 = vmul.f32 %v666, %v694
    %v699 = vmul.f32 %v667, %v695
    %v700 = vmul.f32 %v668, %v696
    %v702 = vlaneseq
    %v703 = vshrl.u32 %v702, 7
    %v704 = vsub.s32 0, %v703
    %v705 = vrot.slane %v645, %v704
    %v707 = vmul.f32 %v697, %v705
    %v708 = vmul.f32 %v698, %v705
    %v709 = vmul.f32 %v699, %v705
    %v710 = vmul.f32 %v700, %v705
    %v712 = vlaneseq
    %v713 = vshrl.u32 %v712, 7
    %v714 = vsub.s32 0, %v713
    %v715 = vrot.slane %v646, %v714
    %v717 = vadd.f32 %v707, %v715
    %v718 = vadd.f32 %v708, %v715
    %v719 = vadd.f32 %v709, %v715
    %v720 = vadd.f32 %v710, %v715
    %v721 = vld [vmem:[%s19] sm:$0xff]
    %v722 = vld [vmem:[%s19 + $0x8] sm:$0xff]
    %v723 = vld [vmem:[%s19 + $0x10] sm:$0xff]
    %v724 = vld [vmem:[%s19 + $0x18] sm:$0xff]
    %v725 = vld [vmem:[%s25] sm:$0x1]
    %v727 = vlaneseq
    %v728 = vshrl.u32 %v727, 7
    %v729 = vsub.s32 0, %v728
    %v730 = vrot.slane %v725, %v729
    %v733 = vsel %vm647, %v717, 0
    %v736 = vsel %vm647, %v718, 0
    %v739 = vsel %vm647, %v719, 0
    %v742 = vsel %vm647, %v720, 0
    %744 = vmatprep.subr.mxu0 0.0
    %745 = vmatpush1.msra.mxu0 %v721
    %746 = vmatprep.subr.mxu0 0.0
    %747 = vmatpush1.msra.mxu0 %v722
    %748 = vmatprep.subr.mxu0 0.0
    %749 = vmatpush1.msra.mxu0 %v723
    %750 = vmatprep.subr.mxu0 0.0
    %751 = vmatpush1.msra.mxu0 %v724
    %752 = vmatprep.subr.mxu0 0.0
    %753 = vmatpush1.msra.mxu0 0.0
    %754 = vmatprep.subr.mxu0 0.0
    %755 = vmatpush1.msra.mxu0 0.0
    %756 = vmatprep.subr.mxu0 0.0
    %757 = vmatpush1.msra.mxu0 0.0
    %758 = vmatprep.subr.mxu0 0.0
    %759 = vmatpush1.msra.mxu0 0.0
    %760 = vmatprep.subr.mxu0 0.0
    %761 = vmatpush1.msra.mxu0 0.0
    %762 = vmatprep.subr.mxu0 0.0
    %763 = vmatpush1.msra.mxu0 0.0
    %764 = vmatprep.subr.mxu0 0.0
    %765 = vmatpush1.msra.mxu0 0.0
    %766 = vmatprep.subr.mxu0 0.0
    %767 = vmatpush1.msra.mxu0 0.0
    %768 = vmatprep.subr.mxu0 0.0
    %769 = vmatpush1.msra.mxu0 0.0
    %770 = vmatprep.subr.mxu0 0.0
    %771 = vmatpush1.msra.mxu0 0.0
    %772 = vmatprep.subr.mxu0 0.0
    %773 = vmatpush1.msra.mxu0 0.0
    %774 = vmatprep.subr.mxu0 0.0
    %775 = vmatpush1.msra.mxu0 0.0
    %776 = vmatprep.subr.mxu0 0.0
    %777 = vmatpush1.msra.mxu0 0.0
    %778 = vmatprep.subr.mxu0 0.0
    %779 = vmatpush1.msra.mxu0 0.0
    %780 = vmatprep.subr.mxu0 0.0
    %781 = vmatpush1.msra.mxu0 0.0
    %782 = vmatprep.subr.mxu0 0.0
    %783 = vmatpush1.msra.mxu0 0.0
    %784 = vmatprep.subr.mxu0 0.0
    %785 = vmatpush1.msra.mxu0 0.0
    %786 = vmatprep.subr.mxu0 0.0
    %787 = vmatpush1.msra.mxu0 0.0
    %788 = vmatprep.subr.mxu0 0.0
    %789 = vmatpush1.msra.mxu0 0.0
    %790 = vmatprep.subr.mxu0 0.0
    %791 = vmatpush1.msra.mxu0 0.0
    %792 = vmatprep.subr.mxu0 0.0
    %793 = vmatpush1.msra.mxu0 0.0
    %794 = vmatprep.subr.mxu0 0.0
    %795 = vmatpush1.msra.mxu0 0.0
    %796 = vmatprep.subr.mxu0 0.0
    %797 = vmatpush1.msra.mxu0 0.0
    %798 = vmatprep.subr.mxu0 0.0
    %799 = vmatpush1.msra.mxu0 0.0
    %800 = vmatprep.subr.mxu0 0.0
    %801 = vmatpush1.msra.mxu0 0.0
    %802 = vmatprep.subr.mxu0 0.0
    %803 = vmatpush1.msra.mxu0 0.0
    %804 = vmatprep.subr.mxu0 0.0
    %805 = vmatpush1.msra.mxu0 0.0
    %806 = vmatprep.subr.mxu0 0.0
    %807 = vmatpush1.msra.mxu0 0.0
    %808 = vmatprep.mubr.f32.mxu0 0.0
    %809 = vmatmul.mubr.f32.gmra.mrb[0].mxu0 %v733
    %v810 = vpop.f32.mrb[0].mxu0
    %v811 = vadd.f32 %v730, %v810
    %v812 = vpop.f32.mrb[0].mxu0
    %813 = vmatprep.mubr.f32.mxu0 0.0
    %814 = vmatmul.mubr.f32.gmra.mrb[0].mxu0 %v736
    %v815 = vpop.f32.mrb[0].mxu0
    %v816 = vadd.f32 %v730, %v815
    %v817 = vpop.f32.mrb[0].mxu0
    %818 = vmatprep.mubr.f32.mxu0 0.0
    %819 = vmatmul.mubr.f32.gmra.mrb[0].mxu0 %v739
    %v820 = vpop.f32.mrb[0].mxu0
    %v821 = vadd.f32 %v730, %v820
    %v822 = vpop.f32.mrb[0].mxu0
    %823 = vmatprep.mubr.f32.mxu0 0.0
    %824 = vmatmul.mubr.f32.gmra.mrb[0].mxu0 %v742
    %v825 = vpop.f32.mrb[0].mxu0
    %v826 = vadd.f32 %v730, %v825
    %v827 = vpop.f32.mrb[0].mxu0
    %828 = vdwg.mxu0
    %v829 = vld [vmem:[%s21] sm:$0xff]
    %v830 = vld [vmem:[%s21 + $0x8] sm:$0xff]
    %v831 = vld [vmem:[%s21 + $0x10] sm:$0xff]
    %v832 = vld [vmem:[%s21 + $0x18] sm:$0xff]
    %v833 = vld [vmem:[%s27] sm:$0x1]
    %v835 = vlaneseq
    %v836 = vshrl.u32 %v835, 7
    %v837 = vsub.s32 0, %v836
    %v838 = vrot.slane %v833, %v837
    %840 = vmatprep.subr.mxu0 0.0
    %841 = vmatpush1.msra.mxu0 %v829
    %842 = vmatprep.subr.mxu0 0.0
    %843 = vmatpush1.msra.mxu0 %v830
    %844 = vmatprep.subr.mxu0 0.0
    %845 = vmatpush1.msra.mxu0 %v831
    %846 = vmatprep.subr.mxu0 0.0
    %847 = vmatpush1.msra.mxu0 %v832
    %848 = vmatprep.subr.mxu0 0.0
    %849 = vmatpush1.msra.mxu0 0.0
    %850 = vmatprep.subr.mxu0 0.0
    %851 = vmatpush1.msra.mxu0 0.0
    %852 = vmatprep.subr.mxu0 0.0
    %853 = vmatpush1.msra.mxu0 0.0
    %854 = vmatprep.subr.mxu0 0.0
    %855 = vmatpush1.msra.mxu0 0.0
    %856 = vmatprep.subr.mxu0 0.0
    %857 = vmatpush1.msra.mxu0 0.0
    %858 = vmatprep.subr.mxu0 0.0
    %859 = vmatpush1.msra.mxu0 0.0
    %860 = vmatprep.subr.mxu0 0.0
    %861 = vmatpush1.msra.mxu0 0.0
    %862 = vmatprep.subr.mxu0 0.0
    %863 = vmatpush1.msra.mxu0 0.0
    %864 = vmatprep.subr.mxu0 0.0
    %865 = vmatpush1.msra.mxu0 0.0
    %866 = vmatprep.subr.mxu0 0.0
    %867 = vmatpush1.msra.mxu0 0.0
    %868 = vmatprep.subr.mxu0 0.0
    %869 = vmatpush1.msra.mxu0 0.0
    %870 = vmatprep.subr.mxu0 0.0
    %871 = vmatpush1.msra.mxu0 0.0
    %872 = vmatprep.subr.mxu0 0.0
    %873 = vmatpush1.msra.mxu0 0.0
    %874 = vmatprep.subr.mxu0 0.0
    %875 = vmatpush1.msra.mxu0 0.0
    %876 = vmatprep.subr.mxu0 0.0
    %877 = vmatpush1.msra.mxu0 0.0
    %878 = vmatprep.subr.mxu0 0.0
    %879 = vmatpush1.msra.mxu0 0.0
    %880 = vmatprep.subr.mxu0 0.0
    %881 = vmatpush1.msra.mxu0 0.0
    %882 = vmatprep.subr.mxu0 0.0
    %883 = vmatpush1.msra.mxu0 0.0
    %884 = vmatprep.subr.mxu0 0.0
    %885 = vmatpush1.msra.mxu0 0.0
    %886 = vmatprep.subr.mxu0 0.0
    %887 = vmatpush1.msra.mxu0 0.0
    %888 = vmatprep.subr.mxu0 0.0
    %889 = vmatpush1.msra.mxu0 0.0
    %890 = vmatprep.subr.mxu0 0.0
    %891 = vmatpush1.msra.mxu0 0.0
    %892 = vmatprep.subr.mxu0 0.0
    %893 = vmatpush1.msra.mxu0 0.0
    %894 = vmatprep.subr.mxu0 0.0
    %895 = vmatpush1.msra.mxu0 0.0
    %896 = vmatprep.subr.mxu0 0.0
    %897 = vmatpush1.msra.mxu0 0.0
    %898 = vmatprep.subr.mxu0 0.0
    %899 = vmatpush1.msra.mxu0 0.0
    %900 = vmatprep.subr.mxu0 0.0
    %901 = vmatpush1.msra.mxu0 0.0
    %902 = vmatprep.subr.mxu0 0.0
    %903 = vmatpush1.msra.mxu0 0.0
    %904 = vmatprep.mubr.f32.mxu0 0.0
    %905 = vmatmul.mubr.f32.gmra.mrb[0].mxu0 %v733
    %v906 = vpop.f32.mrb[0].mxu0
    %v907 = vadd.f32 %v838, %v906
    %v908 = vpop.f32.mrb[0].mxu0
    %909 = vmatprep.mubr.f32.mxu0 0.0
    %910 = vmatmul.mubr.f32.gmra.mrb[0].mxu0 %v736
    %v911 = vpop.f32.mrb[0].mxu0
    %v912 = vadd.f32 %v838, %v911
    %v913 = vpop.f32.mrb[0].mxu0
    %914 = vmatprep.mubr.f32.mxu0 0.0
    %915 = vmatmul.mubr.f32.gmra.mrb[0].mxu0 %v739
    %v916 = vpop.f32.mrb[0].mxu0
    %v917 = vadd.f32 %v838, %v916
    %v918 = vpop.f32.mrb[0].mxu0
    %919 = vmatprep.mubr.f32.mxu0 0.0
    %920 = vmatmul.mubr.f32.gmra.mrb[0].mxu0 %v742
    %v921 = vpop.f32.mrb[0].mxu0
    %v922 = vadd.f32 %v838, %v921
    %v923 = vpop.f32.mrb[0].mxu0
    %924 = vdwg.mxu0
    %v925 = vld [vmem:[%s23] sm:$0xff]
    %v926 = vld [vmem:[%s23 + $0x8] sm:$0xff]
    %v927 = vld [vmem:[%s23 + $0x10] sm:$0xff]
    %v928 = vld [vmem:[%s23 + $0x18] sm:$0xff]
    %v929 = vld [vmem:[%s29] sm:$0x1]
    %v931 = vlaneseq
    %v932 = vshrl.u32 %v931, 7
    %v933 = vsub.s32 0, %v932
    %v934 = vrot.slane %v929, %v933
    %936 = vmatprep.subr.mxu0 0.0
    %937 = vmatpush1.msra.mxu0 %v925
    %938 = vmatprep.subr.mxu0 0.0
    %939 = vmatpush1.msra.mxu0 %v926
    %940 = vmatprep.subr.mxu0 0.0
    %941 = vmatpush1.msra.mxu0 %v927
    %942 = vmatprep.subr.mxu0 0.0
    %943 = vmatpush1.msra.mxu0 %v928
    %944 = vmatprep.subr.mxu0 0.0
    %945 = vmatpush1.msra.mxu0 0.0
    %946 = vmatprep.subr.mxu0 0.0
    %947 = vmatpush1.msra.mxu0 0.0
    %948 = vmatprep.subr.mxu0 0.0
    %949 = vmatpush1.msra.mxu0 0.0
    %950 = vmatprep.subr.mxu0 0.0
    %951 = vmatpush1.msra.mxu0 0.0
    %952 = vmatprep.subr.mxu0 0.0
    %953 = vmatpush1.msra.mxu0 0.0
    %954 = vmatprep.subr.mxu0 0.0
    %955 = vmatpush1.msra.mxu0 0.0
    %956 = vmatprep.subr.mxu0 0.0
    %957 = vmatpush1.msra.mxu0 0.0
    %958 = vmatprep.subr.mxu0 0.0
    %959 = vmatpush1.msra.mxu0 0.0
    %960 = vmatprep.subr.mxu0 0.0
    %961 = vmatpush1.msra.mxu0 0.0
    %962 = vmatprep.subr.mxu0 0.0
    %963 = vmatpush1.msra.mxu0 0.0
    %964 = vmatprep.subr.mxu0 0.0
    %965 = vmatpush1.msra.mxu0 0.0
    %966 = vmatprep.subr.mxu0 0.0
    %967 = vmatpush1.msra.mxu0 0.0
    %968 = vmatprep.subr.mxu0 0.0
    %969 = vmatpush1.msra.mxu0 0.0
    %970 = vmatprep.subr.mxu0 0.0
    %971 = vmatpush1.msra.mxu0 0.0
    %972 = vmatprep.subr.mxu0 0.0
    %973 = vmatpush1.msra.mxu0 0.0
    %974 = vmatprep.subr.mxu0 0.0
    %975 = vmatpush1.msra.mxu0 0.0
    %976 = vmatprep.subr.mxu0 0.0
    %977 = vmatpush1.msra.mxu0 0.0
    %978 = vmatprep.subr.mxu0 0.0
    %979 = vmatpush1.msra.mxu0 0.0
    %980 = vmatprep.subr.mxu0 0.0
    %981 = vmatpush1.msra.mxu0 0.0
    %982 = vmatprep.subr.mxu0 0.0
    %983 = vmatpush1.msra.mxu0 0.0
    %984 = vmatprep.subr.mxu0 0.0
    %985 = vmatpush1.msra.mxu0 0.0
    %986 = vmatprep.subr.mxu0 0.0
    %987 = vmatpush1.msra.mxu0 0.0
    %988 = vmatprep.subr.mxu0 0.0
    %989 = vmatpush1.msra.mxu0 0.0
    %990 = vmatprep.subr.mxu0 0.0
    %991 = vmatpush1.msra.mxu0 0.0
    %992 = vmatprep.subr.mxu0 0.0
    %993 = vmatpush1.msra.mxu0 0.0
    %994 = vmatprep.subr.mxu0 0.0
    %995 = vmatpush1.msra.mxu0 0.0
    %996 = vmatprep.subr.mxu0 0.0
    %997 = vmatpush1.msra.mxu0 0.0
    %998 = vmatprep.subr.mxu0 0.0
    %999 = vmatpush1.msra.mxu0 0.0
    %1000 = vmatprep.mubr.f32.mxu0 0.0
    %1001 = vmatmul.mubr.f32.gmra.mrb[0].mxu0 %v733
    %v1002 = vpop.f32.mrb[0].mxu0
    %v1003 = vadd.f32 %v934, %v1002
    %v1004 = vpop.f32.mrb[0].mxu0
    %1005 = vmatprep.mubr.f32.mxu0 0.0
    %1006 = vmatmul.mubr.f32.gmra.mrb[0].mxu0 %v736
    %v1007 = vpop.f32.mrb[0].mxu0
    %v1008 = vadd.f32 %v934, %v1007
    %v1009 = vpop.f32.mrb[0].mxu0
    %1010 = vmatprep.mubr.f32.mxu0 0.0
    %1011 = vmatmul.mubr.f32.gmra.mrb[0].mxu0 %v739
    %v1012 = vpop.f32.mrb[0].mxu0
    %v1013 = vadd.f32 %v934, %v1012
    %v1014 = vpop.f32.mrb[0].mxu0
    %1015 = vmatprep.mubr.f32.mxu0 0.0
    %1016 = vmatmul.mubr.f32.gmra.mrb[0].mxu0 %v742
    %v1017 = vpop.f32.mrb[0].mxu0
    %v1018 = vadd.f32 %v934, %v1017
    %v1019 = vpop.f32.mrb[0].mxu0
    %1020 = vdwg.mxu0
    %vm1021 = vcmask 64512
    %v1023 = vsel %vm1021, %v811, 0
    %v1026 = vsel %vm1021, %v816, 0
    %v1029 = vsel %vm1021, %v907, 0
    %v1032 = vsel %vm1021, %v912, 0
    %1034 = vmatprep.subr.mxu0 0.0
    %1035 = vmatpush1.xpose.msra.mxu0 %v1029
    %1036 = vmatprep.subr.mxu0 0.0
    %1037 = vmatpush1.xpose.msra.mxu0 %v1032
    %1038 = vmatprep.subr.mxu0 0.0
    %1039 = vmatpush1.xpose.msra.mxu0 0.0
    %1040 = vmatprep.subr.mxu0 0.0
    %1041 = vmatpush1.xpose.msra.mxu0 0.0
    %1042 = vmatprep.subr.mxu0 0.0
    %1043 = vmatpush1.xpose.msra.mxu0 0.0
    %1044 = vmatprep.subr.mxu0 0.0
    %1045 = vmatpush1.xpose.msra.mxu0 0.0
    %1046 = vmatprep.subr.mxu0 0.0
    %1047 = vmatpush1.xpose.msra.mxu0 0.0
    %1048 = vmatprep.subr.mxu0 0.0
    %1049 = vmatpush1.xpose.msra.mxu0 0.0
    %1050 = vmatprep.subr.mxu0 0.0
    %1051 = vmatpush1.xpose.msra.mxu0 0.0
    %1052 = vmatprep.subr.mxu0 0.0
    %1053 = vmatpush1.xpose.msra.mxu0 0.0
    %1054 = vmatprep.subr.mxu0 0.0
    %1055 = vmatpush1.xpose.msra.mxu0 0.0
    %1056 = vmatprep.subr.mxu0 0.0
    %1057 = vmatpush1.xpose.msra.mxu0 0.0
    %1058 = vmatprep.subr.mxu0 0.0
    %1059 = vmatpush1.xpose.msra.mxu0 0.0
    %1060 = vmatprep.subr.mxu0 0.0
    %1061 = vmatpush1.xpose.msra.mxu0 0.0
    %1062 = vmatprep.subr.mxu0 0.0
    %1063 = vmatpush1.xpose.msra.mxu0 0.0
    %1064 = vmatprep.subr.mxu0 0.0
    %1065 = vmatpush1.xpose.msra.mxu0 0.0
    %1066 = vmatprep.subr.mxu0 0.0
    %1067 = vmatpush1.xpose.msra.mxu0 0.0
    %1068 = vmatprep.subr.mxu0 0.0
    %1069 = vmatpush1.xpose.msra.mxu0 0.0
    %1070 = vmatprep.subr.mxu0 0.0
    %1071 = vmatpush1.xpose.msra.mxu0 0.0
    %1072 = vmatprep.subr.mxu0 0.0
    %1073 = vmatpush1.xpose.msra.mxu0 0.0
    %1074 = vmatprep.subr.mxu0 0.0
    %1075 = vmatpush1.xpose.msra.mxu0 0.0
    %1076 = vmatprep.subr.mxu0 0.0
    %1077 = vmatpush1.xpose.msra.mxu0 0.0
    %1078 = vmatprep.subr.mxu0 0.0
    %1079 = vmatpush1.xpose.msra.mxu0 0.0
    %1080 = vmatprep.subr.mxu0 0.0
    %1081 = vmatpush1.xpose.msra.mxu0 0.0
    %1082 = vmatprep.subr.mxu0 0.0
    %1083 = vmatpush1.xpose.msra.mxu0 0.0
    %1084 = vmatprep.subr.mxu0 0.0
    %1085 = vmatpush1.xpose.msra.mxu0 0.0
    %1086 = vmatprep.subr.mxu0 0.0
    %1087 = vmatpush1.xpose.msra.mxu0 0.0
    %1088 = vmatprep.subr.mxu0 0.0
    %1089 = vmatpush1.xpose.msra.mxu0 0.0
    %1090 = vmatprep.subr.mxu0 0.0
    %1091 = vmatpush1.xpose.msra.mxu0 0.0
    %1092 = vmatprep.subr.mxu0 0.0
    %1093 = vmatpush1.xpose.msra.mxu0 0.0
    %1094 = vmatprep.subr.mxu0 0.0
    %1095 = vmatpush1.xpose.msra.mxu0 0.0
    %1096 = vmatprep.subr.mxu0 0.0
    %1097 = vmatpush1.xpose.msra.mxu0 0.0
    %1098 = vmatprep.mubr.f32.mxu0 0.0
    %1099 = vmatmul.mubr.f32.gmra.mrb[0].mxu0 %v1023
    %v1100 = vpop.f32.mrb[0].mxu0
    %v1101 = vadd.f32 0.0, %v1100
    %v1102 = vpop.f32.mrb[0].mxu0
    %1103 = vmatprep.mubr.f32.mxu0 0.0
    %1104 = vmatmul.mubr.f32.gmra.mrb[0].mxu0 %v1026
    %v1105 = vpop.f32.mrb[0].mxu0
    %v1106 = vadd.f32 0.0, %v1105
    %v1107 = vpop.f32.mrb[0].mxu0
    %1108 = vdwg.mxu0
    %v1109 = vmul.f32 %v1101, 0.35355338
    %v1110 = vmul.f32 %v1106, 0.35355338
    %vm1111 = vcmask 130048
    %v1112 = vsel %vm1111, %v1109, -inf
    %1113 = vmax.xlane.f32.xlu0 %v1112
    %v1114 = vpop.xlane.xlu0 %1113
    %v1115 = vsel %vm1111, %v1110, -inf
    %1116 = vmax.xlane.f32.xlu0 %v1115
    %v1117 = vpop.xlane.xlu0 %1116
    %v1118 = vsub.f32 %v1109, %v1114
    %v1119 = vsub.f32 %v1110, %v1117
    %v1120 = vmul.f32 %v1118, 1.442695
    %v1121 = vpow.pop %v1120
    %v1122 = vmul.f32 %v1119, 1.442695
    %v1123 = vpow.pop %v1122
    %v1124 = vsel %vm1111, %v1121, 0.0
    %1125 = vadd.xlane.f32.xlu0 %v1124
    %v1126 = vpop.xlane.xlu0 %1125
    %v1127 = vsel %vm1111, %v1123, 0.0
    %1128 = vadd.xlane.f32.xlu0 %v1127
    %v1129 = vpop.xlane.xlu0 %1128
    %v1130 = vrcp.pop %v1126
    %v1131 = vrcp.pop %v1129
    %v1132 = vmul.f32 %v1121, %v1130
    %v1133 = vmul.f32 %v1123, %v1131
    %v1135 = vsel %vm1111, %v1132, 0
    %v1138 = vsel %vm1111, %v1133, 0
    %1140 = vmatprep.subr.mxu0 0.0
    %1141 = vmatpush1.msra.mxu0 %v1003
    %1142 = vmatprep.subr.mxu0 0.0
    %1143 = vmatpush1.msra.mxu0 %v1008
    %1144 = vmatprep.subr.mxu0 0.0
    %1145 = vmatpush1.msra.mxu0 0.0
    %1146 = vmatprep.subr.mxu0 0.0
    %1147 = vmatpush1.msra.mxu0 0.0
    %1148 = vmatprep.subr.mxu0 0.0
    %1149 = vmatpush1.msra.mxu0 0.0
    %1150 = vmatprep.subr.mxu0 0.0
    %1151 = vmatpush1.msra.mxu0 0.0
    %1152 = vmatprep.subr.mxu0 0.0
    %1153 = vmatpush1.msra.mxu0 0.0
    %1154 = vmatprep.subr.mxu0 0.0
    %1155 = vmatpush1.msra.mxu0 0.0
    %1156 = vmatprep.subr.mxu0 0.0
    %1157 = vmatpush1.msra.mxu0 0.0
    %1158 = vmatprep.subr.mxu0 0.0
    %1159 = vmatpush1.msra.mxu0 0.0
    %1160 = vmatprep.subr.mxu0 0.0
    %1161 = vmatpush1.msra.mxu0 0.0
    %1162 = vmatprep.subr.mxu0 0.0
    %1163 = vmatpush1.msra.mxu0 0.0
    %1164 = vmatprep.subr.mxu0 0.0
    %1165 = vmatpush1.msra.mxu0 0.0
    %1166 = vmatprep.subr.mxu0 0.0
    %1167 = vmatpush1.msra.mxu0 0.0
    %1168 = vmatprep.subr.mxu0 0.0
    %1169 = vmatpush1.msra.mxu0 0.0
    %1170 = vmatprep.subr.mxu0 0.0
    %1171 = vmatpush1.msra.mxu0 0.0
    %1172 = vmatprep.subr.mxu0 0.0
    %1173 = vmatpush1.msra.mxu0 0.0
    %1174 = vmatprep.subr.mxu0 0.0
    %1175 = vmatpush1.msra.mxu0 0.0
    %1176 = vmatprep.subr.mxu0 0.0
    %1177 = vmatpush1.msra.mxu0 0.0
    %1178 = vmatprep.subr.mxu0 0.0
    %1179 = vmatpush1.msra.mxu0 0.0
    %1180 = vmatprep.subr.mxu0 0.0
    %1181 = vmatpush1.msra.mxu0 0.0
    %1182 = vmatprep.subr.mxu0 0.0
    %1183 = vmatpush1.msra.mxu0 0.0
    %1184 = vmatprep.subr.mxu0 0.0
    %1185 = vmatpush1.msra.mxu0 0.0
    %1186 = vmatprep.subr.mxu0 0.0
    %1187 = vmatpush1.msra.mxu0 0.0
    %1188 = vmatprep.subr.mxu0 0.0
    %1189 = vmatpush1.msra.mxu0 0.0
    %1190 = vmatprep.subr.mxu0 0.0
    %1191 = vmatpush1.msra.mxu0 0.0
    %1192 = vmatprep.subr.mxu0 0.0
    %1193 = vmatpush1.msra.mxu0 0.0
    %1194 = vmatprep.subr.mxu0 0.0
    %1195 = vmatpush1.msra.mxu0 0.0
    %1196 = vmatprep.subr.mxu0 0.0
    %1197 = vmatpush1.msra.mxu0 0.0
    %1198 = vmatprep.subr.mxu0 0.0
    %1199 = vmatpush1.msra.mxu0 0.0
    %1200 = vmatprep.subr.mxu0 0.0
    %1201 = vmatpush1.msra.mxu0 0.0
    %1202 = vmatprep.subr.mxu0 0.0
    %1203 = vmatpush1.msra.mxu0 0.0
    %1204 = vmatprep.mubr.f32.mxu0 0.0
    %1205 = vmatmul.mubr.f32.gmra.mrb[0].mxu0 %v1135
    %v1206 = vpop.f32.mrb[0].mxu0
    %v1207 = vadd.f32 0.0, %v1206
    %v1208 = vpop.f32.mrb[0].mxu0
    %1209 = vmatprep.mubr.f32.mxu0 0.0
    %1210 = vmatmul.mubr.f32.gmra.mrb[0].mxu0 %v1138
    %v1211 = vpop.f32.mrb[0].mxu0
    %v1212 = vadd.f32 0.0, %v1211
    %v1213 = vpop.f32.mrb[0].mxu0
    %1214 = vdwg.mxu0
    %v1216 = vsel %vm1021, %v821, 0
    %v1219 = vsel %vm1021, %v826, 0
    %v1222 = vsel %vm1021, %v917, 0
    %v1225 = vsel %vm1021, %v922, 0
    %1227 = vmatprep.subr.mxu0 0.0
    %1228 = vmatpush1.xpose.msra.mxu0 %v1222
    %1229 = vmatprep.subr.mxu0 0.0
    %1230 = vmatpush1.xpose.msra.mxu0 %v1225
    %1231 = vmatprep.subr.mxu0 0.0
    %1232 = vmatpush1.xpose.msra.mxu0 0.0
    %1233 = vmatprep.subr.mxu0 0.0
    %1234 = vmatpush1.xpose.msra.mxu0 0.0
    %1235 = vmatprep.subr.mxu0 0.0
    %1236 = vmatpush1.xpose.msra.mxu0 0.0
    %1237 = vmatprep.subr.mxu0 0.0
    %1238 = vmatpush1.xpose.msra.mxu0 0.0
    %1239 = vmatprep.subr.mxu0 0.0
    %1240 = vmatpush1.xpose.msra.mxu0 0.0
    %1241 = vmatprep.subr.mxu0 0.0
    %1242 = vmatpush1.xpose.msra.mxu0 0.0
    %1243 = vmatprep.subr.mxu0 0.0
    %1244 = vmatpush1.xpose.msra.mxu0 0.0
    %1245 = vmatprep.subr.mxu0 0.0
    %1246 = vmatpush1.xpose.msra.mxu0 0.0
    %1247 = vmatprep.subr.mxu0 0.0
    %1248 = vmatpush1.xpose.msra.mxu0 0.0
    %1249 = vmatprep.subr.mxu0 0.0
    %1250 = vmatpush1.xpose.msra.mxu0 0.0
    %1251 = vmatprep.subr.mxu0 0.0
    %1252 = vmatpush1.xpose.msra.mxu0 0.0
    %1253 = vmatprep.subr.mxu0 0.0
    %1254 = vmatpush1.xpose.msra.mxu0 0.0
    %1255 = vmatprep.subr.mxu0 0.0
    %1256 = vmatpush1.xpose.msra.mxu0 0.0
    %1257 = vmatprep.subr.mxu0 0.0
    %1258 = vmatpush1.xpose.msra.mxu0 0.0
    %1259 = vmatprep.subr.mxu0 0.0
    %1260 = vmatpush1.xpose.msra.mxu0 0.0
    %1261 = vmatprep.subr.mxu0 0.0
    %1262 = vmatpush1.xpose.msra.mxu0 0.0
    %1263 = vmatprep.subr.mxu0 0.0
    %1264 = vmatpush1.xpose.msra.mxu0 0.0
    %1265 = vmatprep.subr.mxu0 0.0
    %1266 = vmatpush1.xpose.msra.mxu0 0.0
    %1267 = vmatprep.subr.mxu0 0.0
    %1268 = vmatpush1.xpose.msra.mxu0 0.0
    %1269 = vmatprep.subr.mxu0 0.0
    %1270 = vmatpush1.xpose.msra.mxu0 0.0
    %1271 = vmatprep.subr.mxu0 0.0
    %1272 = vmatpush1.xpose.msra.mxu0 0.0
    %1273 = vmatprep.subr.mxu0 0.0
    %1274 = vmatpush1.xpose.msra.mxu0 0.0
    %1275 = vmatprep.subr.mxu0 0.0
    %1276 = vmatpush1.xpose.msra.mxu0 0.0
    %1277 = vmatprep.subr.mxu0 0.0
    %1278 = vmatpush1.xpose.msra.mxu0 0.0
    %1279 = vmatprep.subr.mxu0 0.0
    %1280 = vmatpush1.xpose.msra.mxu0 0.0
    %1281 = vmatprep.subr.mxu0 0.0
    %1282 = vmatpush1.xpose.msra.mxu0 0.0
    %1283 = vmatprep.subr.mxu0 0.0
    %1284 = vmatpush1.xpose.msra.mxu0 0.0
    %1285 = vmatprep.subr.mxu0 0.0
    %1286 = vmatpush1.xpose.msra.mxu0 0.0
    %1287 = vmatprep.subr.mxu0 0.0
    %1288 = vmatpush1.xpose.msra.mxu0 0.0
    %1289 = vmatprep.subr.mxu0 0.0
    %1290 = vmatpush1.xpose.msra.mxu0 0.0
    %1291 = vmatprep.mubr.f32.mxu0 0.0
    %1292 = vmatmul.mubr.f32.gmra.mrb[0].mxu0 %v1216
    %v1293 = vpop.f32.mrb[0].mxu0
    %v1294 = vadd.f32 0.0, %v1293
    %v1295 = vpop.f32.mrb[0].mxu0
    %1296 = vmatprep.mubr.f32.mxu0 0.0
    %1297 = vmatmul.mubr.f32.gmra.mrb[0].mxu0 %v1219
    %v1298 = vpop.f32.mrb[0].mxu0
    %v1299 = vadd.f32 0.0, %v1298
    %v1300 = vpop.f32.mrb[0].mxu0
    %1301 = vdwg.mxu0
    %v1302 = vmul.f32 %v1294, 0.35355338
    %v1303 = vmul.f32 %v1299, 0.35355338
    %v1304 = vsel %vm1111, %v1302, -inf
    %1305 = vmax.xlane.f32.xlu0 %v1304
    %v1306 = vpop.xlane.xlu0 %1305
    %v1307 = vsel %vm1111, %v1303, -inf
    %1308 = vmax.xlane.f32.xlu0 %v1307
    %v1309 = vpop.xlane.xlu0 %1308
    %v1310 = vsub.f32 %v1302, %v1306
    %v1311 = vsub.f32 %v1303, %v1309
    %v1312 = vmul.f32 %v1310, 1.442695
    %v1313 = vpow.pop %v1312
    %v1314 = vmul.f32 %v1311, 1.442695
    %v1315 = vpow.pop %v1314
    %v1316 = vsel %vm1111, %v1313, 0.0
    %1317 = vadd.xlane.f32.xlu0 %v1316
    %v1318 = vpop.xlane.xlu0 %1317
    %v1319 = vsel %vm1111, %v1315, 0.0
    %1320 = vadd.xlane.f32.xlu0 %v1319
    %v1321 = vpop.xlane.xlu0 %1320
    %v1322 = vrcp.pop %v1318
    %v1323 = vrcp.pop %v1321
    %v1324 = vmul.f32 %v1313, %v1322
    %v1325 = vmul.f32 %v1315, %v1323
    %v1327 = vsel %vm1111, %v1324, 0
    %v1330 = vsel %vm1111, %v1325, 0
    %1332 = vmatprep.subr.mxu0 0.0
    %1333 = vmatpush1.msra.mxu0 %v1013
    %1334 = vmatprep.subr.mxu0 0.0
    %1335 = vmatpush1.msra.mxu0 %v1018
    %1336 = vmatprep.subr.mxu0 0.0
    %1337 = vmatpush1.msra.mxu0 0.0
    %1338 = vmatprep.subr.mxu0 0.0
    %1339 = vmatpush1.msra.mxu0 0.0
    %1340 = vmatprep.subr.mxu0 0.0
    %1341 = vmatpush1.msra.mxu0 0.0
    %1342 = vmatprep.subr.mxu0 0.0
    %1343 = vmatpush1.msra.mxu0 0.0
    %1344 = vmatprep.subr.mxu0 0.0
    %1345 = vmatpush1.msra.mxu0 0.0
    %1346 = vmatprep.subr.mxu0 0.0
    %1347 = vmatpush1.msra.mxu0 0.0
    %1348 = vmatprep.subr.mxu0 0.0
    %1349 = vmatpush1.msra.mxu0 0.0
    %1350 = vmatprep.subr.mxu0 0.0
    %1351 = vmatpush1.msra.mxu0 0.0
    %1352 = vmatprep.subr.mxu0 0.0
    %1353 = vmatpush1.msra.mxu0 0.0
    %1354 = vmatprep.subr.mxu0 0.0
    %1355 = vmatpush1.msra.mxu0 0.0
    %1356 = vmatprep.subr.mxu0 0.0
    %1357 = vmatpush1.msra.mxu0 0.0
    %1358 = vmatprep.subr.mxu0 0.0
    %1359 = vmatpush1.msra.mxu0 0.0
    %1360 = vmatprep.subr.mxu0 0.0
    %1361 = vmatpush1.msra.mxu0 0.0
    %1362 = vmatprep.subr.mxu0 0.0
    %1363 = vmatpush1.msra.mxu0 0.0
    %1364 = vmatprep.subr.mxu0 0.0
    %1365 = vmatpush1.msra.mxu0 0.0
    %1366 = vmatprep.subr.mxu0 0.0
    %1367 = vmatpush1.msra.mxu0 0.0
    %1368 = vmatprep.subr.mxu0 0.0
    %1369 = vmatpush1.msra.mxu0 0.0
    %1370 = vmatprep.subr.mxu0 0.0
    %1371 = vmatpush1.msra.mxu0 0.0
    %1372 = vmatprep.subr.mxu0 0.0
    %1373 = vmatpush1.msra.mxu0 0.0
    %1374 = vmatprep.subr.mxu0 0.0
    %1375 = vmatpush1.msra.mxu0 0.0
    %1376 = vmatprep.subr.mxu0 0.0
    %1377 = vmatpush1.msra.mxu0 0.0
    %1378 = vmatprep.subr.mxu0 0.0
    %1379 = vmatpush1.msra.mxu0 0.0
    %1380 = vmatprep.subr.mxu0 0.0
    %1381 = vmatpush1.msra.mxu0 0.0
    %1382 = vmatprep.subr.mxu0 0.0
    %1383 = vmatpush1.msra.mxu0 0.0
    %1384 = vmatprep.subr.mxu0 0.0
    %1385 = vmatpush1.msra.mxu0 0.0
    %1386 = vmatprep.subr.mxu0 0.0
    %1387 = vmatpush1.msra.mxu0 0.0
    %1388 = vmatprep.subr.mxu0 0.0
    %1389 = vmatpush1.msra.mxu0 0.0
    %1390 = vmatprep.subr.mxu0 0.0
    %1391 = vmatpush1.msra.mxu0 0.0
    %1392 = vmatprep.subr.mxu0 0.0
    %1393 = vmatpush1.msra.mxu0 0.0
    %1394 = vmatprep.subr.mxu0 0.0
    %1395 = vmatpush1.msra.mxu0 0.0
    %1396 = vmatprep.mubr.f32.mxu0 0.0
    %1397 = vmatmul.mubr.f32.gmra.mrb[0].mxu0 %v1327
    %v1398 = vpop.f32.mrb[0].mxu0
    %v1399 = vadd.f32 0.0, %v1398
    %v1400 = vpop.f32.mrb[0].mxu0
    %1401 = vmatprep.mubr.f32.mxu0 0.0
    %1402 = vmatmul.mubr.f32.gmra.mrb[0].mxu0 %v1330
    %v1403 = vpop.f32.mrb[0].mxu0
    %v1404 = vadd.f32 0.0, %v1403
    %v1405 = vpop.f32.mrb[0].mxu0
    %1406 = vdwg.mxu0
    %v1407 = vld [vmem:[#allocation7] sm:$0xff]
    %s1408 = scalar_lea.vmem %s19, 32
    %v1409 = vld [vmem:[%s1408] sm:$0xff]
    %v1410 = vld [vmem:[%s1408 + $0x8] sm:$0xff]
    %v1411 = vld [vmem:[%s1408 + $0x10] sm:$0xff]
    %v1412 = vld [vmem:[%s1408 + $0x18] sm:$0xff]
    %s1413 = scalar_lea.vmem %s25, 1
    %v1414 = vld [vmem:[%s1413] sm:$0x1]
    %v1416 = vlaneseq
    %v1417 = vshrl.u32 %v1416, 7
    %v1418 = vsub.s32 0, %v1417
    %v1419 = vrot.slane %v1414, %v1418
    %1421 = vmatprep.subr.mxu0 0.0
    %1422 = vmatpush1.msra.mxu0 %v1409
    %1423 = vmatprep.subr.mxu0 0.0
    %1424 = vmatpush1.msra.mxu0 %v1410
    %1425 = vmatprep.subr.mxu0 0.0
    %1426 = vmatpush1.msra.mxu0 %v1411
    %1427 = vmatprep.subr.mxu0 0.0
    %1428 = vmatpush1.msra.mxu0 %v1412
    %1429 = vmatprep.subr.mxu0 0.0
    %1430 = vmatpush1.msra.mxu0 0.0
    %1431 = vmatprep.subr.mxu0 0.0
    %1432 = vmatpush1.msra.mxu0 0.0
    %1433 = vmatprep.subr.mxu0 0.0
    %1434 = vmatpush1.msra.mxu0 0.0
    %1435 = vmatprep.subr.mxu0 0.0
    %1436 = vmatpush1.msra.mxu0 0.0
    %1437 = vmatprep.subr.mxu0 0.0
    %1438 = vmatpush1.msra.mxu0 0.0
    %1439 = vmatprep.subr.mxu0 0.0
    %1440 = vmatpush1.msra.mxu0 0.0
    %1441 = vmatprep.subr.mxu0 0.0
    %1442 = vmatpush1.msra.mxu0 0.0
    %1443 = vmatprep.subr.mxu0 0.0
    %1444 = vmatpush1.msra.mxu0 0.0
    %1445 = vmatprep.subr.mxu0 0.0
    %1446 = vmatpush1.msra.mxu0 0.0
    %1447 = vmatprep.subr.mxu0 0.0
    %1448 = vmatpush1.msra.mxu0 0.0
    %1449 = vmatprep.subr.mxu0 0.0
    %1450 = vmatpush1.msra.mxu0 0.0
    %1451 = vmatprep.subr.mxu0 0.0
    %1452 = vmatpush1.msra.mxu0 0.0
    %1453 = vmatprep.subr.mxu0 0.0
    %1454 = vmatpush1.msra.mxu0 0.0
    %1455 = vmatprep.subr.mxu0 0.0
    %1456 = vmatpush1.msra.mxu0 0.0
    %1457 = vmatprep.subr.mxu0 0.0
    %1458 = vmatpush1.msra.mxu0 0.0
    %1459 = vmatprep.subr.mxu0 0.0
    %1460 = vmatpush1.msra.mxu0 0.0
    %1461 = vmatprep.subr.mxu0 0.0
    %1462 = vmatpush1.msra.mxu0 0.0
    %1463 = vmatprep.subr.mxu0 0.0
    %1464 = vmatpush1.msra.mxu0 0.0
    %1465 = vmatprep.subr.mxu0 0.0
    %1466 = vmatpush1.msra.mxu0 0.0
    %1467 = vmatprep.subr.mxu0 0.0
    %1468 = vmatpush1.msra.mxu0 0.0
    %1469 = vmatprep.subr.mxu0 0.0
    %1470 = vmatpush1.msra.mxu0 0.0
    %1471 = vmatprep.subr.mxu0 0.0
    %1472 = vmatpush1.msra.mxu0 0.0
    %1473 = vmatprep.subr.mxu0 0.0
    %1474 = vmatpush1.msra.mxu0 0.0
    %1475 = vmatprep.subr.mxu0 0.0
    %1476 = vmatpush1.msra.mxu0 0.0
    %1477 = vmatprep.subr.mxu0 0.0
    %1478 = vmatpush1.msra.mxu0 0.0
    %1479 = vmatprep.subr.mxu0 0.0
    %1480 = vmatpush1.msra.mxu0 0.0
    %1481 = vmatprep.subr.mxu0 0.0
    %1482 = vmatpush1.msra.mxu0 0.0
    %1483 = vmatprep.subr.mxu0 0.0
    %1484 = vmatpush1.msra.mxu0 0.0
    %1485 = vmatprep.mubr.f32.mxu0 0.0
    %1486 = vmatmul.mubr.f32.gmra.mrb[0].mxu0 %v733
    %v1487 = vpop.f32.mrb[0].mxu0
    %v1488 = vadd.f32 %v1419, %v1487
    %v1489 = vpop.f32.mrb[0].mxu0
    %1490 = vmatprep.mubr.f32.mxu0 0.0
    %1491 = vmatmul.mubr.f32.gmra.mrb[0].mxu0 %v736
    %v1492 = vpop.f32.mrb[0].mxu0
    %v1493 = vadd.f32 %v1419, %v1492
    %v1494 = vpop.f32.mrb[0].mxu0
    %1495 = vmatprep.mubr.f32.mxu0 0.0
    %1496 = vmatmul.mubr.f32.gmra.mrb[0].mxu0 %v739
    %v1497 = vpop.f32.mrb[0].mxu0
    %v1498 = vadd.f32 %v1419, %v1497
    %v1499 = vpop.f32.mrb[0].mxu0
    %1500 = vmatprep.mubr.f32.mxu0 0.0
    %1501 = vmatmul.mubr.f32.gmra.mrb[0].mxu0 %v742
    %v1502 = vpop.f32.mrb[0].mxu0
    %v1503 = vadd.f32 %v1419, %v1502
    %v1504 = vpop.f32.mrb[0].mxu0
    %1505 = vdwg.mxu0
    %s1506 = scalar_lea.vmem %s21, 32
    %v1507 = vld [vmem:[%s1506] sm:$0xff]
    %v1508 = vld [vmem:[%s1506 + $0x8] sm:$0xff]
    %v1509 = vld [vmem:[%s1506 + $0x10] sm:$0xff]
    %v1510 = vld [vmem:[%s1506 + $0x18] sm:$0xff]
    %s1511 = scalar_lea.vmem %s27, 1
    %v1512 = vld [vmem:[%s1511] sm:$0x1]
    %v1514 = vlaneseq
    %v1515 = vshrl.u32 %v1514, 7
    %v1516 = vsub.s32 0, %v1515
    %v1517 = vrot.slane %v1512, %v1516
    %1519 = vmatprep.subr.mxu0 0.0
    %1520 = vmatpush1.msra.mxu0 %v1507
    %1521 = vmatprep.subr.mxu0 0.0
    %1522 = vmatpush1.msra.mxu0 %v1508
    %1523 = vmatprep.subr.mxu0 0.0
    %1524 = vmatpush1.msra.mxu0 %v1509
    %1525 = vmatprep.subr.mxu0 0.0
    %1526 = vmatpush1.msra.mxu0 %v1510
    %1527 = vmatprep.subr.mxu0 0.0
    %1528 = vmatpush1.msra.mxu0 0.0
    %1529 = vmatprep.subr.mxu0 0.0
    %1530 = vmatpush1.msra.mxu0 0.0
    %1531 = vmatprep.subr.mxu0 0.0
    %1532 = vmatpush1.msra.mxu0 0.0
    %1533 = vmatprep.subr.mxu0 0.0
    %1534 = vmatpush1.msra.mxu0 0.0
    %1535 = vmatprep.subr.mxu0 0.0
    %1536 = vmatpush1.msra.mxu0 0.0
    %1537 = vmatprep.subr.mxu0 0.0
    %1538 = vmatpush1.msra.mxu0 0.0
    %1539 = vmatprep.subr.mxu0 0.0
    %1540 = vmatpush1.msra.mxu0 0.0
    %1541 = vmatprep.subr.mxu0 0.0
    %1542 = vmatpush1.msra.mxu0 0.0
    %1543 = vmatprep.subr.mxu0 0.0
    %1544 = vmatpush1.msra.mxu0 0.0
    %1545 = vmatprep.subr.mxu0 0.0
    %1546 = vmatpush1.msra.mxu0 0.0
    %1547 = vmatprep.subr.mxu0 0.0
    %1548 = vmatpush1.msra.mxu0 0.0
    %1549 = vmatprep.subr.mxu0 0.0
    %1550 = vmatpush1.msra.mxu0 0.0
    %1551 = vmatprep.subr.mxu0 0.0
    %1552 = vmatpush1.msra.mxu0 0.0
    %1553 = vmatprep.subr.mxu0 0.0
    %1554 = vmatpush1.msra.mxu0 0.0
    %1555 = vmatprep.subr.mxu0 0.0
    %1556 = vmatpush1.msra.mxu0 0.0
    %1557 = vmatprep.subr.mxu0 0.0
    %1558 = vmatpush1.msra.mxu0 0.0
    %1559 = vmatprep.subr.mxu0 0.0
    %1560 = vmatpush1.msra.mxu0 0.0
    %1561 = vmatprep.subr.mxu0 0.0
    %1562 = vmatpush1.msra.mxu0 0.0
    %1563 = vmatprep.subr.mxu0 0.0
    %1564 = vmatpush1.msra.mxu0 0.0
    %1565 = vmatprep.subr.mxu0 0.0
    %1566 = vmatpush1.msra.mxu0 0.0
    %1567 = vmatprep.subr.mxu0 0.0
    %1568 = vmatpush1.msra.mxu0 0.0
    %1569 = vmatprep.subr.mxu0 0.0
    %1570 = vmatpush1.msra.mxu0 0.0
    %1571 = vmatprep.subr.mxu0 0.0
    %1572 = vmatpush1.msra.mxu0 0.0
    %1573 = vmatprep.subr.mxu0 0.0
    %1574 = vmatpush1.msra.mxu0 0.0
    %1575 = vmatprep.subr.mxu0 0.0
    %1576 = vmatpush1.msra.mxu0 0.0
    %1577 = vmatprep.subr.mxu0 0.0
    %1578 = vmatpush1.msra.mxu0 0.0
    %1579 = vmatprep.subr.mxu0 0.0
    %1580 = vmatpush1.msra.mxu0 0.0
    %1581 = vmatprep.subr.mxu0 0.0
    %1582 = vmatpush1.msra.mxu0 0.0
    %1583 = vmatprep.mubr.f32.mxu0 0.0
    %1584 = vmatmul.mubr.f32.gmra.mrb[0].mxu0 %v733
    %v1585 = vpop.f32.mrb[0].mxu0
    %v1586 = vadd.f32 %v1517, %v1585
    %v1587 = vpop.f32.mrb[0].mxu0
    %1588 = vmatprep.mubr.f32.mxu0 0.0
    %1589 = vmatmul.mubr.f32.gmra.mrb[0].mxu0 %v736
    %v1590 = vpop.f32.mrb[0].mxu0
    %v1591 = vadd.f32 %v1517, %v1590
    %v1592 = vpop.f32.mrb[0].mxu0
    %1593 = vmatprep.mubr.f32.mxu0 0.0
    %1594 = vmatmul.mubr.f32.gmra.mrb[0].mxu0 %v739
    %v1595 = vpop.f32.mrb[0].mxu0
    %v1596 = vadd.f32 %v1517, %v1595
    %v1597 = vpop.f32.mrb[0].mxu0
    %1598 = vmatprep.mubr.f32.mxu0 0.0
    %1599 = vmatmul.mubr.f32.gmra.mrb[0].mxu0 %v742
    %v1600 = vpop.f32.mrb[0].mxu0
    %v1601 = vadd.f32 %v1517, %v1600
    %v1602 = vpop.f32.mrb[0].mxu0
    %1603 = vdwg.mxu0
    %s1604 = scalar_lea.vmem %s23, 32
    %v1605 = vld [vmem:[%s1604] sm:$0xff]
    %v1606 = vld [vmem:[%s1604 + $0x8] sm:$0xff]
    %v1607 = vld [vmem:[%s1604 + $0x10] sm:$0xff]
    %v1608 = vld [vmem:[%s1604 + $0x18] sm:$0xff]
    %s1609 = scalar_lea.vmem %s29, 1
    %v1610 = vld [vmem:[%s1609] sm:$0x1]
    %v1612 = vlaneseq
    %v1613 = vshrl.u32 %v1612, 7
    %v1614 = vsub.s32 0, %v1613
    %v1615 = vrot.slane %v1610, %v1614
    %1617 = vmatprep.subr.mxu0 0.0
    %1618 = vmatpush1.msra.mxu0 %v1605
    %1619 = vmatprep.subr.mxu0 0.0
    %1620 = vmatpush1.msra.mxu0 %v1606
    %1621 = vmatprep.subr.mxu0 0.0
    %1622 = vmatpush1.msra.mxu0 %v1607
    %1623 = vmatprep.subr.mxu0 0.0
    %1624 = vmatpush1.msra.mxu0 %v1608
    %1625 = vmatprep.subr.mxu0 0.0
    %1626 = vmatpush1.msra.mxu0 0.0
    %1627 = vmatprep.subr.mxu0 0.0
    %1628 = vmatpush1.msra.mxu0 0.0
    %1629 = vmatprep.subr.mxu0 0.0
    %1630 = vmatpush1.msra.mxu0 0.0
    %1631 = vmatprep.subr.mxu0 0.0
    %1632 = vmatpush1.msra.mxu0 0.0
    %1633 = vmatprep.subr.mxu0 0.0
    %1634 = vmatpush1.msra.mxu0 0.0
    %1635 = vmatprep.subr.mxu0 0.0
    %1636 = vmatpush1.msra.mxu0 0.0
    %1637 = vmatprep.subr.mxu0 0.0
    %1638 = vmatpush1.msra.mxu0 0.0
    %1639 = vmatprep.subr.mxu0 0.0
    %1640 = vmatpush1.msra.mxu0 0.0
    %1641 = vmatprep.subr.mxu0 0.0
    %1642 = vmatpush1.msra.mxu0 0.0
    %1643 = vmatprep.subr.mxu0 0.0
    %1644 = vmatpush1.msra.mxu0 0.0
    %1645 = vmatprep.subr.mxu0 0.0
    %1646 = vmatpush1.msra.mxu0 0.0
    %1647 = vmatprep.subr.mxu0 0.0
    %1648 = vmatpush1.msra.mxu0 0.0
    %1649 = vmatprep.subr.mxu0 0.0
    %1650 = vmatpush1.msra.mxu0 0.0
    %1651 = vmatprep.subr.mxu0 0.0
    %1652 = vmatpush1.msra.mxu0 0.0
    %1653 = vmatprep.subr.mxu0 0.0
    %1654 = vmatpush1.msra.mxu0 0.0
    %1655 = vmatprep.subr.mxu0 0.0
    %1656 = vmatpush1.msra.mxu0 0.0
    %1657 = vmatprep.subr.mxu0 0.0
    %1658 = vmatpush1.msra.mxu0 0.0
    %1659 = vmatprep.subr.mxu0 0.0
    %1660 = vmatpush1.msra.mxu0 0.0
    %1661 = vmatprep.subr.mxu0 0.0
    %1662 = vmatpush1.msra.mxu0 0.0
    %1663 = vmatprep.subr.mxu0 0.0
    %1664 = vmatpush1.msra.mxu0 0.0
    %1665 = vmatprep.subr.mxu0 0.0
    %1666 = vmatpush1.msra.mxu0 0.0
    %1667 = vmatprep.subr.mxu0 0.0
    %1668 = vmatpush1.msra.mxu0 0.0
    %1669 = vmatprep.subr.mxu0 0.0
    %1670 = vmatpush1.msra.mxu0 0.0
    %1671 = vmatprep.subr.mxu0 0.0
    %1672 = vmatpush1.msra.mxu0 0.0
    %1673 = vmatprep.subr.mxu0 0.0
    %1674 = vmatpush1.msra.mxu0 0.0
    %1675 = vmatprep.subr.mxu0 0.0
    %1676 = vmatpush1.msra.mxu0 0.0
    %1677 = vmatprep.subr.mxu0 0.0
    %1678 = vmatpush1.msra.mxu0 0.0
    %1679 = vmatprep.subr.mxu0 0.0
    %1680 = vmatpush1.msra.mxu0 0.0
    %1681 = vmatprep.mubr.f32.mxu0 0.0
    %1682 = vmatmul.mubr.f32.gmra.mrb[0].mxu0 %v733
    %v1683 = vpop.f32.mrb[0].mxu0
    %v1684 = vadd.f32 %v1615, %v1683
    %v1685 = vpop.f32.mrb[0].mxu0
    %1686 = vmatprep.mubr.f32.mxu0 0.0
    %1687 = vmatmul.mubr.f32.gmra.mrb[0].mxu0 %v736
    %v1688 = vpop.f32.mrb[0].mxu0
    %v1689 = vadd.f32 %v1615, %v1688
    %v1690 = vpop.f32.mrb[0].mxu0
    %1691 = vmatprep.mubr.f32.mxu0 0.0
    %1692 = vmatmul.mubr.f32.gmra.mrb[0].mxu0 %v739
    %v1693 = vpop.f32.mrb[0].mxu0
    %v1694 = vadd.f32 %v1615, %v1693
    %v1695 = vpop.f32.mrb[0].mxu0
    %1696 = vmatprep.mubr.f32.mxu0 0.0
    %1697 = vmatmul.mubr.f32.gmra.mrb[0].mxu0 %v742
    %v1698 = vpop.f32.mrb[0].mxu0
    %v1699 = vadd.f32 %v1615, %v1698
    %v1700 = vpop.f32.mrb[0].mxu0
    %1701 = vdwg.mxu0
    %v1703 = vsel %vm1021, %v1488, 0
    %v1706 = vsel %vm1021, %v1493, 0
    %v1709 = vsel %vm1021, %v1586, 0
    %v1712 = vsel %vm1021, %v1591, 0
    %1714 = vmatprep.subr.mxu0 0.0
    %1715 = vmatpush1.xpose.msra.mxu0 %v1709
    %1716 = vmatprep.subr.mxu0 0.0
    %1717 = vmatpush1.xpose.msra.mxu0 %v1712
    %1718 = vmatprep.subr.mxu0 0.0
    %1719 = vmatpush1.xpose.msra.mxu0 0.0
    %1720 = vmatprep.subr.mxu0 0.0
    %1721 = vmatpush1.xpose.msra.mxu0 0.0
    %1722 = vmatprep.subr.mxu0 0.0
    %1723 = vmatpush1.xpose.msra.mxu0 0.0
    %1724 = vmatprep.subr.mxu0 0.0
    %1725 = vmatpush1.xpose.msra.mxu0 0.0
    %1726 = vmatprep.subr.mxu0 0.0
    %1727 = vmatpush1.xpose.msra.mxu0 0.0
    %1728 = vmatprep.subr.mxu0 0.0
    %1729 = vmatpush1.xpose.msra.mxu0 0.0
    %1730 = vmatprep.subr.mxu0 0.0
    %1731 = vmatpush1.xpose.msra.mxu0 0.0
    %1732 = vmatprep.subr.mxu0 0.0
    %1733 = vmatpush1.xpose.msra.mxu0 0.0
    %1734 = vmatprep.subr.mxu0 0.0
    %1735 = vmatpush1.xpose.msra.mxu0 0.0
    %1736 = vmatprep.subr.mxu0 0.0
    %1737 = vmatpush1.xpose.msra.mxu0 0.0
    %1738 = vmatprep.subr.mxu0 0.0
    %1739 = vmatpush1.xpose.msra.mxu0 0.0
    %1740 = vmatprep.subr.mxu0 0.0
    %1741 = vmatpush1.xpose.msra.mxu0 0.0
    %1742 = vmatprep.subr.mxu0 0.0
    %1743 = vmatpush1.xpose.msra.mxu0 0.0
    %1744 = vmatprep.subr.mxu0 0.0
    %1745 = vmatpush1.xpose.msra.mxu0 0.0
    %1746 = vmatprep.subr.mxu0 0.0
    %1747 = vmatpush1.xpose.msra.mxu0 0.0
    %1748 = vmatprep.subr.mxu0 0.0
    %1749 = vmatpush1.xpose.msra.mxu0 0.0
    %1750 = vmatprep.subr.mxu0 0.0
    %1751 = vmatpush1.xpose.msra.mxu0 0.0
    %1752 = vmatprep.subr.mxu0 0.0
    %1753 = vmatpush1.xpose.msra.mxu0 0.0
    %1754 = vmatprep.subr.mxu0 0.0
    %1755 = vmatpush1.xpose.msra.mxu0 0.0
    %1756 = vmatprep.subr.mxu0 0.0
    %1757 = vmatpush1.xpose.msra.mxu0 0.0
    %1758 = vmatprep.subr.mxu0 0.0
    %1759 = vmatpush1.xpose.msra.mxu0 0.0
    %1760 = vmatprep.subr.mxu0 0.0
    %1761 = vmatpush1.xpose.msra.mxu0 0.0
    %1762 = vmatprep.subr.mxu0 0.0
    %1763 = vmatpush1.xpose.msra.mxu0 0.0
    %1764 = vmatprep.subr.mxu0 0.0
    %1765 = vmatpush1.xpose.msra.mxu0 0.0
    %1766 = vmatprep.subr.mxu0 0.0
    %1767 = vmatpush1.xpose.msra.mxu0 0.0
    %1768 = vmatprep.subr.mxu0 0.0
    %1769 = vmatpush1.xpose.msra.mxu0 0.0
    %1770 = vmatprep.subr.mxu0 0.0
    %1771 = vmatpush1.xpose.msra.mxu0 0.0
    %1772 = vmatprep.subr.mxu0 0.0
    %1773 = vmatpush1.xpose.msra.mxu0 0.0
    %1774 = vmatprep.subr.mxu0 0.0
    %1775 = vmatpush1.xpose.msra.mxu0 0.0
    %1776 = vmatprep.subr.mxu0 0.0
    %1777 = vmatpush1.xpose.msra.mxu0 0.0
    %1778 = vmatprep.mubr.f32.mxu0 0.0
    %1779 = vmatmul.mubr.f32.gmra.mrb[0].mxu0 %v1703
    %v1780 = vpop.f32.mrb[0].mxu0
    %v1781 = vadd.f32 0.0, %v1780
    %v1782 = vpop.f32.mrb[0].mxu0
    %1783 = vmatprep.mubr.f32.mxu0 0.0
    %1784 = vmatmul.mubr.f32.gmra.mrb[0].mxu0 %v1706
    %v1785 = vpop.f32.mrb[0].mxu0
    %v1786 = vadd.f32 0.0, %v1785
    %v1787 = vpop.f32.mrb[0].mxu0
    %1788 = vdwg.mxu0
    %v1789 = vmul.f32 %v1781, 0.35355338
    %v1790 = vmul.f32 %v1786, 0.35355338
    %v1791 = vsel %vm1111, %v1789, -inf
    %1792 = vmax.xlane.f32.xlu0 %v1791
    %v1793 = vpop.xlane.xlu0 %1792
    %v1794 = vsel %vm1111, %v1790, -inf
    %1795 = vmax.xlane.f32.xlu0 %v1794
    %v1796 = vpop.xlane.xlu0 %1795
    %v1797 = vsub.f32 %v1789, %v1793
    %v1798 = vsub.f32 %v1790, %v1796
    %v1799 = vmul.f32 %v1797, 1.442695
    %v1800 = vpow.pop %v1799
    %v1801 = vmul.f32 %v1798, 1.442695
    %v1802 = vpow.pop %v1801
    %v1803 = vsel %vm1111, %v1800, 0.0
    %1804 = vadd.xlane.f32.xlu0 %v1803
    %v1805 = vpop.xlane.xlu0 %1804
    %v1806 = vsel %vm1111, %v1802, 0.0
    %1807 = vadd.xlane.f32.xlu0 %v1806
    %v1808 = vpop.xlane.xlu0 %1807
    %v1809 = vrcp.pop %v1805
    %v1810 = vrcp.pop %v1808
    %v1811 = vmul.f32 %v1800, %v1809
    %v1812 = vmul.f32 %v1802, %v1810
    %v1814 = vsel %vm1111, %v1811, 0
    %v1817 = vsel %vm1111, %v1812, 0
    %1819 = vmatprep.subr.mxu0 0.0
    %1820 = vmatpush1.msra.mxu0 %v1684
    %1821 = vmatprep.subr.mxu0 0.0
    %1822 = vmatpush1.msra.mxu0 %v1689
    %1823 = vmatprep.subr.mxu0 0.0
    %1824 = vmatpush1.msra.mxu0 0.0
    %1825 = vmatprep.subr.mxu0 0.0
    %1826 = vmatpush1.msra.mxu0 0.0
    %1827 = vmatprep.subr.mxu0 0.0
    %1828 = vmatpush1.msra.mxu0 0.0
    %1829 = vmatprep.subr.mxu0 0.0
    %1830 = vmatpush1.msra.mxu0 0.0
    %1831 = vmatprep.subr.mxu0 0.0
    %1832 = vmatpush1.msra.mxu0 0.0
    %1833 = vmatprep.subr.mxu0 0.0
    %1834 = vmatpush1.msra.mxu0 0.0
    %1835 = vmatprep.subr.mxu0 0.0
    %1836 = vmatpush1.msra.mxu0 0.0
    %1837 = vmatprep.subr.mxu0 0.0
    %1838 = vmatpush1.msra.mxu0 0.0
    %1839 = vmatprep.subr.mxu0 0.0
    %1840 = vmatpush1.msra.mxu0 0.0
    %1841 = vmatprep.subr.mxu0 0.0
    %1842 = vmatpush1.msra.mxu0 0.0
    %1843 = vmatprep.subr.mxu0 0.0
    %1844 = vmatpush1.msra.mxu0 0.0
    %1845 = vmatprep.subr.mxu0 0.0
    %1846 = vmatpush1.msra.mxu0 0.0
    %1847 = vmatprep.subr.mxu0 0.0
    %1848 = vmatpush1.msra.mxu0 0.0
    %1849 = vmatprep.subr.mxu0 0.0
    %1850 = vmatpush1.msra.mxu0 0.0
    %1851 = vmatprep.subr.mxu0 0.0
    %1852 = vmatpush1.msra.mxu0 0.0
    %1853 = vmatprep.subr.mxu0 0.0
    %1854 = vmatpush1.msra.mxu0 0.0
    %1855 = vmatprep.subr.mxu0 0.0
    %1856 = vmatpush1.msra.mxu0 0.0
    %1857 = vmatprep.subr.mxu0 0.0
    %1858 = vmatpush1.msra.mxu0 0.0
    %1859 = vmatprep.subr.mxu0 0.0
    %1860 = vmatpush1.msra.mxu0 0.0
    %1861 = vmatprep.subr.mxu0 0.0
    %1862 = vmatpush1.msra.mxu0 0.0
    %1863 = vmatprep.subr.mxu0 0.0
    %1864 = vmatpush1.msra.mxu0 0.0
    %1865 = vmatprep.subr.mxu0 0.0
    %1866 = vmatpush1.msra.mxu0 0.0
    %1867 = vmatprep.subr.mxu0 0.0
    %1868 = vmatpush1.msra.mxu0 0.0
    %1869 = vmatprep.subr.mxu0 0.0
    %1870 = vmatpush1.msra.mxu0 0.0
    %1871 = vmatprep.subr.mxu0 0.0
    %1872 = vmatpush1.msra.mxu0 0.0
    %1873 = vmatprep.subr.mxu0 0.0
    %1874 = vmatpush1.msra.mxu0 0.0
    %1875 = vmatprep.subr.mxu0 0.0
    %1876 = vmatpush1.msra.mxu0 0.0
    %1877 = vmatprep.subr.mxu0 0.0
    %1878 = vmatpush1.msra.mxu0 0.0
    %1879 = vmatprep.subr.mxu0 0.0
    %1880 = vmatpush1.msra.mxu0 0.0
    %1881 = vmatprep.subr.mxu0 0.0
    %1882 = vmatpush1.msra.mxu0 0.0
    %1883 = vmatprep.mubr.f32.mxu0 0.0
    %1884 = vmatmul.mubr.f32.gmra.mrb[0].mxu0 %v1814
    %v1885 = vpop.f32.mrb[0].mxu0
    %v1886 = vadd.f32 0.0, %v1885
    %v1887 = vpop.f32.mrb[0].mxu0
    %1888 = vmatprep.mubr.f32.mxu0 0.0
    %1889 = vmatmul.mubr.f32.gmra.mrb[0].mxu0 %v1817
    %v1890 = vpop.f32.mrb[0].mxu0
    %v1891 = vadd.f32 0.0, %v1890
    %v1892 = vpop.f32.mrb[0].mxu0
    %1893 = vdwg.mxu0
    %v1895 = vsel %vm1021, %v1498, 0
    %v1898 = vsel %vm1021, %v1503, 0
    %v1901 = vsel %vm1021, %v1596, 0
    %v1904 = vsel %vm1021, %v1601, 0
    %1906 = vmatprep.subr.mxu0 0.0
    %1907 = vmatpush1.xpose.msra.mxu0 %v1901
    %1908 = vmatprep.subr.mxu0 0.0
    %1909 = vmatpush1.xpose.msra.mxu0 %v1904
    %1910 = vmatprep.subr.mxu0 0.0
    %1911 = vmatpush1.xpose.msra.mxu0 0.0
    %1912 = vmatprep.subr.mxu0 0.0
    %1913 = vmatpush1.xpose.msra.mxu0 0.0
    %1914 = vmatprep.subr.mxu0 0.0
    %1915 = vmatpush1.xpose.msra.mxu0 0.0
    %1916 = vmatprep.subr.mxu0 0.0
    %1917 = vmatpush1.xpose.msra.mxu0 0.0
    %1918 = vmatprep.subr.mxu0 0.0
    %1919 = vmatpush1.xpose.msra.mxu0 0.0
    %1920 = vmatprep.subr.mxu0 0.0
    %1921 = vmatpush1.xpose.msra.mxu0 0.0
    %1922 = vmatprep.subr.mxu0 0.0
    %1923 = vmatpush1.xpose.msra.mxu0 0.0
    %1924 = vmatprep.subr.mxu0 0.0
    %1925 = vmatpush1.xpose.msra.mxu0 0.0
    %1926 = vmatprep.subr.mxu0 0.0
    %1927 = vmatpush1.xpose.msra.mxu0 0.0
    %1928 = vmatprep.subr.mxu0 0.0
    %1929 = vmatpush1.xpose.msra.mxu0 0.0
    %1930 = vmatprep.subr.mxu0 0.0
    %1931 = vmatpush1.xpose.msra.mxu0 0.0
    %1932 = vmatprep.subr.mxu0 0.0
    %1933 = vmatpush1.xpose.msra.mxu0 0.0
    %1934 = vmatprep.subr.mxu0 0.0
    %1935 = vmatpush1.xpose.msra.mxu0 0.0
    %1936 = vmatprep.subr.mxu0 0.0
    %1937 = vmatpush1.xpose.msra.mxu0 0.0
    %1938 = vmatprep.subr.mxu0 0.0
    %1939 = vmatpush1.xpose.msra.mxu0 0.0
    %1940 = vmatprep.subr.mxu0 0.0
    %1941 = vmatpush1.xpose.msra.mxu0 0.0
    %1942 = vmatprep.subr.mxu0 0.0
    %1943 = vmatpush1.xpose.msra.mxu0 0.0
    %1944 = vmatprep.subr.mxu0 0.0
    %1945 = vmatpush1.xpose.msra.mxu0 0.0
    %1946 = vmatprep.subr.mxu0 0.0
    %1947 = vmatpush1.xpose.msra.mxu0 0.0
    %1948 = vmatprep.subr.mxu0 0.0
    %1949 = vmatpush1.xpose.msra.mxu0 0.0
    %1950 = vmatprep.subr.mxu0 0.0
    %1951 = vmatpush1.xpose.msra.mxu0 0.0
    %1952 = vmatprep.subr.mxu0 0.0
    %1953 = vmatpush1.xpose.msra.mxu0 0.0
    %1954 = vmatprep.subr.mxu0 0.0
    %1955 = vmatpush1.xpose.msra.mxu0 0.0
    %1956 = vmatprep.subr.mxu0 0.0
    %1957 = vmatpush1.xpose.msra.mxu0 0.0
    %1958 = vmatprep.subr.mxu0 0.0
    %1959 = vmatpush1.xpose.msra.mxu0 0.0
    %1960 = vmatprep.subr.mxu0 0.0
    %1961 = vmatpush1.xpose.msra.mxu0 0.0
    %1962 = vmatprep.subr.mxu0 0.0
    %1963 = vmatpush1.xpose.msra.mxu0 0.0
    %1964 = vmatprep.subr.mxu0 0.0
    %1965 = vmatpush1.xpose.msra.mxu0 0.0
    %1966 = vmatprep.subr.mxu0 0.0
    %1967 = vmatpush1.xpose.msra.mxu0 0.0
    %1968 = vmatprep.subr.mxu0 0.0
    %1969 = vmatpush1.xpose.msra.mxu0 0.0
    %1970 = vmatprep.mubr.f32.mxu0 0.0
    %1971 = vmatmul.mubr.f32.gmra.mrb[0].mxu0 %v1895
    %v1972 = vpop.f32.mrb[0].mxu0
    %v1973 = vadd.f32 0.0, %v1972
    %v1974 = vpop.f32.mrb[0].mxu0
    %1975 = vmatprep.mubr.f32.mxu0 0.0
    %1976 = vmatmul.mubr.f32.gmra.mrb[0].mxu0 %v1898
    %v1977 = vpop.f32.mrb[0].mxu0
    %v1978 = vadd.f32 0.0, %v1977
    %v1979 = vpop.f32.mrb[0].mxu0
    %1980 = vdwg.mxu0
    %v1981 = vmul.f32 %v1973, 0.35355338
    %v1982 = vmul.f32 %v1978, 0.35355338
    %v1983 = vsel %vm1111, %v1981, -inf
    %1984 = vmax.xlane.f32.xlu0 %v1983
    %v1985 = vpop.xlane.xlu0 %1984
    %v1986 = vsel %vm1111, %v1982, -inf
    %1987 = vmax.xlane.f32.xlu0 %v1986
    %v1988 = vpop.xlane.xlu0 %1987
    %v1989 = vsub.f32 %v1981, %v1985
    %v1990 = vsub.f32 %v1982, %v1988
    %v1991 = vmul.f32 %v1989, 1.442695
    %v1992 = vpow.pop %v1991
    %v1993 = vmul.f32 %v1990, 1.442695
    %v1994 = vpow.pop %v1993
    %v1995 = vsel %vm1111, %v1992, 0.0
    %1996 = vadd.xlane.f32.xlu0 %v1995
    %v1997 = vpop.xlane.xlu0 %1996
    %v1998 = vsel %vm1111, %v1994, 0.0
    %1999 = vadd.xlane.f32.xlu0 %v1998
    %v2000 = vpop.xlane.xlu0 %1999
    %v2001 = vrcp.pop %v1997
    %v2002 = vrcp.pop %v2000
    %v2003 = vmul.f32 %v1992, %v2001
    %v2004 = vmul.f32 %v1994, %v2002
    %v2006 = vsel %vm1111, %v2003, 0
    %v2009 = vsel %vm1111, %v2004, 0
    %2011 = vmatprep.subr.mxu0 0.0
    %2012 = vmatpush1.msra.mxu0 %v1694
    %2013 = vmatprep.subr.mxu0 0.0
    %2014 = vmatpush1.msra.mxu0 %v1699
    %2015 = vmatprep.subr.mxu0 0.0
    %2016 = vmatpush1.msra.mxu0 0.0
    %2017 = vmatprep.subr.mxu0 0.0
    %2018 = vmatpush1.msra.mxu0 0.0
    %2019 = vmatprep.subr.mxu0 0.0
    %2020 = vmatpush1.msra.mxu0 0.0
    %2021 = vmatprep.subr.mxu0 0.0
    %2022 = vmatpush1.msra.mxu0 0.0
    %2023 = vmatprep.subr.mxu0 0.0
    %2024 = vmatpush1.msra.mxu0 0.0
    %2025 = vmatprep.subr.mxu0 0.0
    %2026 = vmatpush1.msra.mxu0 0.0
    %2027 = vmatprep.subr.mxu0 0.0
    %2028 = vmatpush1.msra.mxu0 0.0
    %2029 = vmatprep.subr.mxu0 0.0
    %2030 = vmatpush1.msra.mxu0 0.0
    %2031 = vmatprep.subr.mxu0 0.0
    %2032 = vmatpush1.msra.mxu0 0.0
    %2033 = vmatprep.subr.mxu0 0.0
    %2034 = vmatpush1.msra.mxu0 0.0
    %2035 = vmatprep.subr.mxu0 0.0
    %2036 = vmatpush1.msra.mxu0 0.0
    %2037 = vmatprep.subr.mxu0 0.0
    %2038 = vmatpush1.msra.mxu0 0.0
    %2039 = vmatprep.subr.mxu0 0.0
    %2040 = vmatpush1.msra.mxu0 0.0
    %2041 = vmatprep.subr.mxu0 0.0
    %2042 = vmatpush1.msra.mxu0 0.0
    %2043 = vmatprep.subr.mxu0 0.0
    %2044 = vmatpush1.msra.mxu0 0.0
    %2045 = vmatprep.subr.mxu0 0.0
    %2046 = vmatpush1.msra.mxu0 0.0
    %2047 = vmatprep.subr.mxu0 0.0
    %2048 = vmatpush1.msra.mxu0 0.0
    %2049 = vmatprep.subr.mxu0 0.0
    %2050 = vmatpush1.msra.mxu0 0.0
    %2051 = vmatprep.subr.mxu0 0.0
    %2052 = vmatpush1.msra.mxu0 0.0
    %2053 = vmatprep.subr.mxu0 0.0
    %2054 = vmatpush1.msra.mxu0 0.0
    %2055 = vmatprep.subr.mxu0 0.0
    %2056 = vmatpush1.msra.mxu0 0.0
    %2057 = vmatprep.subr.mxu0 0.0
    %2058 = vmatpush1.msra.mxu0 0.0
    %2059 = vmatprep.subr.mxu0 0.0
    %2060 = vmatpush1.msra.mxu0 0.0
    %2061 = vmatprep.subr.mxu0 0.0
    %2062 = vmatpush1.msra.mxu0 0.0
    %2063 = vmatprep.subr.mxu0 0.0
    %2064 = vmatpush1.msra.mxu0 0.0
    %2065 = vmatprep.subr.mxu0 0.0
    %2066 = vmatpush1.msra.mxu0 0.0
    %2067 = vmatprep.subr.mxu0 0.0
    %2068 = vmatpush1.msra.mxu0 0.0
    %2069 = vmatprep.subr.mxu0 0.0
    %2070 = vmatpush1.msra.mxu0 0.0
    %2071 = vmatprep.subr.mxu0 0.0
    %2072 = vmatpush1.msra.mxu0 0.0
    %2073 = vmatprep.subr.mxu0 0.0
    %2074 = vmatpush1.msra.mxu0 0.0
    %2075 = vmatprep.mubr.f32.mxu0 0.0
    %2076 = vmatmul.mubr.f32.gmra.mrb[0].mxu0 %v2006
    %v2077 = vpop.f32.mrb[0].mxu0
    %v2078 = vadd.f32 0.0, %v2077
    %v2079 = vpop.f32.mrb[0].mxu0
    %2080 = vmatprep.mubr.f32.mxu0 0.0
    %2081 = vmatmul.mubr.f32.gmra.mrb[0].mxu0 %v2009
    %v2082 = vpop.f32.mrb[0].mxu0
    %v2083 = vadd.f32 0.0, %v2082
    %v2084 = vpop.f32.mrb[0].mxu0
    %2085 = vdwg.mxu0
    %s2086 = scalar_lea.vmem [#allocation7], 8
    %v2087 = vld [vmem:[%s2086] sm:$0xff]
    %v2089 = vsel %vm1021, %v1886, 0
    %v2092 = vsel %vm1021, %v1891, 0
    %v2095 = vsel %vm1021, %v2078, 0
    %v2098 = vsel %vm1021, %v2083, 0
    %2100 = vmatprep.subr.mxu0 0.0
    %2101 = vmatpush1.msra.mxu0 %v2087
    %2102 = vmatprep.subr.mxu0 0.0
    %2103 = vmatpush1.msra.mxu0 0.0
    %2104 = vmatprep.subr.mxu0 0.0
    %2105 = vmatpush1.msra.mxu0 0.0
    %2106 = vmatprep.subr.mxu0 0.0
    %2107 = vmatpush1.msra.mxu0 0.0
    %2108 = vmatprep.subr.mxu0 0.0
    %2109 = vmatpush1.msra.mxu0 0.0
    %2110 = vmatprep.subr.mxu0 0.0
    %2111 = vmatpush1.msra.mxu0 0.0
    %2112 = vmatprep.subr.mxu0 0.0
    %2113 = vmatpush1.msra.mxu0 0.0
    %2114 = vmatprep.subr.mxu0 0.0
    %2115 = vmatpush1.msra.mxu0 0.0
    %2116 = vmatprep.subr.mxu0 0.0
    %2117 = vmatpush1.msra.mxu0 0.0
    %2118 = vmatprep.subr.mxu0 0.0
    %2119 = vmatpush1.msra.mxu0 0.0
    %2120 = vmatprep.subr.mxu0 0.0
    %2121 = vmatpush1.msra.mxu0 0.0
    %2122 = vmatprep.subr.mxu0 0.0
    %2123 = vmatpush1.msra.mxu0 0.0
    %2124 = vmatprep.subr.mxu0 0.0
    %2125 = vmatpush1.msra.mxu0 0.0
    %2126 = vmatprep.subr.mxu0 0.0
    %2127 = vmatpush1.msra.mxu0 0.0
    %2128 = vmatprep.subr.mxu0 0.0
    %2129 = vmatpush1.msra.mxu0 0.0
    %2130 = vmatprep.subr.mxu0 0.0
    %2131 = vmatpush1.msra.mxu0 0.0
    %2132 = vmatprep.subr.mxu0 0.0
    %2133 = vmatpush1.msra.mxu0 0.0
    %2134 = vmatprep.subr.mxu0 0.0
    %2135 = vmatpush1.msra.mxu0 0.0
    %2136 = vmatprep.subr.mxu0 0.0
    %2137 = vmatpush1.msra.mxu0 0.0
    %2138 = vmatprep.subr.mxu0 0.0
    %2139 = vmatpush1.msra.mxu0 0.0
    %2140 = vmatprep.subr.mxu0 0.0
    %2141 = vmatpush1.msra.mxu0 0.0
    %2142 = vmatprep.subr.mxu0 0.0
    %2143 = vmatpush1.msra.mxu0 0.0
    %2144 = vmatprep.subr.mxu0 0.0
    %2145 = vmatpush1.msra.mxu0 0.0
    %2146 = vmatprep.subr.mxu0 0.0
    %2147 = vmatpush1.msra.mxu0 0.0
    %2148 = vmatprep.subr.mxu0 0.0
    %2149 = vmatpush1.msra.mxu0 0.0
    %2150 = vmatprep.subr.mxu0 0.0
    %2151 = vmatpush1.msra.mxu0 0.0
    %2152 = vmatprep.subr.mxu0 0.0
    %2153 = vmatpush1.msra.mxu0 0.0
    %2154 = vmatprep.subr.mxu0 0.0
    %2155 = vmatpush1.msra.mxu0 0.0
    %2156 = vmatprep.subr.mxu0 0.0
    %2157 = vmatpush1.msra.mxu0 0.0
    %2158 = vmatprep.subr.mxu0 0.0
    %2159 = vmatpush1.msra.mxu0 0.0
    %2160 = vmatprep.subr.mxu0 0.0
    %2161 = vmatpush1.msra.mxu0 0.0
    %2162 = vmatprep.subr.mxu0 0.0
    %2163 = vmatpush1.msra.mxu0 0.0
    %2164 = vmatprep.mubr.f32.mxu0 0.0
    %2165 = vmatmul.mubr.f32.gmra.mrb[0].mxu0 %v2089
    %v2166 = vpop.f32.mrb[0].mxu0
    %v2167 = vadd.f32 0.0, %v2166
    %v2168 = vpop.f32.mrb[0].mxu0
    %2169 = vmatprep.mubr.f32.mxu0 0.0
    %2170 = vmatmul.mubr.f32.gmra.mrb[0].mxu0 %v2092
    %v2171 = vpop.f32.mrb[0].mxu0
    %v2172 = vadd.f32 0.0, %v2171
    %v2173 = vpop.f32.mrb[0].mxu0
    %2174 = vmatprep.mubr.f32.mxu0 0.0
    %2175 = vmatmul.mubr.f32.gmra.mrb[0].mxu0 %v2095
    %v2176 = vpop.f32.mrb[0].mxu0
    %v2177 = vadd.f32 0.0, %v2176
    %v2178 = vpop.f32.mrb[0].mxu0
    %2179 = vmatprep.mubr.f32.mxu0 0.0
    %2180 = vmatmul.mubr.f32.gmra.mrb[0].mxu0 %v2098
    %v2181 = vpop.f32.mrb[0].mxu0
    %v2182 = vadd.f32 0.0, %v2181
    %v2183 = vpop.f32.mrb[0].mxu0
    %2184 = vdwg.mxu0
    %v2186 = vsel %vm1021, %v1207, 0
    %v2189 = vsel %vm1021, %v1212, 0
    %v2192 = vsel %vm1021, %v1399, 0
    %v2195 = vsel %vm1021, %v1404, 0
    %2197 = vmatprep.subr.mxu0 0.0
    %2198 = vmatpush1.msra.mxu0 %v1407
    %2199 = vmatprep.subr.mxu0 0.0
    %2200 = vmatpush1.msra.mxu0 0.0
    %2201 = vmatprep.subr.mxu0 0.0
    %2202 = vmatpush1.msra.mxu0 0.0
    %2203 = vmatprep.subr.mxu0 0.0
    %2204 = vmatpush1.msra.mxu0 0.0
    %2205 = vmatprep.subr.mxu0 0.0
    %2206 = vmatpush1.msra.mxu0 0.0
    %2207 = vmatprep.subr.mxu0 0.0
    %2208 = vmatpush1.msra.mxu0 0.0
    %2209 = vmatprep.subr.mxu0 0.0
    %2210 = vmatpush1.msra.mxu0 0.0
    %2211 = vmatprep.subr.mxu0 0.0
    %2212 = vmatpush1.msra.mxu0 0.0
    %2213 = vmatprep.subr.mxu0 0.0
    %2214 = vmatpush1.msra.mxu0 0.0
    %2215 = vmatprep.subr.mxu0 0.0
    %2216 = vmatpush1.msra.mxu0 0.0
    %2217 = vmatprep.subr.mxu0 0.0
    %2218 = vmatpush1.msra.mxu0 0.0
    %2219 = vmatprep.subr.mxu0 0.0
    %2220 = vmatpush1.msra.mxu0 0.0
    %2221 = vmatprep.subr.mxu0 0.0
    %2222 = vmatpush1.msra.mxu0 0.0
    %2223 = vmatprep.subr.mxu0 0.0
    %2224 = vmatpush1.msra.mxu0 0.0
    %2225 = vmatprep.subr.mxu0 0.0
    %2226 = vmatpush1.msra.mxu0 0.0
    %2227 = vmatprep.subr.mxu0 0.0
    %2228 = vmatpush1.msra.mxu0 0.0
    %2229 = vmatprep.subr.mxu0 0.0
    %2230 = vmatpush1.msra.mxu0 0.0
    %2231 = vmatprep.subr.mxu0 0.0
    %2232 = vmatpush1.msra.mxu0 0.0
    %2233 = vmatprep.subr.mxu0 0.0
    %2234 = vmatpush1.msra.mxu0 0.0
    %2235 = vmatprep.subr.mxu0 0.0
    %2236 = vmatpush1.msra.mxu0 0.0
    %2237 = vmatprep.subr.mxu0 0.0
    %2238 = vmatpush1.msra.mxu0 0.0
    %2239 = vmatprep.subr.mxu0 0.0
    %2240 = vmatpush1.msra.mxu0 0.0
    %2241 = vmatprep.subr.mxu0 0.0
    %2242 = vmatpush1.msra.mxu0 0.0
    %2243 = vmatprep.subr.mxu0 0.0
    %2244 = vmatpush1.msra.mxu0 0.0
    %2245 = vmatprep.subr.mxu0 0.0
    %2246 = vmatpush1.msra.mxu0 0.0
    %2247 = vmatprep.subr.mxu0 0.0
    %2248 = vmatpush1.msra.mxu0 0.0
    %2249 = vmatprep.subr.mxu0 0.0
    %2250 = vmatpush1.msra.mxu0 0.0
    %2251 = vmatprep.subr.mxu0 0.0
    %2252 = vmatpush1.msra.mxu0 0.0
    %2253 = vmatprep.subr.mxu0 0.0
    %2254 = vmatpush1.msra.mxu0 0.0
    %2255 = vmatprep.subr.mxu0 0.0
    %2256 = vmatpush1.msra.mxu0 0.0
    %2257 = vmatprep.subr.mxu0 0.0
    %2258 = vmatpush1.msra.mxu0 0.0
    %2259 = vmatprep.subr.mxu0 0.0
    %2260 = vmatpush1.msra.mxu0 0.0
    %2261 = vmatprep.mubr.f32.mxu0 0.0
    %2262 = vmatmul.mubr.f32.gmra.mrb[0].mxu0 %v2186
    %v2263 = vpop.f32.mrb[0].mxu0
    %v2264 = vadd.f32 %v2167, %v2263
    %v2265 = vpop.f32.mrb[0].mxu0
    %2266 = vmatprep.mubr.f32.mxu0 0.0
    %2267 = vmatmul.mubr.f32.gmra.mrb[0].mxu0 %v2189
    %v2268 = vpop.f32.mrb[0].mxu0
    %v2269 = vadd.f32 %v2172, %v2268
    %v2270 = vpop.f32.mrb[0].mxu0
    %2271 = vmatprep.mubr.f32.mxu0 0.0
    %2272 = vmatmul.mubr.f32.gmra.mrb[0].mxu0 %v2192
    %v2273 = vpop.f32.mrb[0].mxu0
    %v2274 = vadd.f32 %v2177, %v2273
    %v2275 = vpop.f32.mrb[0].mxu0
    %2276 = vmatprep.mubr.f32.mxu0 0.0
    %2277 = vmatmul.mubr.f32.gmra.mrb[0].mxu0 %v2195
    %v2278 = vpop.f32.mrb[0].mxu0
    %v2279 = vadd.f32 %v2182, %v2278
    %v2280 = vpop.f32.mrb[0].mxu0
    %2281 = vdwg.mxu0
    %s2282 = scalar_lea.vmem %s19, 64
    %v2283 = vld [vmem:[%s2282] sm:$0xff]
    %v2284 = vld [vmem:[%s2282 + $0x8] sm:$0xff]
    %v2285 = vld [vmem:[%s2282 + $0x10] sm:$0xff]
    %v2286 = vld [vmem:[%s2282 + $0x18] sm:$0xff]
    %s2287 = scalar_lea.vmem %s25, 2
    %v2288 = vld [vmem:[%s2287] sm:$0x1]
    %v2290 = vlaneseq
    %v2291 = vshrl.u32 %v2290, 7
    %v2292 = vsub.s32 0, %v2291
    %v2293 = vrot.slane %v2288, %v2292
    %2295 = vmatprep.subr.mxu0 0.0
    %2296 = vmatpush1.msra.mxu0 %v2283
    %2297 = vmatprep.subr.mxu0 0.0
    %2298 = vmatpush1.msra.mxu0 %v2284
    %2299 = vmatprep.subr.mxu0 0.0
    %2300 = vmatpush1.msra.mxu0 %v2285
    %2301 = vmatprep.subr.mxu0 0.0
    %2302 = vmatpush1.msra.mxu0 %v2286
    %2303 = vmatprep.subr.mxu0 0.0
    %2304 = vmatpush1.msra.mxu0 0.0
    %2305 = vmatprep.subr.mxu0 0.0
    %2306 = vmatpush1.msra.mxu0 0.0
    %2307 = vmatprep.subr.mxu0 0.0
    %2308 = vmatpush1.msra.mxu0 0.0
    %2309 = vmatprep.subr.mxu0 0.0
    %2310 = vmatpush1.msra.mxu0 0.0
    %2311 = vmatprep.subr.mxu0 0.0
    %2312 = vmatpush1.msra.mxu0 0.0
    %2313 = vmatprep.subr.mxu0 0.0
    %2314 = vmatpush1.msra.mxu0 0.0
    %2315 = vmatprep.subr.mxu0 0.0
    %2316 = vmatpush1.msra.mxu0 0.0
    %2317 = vmatprep.subr.mxu0 0.0
    %2318 = vmatpush1.msra.mxu0 0.0
    %2319 = vmatprep.subr.mxu0 0.0
    %2320 = vmatpush1.msra.mxu0 0.0
    %2321 = vmatprep.subr.mxu0 0.0
    %2322 = vmatpush1.msra.mxu0 0.0
    %2323 = vmatprep.subr.mxu0 0.0
    %2324 = vmatpush1.msra.mxu0 0.0
    %2325 = vmatprep.subr.mxu0 0.0
    %2326 = vmatpush1.msra.mxu0 0.0
    %2327 = vmatprep.subr.mxu0 0.0
    %2328 = vmatpush1.msra.mxu0 0.0
    %2329 = vmatprep.subr.mxu0 0.0
    %2330 = vmatpush1.msra.mxu0 0.0
    %2331 = vmatprep.subr.mxu0 0.0
    %2332 = vmatpush1.msra.mxu0 0.0
    %2333 = vmatprep.subr.mxu0 0.0
    %2334 = vmatpush1.msra.mxu0 0.0
    %2335 = vmatprep.subr.mxu0 0.0
    %2336 = vmatpush1.msra.mxu0 0.0
    %2337 = vmatprep.subr.mxu0 0.0
    %2338 = vmatpush1.msra.mxu0 0.0
    %2339 = vmatprep.subr.mxu0 0.0
    %2340 = vmatpush1.msra.mxu0 0.0
    %2341 = vmatprep.subr.mxu0 0.0
    %2342 = vmatpush1.msra.mxu0 0.0
    %2343 = vmatprep.subr.mxu0 0.0
    %2344 = vmatpush1.msra.mxu0 0.0
    %2345 = vmatprep.subr.mxu0 0.0
    %2346 = vmatpush1.msra.mxu0 0.0
    %2347 = vmatprep.subr.mxu0 0.0
    %2348 = vmatpush1.msra.mxu0 0.0
    %2349 = vmatprep.subr.mxu0 0.0
    %2350 = vmatpush1.msra.mxu0 0.0
    %2351 = vmatprep.subr.mxu0 0.0
    %2352 = vmatpush1.msra.mxu0 0.0
    %2353 = vmatprep.subr.mxu0 0.0
    %2354 = vmatpush1.msra.mxu0 0.0
    %2355 = vmatprep.subr.mxu0 0.0
    %2356 = vmatpush1.msra.mxu0 0.0
    %2357 = vmatprep.subr.mxu0 0.0
    %2358 = vmatpush1.msra.mxu0 0.0
    %2359 = vmatprep.mubr.f32.mxu0 0.0
    %2360 = vmatmul.mubr.f32.gmra.mrb[0].mxu0 %v733
    %v2361 = vpop.f32.mrb[0].mxu0
    %v2362 = vadd.f32 %v2293, %v2361
    %v2363 = vpop.f32.mrb[0].mxu0
    %2364 = vmatprep.mubr.f32.mxu0 0.0
    %2365 = vmatmul.mubr.f32.gmra.mrb[0].mxu0 %v736
    %v2366 = vpop.f32.mrb[0].mxu0
    %v2367 = vadd.f32 %v2293, %v2366
    %v2368 = vpop.f32.mrb[0].mxu0
    %2369 = vmatprep.mubr.f32.mxu0 0.0
    %2370 = vmatmul.mubr.f32.gmra.mrb[0].mxu0 %v739
    %v2371 = vpop.f32.mrb[0].mxu0
    %v2372 = vadd.f32 %v2293, %v2371
    %v2373 = vpop.f32.mrb[0].mxu0
    %2374 = vmatprep.mubr.f32.mxu0 0.0
    %2375 = vmatmul.mubr.f32.gmra.mrb[0].mxu0 %v742
    %v2376 = vpop.f32.mrb[0].mxu0
    %v2377 = vadd.f32 %v2293, %v2376
    %v2378 = vpop.f32.mrb[0].mxu0
    %2379 = vdwg.mxu0
    %s2380 = scalar_lea.vmem %s21, 64
    %v2381 = vld [vmem:[%s2380] sm:$0xff]
    %v2382 = vld [vmem:[%s2380 + $0x8] sm:$0xff]
    %v2383 = vld [vmem:[%s2380 + $0x10] sm:$0xff]
    %v2384 = vld [vmem:[%s2380 + $0x18] sm:$0xff]
    %s2385 = scalar_lea.vmem %s27, 2
    %v2386 = vld [vmem:[%s2385] sm:$0x1]
    %v2388 = vlaneseq
    %v2389 = vshrl.u32 %v2388, 7
    %v2390 = vsub.s32 0, %v2389
    %v2391 = vrot.slane %v2386, %v2390
    %2393 = vmatprep.subr.mxu0 0.0
    %2394 = vmatpush1.msra.mxu0 %v2381
    %2395 = vmatprep.subr.mxu0 0.0
    %2396 = vmatpush1.msra.mxu0 %v2382
    %2397 = vmatprep.subr.mxu0 0.0
    %2398 = vmatpush1.msra.mxu0 %v2383
    %2399 = vmatprep.subr.mxu0 0.0
    %2400 = vmatpush1.msra.mxu0 %v2384
    %2401 = vmatprep.subr.mxu0 0.0
    %2402 = vmatpush1.msra.mxu0 0.0
    %2403 = vmatprep.subr.mxu0 0.0
    %2404 = vmatpush1.msra.mxu0 0.0
    %2405 = vmatprep.subr.mxu0 0.0
    %2406 = vmatpush1.msra.mxu0 0.0
    %2407 = vmatprep.subr.mxu0 0.0
    %2408 = vmatpush1.msra.mxu0 0.0
    %2409 = vmatprep.subr.mxu0 0.0
    %2410 = vmatpush1.msra.mxu0 0.0
    %2411 = vmatprep.subr.mxu0 0.0
    %2412 = vmatpush1.msra.mxu0 0.0
    %2413 = vmatprep.subr.mxu0 0.0
    %2414 = vmatpush1.msra.mxu0 0.0
    %2415 = vmatprep.subr.mxu0 0.0
    %2416 = vmatpush1.msra.mxu0 0.0
    %2417 = vmatprep.subr.mxu0 0.0
    %2418 = vmatpush1.msra.mxu0 0.0
    %2419 = vmatprep.subr.mxu0 0.0
    %2420 = vmatpush1.msra.mxu0 0.0
    %2421 = vmatprep.subr.mxu0 0.0
    %2422 = vmatpush1.msra.mxu0 0.0
    %2423 = vmatprep.subr.mxu0 0.0
    %2424 = vmatpush1.msra.mxu0 0.0
    %2425 = vmatprep.subr.mxu0 0.0
    %2426 = vmatpush1.msra.mxu0 0.0
    %2427 = vmatprep.subr.mxu0 0.0
    %2428 = vmatpush1.msra.mxu0 0.0
    %2429 = vmatprep.subr.mxu0 0.0
    %2430 = vmatpush1.msra.mxu0 0.0
    %2431 = vmatprep.subr.mxu0 0.0
    %2432 = vmatpush1.msra.mxu0 0.0
    %2433 = vmatprep.subr.mxu0 0.0
    %2434 = vmatpush1.msra.mxu0 0.0
    %2435 = vmatprep.subr.mxu0 0.0
    %2436 = vmatpush1.msra.mxu0 0.0
    %2437 = vmatprep.subr.mxu0 0.0
    %2438 = vmatpush1.msra.mxu0 0.0
    %2439 = vmatprep.subr.mxu0 0.0
    %2440 = vmatpush1.msra.mxu0 0.0
    %2441 = vmatprep.subr.mxu0 0.0
    %2442 = vmatpush1.msra.mxu0 0.0
    %2443 = vmatprep.subr.mxu0 0.0
    %2444 = vmatpush1.msra.mxu0 0.0
    %2445 = vmatprep.subr.mxu0 0.0
    %2446 = vmatpush1.msra.mxu0 0.0
    %2447 = vmatprep.subr.mxu0 0.0
    %2448 = vmatpush1.msra.mxu0 0.0
    %2449 = vmatprep.subr.mxu0 0.0
    %2450 = vmatpush1.msra.mxu0 0.0
    %2451 = vmatprep.subr.mxu0 0.0
    %2452 = vmatpush1.msra.mxu0 0.0
    %2453 = vmatprep.subr.mxu0 0.0
    %2454 = vmatpush1.msra.mxu0 0.0
    %2455 = vmatprep.subr.mxu0 0.0
    %2456 = vmatpush1.msra.mxu0 0.0
    %2457 = vmatprep.mubr.f32.mxu0 0.0
    %2458 = vmatmul.mubr.f32.gmra.mrb[0].mxu0 %v733
    %v2459 = vpop.f32.mrb[0].mxu0
    %v2460 = vadd.f32 %v2391, %v2459
    %v2461 = vpop.f32.mrb[0].mxu0
    %2462 = vmatprep.mubr.f32.mxu0 0.0
    %2463 = vmatmul.mubr.f32.gmra.mrb[0].mxu0 %v736
    %v2464 = vpop.f32.mrb[0].mxu0
    %v2465 = vadd.f32 %v2391, %v2464
    %v2466 = vpop.f32.mrb[0].mxu0
    %2467 = vmatprep.mubr.f32.mxu0 0.0
    %2468 = vmatmul.mubr.f32.gmra.mrb[0].mxu0 %v739
    %v2469 = vpop.f32.mrb[0].mxu0
    %v2470 = vadd.f32 %v2391, %v2469
    %v2471 = vpop.f32.mrb[0].mxu0
    %2472 = vmatprep.mubr.f32.mxu0 0.0
    %2473 = vmatmul.mubr.f32.gmra.mrb[0].mxu0 %v742
    %v2474 = vpop.f32.mrb[0].mxu0
    %v2475 = vadd.f32 %v2391, %v2474
    %v2476 = vpop.f32.mrb[0].mxu0
    %2477 = vdwg.mxu0
    %s2478 = scalar_lea.vmem %s23, 64
    %v2479 = vld [vmem:[%s2478] sm:$0xff]
    %v2480 = vld [vmem:[%s2478 + $0x8] sm:$0xff]
    %v2481 = vld [vmem:[%s2478 + $0x10] sm:$0xff]
    %v2482 = vld [vmem:[%s2478 + $0x18] sm:$0xff]
    %s2483 = scalar_lea.vmem %s29, 2
    %v2484 = vld [vmem:[%s2483] sm:$0x1]
    %v2486 = vlaneseq
    %v2487 = vshrl.u32 %v2486, 7
    %v2488 = vsub.s32 0, %v2487
    %v2489 = vrot.slane %v2484, %v2488
    %2491 = vmatprep.subr.mxu0 0.0
    %2492 = vmatpush1.msra.mxu0 %v2479
    %2493 = vmatprep.subr.mxu0 0.0
    %2494 = vmatpush1.msra.mxu0 %v2480
    %2495 = vmatprep.subr.mxu0 0.0
    %2496 = vmatpush1.msra.mxu0 %v2481
    %2497 = vmatprep.subr.mxu0 0.0
    %2498 = vmatpush1.msra.mxu0 %v2482
    %2499 = vmatprep.subr.mxu0 0.0
    %2500 = vmatpush1.msra.mxu0 0.0
    %2501 = vmatprep.subr.mxu0 0.0
    %2502 = vmatpush1.msra.mxu0 0.0
    %2503 = vmatprep.subr.mxu0 0.0
    %2504 = vmatpush1.msra.mxu0 0.0
    %2505 = vmatprep.subr.mxu0 0.0
    %2506 = vmatpush1.msra.mxu0 0.0
    %2507 = vmatprep.subr.mxu0 0.0
    %2508 = vmatpush1.msra.mxu0 0.0
    %2509 = vmatprep.subr.mxu0 0.0
    %2510 = vmatpush1.msra.mxu0 0.0
    %2511 = vmatprep.subr.mxu0 0.0
    %2512 = vmatpush1.msra.mxu0 0.0
    %2513 = vmatprep.subr.mxu0 0.0
    %2514 = vmatpush1.msra.mxu0 0.0
    %2515 = vmatprep.subr.mxu0 0.0
    %2516 = vmatpush1.msra.mxu0 0.0
    %2517 = vmatprep.subr.mxu0 0.0
    %2518 = vmatpush1.msra.mxu0 0.0
    %2519 = vmatprep.subr.mxu0 0.0
    %2520 = vmatpush1.msra.mxu0 0.0
    %2521 = vmatprep.subr.mxu0 0.0
    %2522 = vmatpush1.msra.mxu0 0.0
    %2523 = vmatprep.subr.mxu0 0.0
    %2524 = vmatpush1.msra.mxu0 0.0
    %2525 = vmatprep.subr.mxu0 0.0
    %2526 = vmatpush1.msra.mxu0 0.0
    %2527 = vmatprep.subr.mxu0 0.0
    %2528 = vmatpush1.msra.mxu0 0.0
    %2529 = vmatprep.subr.mxu0 0.0
    %2530 = vmatpush1.msra.mxu0 0.0
    %2531 = vmatprep.subr.mxu0 0.0
    %2532 = vmatpush1.msra.mxu0 0.0
    %2533 = vmatprep.subr.mxu0 0.0
    %2534 = vmatpush1.msra.mxu0 0.0
    %2535 = vmatprep.subr.mxu0 0.0
    %2536 = vmatpush1.msra.mxu0 0.0
    %2537 = vmatprep.subr.mxu0 0.0
    %2538 = vmatpush1.msra.mxu0 0.0
    %2539 = vmatprep.subr.mxu0 0.0
    %2540 = vmatpush1.msra.mxu0 0.0
    %2541 = vmatprep.subr.mxu0 0.0
    %2542 = vmatpush1.msra.mxu0 0.0
    %2543 = vmatprep.subr.mxu0 0.0
    %2544 = vmatpush1.msra.mxu0 0.0
    %2545 = vmatprep.subr.mxu0 0.0
    %2546 = vmatpush1.msra.mxu0 0.0
    %2547 = vmatprep.subr.mxu0 0.0
    %2548 = vmatpush1.msra.mxu0 0.0
    %2549 = vmatprep.subr.mxu0 0.0
    %2550 = vmatpush1.msra.mxu0 0.0
    %2551 = vmatprep.subr.mxu0 0.0
    %2552 = vmatpush1.msra.mxu0 0.0
    %2553 = vmatprep.subr.mxu0 0.0
    %2554 = vmatpush1.msra.mxu0 0.0
    %2555 = vmatprep.mubr.f32.mxu0 0.0
    %2556 = vmatmul.mubr.f32.gmra.mrb[0].mxu0 %v733
    %v2557 = vpop.f32.mrb[0].mxu0
    %v2558 = vadd.f32 %v2489, %v2557
    %v2559 = vpop.f32.mrb[0].mxu0
    %2560 = vmatprep.mubr.f32.mxu0 0.0
    %2561 = vmatmul.mubr.f32.gmra.mrb[0].mxu0 %v736
    %v2562 = vpop.f32.mrb[0].mxu0
    %v2563 = vadd.f32 %v2489, %v2562
    %v2564 = vpop.f32.mrb[0].mxu0
    %2565 = vmatprep.mubr.f32.mxu0 0.0
    %2566 = vmatmul.mubr.f32.gmra.mrb[0].mxu0 %v739
    %v2567 = vpop.f32.mrb[0].mxu0
    %v2568 = vadd.f32 %v2489, %v2567
    %v2569 = vpop.f32.mrb[0].mxu0
    %2570 = vmatprep.mubr.f32.mxu0 0.0
    %2571 = vmatmul.mubr.f32.gmra.mrb[0].mxu0 %v742
    %v2572 = vpop.f32.mrb[0].mxu0
    %v2573 = vadd.f32 %v2489, %v2572
    %v2574 = vpop.f32.mrb[0].mxu0
    %2575 = vdwg.mxu0
    %v2577 = vsel %vm1021, %v2362, 0
    %v2580 = vsel %vm1021, %v2367, 0
    %v2583 = vsel %vm1021, %v2460, 0
    %v2586 = vsel %vm1021, %v2465, 0
    %2588 = vmatprep.subr.mxu0 0.0
    %2589 = vmatpush1.xpose.msra.mxu0 %v2583
    %2590 = vmatprep.subr.mxu0 0.0
    %2591 = vmatpush1.xpose.msra.mxu0 %v2586
    %2592 = vmatprep.subr.mxu0 0.0
    %2593 = vmatpush1.xpose.msra.mxu0 0.0
    %2594 = vmatprep.subr.mxu0 0.0
    %2595 = vmatpush1.xpose.msra.mxu0 0.0
    %2596 = vmatprep.subr.mxu0 0.0
    %2597 = vmatpush1.xpose.msra.mxu0 0.0
    %2598 = vmatprep.subr.mxu0 0.0
    %2599 = vmatpush1.xpose.msra.mxu0 0.0
    %2600 = vmatprep.subr.mxu0 0.0
    %2601 = vmatpush1.xpose.msra.mxu0 0.0
    %2602 = vmatprep.subr.mxu0 0.0
    %2603 = vmatpush1.xpose.msra.mxu0 0.0
    %2604 = vmatprep.subr.mxu0 0.0
    %2605 = vmatpush1.xpose.msra.mxu0 0.0
    %2606 = vmatprep.subr.mxu0 0.0
    %2607 = vmatpush1.xpose.msra.mxu0 0.0
    %2608 = vmatprep.subr.mxu0 0.0
    %2609 = vmatpush1.xpose.msra.mxu0 0.0
    %2610 = vmatprep.subr.mxu0 0.0
    %2611 = vmatpush1.xpose.msra.mxu0 0.0
    %2612 = vmatprep.subr.mxu0 0.0
    %2613 = vmatpush1.xpose.msra.mxu0 0.0
    %2614 = vmatprep.subr.mxu0 0.0
    %2615 = vmatpush1.xpose.msra.mxu0 0.0
    %2616 = vmatprep.subr.mxu0 0.0
    %2617 = vmatpush1.xpose.msra.mxu0 0.0
    %2618 = vmatprep.subr.mxu0 0.0
    %2619 = vmatpush1.xpose.msra.mxu0 0.0
    %2620 = vmatprep.subr.mxu0 0.0
    %2621 = vmatpush1.xpose.msra.mxu0 0.0
    %2622 = vmatprep.subr.mxu0 0.0
    %2623 = vmatpush1.xpose.msra.mxu0 0.0
    %2624 = vmatprep.subr.mxu0 0.0
    %2625 = vmatpush1.xpose.msra.mxu0 0.0
    %2626 = vmatprep.subr.mxu0 0.0
    %2627 = vmatpush1.xpose.msra.mxu0 0.0
    %2628 = vmatprep.subr.mxu0 0.0
    %2629 = vmatpush1.xpose.msra.mxu0 0.0
    %2630 = vmatprep.subr.mxu0 0.0
    %2631 = vmatpush1.xpose.msra.mxu0 0.0
    %2632 = vmatprep.subr.mxu0 0.0
    %2633 = vmatpush1.xpose.msra.mxu0 0.0
    %2634 = vmatprep.subr.mxu0 0.0
    %2635 = vmatpush1.xpose.msra.mxu0 0.0
    %2636 = vmatprep.subr.mxu0 0.0
    %2637 = vmatpush1.xpose.msra.mxu0 0.0
    %2638 = vmatprep.subr.mxu0 0.0
    %2639 = vmatpush1.xpose.msra.mxu0 0.0
    %2640 = vmatprep.subr.mxu0 0.0
    %2641 = vmatpush1.xpose.msra.mxu0 0.0
    %2642 = vmatprep.subr.mxu0 0.0
    %2643 = vmatpush1.xpose.msra.mxu0 0.0
    %2644 = vmatprep.subr.mxu0 0.0
    %2645 = vmatpush1.xpose.msra.mxu0 0.0
    %2646 = vmatprep.subr.mxu0 0.0
    %2647 = vmatpush1.xpose.msra.mxu0 0.0
    %2648 = vmatprep.subr.mxu0 0.0
    %2649 = vmatpush1.xpose.msra.mxu0 0.0
    %2650 = vmatprep.subr.mxu0 0.0
    %2651 = vmatpush1.xpose.msra.mxu0 0.0
    %2652 = vmatprep.mubr.f32.mxu0 0.0
    %2653 = vmatmul.mubr.f32.gmra.mrb[0].mxu0 %v2577
    %v2654 = vpop.f32.mrb[0].mxu0
    %v2655 = vadd.f32 0.0, %v2654
    %v2656 = vpop.f32.mrb[0].mxu0
    %2657 = vmatprep.mubr.f32.mxu0 0.0
    %2658 = vmatmul.mubr.f32.gmra.mrb[0].mxu0 %v2580
    %v2659 = vpop.f32.mrb[0].mxu0
    %v2660 = vadd.f32 0.0, %v2659
    %v2661 = vpop.f32.mrb[0].mxu0
    %2662 = vdwg.mxu0
    %v2663 = vmul.f32 %v2655, 0.35355338
    %v2664 = vmul.f32 %v2660, 0.35355338
    %v2665 = vsel %vm1111, %v2663, -inf
    %2666 = vmax.xlane.f32.xlu0 %v2665
    %v2667 = vpop.xlane.xlu0 %2666
    %v2668 = vsel %vm1111, %v2664, -inf
    %2669 = vmax.xlane.f32.xlu0 %v2668
    %v2670 = vpop.xlane.xlu0 %2669
    %v2671 = vsub.f32 %v2663, %v2667
    %v2672 = vsub.f32 %v2664, %v2670
    %v2673 = vmul.f32 %v2671, 1.442695
    %v2674 = vpow.pop %v2673
    %v2675 = vmul.f32 %v2672, 1.442695
    %v2676 = vpow.pop %v2675
    %v2677 = vsel %vm1111, %v2674, 0.0
    %2678 = vadd.xlane.f32.xlu0 %v2677
    %v2679 = vpop.xlane.xlu0 %2678
    %v2680 = vsel %vm1111, %v2676, 0.0
    %2681 = vadd.xlane.f32.xlu0 %v2680
    %v2682 = vpop.xlane.xlu0 %2681
    %v2683 = vrcp.pop %v2679
    %v2684 = vrcp.pop %v2682
    %v2685 = vmul.f32 %v2674, %v2683
    %v2686 = vmul.f32 %v2676, %v2684
    %v2688 = vsel %vm1111, %v2685, 0
    %v2691 = vsel %vm1111, %v2686, 0
    %2693 = vmatprep.subr.mxu0 0.0
    %2694 = vmatpush1.msra.mxu0 %v2558
    %2695 = vmatprep.subr.mxu0 0.0
    %2696 = vmatpush1.msra.mxu0 %v2563
    %2697 = vmatprep.subr.mxu0 0.0
    %2698 = vmatpush1.msra.mxu0 0.0
    %2699 = vmatprep.subr.mxu0 0.0
    %2700 = vmatpush1.msra.mxu0 0.0
    %2701 = vmatprep.subr.mxu0 0.0
    %2702 = vmatpush1.msra.mxu0 0.0
    %2703 = vmatprep.subr.mxu0 0.0
    %2704 = vmatpush1.msra.mxu0 0.0
    %2705 = vmatprep.subr.mxu0 0.0
    %2706 = vmatpush1.msra.mxu0 0.0
    %2707 = vmatprep.subr.mxu0 0.0
    %2708 = vmatpush1.msra.mxu0 0.0
    %2709 = vmatprep.subr.mxu0 0.0
    %2710 = vmatpush1.msra.mxu0 0.0
    %2711 = vmatprep.subr.mxu0 0.0
    %2712 = vmatpush1.msra.mxu0 0.0
    %2713 = vmatprep.subr.mxu0 0.0
    %2714 = vmatpush1.msra.mxu0 0.0
    %2715 = vmatprep.subr.mxu0 0.0
    %2716 = vmatpush1.msra.mxu0 0.0
    %2717 = vmatprep.subr.mxu0 0.0
    %2718 = vmatpush1.msra.mxu0 0.0
    %2719 = vmatprep.subr.mxu0 0.0
    %2720 = vmatpush1.msra.mxu0 0.0
    %2721 = vmatprep.subr.mxu0 0.0
    %2722 = vmatpush1.msra.mxu0 0.0
    %2723 = vmatprep.subr.mxu0 0.0
    %2724 = vmatpush1.msra.mxu0 0.0
    %2725 = vmatprep.subr.mxu0 0.0
    %2726 = vmatpush1.msra.mxu0 0.0
    %2727 = vmatprep.subr.mxu0 0.0
    %2728 = vmatpush1.msra.mxu0 0.0
    %2729 = vmatprep.subr.mxu0 0.0
    %2730 = vmatpush1.msra.mxu0 0.0
    %2731 = vmatprep.subr.mxu0 0.0
    %2732 = vmatpush1.msra.mxu0 0.0
    %2733 = vmatprep.subr.mxu0 0.0
    %2734 = vmatpush1.msra.mxu0 0.0
    %2735 = vmatprep.subr.mxu0 0.0
    %2736 = vmatpush1.msra.mxu0 0.0
    %2737 = vmatprep.subr.mxu0 0.0
    %2738 = vmatpush1.msra.mxu0 0.0
    %2739 = vmatprep.subr.mxu0 0.0
    %2740 = vmatpush1.msra.mxu0 0.0
    %2741 = vmatprep.subr.mxu0 0.0
    %2742 = vmatpush1.msra.mxu0 0.0
    %2743 = vmatprep.subr.mxu0 0.0
    %2744 = vmatpush1.msra.mxu0 0.0
    %2745 = vmatprep.subr.mxu0 0.0
    %2746 = vmatpush1.msra.mxu0 0.0
    %2747 = vmatprep.subr.mxu0 0.0
    %2748 = vmatpush1.msra.mxu0 0.0
    %2749 = vmatprep.subr.mxu0 0.0
    %2750 = vmatpush1.msra.mxu0 0.0
    %2751 = vmatprep.subr.mxu0 0.0
    %2752 = vmatpush1.msra.mxu0 0.0
    %2753 = vmatprep.subr.mxu0 0.0
    %2754 = vmatpush1.msra.mxu0 0.0
    %2755 = vmatprep.subr.mxu0 0.0
    %2756 = vmatpush1.msra.mxu0 0.0
    %2757 = vmatprep.mubr.f32.mxu0 0.0
    %2758 = vmatmul.mubr.f32.gmra.mrb[0].mxu0 %v2688
    %v2759 = vpop.f32.mrb[0].mxu0
    %v2760 = vadd.f32 0.0, %v2759
    %v2761 = vpop.f32.mrb[0].mxu0
    %2762 = vmatprep.mubr.f32.mxu0 0.0
    %2763 = vmatmul.mubr.f32.gmra.mrb[0].mxu0 %v2691
    %v2764 = vpop.f32.mrb[0].mxu0
    %v2765 = vadd.f32 0.0, %v2764
    %v2766 = vpop.f32.mrb[0].mxu0
    %2767 = vdwg.mxu0
    %v2769 = vsel %vm1021, %v2372, 0
    %v2772 = vsel %vm1021, %v2377, 0
    %v2775 = vsel %vm1021, %v2470, 0
    %v2778 = vsel %vm1021, %v2475, 0
    %2780 = vmatprep.subr.mxu0 0.0
    %2781 = vmatpush1.xpose.msra.mxu0 %v2775
    %2782 = vmatprep.subr.mxu0 0.0
    %2783 = vmatpush1.xpose.msra.mxu0 %v2778
    %2784 = vmatprep.subr.mxu0 0.0
    %2785 = vmatpush1.xpose.msra.mxu0 0.0
    %2786 = vmatprep.subr.mxu0 0.0
    %2787 = vmatpush1.xpose.msra.mxu0 0.0
    %2788 = vmatprep.subr.mxu0 0.0
    %2789 = vmatpush1.xpose.msra.mxu0 0.0
    %2790 = vmatprep.subr.mxu0 0.0
    %2791 = vmatpush1.xpose.msra.mxu0 0.0
    %2792 = vmatprep.subr.mxu0 0.0
    %2793 = vmatpush1.xpose.msra.mxu0 0.0
    %2794 = vmatprep.subr.mxu0 0.0
    %2795 = vmatpush1.xpose.msra.mxu0 0.0
    %2796 = vmatprep.subr.mxu0 0.0
    %2797 = vmatpush1.xpose.msra.mxu0 0.0
    %2798 = vmatprep.subr.mxu0 0.0
    %2799 = vmatpush1.xpose.msra.mxu0 0.0
    %2800 = vmatprep.subr.mxu0 0.0
    %2801 = vmatpush1.xpose.msra.mxu0 0.0
    %2802 = vmatprep.subr.mxu0 0.0
    %2803 = vmatpush1.xpose.msra.mxu0 0.0
    %2804 = vmatprep.subr.mxu0 0.0
    %2805 = vmatpush1.xpose.msra.mxu0 0.0
    %2806 = vmatprep.subr.mxu0 0.0
    %2807 = vmatpush1.xpose.msra.mxu0 0.0
    %2808 = vmatprep.subr.mxu0 0.0
    %2809 = vmatpush1.xpose.msra.mxu0 0.0
    %2810 = vmatprep.subr.mxu0 0.0
    %2811 = vmatpush1.xpose.msra.mxu0 0.0
    %2812 = vmatprep.subr.mxu0 0.0
    %2813 = vmatpush1.xpose.msra.mxu0 0.0
    %2814 = vmatprep.subr.mxu0 0.0
    %2815 = vmatpush1.xpose.msra.mxu0 0.0
    %2816 = vmatprep.subr.mxu0 0.0
    %2817 = vmatpush1.xpose.msra.mxu0 0.0
    %2818 = vmatprep.subr.mxu0 0.0
    %2819 = vmatpush1.xpose.msra.mxu0 0.0
    %2820 = vmatprep.subr.mxu0 0.0
    %2821 = vmatpush1.xpose.msra.mxu0 0.0
    %2822 = vmatprep.subr.mxu0 0.0
    %2823 = vmatpush1.xpose.msra.mxu0 0.0
    %2824 = vmatprep.subr.mxu0 0.0
    %2825 = vmatpush1.xpose.msra.mxu0 0.0
    %2826 = vmatprep.subr.mxu0 0.0
    %2827 = vmatpush1.xpose.msra.mxu0 0.0
    %2828 = vmatprep.subr.mxu0 0.0
    %2829 = vmatpush1.xpose.msra.mxu0 0.0
    %2830 = vmatprep.subr.mxu0 0.0
    %2831 = vmatpush1.xpose.msra.mxu0 0.0
    %2832 = vmatprep.subr.mxu0 0.0
    %2833 = vmatpush1.xpose.msra.mxu0 0.0
    %2834 = vmatprep.subr.mxu0 0.0
    %2835 = vmatpush1.xpose.msra.mxu0 0.0
    %2836 = vmatprep.subr.mxu0 0.0
    %2837 = vmatpush1.xpose.msra.mxu0 0.0
    %2838 = vmatprep.subr.mxu0 0.0
    %2839 = vmatpush1.xpose.msra.mxu0 0.0
    %2840 = vmatprep.subr.mxu0 0.0
    %2841 = vmatpush1.xpose.msra.mxu0 0.0
    %2842 = vmatprep.subr.mxu0 0.0
    %2843 = vmatpush1.xpose.msra.mxu0 0.0
    %2844 = vmatprep.mubr.f32.mxu0 0.0
    %2845 = vmatmul.mubr.f32.gmra.mrb[0].mxu0 %v2769
    %v2846 = vpop.f32.mrb[0].mxu0
    %v2847 = vadd.f32 0.0, %v2846
    %v2848 = vpop.f32.mrb[0].mxu0
    %2849 = vmatprep.mubr.f32.mxu0 0.0
    %2850 = vmatmul.mubr.f32.gmra.mrb[0].mxu0 %v2772
    %v2851 = vpop.f32.mrb[0].mxu0
    %v2852 = vadd.f32 0.0, %v2851
    %v2853 = vpop.f32.mrb[0].mxu0
    %2854 = vdwg.mxu0
    %v2855 = vmul.f32 %v2847, 0.35355338
    %v2856 = vmul.f32 %v2852, 0.35355338
    %v2857 = vsel %vm1111, %v2855, -inf
    %2858 = vmax.xlane.f32.xlu0 %v2857
    %v2859 = vpop.xlane.xlu0 %2858
    %v2860 = vsel %vm1111, %v2856, -inf
    %2861 = vmax.xlane.f32.xlu0 %v2860
    %v2862 = vpop.xlane.xlu0 %2861
    %v2863 = vsub.f32 %v2855, %v2859
    %v2864 = vsub.f32 %v2856, %v2862
    %v2865 = vmul.f32 %v2863, 1.442695
    %v2866 = vpow.pop %v2865
    %v2867 = vmul.f32 %v2864, 1.442695
    %v2868 = vpow.pop %v2867
    %v2869 = vsel %vm1111, %v2866, 0.0
    %2870 = vadd.xlane.f32.xlu0 %v2869
    %v2871 = vpop.xlane.xlu0 %2870
    %v2872 = vsel %vm1111, %v2868, 0.0
    %2873 = vadd.xlane.f32.xlu0 %v2872
    %v2874 = vpop.xlane.xlu0 %2873
    %v2875 = vrcp.pop %v2871
    %v2876 = vrcp.pop %v2874
    %v2877 = vmul.f32 %v2866, %v2875
    %v2878 = vmul.f32 %v2868, %v2876
    %v2880 = vsel %vm1111, %v2877, 0
    %v2883 = vsel %vm1111, %v2878, 0
    %2885 = vmatprep.subr.mxu0 0.0
    %2886 = vmatpush1.msra.mxu0 %v2568
    %2887 = vmatprep.subr.mxu0 0.0
    %2888 = vmatpush1.msra.mxu0 %v2573
    %2889 = vmatprep.subr.mxu0 0.0
    %2890 = vmatpush1.msra.mxu0 0.0
    %2891 = vmatprep.subr.mxu0 0.0
    %2892 = vmatpush1.msra.mxu0 0.0
    %2893 = vmatprep.subr.mxu0 0.0
    %2894 = vmatpush1.msra.mxu0 0.0
    %2895 = vmatprep.subr.mxu0 0.0
    %2896 = vmatpush1.msra.mxu0 0.0
    %2897 = vmatprep.subr.mxu0 0.0
    %2898 = vmatpush1.msra.mxu0 0.0
    %2899 = vmatprep.subr.mxu0 0.0
    %2900 = vmatpush1.msra.mxu0 0.0
    %2901 = vmatprep.subr.mxu0 0.0
    %2902 = vmatpush1.msra.mxu0 0.0
    %2903 = vmatprep.subr.mxu0 0.0
    %2904 = vmatpush1.msra.mxu0 0.0
    %2905 = vmatprep.subr.mxu0 0.0
    %2906 = vmatpush1.msra.mxu0 0.0
    %2907 = vmatprep.subr.mxu0 0.0
    %2908 = vmatpush1.msra.mxu0 0.0
    %2909 = vmatprep.subr.mxu0 0.0
    %2910 = vmatpush1.msra.mxu0 0.0
    %2911 = vmatprep.subr.mxu0 0.0
    %2912 = vmatpush1.msra.mxu0 0.0
    %2913 = vmatprep.subr.mxu0 0.0
    %2914 = vmatpush1.msra.mxu0 0.0
    %2915 = vmatprep.subr.mxu0 0.0
    %2916 = vmatpush1.msra.mxu0 0.0
    %2917 = vmatprep.subr.mxu0 0.0
    %2918 = vmatpush1.msra.mxu0 0.0
    %2919 = vmatprep.subr.mxu0 0.0
    %2920 = vmatpush1.msra.mxu0 0.0
    %2921 = vmatprep.subr.mxu0 0.0
    %2922 = vmatpush1.msra.mxu0 0.0
    %2923 = vmatprep.subr.mxu0 0.0
    %2924 = vmatpush1.msra.mxu0 0.0
    %2925 = vmatprep.subr.mxu0 0.0
    %2926 = vmatpush1.msra.mxu0 0.0
    %2927 = vmatprep.subr.mxu0 0.0
    %2928 = vmatpush1.msra.mxu0 0.0
    %2929 = vmatprep.subr.mxu0 0.0
    %2930 = vmatpush1.msra.mxu0 0.0
    %2931 = vmatprep.subr.mxu0 0.0
    %2932 = vmatpush1.msra.mxu0 0.0
    %2933 = vmatprep.subr.mxu0 0.0
    %2934 = vmatpush1.msra.mxu0 0.0
    %2935 = vmatprep.subr.mxu0 0.0
    %2936 = vmatpush1.msra.mxu0 0.0
    %2937 = vmatprep.subr.mxu0 0.0
    %2938 = vmatpush1.msra.mxu0 0.0
    %2939 = vmatprep.subr.mxu0 0.0
    %2940 = vmatpush1.msra.mxu0 0.0
    %2941 = vmatprep.subr.mxu0 0.0
    %2942 = vmatpush1.msra.mxu0 0.0
    %2943 = vmatprep.subr.mxu0 0.0
    %2944 = vmatpush1.msra.mxu0 0.0
    %2945 = vmatprep.subr.mxu0 0.0
    %2946 = vmatpush1.msra.mxu0 0.0
    %2947 = vmatprep.subr.mxu0 0.0
    %2948 = vmatpush1.msra.mxu0 0.0
    %2949 = vmatprep.mubr.f32.mxu0 0.0
    %2950 = vmatmul.mubr.f32.gmra.mrb[0].mxu0 %v2880
    %v2951 = vpop.f32.mrb[0].mxu0
    %v2952 = vadd.f32 0.0, %v2951
    %v2953 = vpop.f32.mrb[0].mxu0
    %2954 = vmatprep.mubr.f32.mxu0 0.0
    %2955 = vmatmul.mubr.f32.gmra.mrb[0].mxu0 %v2883
    %v2956 = vpop.f32.mrb[0].mxu0
    %v2957 = vadd.f32 0.0, %v2956
    %v2958 = vpop.f32.mrb[0].mxu0
    %2959 = vdwg.mxu0
    %s2960 = scalar_lea.vmem [#allocation7], 16
    %v2961 = vld [vmem:[%s2960] sm:$0xff]
    %v2963 = vsel %vm1021, %v2760, 0
    %v2966 = vsel %vm1021, %v2765, 0
    %v2969 = vsel %vm1021, %v2952, 0
    %v2972 = vsel %vm1021, %v2957, 0
    %2974 = vmatprep.subr.mxu0 0.0
    %2975 = vmatpush1.msra.mxu0 %v2961
    %2976 = vmatprep.subr.mxu0 0.0
    %2977 = vmatpush1.msra.mxu0 0.0
    %2978 = vmatprep.subr.mxu0 0.0
    %2979 = vmatpush1.msra.mxu0 0.0
    %2980 = vmatprep.subr.mxu0 0.0
    %2981 = vmatpush1.msra.mxu0 0.0
    %2982 = vmatprep.subr.mxu0 0.0
    %2983 = vmatpush1.msra.mxu0 0.0
    %2984 = vmatprep.subr.mxu0 0.0
    %2985 = vmatpush1.msra.mxu0 0.0
    %2986 = vmatprep.subr.mxu0 0.0
    %2987 = vmatpush1.msra.mxu0 0.0
    %2988 = vmatprep.subr.mxu0 0.0
    %2989 = vmatpush1.msra.mxu0 0.0
    %2990 = vmatprep.subr.mxu0 0.0
    %2991 = vmatpush1.msra.mxu0 0.0
    %2992 = vmatprep.subr.mxu0 0.0
    %2993 = vmatpush1.msra.mxu0 0.0
    %2994 = vmatprep.subr.mxu0 0.0
    %2995 = vmatpush1.msra.mxu0 0.0
    %2996 = vmatprep.subr.mxu0 0.0
    %2997 = vmatpush1.msra.mxu0 0.0
    %2998 = vmatprep.subr.mxu0 0.0
    %2999 = vmatpush1.msra.mxu0 0.0
    %3000 = vmatprep.subr.mxu0 0.0
    %3001 = vmatpush1.msra.mxu0 0.0
    %3002 = vmatprep.subr.mxu0 0.0
    %3003 = vmatpush1.msra.mxu0 0.0
    %3004 = vmatprep.subr.mxu0 0.0
    %3005 = vmatpush1.msra.mxu0 0.0
    %3006 = vmatprep.subr.mxu0 0.0
    %3007 = vmatpush1.msra.mxu0 0.0
    %3008 = vmatprep.subr.mxu0 0.0
    %3009 = vmatpush1.msra.mxu0 0.0
    %3010 = vmatprep.subr.mxu0 0.0
    %3011 = vmatpush1.msra.mxu0 0.0
    %3012 = vmatprep.subr.mxu0 0.0
    %3013 = vmatpush1.msra.mxu0 0.0
    %3014 = vmatprep.subr.mxu0 0.0
    %3015 = vmatpush1.msra.mxu0 0.0
    %3016 = vmatprep.subr.mxu0 0.0
    %3017 = vmatpush1.msra.mxu0 0.0
    %3018 = vmatprep.subr.mxu0 0.0
    %3019 = vmatpush1.msra.mxu0 0.0
    %3020 = vmatprep.subr.mxu0 0.0
    %3021 = vmatpush1.msra.mxu0 0.0
    %3022 = vmatprep.subr.mxu0 0.0
    %3023 = vmatpush1.msra.mxu0 0.0
    %3024 = vmatprep.subr.mxu0 0.0
    %3025 = vmatpush1.msra.mxu0 0.0
    %3026 = vmatprep.subr.mxu0 0.0
    %3027 = vmatpush1.msra.mxu0 0.0
    %3028 = vmatprep.subr.mxu0 0.0
    %3029 = vmatpush1.msra.mxu0 0.0
    %3030 = vmatprep.subr.mxu0 0.0
    %3031 = vmatpush1.msra.mxu0 0.0
    %3032 = vmatprep.subr.mxu0 0.0
    %3033 = vmatpush1.msra.mxu0 0.0
    %3034 = vmatprep.subr.mxu0 0.0
    %3035 = vmatpush1.msra.mxu0 0.0
    %3036 = vmatprep.subr.mxu0 0.0
    %3037 = vmatpush1.msra.mxu0 0.0
    %3038 = vmatprep.mubr.f32.mxu0 0.0
    %3039 = vmatmul.mubr.f32.gmra.mrb[0].mxu0 %v2963
    %v3040 = vpop.f32.mrb[0].mxu0
    %v3041 = vadd.f32 0.0, %v3040
    %v3042 = vpop.f32.mrb[0].mxu0
    %3043 = vmatprep.mubr.f32.mxu0 0.0
    %3044 = vmatmul.mubr.f32.gmra.mrb[0].mxu0 %v2966
    %v3045 = vpop.f32.mrb[0].mxu0
    %v3046 = vadd.f32 0.0, %v3045
    %v3047 = vpop.f32.mrb[0].mxu0
    %3048 = vmatprep.mubr.f32.mxu0 0.0
    %3049 = vmatmul.mubr.f32.gmra.mrb[0].mxu0 %v2969
    %v3050 = vpop.f32.mrb[0].mxu0
    %v3051 = vadd.f32 0.0, %v3050
    %v3052 = vpop.f32.mrb[0].mxu0
    %3053 = vmatprep.mubr.f32.mxu0 0.0
    %3054 = vmatmul.mubr.f32.gmra.mrb[0].mxu0 %v2972
    %v3055 = vpop.f32.mrb[0].mxu0
    %v3056 = vadd.f32 0.0, %v3055
    %v3057 = vpop.f32.mrb[0].mxu0
    %3058 = vdwg.mxu0
    %v3059 = vadd.f32 %v2264, %v3041
    %v3060 = vadd.f32 %v2269, %v3046
    %v3061 = vadd.f32 %v2274, %v3051
    %v3062 = vadd.f32 %v2279, %v3056
    %s3063 = scalar_lea.vmem %s19, 96
    %v3064 = vld [vmem:[%s3063] sm:$0xff]
    %v3065 = vld [vmem:[%s3063 + $0x8] sm:$0xff]
    %v3066 = vld [vmem:[%s3063 + $0x10] sm:$0xff]
    %v3067 = vld [vmem:[%s3063 + $0x18] sm:$0xff]
    %s3068 = scalar_lea.vmem %s25, 3
    %v3069 = vld [vmem:[%s3068] sm:$0x1]
    %v3071 = vlaneseq
    %v3072 = vshrl.u32 %v3071, 7
    %v3073 = vsub.s32 0, %v3072
    %v3074 = vrot.slane %v3069, %v3073
    %3076 = vmatprep.subr.mxu0 0.0
    %3077 = vmatpush1.msra.mxu0 %v3064
    %3078 = vmatprep.subr.mxu0 0.0
    %3079 = vmatpush1.msra.mxu0 %v3065
    %3080 = vmatprep.subr.mxu0 0.0
    %3081 = vmatpush1.msra.mxu0 %v3066
    %3082 = vmatprep.subr.mxu0 0.0
    %3083 = vmatpush1.msra.mxu0 %v3067
    %3084 = vmatprep.subr.mxu0 0.0
    %3085 = vmatpush1.msra.mxu0 0.0
    %3086 = vmatprep.subr.mxu0 0.0
    %3087 = vmatpush1.msra.mxu0 0.0
    %3088 = vmatprep.subr.mxu0 0.0
    %3089 = vmatpush1.msra.mxu0 0.0
    %3090 = vmatprep.subr.mxu0 0.0
    %3091 = vmatpush1.msra.mxu0 0.0
    %3092 = vmatprep.subr.mxu0 0.0
    %3093 = vmatpush1.msra.mxu0 0.0
    %3094 = vmatprep.subr.mxu0 0.0
    %3095 = vmatpush1.msra.mxu0 0.0
    %3096 = vmatprep.subr.mxu0 0.0
    %3097 = vmatpush1.msra.mxu0 0.0
    %3098 = vmatprep.subr.mxu0 0.0
    %3099 = vmatpush1.msra.mxu0 0.0
    %3100 = vmatprep.subr.mxu0 0.0
    %3101 = vmatpush1.msra.mxu0 0.0
    %3102 = vmatprep.subr.mxu0 0.0
    %3103 = vmatpush1.msra.mxu0 0.0
    %3104 = vmatprep.subr.mxu0 0.0
    %3105 = vmatpush1.msra.mxu0 0.0
    %3106 = vmatprep.subr.mxu0 0.0
    %3107 = vmatpush1.msra.mxu0 0.0
    %3108 = vmatprep.subr.mxu0 0.0
    %3109 = vmatpush1.msra.mxu0 0.0
    %3110 = vmatprep.subr.mxu0 0.0
    %3111 = vmatpush1.msra.mxu0 0.0
    %3112 = vmatprep.subr.mxu0 0.0
    %3113 = vmatpush1.msra.mxu0 0.0
    %3114 = vmatprep.subr.mxu0 0.0
    %3115 = vmatpush1.msra.mxu0 0.0
    %3116 = vmatprep.subr.mxu0 0.0
    %3117 = vmatpush1.msra.mxu0 0.0
    %3118 = vmatprep.subr.mxu0 0.0
    %3119 = vmatpush1.msra.mxu0 0.0
    %3120 = vmatprep.subr.mxu0 0.0
    %3121 = vmatpush1.msra.mxu0 0.0
    %3122 = vmatprep.subr.mxu0 0.0
    %3123 = vmatpush1.msra.mxu0 0.0
    %3124 = vmatprep.subr.mxu0 0.0
    %3125 = vmatpush1.msra.mxu0 0.0
    %3126 = vmatprep.subr.mxu0 0.0
    %3127 = vmatpush1.msra.mxu0 0.0
    %3128 = vmatprep.subr.mxu0 0.0
    %3129 = vmatpush1.msra.mxu0 0.0
    %3130 = vmatprep.subr.mxu0 0.0
    %3131 = vmatpush1.msra.mxu0 0.0
    %3132 = vmatprep.subr.mxu0 0.0
    %3133 = vmatpush1.msra.mxu0 0.0
    %3134 = vmatprep.subr.mxu0 0.0
    %3135 = vmatpush1.msra.mxu0 0.0
    %3136 = vmatprep.subr.mxu0 0.0
    %3137 = vmatpush1.msra.mxu0 0.0
    %3138 = vmatprep.subr.mxu0 0.0
    %3139 = vmatpush1.msra.mxu0 0.0
    %3140 = vmatprep.mubr.f32.mxu0 0.0
    %3141 = vmatmul.mubr.f32.gmra.mrb[0].mxu0 %v733
    %v3142 = vpop.f32.mrb[0].mxu0
    %v3143 = vadd.f32 %v3074, %v3142
    %v3144 = vpop.f32.mrb[0].mxu0
    %3145 = vmatprep.mubr.f32.mxu0 0.0
    %3146 = vmatmul.mubr.f32.gmra.mrb[0].mxu0 %v736
    %v3147 = vpop.f32.mrb[0].mxu0
    %v3148 = vadd.f32 %v3074, %v3147
    %v3149 = vpop.f32.mrb[0].mxu0
    %3150 = vmatprep.mubr.f32.mxu0 0.0
    %3151 = vmatmul.mubr.f32.gmra.mrb[0].mxu0 %v739
    %v3152 = vpop.f32.mrb[0].mxu0
    %v3153 = vadd.f32 %v3074, %v3152
    %v3154 = vpop.f32.mrb[0].mxu0
    %3155 = vmatprep.mubr.f32.mxu0 0.0
    %3156 = vmatmul.mubr.f32.gmra.mrb[0].mxu0 %v742
    %v3157 = vpop.f32.mrb[0].mxu0
    %v3158 = vadd.f32 %v3074, %v3157
    %v3159 = vpop.f32.mrb[0].mxu0
    %3160 = vdwg.mxu0
    %s3161 = scalar_lea.vmem %s21, 96
    %v3162 = vld [vmem:[%s3161] sm:$0xff]
    %v3163 = vld [vmem:[%s3161 + $0x8] sm:$0xff]
    %v3164 = vld [vmem:[%s3161 + $0x10] sm:$0xff]
    %v3165 = vld [vmem:[%s3161 + $0x18] sm:$0xff]
    %s3166 = scalar_lea.vmem %s27, 3
    %v3167 = vld [vmem:[%s3166] sm:$0x1]
    %v3169 = vlaneseq
    %v3170 = vshrl.u32 %v3169, 7
    %v3171 = vsub.s32 0, %v3170
    %v3172 = vrot.slane %v3167, %v3171
    %3174 = vmatprep.subr.mxu0 0.0
    %3175 = vmatpush1.msra.mxu0 %v3162
    %3176 = vmatprep.subr.mxu0 0.0
    %3177 = vmatpush1.msra.mxu0 %v3163
    %3178 = vmatprep.subr.mxu0 0.0
    %3179 = vmatpush1.msra.mxu0 %v3164
    %3180 = vmatprep.subr.mxu0 0.0
    %3181 = vmatpush1.msra.mxu0 %v3165
    %3182 = vmatprep.subr.mxu0 0.0
    %3183 = vmatpush1.msra.mxu0 0.0
    %3184 = vmatprep.subr.mxu0 0.0
    %3185 = vmatpush1.msra.mxu0 0.0
    %3186 = vmatprep.subr.mxu0 0.0
    %3187 = vmatpush1.msra.mxu0 0.0
    %3188 = vmatprep.subr.mxu0 0.0
    %3189 = vmatpush1.msra.mxu0 0.0
    %3190 = vmatprep.subr.mxu0 0.0
    %3191 = vmatpush1.msra.mxu0 0.0
    %3192 = vmatprep.subr.mxu0 0.0
    %3193 = vmatpush1.msra.mxu0 0.0
    %3194 = vmatprep.subr.mxu0 0.0
    %3195 = vmatpush1.msra.mxu0 0.0
    %3196 = vmatprep.subr.mxu0 0.0
    %3197 = vmatpush1.msra.mxu0 0.0
    %3198 = vmatprep.subr.mxu0 0.0
    %3199 = vmatpush1.msra.mxu0 0.0
    %3200 = vmatprep.subr.mxu0 0.0
    %3201 = vmatpush1.msra.mxu0 0.0
    %3202 = vmatprep.subr.mxu0 0.0
    %3203 = vmatpush1.msra.mxu0 0.0
    %3204 = vmatprep.subr.mxu0 0.0
    %3205 = vmatpush1.msra.mxu0 0.0
    %3206 = vmatprep.subr.mxu0 0.0
    %3207 = vmatpush1.msra.mxu0 0.0
    %3208 = vmatprep.subr.mxu0 0.0
    %3209 = vmatpush1.msra.mxu0 0.0
    %3210 = vmatprep.subr.mxu0 0.0
    %3211 = vmatpush1.msra.mxu0 0.0
    %3212 = vmatprep.subr.mxu0 0.0
    %3213 = vmatpush1.msra.mxu0 0.0
    %3214 = vmatprep.subr.mxu0 0.0
    %3215 = vmatpush1.msra.mxu0 0.0
    %3216 = vmatprep.subr.mxu0 0.0
    %3217 = vmatpush1.msra.mxu0 0.0
    %3218 = vmatprep.subr.mxu0 0.0
    %3219 = vmatpush1.msra.mxu0 0.0
    %3220 = vmatprep.subr.mxu0 0.0
    %3221 = vmatpush1.msra.mxu0 0.0
    %3222 = vmatprep.subr.mxu0 0.0
    %3223 = vmatpush1.msra.mxu0 0.0
    %3224 = vmatprep.subr.mxu0 0.0
    %3225 = vmatpush1.msra.mxu0 0.0
    %3226 = vmatprep.subr.mxu0 0.0
    %3227 = vmatpush1.msra.mxu0 0.0
    %3228 = vmatprep.subr.mxu0 0.0
    %3229 = vmatpush1.msra.mxu0 0.0
    %3230 = vmatprep.subr.mxu0 0.0
    %3231 = vmatpush1.msra.mxu0 0.0
    %3232 = vmatprep.subr.mxu0 0.0
    %3233 = vmatpush1.msra.mxu0 0.0
    %3234 = vmatprep.subr.mxu0 0.0
    %3235 = vmatpush1.msra.mxu0 0.0
    %3236 = vmatprep.subr.mxu0 0.0
    %3237 = vmatpush1.msra.mxu0 0.0
    %3238 = vmatprep.mubr.f32.mxu0 0.0
    %3239 = vmatmul.mubr.f32.gmra.mrb[0].mxu0 %v733
    %v3240 = vpop.f32.mrb[0].mxu0
    %v3241 = vadd.f32 %v3172, %v3240
    %v3242 = vpop.f32.mrb[0].mxu0
    %3243 = vmatprep.mubr.f32.mxu0 0.0
    %3244 = vmatmul.mubr.f32.gmra.mrb[0].mxu0 %v736
    %v3245 = vpop.f32.mrb[0].mxu0
    %v3246 = vadd.f32 %v3172, %v3245
    %v3247 = vpop.f32.mrb[0].mxu0
    %3248 = vmatprep.mubr.f32.mxu0 0.0
    %3249 = vmatmul.mubr.f32.gmra.mrb[0].mxu0 %v739
    %v3250 = vpop.f32.mrb[0].mxu0
    %v3251 = vadd.f32 %v3172, %v3250
    %v3252 = vpop.f32.mrb[0].mxu0
    %3253 = vmatprep.mubr.f32.mxu0 0.0
    %3254 = vmatmul.mubr.f32.gmra.mrb[0].mxu0 %v742
    %v3255 = vpop.f32.mrb[0].mxu0
    %v3256 = vadd.f32 %v3172, %v3255
    %v3257 = vpop.f32.mrb[0].mxu0
    %3258 = vdwg.mxu0
    %s3259 = scalar_lea.vmem %s23, 96
    %v3260 = vld [vmem:[%s3259] sm:$0xff]
    %v3261 = vld [vmem:[%s3259 + $0x8] sm:$0xff]
    %v3262 = vld [vmem:[%s3259 + $0x10] sm:$0xff]
    %v3263 = vld [vmem:[%s3259 + $0x18] sm:$0xff]
    %s3264 = scalar_lea.vmem %s29, 3
    %v3265 = vld [vmem:[%s3264] sm:$0x1]
    %v3267 = vlaneseq
    %v3268 = vshrl.u32 %v3267, 7
    %v3269 = vsub.s32 0, %v3268
    %v3270 = vrot.slane %v3265, %v3269
    %3272 = vmatprep.subr.mxu0 0.0
    %3273 = vmatpush1.msra.mxu0 %v3260
    %3274 = vmatprep.subr.mxu0 0.0
    %3275 = vmatpush1.msra.mxu0 %v3261
    %3276 = vmatprep.subr.mxu0 0.0
    %3277 = vmatpush1.msra.mxu0 %v3262
    %3278 = vmatprep.subr.mxu0 0.0
    %3279 = vmatpush1.msra.mxu0 %v3263
    %3280 = vmatprep.subr.mxu0 0.0
    %3281 = vmatpush1.msra.mxu0 0.0
    %3282 = vmatprep.subr.mxu0 0.0
    %3283 = vmatpush1.msra.mxu0 0.0
    %3284 = vmatprep.subr.mxu0 0.0
    %3285 = vmatpush1.msra.mxu0 0.0
    %3286 = vmatprep.subr.mxu0 0.0
    %3287 = vmatpush1.msra.mxu0 0.0
    %3288 = vmatprep.subr.mxu0 0.0
    %3289 = vmatpush1.msra.mxu0 0.0
    %3290 = vmatprep.subr.mxu0 0.0
    %3291 = vmatpush1.msra.mxu0 0.0
    %3292 = vmatprep.subr.mxu0 0.0
    %3293 = vmatpush1.msra.mxu0 0.0
    %3294 = vmatprep.subr.mxu0 0.0
    %3295 = vmatpush1.msra.mxu0 0.0
    %3296 = vmatprep.subr.mxu0 0.0
    %3297 = vmatpush1.msra.mxu0 0.0
    %3298 = vmatprep.subr.mxu0 0.0
    %3299 = vmatpush1.msra.mxu0 0.0
    %3300 = vmatprep.subr.mxu0 0.0
    %3301 = vmatpush1.msra.mxu0 0.0
    %3302 = vmatprep.subr.mxu0 0.0
    %3303 = vmatpush1.msra.mxu0 0.0
    %3304 = vmatprep.subr.mxu0 0.0
    %3305 = vmatpush1.msra.mxu0 0.0
    %3306 = vmatprep.subr.mxu0 0.0
    %3307 = vmatpush1.msra.mxu0 0.0
    %3308 = vmatprep.subr.mxu0 0.0
    %3309 = vmatpush1.msra.mxu0 0.0
    %3310 = vmatprep.subr.mxu0 0.0
    %3311 = vmatpush1.msra.mxu0 0.0
    %3312 = vmatprep.subr.mxu0 0.0
    %3313 = vmatpush1.msra.mxu0 0.0
    %3314 = vmatprep.subr.mxu0 0.0
    %3315 = vmatpush1.msra.mxu0 0.0
    %3316 = vmatprep.subr.mxu0 0.0
    %3317 = vmatpush1.msra.mxu0 0.0
    %3318 = vmatprep.subr.mxu0 0.0
    %3319 = vmatpush1.msra.mxu0 0.0
    %3320 = vmatprep.subr.mxu0 0.0
    %3321 = vmatpush1.msra.mxu0 0.0
    %3322 = vmatprep.subr.mxu0 0.0
    %3323 = vmatpush1.msra.mxu0 0.0
    %3324 = vmatprep.subr.mxu0 0.0
    %3325 = vmatpush1.msra.mxu0 0.0
    %3326 = vmatprep.subr.mxu0 0.0
    %3327 = vmatpush1.msra.mxu0 0.0
    %3328 = vmatprep.subr.mxu0 0.0
    %3329 = vmatpush1.msra.mxu0 0.0
    %3330 = vmatprep.subr.mxu0 0.0
    %3331 = vmatpush1.msra.mxu0 0.0
    %3332 = vmatprep.subr.mxu0 0.0
    %3333 = vmatpush1.msra.mxu0 0.0
    %3334 = vmatprep.subr.mxu0 0.0
    %3335 = vmatpush1.msra.mxu0 0.0
    %3336 = vmatprep.mubr.f32.mxu0 0.0
    %3337 = vmatmul.mubr.f32.gmra.mrb[0].mxu0 %v733
    %v3338 = vpop.f32.mrb[0].mxu0
    %v3339 = vadd.f32 %v3270, %v3338
    %v3340 = vpop.f32.mrb[0].mxu0
    %3341 = vmatprep.mubr.f32.mxu0 0.0
    %3342 = vmatmul.mubr.f32.gmra.mrb[0].mxu0 %v736
    %v3343 = vpop.f32.mrb[0].mxu0
    %v3344 = vadd.f32 %v3270, %v3343
    %v3345 = vpop.f32.mrb[0].mxu0
    %3346 = vmatprep.mubr.f32.mxu0 0.0
    %3347 = vmatmul.mubr.f32.gmra.mrb[0].mxu0 %v739
    %v3348 = vpop.f32.mrb[0].mxu0
    %v3349 = vadd.f32 %v3270, %v3348
    %v3350 = vpop.f32.mrb[0].mxu0
    %3351 = vmatprep.mubr.f32.mxu0 0.0
    %3352 = vmatmul.mubr.f32.gmra.mrb[0].mxu0 %v742
    %v3353 = vpop.f32.mrb[0].mxu0
    %v3354 = vadd.f32 %v3270, %v3353
    %v3355 = vpop.f32.mrb[0].mxu0
    %3356 = vdwg.mxu0
    %v3358 = vsel %vm1021, %v3143, 0
    %v3361 = vsel %vm1021, %v3148, 0
    %v3364 = vsel %vm1021, %v3241, 0
    %v3367 = vsel %vm1021, %v3246, 0
    %3369 = vmatprep.subr.mxu0 0.0
    %3370 = vmatpush1.xpose.msra.mxu0 %v3364
    %3371 = vmatprep.subr.mxu0 0.0
    %3372 = vmatpush1.xpose.msra.mxu0 %v3367
    %3373 = vmatprep.subr.mxu0 0.0
    %3374 = vmatpush1.xpose.msra.mxu0 0.0
    %3375 = vmatprep.subr.mxu0 0.0
    %3376 = vmatpush1.xpose.msra.mxu0 0.0
    %3377 = vmatprep.subr.mxu0 0.0
    %3378 = vmatpush1.xpose.msra.mxu0 0.0
    %3379 = vmatprep.subr.mxu0 0.0
    %3380 = vmatpush1.xpose.msra.mxu0 0.0
    %3381 = vmatprep.subr.mxu0 0.0
    %3382 = vmatpush1.xpose.msra.mxu0 0.0
    %3383 = vmatprep.subr.mxu0 0.0
    %3384 = vmatpush1.xpose.msra.mxu0 0.0
    %3385 = vmatprep.subr.mxu0 0.0
    %3386 = vmatpush1.xpose.msra.mxu0 0.0
    %3387 = vmatprep.subr.mxu0 0.0
    %3388 = vmatpush1.xpose.msra.mxu0 0.0
    %3389 = vmatprep.subr.mxu0 0.0
    %3390 = vmatpush1.xpose.msra.mxu0 0.0
    %3391 = vmatprep.subr.mxu0 0.0
    %3392 = vmatpush1.xpose.msra.mxu0 0.0
    %3393 = vmatprep.subr.mxu0 0.0
    %3394 = vmatpush1.xpose.msra.mxu0 0.0
    %3395 = vmatprep.subr.mxu0 0.0
    %3396 = vmatpush1.xpose.msra.mxu0 0.0
    %3397 = vmatprep.subr.mxu0 0.0
    %3398 = vmatpush1.xpose.msra.mxu0 0.0
    %3399 = vmatprep.subr.mxu0 0.0
    %3400 = vmatpush1.xpose.msra.mxu0 0.0
    %3401 = vmatprep.subr.mxu0 0.0
    %3402 = vmatpush1.xpose.msra.mxu0 0.0
    %3403 = vmatprep.subr.mxu0 0.0
    %3404 = vmatpush1.xpose.msra.mxu0 0.0
    %3405 = vmatprep.subr.mxu0 0.0
    %3406 = vmatpush1.xpose.msra.mxu0 0.0
    %3407 = vmatprep.subr.mxu0 0.0
    %3408 = vmatpush1.xpose.msra.mxu0 0.0
    %3409 = vmatprep.subr.mxu0 0.0
    %3410 = vmatpush1.xpose.msra.mxu0 0.0
    %3411 = vmatprep.subr.mxu0 0.0
    %3412 = vmatpush1.xpose.msra.mxu0 0.0
    %3413 = vmatprep.subr.mxu0 0.0
    %3414 = vmatpush1.xpose.msra.mxu0 0.0
    %3415 = vmatprep.subr.mxu0 0.0
    %3416 = vmatpush1.xpose.msra.mxu0 0.0
    %3417 = vmatprep.subr.mxu0 0.0
    %3418 = vmatpush1.xpose.msra.mxu0 0.0
    %3419 = vmatprep.subr.mxu0 0.0
    %3420 = vmatpush1.xpose.msra.mxu0 0.0
    %3421 = vmatprep.subr.mxu0 0.0
    %3422 = vmatpush1.xpose.msra.mxu0 0.0
    %3423 = vmatprep.subr.mxu0 0.0
    %3424 = vmatpush1.xpose.msra.mxu0 0.0
    %3425 = vmatprep.subr.mxu0 0.0
    %3426 = vmatpush1.xpose.msra.mxu0 0.0
    %3427 = vmatprep.subr.mxu0 0.0
    %3428 = vmatpush1.xpose.msra.mxu0 0.0
    %3429 = vmatprep.subr.mxu0 0.0
    %3430 = vmatpush1.xpose.msra.mxu0 0.0
    %3431 = vmatprep.subr.mxu0 0.0
    %3432 = vmatpush1.xpose.msra.mxu0 0.0
    %3433 = vmatprep.mubr.f32.mxu0 0.0
    %3434 = vmatmul.mubr.f32.gmra.mrb[0].mxu0 %v3358
    %v3435 = vpop.f32.mrb[0].mxu0
    %v3436 = vadd.f32 0.0, %v3435
    %v3437 = vpop.f32.mrb[0].mxu0
    %3438 = vmatprep.mubr.f32.mxu0 0.0
    %3439 = vmatmul.mubr.f32.gmra.mrb[0].mxu0 %v3361
    %v3440 = vpop.f32.mrb[0].mxu0
    %v3441 = vadd.f32 0.0, %v3440
    %v3442 = vpop.f32.mrb[0].mxu0
    %3443 = vdwg.mxu0
    %v3444 = vmul.f32 %v3436, 0.35355338
    %v3445 = vmul.f32 %v3441, 0.35355338
    %v3446 = vsel %vm1111, %v3444, -inf
    %3447 = vmax.xlane.f32.xlu0 %v3446
    %v3448 = vpop.xlane.xlu0 %3447
    %v3449 = vsel %vm1111, %v3445, -inf
    %3450 = vmax.xlane.f32.xlu0 %v3449
    %v3451 = vpop.xlane.xlu0 %3450
    %v3452 = vsub.f32 %v3444, %v3448
    %v3453 = vsub.f32 %v3445, %v3451
    %v3454 = vmul.f32 %v3452, 1.442695
    %v3455 = vpow.pop %v3454
    %v3456 = vmul.f32 %v3453, 1.442695
    %v3457 = vpow.pop %v3456
    %v3458 = vsel %vm1111, %v3455, 0.0
    %3459 = vadd.xlane.f32.xlu0 %v3458
    %v3460 = vpop.xlane.xlu0 %3459
    %v3461 = vsel %vm1111, %v3457, 0.0
    %3462 = vadd.xlane.f32.xlu0 %v3461
    %v3463 = vpop.xlane.xlu0 %3462
    %v3464 = vrcp.pop %v3460
    %v3465 = vrcp.pop %v3463
    %v3466 = vmul.f32 %v3455, %v3464
    %v3467 = vmul.f32 %v3457, %v3465
    %v3469 = vsel %vm1111, %v3466, 0
    %v3472 = vsel %vm1111, %v3467, 0
    %3474 = vmatprep.subr.mxu0 0.0
    %3475 = vmatpush1.msra.mxu0 %v3339
    %3476 = vmatprep.subr.mxu0 0.0
    %3477 = vmatpush1.msra.mxu0 %v3344
    %3478 = vmatprep.subr.mxu0 0.0
    %3479 = vmatpush1.msra.mxu0 0.0
    %3480 = vmatprep.subr.mxu0 0.0
    %3481 = vmatpush1.msra.mxu0 0.0
    %3482 = vmatprep.subr.mxu0 0.0
    %3483 = vmatpush1.msra.mxu0 0.0
    %3484 = vmatprep.subr.mxu0 0.0
    %3485 = vmatpush1.msra.mxu0 0.0
    %3486 = vmatprep.subr.mxu0 0.0
    %3487 = vmatpush1.msra.mxu0 0.0
    %3488 = vmatprep.subr.mxu0 0.0
    %3489 = vmatpush1.msra.mxu0 0.0
    %3490 = vmatprep.subr.mxu0 0.0
    %3491 = vmatpush1.msra.mxu0 0.0
    %3492 = vmatprep.subr.mxu0 0.0
    %3493 = vmatpush1.msra.mxu0 0.0
    %3494 = vmatprep.subr.mxu0 0.0
    %3495 = vmatpush1.msra.mxu0 0.0
    %3496 = vmatprep.subr.mxu0 0.0
    %3497 = vmatpush1.msra.mxu0 0.0
    %3498 = vmatprep.subr.mxu0 0.0
    %3499 = vmatpush1.msra.mxu0 0.0
    %3500 = vmatprep.subr.mxu0 0.0
    %3501 = vmatpush1.msra.mxu0 0.0
    %3502 = vmatprep.subr.mxu0 0.0
    %3503 = vmatpush1.msra.mxu0 0.0
    %3504 = vmatprep.subr.mxu0 0.0
    %3505 = vmatpush1.msra.mxu0 0.0
    %3506 = vmatprep.subr.mxu0 0.0
    %3507 = vmatpush1.msra.mxu0 0.0
    %3508 = vmatprep.subr.mxu0 0.0
    %3509 = vmatpush1.msra.mxu0 0.0
    %3510 = vmatprep.subr.mxu0 0.0
    %3511 = vmatpush1.msra.mxu0 0.0
    %3512 = vmatprep.subr.mxu0 0.0
    %3513 = vmatpush1.msra.mxu0 0.0
    %3514 = vmatprep.subr.mxu0 0.0
    %3515 = vmatpush1.msra.mxu0 0.0
    %3516 = vmatprep.subr.mxu0 0.0
    %3517 = vmatpush1.msra.mxu0 0.0
    %3518 = vmatprep.subr.mxu0 0.0
    %3519 = vmatpush1.msra.mxu0 0.0
    %3520 = vmatprep.subr.mxu0 0.0
    %3521 = vmatpush1.msra.mxu0 0.0
    %3522 = vmatprep.subr.mxu0 0.0
    %3523 = vmatpush1.msra.mxu0 0.0
    %3524 = vmatprep.subr.mxu0 0.0
    %3525 = vmatpush1.msra.mxu0 0.0
    %3526 = vmatprep.subr.mxu0 0.0
    %3527 = vmatpush1.msra.mxu0 0.0
    %3528 = vmatprep.subr.mxu0 0.0
    %3529 = vmatpush1.msra.mxu0 0.0
    %3530 = vmatprep.subr.mxu0 0.0
    %3531 = vmatpush1.msra.mxu0 0.0
    %3532 = vmatprep.subr.mxu0 0.0
    %3533 = vmatpush1.msra.mxu0 0.0
    %3534 = vmatprep.subr.mxu0 0.0
    %3535 = vmatpush1.msra.mxu0 0.0
    %3536 = vmatprep.subr.mxu0 0.0
    %3537 = vmatpush1.msra.mxu0 0.0
    %3538 = vmatprep.mubr.f32.mxu0 0.0
    %3539 = vmatmul.mubr.f32.gmra.mrb[0].mxu0 %v3469
    %v3540 = vpop.f32.mrb[0].mxu0
    %v3541 = vadd.f32 0.0, %v3540
    %v3542 = vpop.f32.mrb[0].mxu0
    %3543 = vmatprep.mubr.f32.mxu0 0.0
    %3544 = vmatmul.mubr.f32.gmra.mrb[0].mxu0 %v3472
    %v3545 = vpop.f32.mrb[0].mxu0
    %v3546 = vadd.f32 0.0, %v3545
    %v3547 = vpop.f32.mrb[0].mxu0
    %3548 = vdwg.mxu0
    %v3550 = vsel %vm1021, %v3153, 0
    %v3553 = vsel %vm1021, %v3158, 0
    %v3556 = vsel %vm1021, %v3251, 0
    %v3559 = vsel %vm1021, %v3256, 0
    %3561 = vmatprep.subr.mxu0 0.0
    %3562 = vmatpush1.xpose.msra.mxu0 %v3556
    %3563 = vmatprep.subr.mxu0 0.0
    %3564 = vmatpush1.xpose.msra.mxu0 %v3559
    %3565 = vmatprep.subr.mxu0 0.0
    %3566 = vmatpush1.xpose.msra.mxu0 0.0
    %3567 = vmatprep.subr.mxu0 0.0
    %3568 = vmatpush1.xpose.msra.mxu0 0.0
    %3569 = vmatprep.subr.mxu0 0.0
    %3570 = vmatpush1.xpose.msra.mxu0 0.0
    %3571 = vmatprep.subr.mxu0 0.0
    %3572 = vmatpush1.xpose.msra.mxu0 0.0
    %3573 = vmatprep.subr.mxu0 0.0
    %3574 = vmatpush1.xpose.msra.mxu0 0.0
    %3575 = vmatprep.subr.mxu0 0.0
    %3576 = vmatpush1.xpose.msra.mxu0 0.0
    %3577 = vmatprep.subr.mxu0 0.0
    %3578 = vmatpush1.xpose.msra.mxu0 0.0
    %3579 = vmatprep.subr.mxu0 0.0
    %3580 = vmatpush1.xpose.msra.mxu0 0.0
    %3581 = vmatprep.subr.mxu0 0.0
    %3582 = vmatpush1.xpose.msra.mxu0 0.0
    %3583 = vmatprep.subr.mxu0 0.0
    %3584 = vmatpush1.xpose.msra.mxu0 0.0
    %3585 = vmatprep.subr.mxu0 0.0
    %3586 = vmatpush1.xpose.msra.mxu0 0.0
    %3587 = vmatprep.subr.mxu0 0.0
    %3588 = vmatpush1.xpose.msra.mxu0 0.0
    %3589 = vmatprep.subr.mxu0 0.0
    %3590 = vmatpush1.xpose.msra.mxu0 0.0
    %3591 = vmatprep.subr.mxu0 0.0
    %3592 = vmatpush1.xpose.msra.mxu0 0.0
    %3593 = vmatprep.subr.mxu0 0.0
    %3594 = vmatpush1.xpose.msra.mxu0 0.0
    %3595 = vmatprep.subr.mxu0 0.0
    %3596 = vmatpush1.xpose.msra.mxu0 0.0
    %3597 = vmatprep.subr.mxu0 0.0
    %3598 = vmatpush1.xpose.msra.mxu0 0.0
    %3599 = vmatprep.subr.mxu0 0.0
    %3600 = vmatpush1.xpose.msra.mxu0 0.0
    %3601 = vmatprep.subr.mxu0 0.0
    %3602 = vmatpush1.xpose.msra.mxu0 0.0
    %3603 = vmatprep.subr.mxu0 0.0
    %3604 = vmatpush1.xpose.msra.mxu0 0.0
    %3605 = vmatprep.subr.mxu0 0.0
    %3606 = vmatpush1.xpose.msra.mxu0 0.0
    %3607 = vmatprep.subr.mxu0 0.0
    %3608 = vmatpush1.xpose.msra.mxu0 0.0
    %3609 = vmatprep.subr.mxu0 0.0
    %3610 = vmatpush1.xpose.msra.mxu0 0.0
    %3611 = vmatprep.subr.mxu0 0.0
    %3612 = vmatpush1.xpose.msra.mxu0 0.0
    %3613 = vmatprep.subr.mxu0 0.0
    %3614 = vmatpush1.xpose.msra.mxu0 0.0
    %3615 = vmatprep.subr.mxu0 0.0
    %3616 = vmatpush1.xpose.msra.mxu0 0.0
    %3617 = vmatprep.subr.mxu0 0.0
    %3618 = vmatpush1.xpose.msra.mxu0 0.0
    %3619 = vmatprep.subr.mxu0 0.0
    %3620 = vmatpush1.xpose.msra.mxu0 0.0
    %3621 = vmatprep.subr.mxu0 0.0
    %3622 = vmatpush1.xpose.msra.mxu0 0.0
    %3623 = vmatprep.subr.mxu0 0.0
    %3624 = vmatpush1.xpose.msra.mxu0 0.0
    %3625 = vmatprep.mubr.f32.mxu0 0.0
    %3626 = vmatmul.mubr.f32.gmra.mrb[0].mxu0 %v3550
    %v3627 = vpop.f32.mrb[0].mxu0
    %v3628 = vadd.f32 0.0, %v3627
    %v3629 = vpop.f32.mrb[0].mxu0
    %3630 = vmatprep.mubr.f32.mxu0 0.0
    %3631 = vmatmul.mubr.f32.gmra.mrb[0].mxu0 %v3553
    %v3632 = vpop.f32.mrb[0].mxu0
    %v3633 = vadd.f32 0.0, %v3632
    %v3634 = vpop.f32.mrb[0].mxu0
    %3635 = vdwg.mxu0
    %v3636 = vmul.f32 %v3628, 0.35355338
    %v3637 = vmul.f32 %v3633, 0.35355338
    %v3638 = vsel %vm1111, %v3636, -inf
    %3639 = vmax.xlane.f32.xlu0 %v3638
    %v3640 = vpop.xlane.xlu0 %3639
    %v3641 = vsel %vm1111, %v3637, -inf
    %3642 = vmax.xlane.f32.xlu0 %v3641
    %v3643 = vpop.xlane.xlu0 %3642
    %v3644 = vsub.f32 %v3636, %v3640
    %v3645 = vsub.f32 %v3637, %v3643
    %v3646 = vmul.f32 %v3644, 1.442695
    %v3647 = vpow.pop %v3646
    %v3648 = vmul.f32 %v3645, 1.442695
    %v3649 = vpow.pop %v3648
    %v3650 = vsel %vm1111, %v3647, 0.0
    %3651 = vadd.xlane.f32.xlu0 %v3650
    %v3652 = vpop.xlane.xlu0 %3651
    %v3653 = vsel %vm1111, %v3649, 0.0
    %3654 = vadd.xlane.f32.xlu0 %v3653
    %v3655 = vpop.xlane.xlu0 %3654
    %v3656 = vrcp.pop %v3652
    %v3657 = vrcp.pop %v3655
    %v3658 = vmul.f32 %v3647, %v3656
    %v3659 = vmul.f32 %v3649, %v3657
    %v3661 = vsel %vm1111, %v3658, 0
    %v3664 = vsel %vm1111, %v3659, 0
    %3666 = vmatprep.subr.mxu0 0.0
    %3667 = vmatpush1.msra.mxu0 %v3349
    %3668 = vmatprep.subr.mxu0 0.0
    %3669 = vmatpush1.msra.mxu0 %v3354
    %3670 = vmatprep.subr.mxu0 0.0
    %3671 = vmatpush1.msra.mxu0 0.0
    %3672 = vmatprep.subr.mxu0 0.0
    %3673 = vmatpush1.msra.mxu0 0.0
    %3674 = vmatprep.subr.mxu0 0.0
    %3675 = vmatpush1.msra.mxu0 0.0
    %3676 = vmatprep.subr.mxu0 0.0
    %3677 = vmatpush1.msra.mxu0 0.0
    %3678 = vmatprep.subr.mxu0 0.0
    %3679 = vmatpush1.msra.mxu0 0.0
    %3680 = vmatprep.subr.mxu0 0.0
    %3681 = vmatpush1.msra.mxu0 0.0
    %3682 = vmatprep.subr.mxu0 0.0
    %3683 = vmatpush1.msra.mxu0 0.0
    %3684 = vmatprep.subr.mxu0 0.0
    %3685 = vmatpush1.msra.mxu0 0.0
    %3686 = vmatprep.subr.mxu0 0.0
    %3687 = vmatpush1.msra.mxu0 0.0
    %3688 = vmatprep.subr.mxu0 0.0
    %3689 = vmatpush1.msra.mxu0 0.0
    %3690 = vmatprep.subr.mxu0 0.0
    %3691 = vmatpush1.msra.mxu0 0.0
    %3692 = vmatprep.subr.mxu0 0.0
    %3693 = vmatpush1.msra.mxu0 0.0
    %3694 = vmatprep.subr.mxu0 0.0
    %3695 = vmatpush1.msra.mxu0 0.0
    %3696 = vmatprep.subr.mxu0 0.0
    %3697 = vmatpush1.msra.mxu0 0.0
    %3698 = vmatprep.subr.mxu0 0.0
    %3699 = vmatpush1.msra.mxu0 0.0
    %3700 = vmatprep.subr.mxu0 0.0
    %3701 = vmatpush1.msra.mxu0 0.0
    %3702 = vmatprep.subr.mxu0 0.0
    %3703 = vmatpush1.msra.mxu0 0.0
    %3704 = vmatprep.subr.mxu0 0.0
    %3705 = vmatpush1.msra.mxu0 0.0
    %3706 = vmatprep.subr.mxu0 0.0
    %3707 = vmatpush1.msra.mxu0 0.0
    %3708 = vmatprep.subr.mxu0 0.0
    %3709 = vmatpush1.msra.mxu0 0.0
    %3710 = vmatprep.subr.mxu0 0.0
    %3711 = vmatpush1.msra.mxu0 0.0
    %3712 = vmatprep.subr.mxu0 0.0
    %3713 = vmatpush1.msra.mxu0 0.0
    %3714 = vmatprep.subr.mxu0 0.0
    %3715 = vmatpush1.msra.mxu0 0.0
    %3716 = vmatprep.subr.mxu0 0.0
    %3717 = vmatpush1.msra.mxu0 0.0
    %3718 = vmatprep.subr.mxu0 0.0
    %3719 = vmatpush1.msra.mxu0 0.0
    %3720 = vmatprep.subr.mxu0 0.0
    %3721 = vmatpush1.msra.mxu0 0.0
    %3722 = vmatprep.subr.mxu0 0.0
    %3723 = vmatpush1.msra.mxu0 0.0
    %3724 = vmatprep.subr.mxu0 0.0
    %3725 = vmatpush1.msra.mxu0 0.0
    %3726 = vmatprep.subr.mxu0 0.0
    %3727 = vmatpush1.msra.mxu0 0.0
    %3728 = vmatprep.subr.mxu0 0.0
    %3729 = vmatpush1.msra.mxu0 0.0
    %3730 = vmatprep.mubr.f32.mxu0 0.0
    %3731 = vmatmul.mubr.f32.gmra.mrb[0].mxu0 %v3661
    %v3732 = vpop.f32.mrb[0].mxu0
    %v3733 = vadd.f32 0.0, %v3732
    %v3734 = vpop.f32.mrb[0].mxu0
    %3735 = vmatprep.mubr.f32.mxu0 0.0
    %3736 = vmatmul.mubr.f32.gmra.mrb[0].mxu0 %v3664
    %v3737 = vpop.f32.mrb[0].mxu0
    %v3738 = vadd.f32 0.0, %v3737
    %v3739 = vpop.f32.mrb[0].mxu0
    %3740 = vdwg.mxu0
    %s3741 = scalar_lea.vmem [#allocation7], 24
    %v3742 = vld [vmem:[%s3741] sm:$0xff]
    %v3744 = vsel %vm1021, %v3541, 0
    %v3747 = vsel %vm1021, %v3546, 0
    %v3750 = vsel %vm1021, %v3733, 0
    %v3753 = vsel %vm1021, %v3738, 0
    %3755 = vmatprep.subr.mxu0 0.0
    %3756 = vmatpush1.msra.mxu0 %v3742
    %3757 = vmatprep.subr.mxu0 0.0
    %3758 = vmatpush1.msra.mxu0 0.0
    %3759 = vmatprep.subr.mxu0 0.0
    %3760 = vmatpush1.msra.mxu0 0.0
    %3761 = vmatprep.subr.mxu0 0.0
    %3762 = vmatpush1.msra.mxu0 0.0
    %3763 = vmatprep.subr.mxu0 0.0
    %3764 = vmatpush1.msra.mxu0 0.0
    %3765 = vmatprep.subr.mxu0 0.0
    %3766 = vmatpush1.msra.mxu0 0.0
    %3767 = vmatprep.subr.mxu0 0.0
    %3768 = vmatpush1.msra.mxu0 0.0
    %3769 = vmatprep.subr.mxu0 0.0
    %3770 = vmatpush1.msra.mxu0 0.0
    %3771 = vmatprep.subr.mxu0 0.0
    %3772 = vmatpush1.msra.mxu0 0.0
    %3773 = vmatprep.subr.mxu0 0.0
    %3774 = vmatpush1.msra.mxu0 0.0
    %3775 = vmatprep.subr.mxu0 0.0
    %3776 = vmatpush1.msra.mxu0 0.0
    %3777 = vmatprep.subr.mxu0 0.0
    %3778 = vmatpush1.msra.mxu0 0.0
    %3779 = vmatprep.subr.mxu0 0.0
    %3780 = vmatpush1.msra.mxu0 0.0
    %3781 = vmatprep.subr.mxu0 0.0
    %3782 = vmatpush1.msra.mxu0 0.0
    %3783 = vmatprep.subr.mxu0 0.0
    %3784 = vmatpush1.msra.mxu0 0.0
    %3785 = vmatprep.subr.mxu0 0.0
    %3786 = vmatpush1.msra.mxu0 0.0
    %3787 = vmatprep.subr.mxu0 0.0
    %3788 = vmatpush1.msra.mxu0 0.0
    %3789 = vmatprep.subr.mxu0 0.0
    %3790 = vmatpush1.msra.mxu0 0.0
    %3791 = vmatprep.subr.mxu0 0.0
    %3792 = vmatpush1.msra.mxu0 0.0
    %3793 = vmatprep.subr.mxu0 0.0
    %3794 = vmatpush1.msra.mxu0 0.0
    %3795 = vmatprep.subr.mxu0 0.0
    %3796 = vmatpush1.msra.mxu0 0.0
    %3797 = vmatprep.subr.mxu0 0.0
    %3798 = vmatpush1.msra.mxu0 0.0
    %3799 = vmatprep.subr.mxu0 0.0
    %3800 = vmatpush1.msra.mxu0 0.0
    %3801 = vmatprep.subr.mxu0 0.0
    %3802 = vmatpush1.msra.mxu0 0.0
    %3803 = vmatprep.subr.mxu0 0.0
    %3804 = vmatpush1.msra.mxu0 0.0
    %3805 = vmatprep.subr.mxu0 0.0
    %3806 = vmatpush1.msra.mxu0 0.0
    %3807 = vmatprep.subr.mxu0 0.0
    %3808 = vmatpush1.msra.mxu0 0.0
    %3809 = vmatprep.subr.mxu0 0.0
    %3810 = vmatpush1.msra.mxu0 0.0
    %3811 = vmatprep.subr.mxu0 0.0
    %3812 = vmatpush1.msra.mxu0 0.0
    %3813 = vmatprep.subr.mxu0 0.0
    %3814 = vmatpush1.msra.mxu0 0.0
    %3815 = vmatprep.subr.mxu0 0.0
    %3816 = vmatpush1.msra.mxu0 0.0
    %3817 = vmatprep.subr.mxu0 0.0
    %3818 = vmatpush1.msra.mxu0 0.0
    %3819 = vmatprep.mubr.f32.mxu0 0.0
    %3820 = vmatmul.mubr.f32.gmra.mrb[0].mxu0 %v3744
    %v3821 = vpop.f32.mrb[0].mxu0
    %v3822 = vadd.f32 0.0, %v3821
    %v3823 = vpop.f32.mrb[0].mxu0
    %3824 = vmatprep.mubr.f32.mxu0 0.0
    %3825 = vmatmul.mubr.f32.gmra.mrb[0].mxu0 %v3747
    %v3826 = vpop.f32.mrb[0].mxu0
    %v3827 = vadd.f32 0.0, %v3826
    %v3828 = vpop.f32.mrb[0].mxu0
    %3829 = vmatprep.mubr.f32.mxu0 0.0
    %3830 = vmatmul.mubr.f32.gmra.mrb[0].mxu0 %v3750
    %v3831 = vpop.f32.mrb[0].mxu0
    %v3832 = vadd.f32 0.0, %v3831
    %v3833 = vpop.f32.mrb[0].mxu0
    %3834 = vmatprep.mubr.f32.mxu0 0.0
    %3835 = vmatmul.mubr.f32.gmra.mrb[0].mxu0 %v3753
    %v3836 = vpop.f32.mrb[0].mxu0
    %v3837 = vadd.f32 0.0, %v3836
    %v3838 = vpop.f32.mrb[0].mxu0
    %3839 = vdwg.mxu0
    %v3840 = vadd.f32 %v3059, %v3822
    %v3841 = vadd.f32 %v3060, %v3827
    %v3842 = vadd.f32 %v3061, %v3832
    %v3843 = vadd.f32 %v3062, %v3837
    %v3844 = vadd.f32 %v641, %v3840
    %v3845 = vadd.f32 %v642, %v3841
    %v3846 = vadd.f32 %v643, %v3842
    %v3847 = vadd.f32 %v644, %v3843
    %v3848 = vld [vmem:[%s33] sm:$0x1]
    %v3850 = vlaneseq
    %v3851 = vshrl.u32 %v3850, 7
    %v3852 = vsub.s32 0, %v3851
    %v3853 = vrot.slane %v3848, %v3852
    %v3855 = vadd.f32 %v3844, %v3853
    %v3856 = vadd.f32 %v3845, %v3853
    %v3857 = vadd.f32 %v3846, %v3853
    %v3858 = vadd.f32 %v3847, %v3853
    %v3859 = vld [vmem:[%s35] sm:$0x1]
    %v3860 = vld [vmem:[%s37] sm:$0x1]
    %v3861 = vsel %vm647, %v3855, 0.0
    %3862 = vadd.xlane.f32.xlu0 %v3861
    %v3863 = vpop.xlane.xlu0 %3862
    %v3864 = vsel %vm647, %v3856, 0.0
    %3865 = vadd.xlane.f32.xlu0 %v3864
    %v3866 = vpop.xlane.xlu0 %3865
    %v3867 = vsel %vm647, %v3857, 0.0
    %3868 = vadd.xlane.f32.xlu0 %v3867
    %v3869 = vpop.xlane.xlu0 %3868
    %v3870 = vsel %vm647, %v3858, 0.0
    %3871 = vadd.xlane.f32.xlu0 %v3870
    %v3872 = vpop.xlane.xlu0 %3871
    %v3873 = vmul.f32 %v3863, %v660
    %v3874 = vmul.f32 %v3866, %v660
    %v3875 = vmul.f32 %v3869, %v660
    %v3876 = vmul.f32 %v3872, %v660
    %v3877 = vsub.f32 %v3855, %v3873
    %v3878 = vsub.f32 %v3856, %v3874
    %v3879 = vsub.f32 %v3857, %v3875
    %v3880 = vsub.f32 %v3858, %v3876
    %v3881 = vmul.f32 %v3877, %v3877
    %v3882 = vmul.f32 %v3878, %v3878
    %v3883 = vmul.f32 %v3879, %v3879
    %v3884 = vmul.f32 %v3880, %v3880
    %v3885 = vsel %vm647, %v3881, 0.0
    %3886 = vadd.xlane.f32.xlu0 %v3885
    %v3887 = vpop.xlane.xlu0 %3886
    %v3888 = vsel %vm647, %v3882, 0.0
    %3889 = vadd.xlane.f32.xlu0 %v3888
    %v3890 = vpop.xlane.xlu0 %3889
    %v3891 = vsel %vm647, %v3883, 0.0
    %3892 = vadd.xlane.f32.xlu0 %v3891
    %v3893 = vpop.xlane.xlu0 %3892
    %v3894 = vsel %vm647, %v3884, 0.0
    %3895 = vadd.xlane.f32.xlu0 %v3894
    %v3896 = vpop.xlane.xlu0 %3895
    %v3897 = vmul.f32 %v3887, %v660
    %v3898 = vmul.f32 %v3890, %v660
    %v3899 = vmul.f32 %v3893, %v660
    %v3900 = vmul.f32 %v3896, %v660
    %v3901 = vadd.f32 %v3897, 1e-06
    %v3902 = vadd.f32 %v3898, 1e-06
    %v3903 = vadd.f32 %v3899, 1e-06
    %v3904 = vadd.f32 %v3900, 1e-06
    %v3905 = vrsqrt.pop %v3901
    %v3906 = vrsqrt.pop %v3902
    %v3907 = vrsqrt.pop %v3903
    %v3908 = vrsqrt.pop %v3904
    %v3909 = vmul.f32 %v3877, %v3905
    %v3910 = vmul.f32 %v3878, %v3906
    %v3911 = vmul.f32 %v3879, %v3907
    %v3912 = vmul.f32 %v3880, %v3908
    %v3914 = vlaneseq
    %v3915 = vshrl.u32 %v3914, 7
    %v3916 = vsub.s32 0, %v3915
    %v3917 = vrot.slane %v3859, %v3916
    %v3919 = vmul.f32 %v3909, %v3917
    %v3920 = vmul.f32 %v3910, %v3917
    %v3921 = vmul.f32 %v3911, %v3917
    %v3922 = vmul.f32 %v3912, %v3917
    %v3924 = vlaneseq
    %v3925 = vshrl.u32 %v3924, 7
    %v3926 = vsub.s32 0, %v3925
    %v3927 = vrot.slane %v3860, %v3926
    %v3929 = vadd.f32 %v3919, %v3927
    %v3930 = vadd.f32 %v3920, %v3927
    %v3931 = vadd.f32 %v3921, %v3927
    %v3932 = vadd.f32 %v3922, %v3927
    %v3933 = vld [vmem:[#allocation8] sm:$0xff]
    %v3934 = vld [vmem:[#allocation8 + $0x8] sm:$0xff]
    %v3935 = vld [vmem:[#allocation8 + $0x10] sm:$0xff]
    %v3936 = vld [vmem:[#allocation8 + $0x18] sm:$0xff]
    %v3937 = vld [vmem:[%s41] sm:$0x1]
    %v3939 = vlaneseq
    %v3940 = vshrl.u32 %v3939, 7
    %v3941 = vsub.s32 0, %v3940
    %v3942 = vrot.slane %v3937, %v3941
    %v3945 = vsel %vm647, %v3929, 0
    %v3948 = vsel %vm647, %v3930, 0
    %v3951 = vsel %vm647, %v3931, 0
    %v3954 = vsel %vm647, %v3932, 0
    %3956 = vmatprep.subr.mxu0 0.0
    %3957 = vmatpush1.msra.mxu0 %v3933
    %3958 = vmatprep.subr.mxu0 0.0
    %3959 = vmatpush1.msra.mxu0 %v3934
    %3960 = vmatprep.subr.mxu0 0.0
    %3961 = vmatpush1.msra.mxu0 %v3935
    %3962 = vmatprep.subr.mxu0 0.0
    %3963 = vmatpush1.msra.mxu0 %v3936
    %3964 = vmatprep.subr.mxu0 0.0
    %3965 = vmatpush1.msra.mxu0 0.0
    %3966 = vmatprep.subr.mxu0 0.0
    %3967 = vmatpush1.msra.mxu0 0.0
    %3968 = vmatprep.subr.mxu0 0.0
    %3969 = vmatpush1.msra.mxu0 0.0
    %3970 = vmatprep.subr.mxu0 0.0
    %3971 = vmatpush1.msra.mxu0 0.0
    %3972 = vmatprep.subr.mxu0 0.0
    %3973 = vmatpush1.msra.mxu0 0.0
    %3974 = vmatprep.subr.mxu0 0.0
    %3975 = vmatpush1.msra.mxu0 0.0
    %3976 = vmatprep.subr.mxu0 0.0
    %3977 = vmatpush1.msra.mxu0 0.0
    %3978 = vmatprep.subr.mxu0 0.0
    %3979 = vmatpush1.msra.mxu0 0.0
    %3980 = vmatprep.subr.mxu0 0.0
    %3981 = vmatpush1.msra.mxu0 0.0
    %3982 = vmatprep.subr.mxu0 0.0
    %3983 = vmatpush1.msra.mxu0 0.0
    %3984 = vmatprep.subr.mxu0 0.0
    %3985 = vmatpush1.msra.mxu0 0.0
    %3986 = vmatprep.subr.mxu0 0.0
    %3987 = vmatpush1.msra.mxu0 0.0
    %3988 = vmatprep.subr.mxu0 0.0
    %3989 = vmatpush1.msra.mxu0 0.0
    %3990 = vmatprep.subr.mxu0 0.0
    %3991 = vmatpush1.msra.mxu0 0.0
    %3992 = vmatprep.subr.mxu0 0.0
    %3993 = vmatpush1.msra.mxu0 0.0
    %3994 = vmatprep.subr.mxu0 0.0
    %3995 = vmatpush1.msra.mxu0 0.0
    %3996 = vmatprep.subr.mxu0 0.0
    %3997 = vmatpush1.msra.mxu0 0.0
    %3998 = vmatprep.subr.mxu0 0.0
    %3999 = vmatpush1.msra.mxu0 0.0
    %4000 = vmatprep.subr.mxu0 0.0
    %4001 = vmatpush1.msra.mxu0 0.0
    %4002 = vmatprep.subr.mxu0 0.0
    %4003 = vmatpush1.msra.mxu0 0.0
    %4004 = vmatprep.subr.mxu0 0.0
    %4005 = vmatpush1.msra.mxu0 0.0
    %4006 = vmatprep.subr.mxu0 0.0
    %4007 = vmatpush1.msra.mxu0 0.0
    %4008 = vmatprep.subr.mxu0 0.0
    %4009 = vmatpush1.msra.mxu0 0.0
    %4010 = vmatprep.subr.mxu0 0.0
    %4011 = vmatpush1.msra.mxu0 0.0
    %4012 = vmatprep.subr.mxu0 0.0
    %4013 = vmatpush1.msra.mxu0 0.0
    %4014 = vmatprep.subr.mxu0 0.0
    %4015 = vmatpush1.msra.mxu0 0.0
    %4016 = vmatprep.subr.mxu0 0.0
    %4017 = vmatpush1.msra.mxu0 0.0
    %4018 = vmatprep.subr.mxu0 0.0
    %4019 = vmatpush1.msra.mxu0 0.0
    %4020 = vmatprep.mubr.f32.mxu0 0.0
    %4021 = vmatmul.mubr.f32.gmra.mrb[0].mxu0 %v3945
    %v4022 = vpop.f32.mrb[0].mxu0
    %v4023 = vadd.f32 %v3942, %v4022
    %v4024 = vpop.f32.mrb[0].mxu0
    %4025 = vmatprep.mubr.f32.mxu0 0.0
    %4026 = vmatmul.mubr.f32.gmra.mrb[0].mxu0 %v3948
    %v4027 = vpop.f32.mrb[0].mxu0
    %v4028 = vadd.f32 %v3942, %v4027
    %v4029 = vpop.f32.mrb[0].mxu0
    %4030 = vmatprep.mubr.f32.mxu0 0.0
    %4031 = vmatmul.mubr.f32.gmra.mrb[0].mxu0 %v3951
    %v4032 = vpop.f32.mrb[0].mxu0
    %v4033 = vadd.f32 %v3942, %v4032
    %v4034 = vpop.f32.mrb[0].mxu0
    %4035 = vmatprep.mubr.f32.mxu0 0.0
    %4036 = vmatmul.mubr.f32.gmra.mrb[0].mxu0 %v3954
    %v4037 = vpop.f32.mrb[0].mxu0
    %v4038 = vadd.f32 %v3942, %v4037
    %v4039 = vpop.f32.mrb[0].mxu0
    %4040 = vdwg.mxu0
    %v4041 = vmul.f32 %v4023, 0.5
    %v4042 = vmul.f32 %v4028, 0.5
    %v4043 = vmul.f32 %v4033, 0.5
    %v4044 = vmul.f32 %v4038, 0.5
    %v4045 = vmul.f32 %v4023, 0.70710677
    %v4046 = vmul.f32 %v4028, 0.70710677
    %v4047 = vmul.f32 %v4033, 0.70710677
    %v4048 = vmul.f32 %v4038, 0.70710677
    %v4049 = verf.f32.pop %v4045
    %v4050 = verf.f32.pop %v4046
    %v4051 = verf.f32.pop %v4047
    %v4052 = verf.f32.pop %v4048
    %v4053 = vadd.f32 %v4049, 1.0
    %v4054 = vadd.f32 %v4050, 1.0
    %v4055 = vadd.f32 %v4051, 1.0
    %v4056 = vadd.f32 %v4052, 1.0
    %v4057 = vmul.f32 %v4041, %v4053
    %v4058 = vmul.f32 %v4042, %v4054
    %v4059 = vmul.f32 %v4043, %v4055
    %v4060 = vmul.f32 %v4044, %v4056
    %v4061 = vld [vmem:[%s43] sm:$0xff]
    %v4062 = vld [vmem:[%s43 + $0x8] sm:$0xff]
    %v4063 = vld [vmem:[%s43 + $0x10] sm:$0xff]
    %v4064 = vld [vmem:[%s43 + $0x18] sm:$0xff]
    %v4065 = vld [vmem:[%s43 + $0x20] sm:$0xff]
    %v4066 = vld [vmem:[%s43 + $0x28] sm:$0xff]
    %v4067 = vld [vmem:[%s43 + $0x30] sm:$0xff]
    %v4068 = vld [vmem:[%s43 + $0x38] sm:$0xff]
    %v4069 = vld [vmem:[%s43 + $0x40] sm:$0xff]
    %v4070 = vld [vmem:[%s43 + $0x48] sm:$0xff]
    %v4071 = vld [vmem:[%s43 + $0x50] sm:$0xff]
    %v4072 = vld [vmem:[%s43 + $0x58] sm:$0xff]
    %v4073 = vld [vmem:[%s43 + $0x60] sm:$0xff]
    %v4074 = vld [vmem:[%s43 + $0x68] sm:$0xff]
    %v4075 = vld [vmem:[%s43 + $0x70] sm:$0xff]
    %v4076 = vld [vmem:[%s43 + $0x78] sm:$0xff]
    %4077 = vmatprep.subr.mxu0 0.0
    %4078 = vmatpush1.msra.mxu0 %v4061
    %4079 = vmatprep.subr.mxu0 0.0
    %4080 = vmatpush1.msra.mxu0 %v4062
    %4081 = vmatprep.subr.mxu0 0.0
    %4082 = vmatpush1.msra.mxu0 %v4063
    %4083 = vmatprep.subr.mxu0 0.0
    %4084 = vmatpush1.msra.mxu0 %v4064
    %4085 = vmatprep.subr.mxu0 0.0
    %4086 = vmatpush1.msra.mxu0 %v4065
    %4087 = vmatprep.subr.mxu0 0.0
    %4088 = vmatpush1.msra.mxu0 %v4066
    %4089 = vmatprep.subr.mxu0 0.0
    %4090 = vmatpush1.msra.mxu0 %v4067
    %4091 = vmatprep.subr.mxu0 0.0
    %4092 = vmatpush1.msra.mxu0 %v4068
    %4093 = vmatprep.subr.mxu0 0.0
    %4094 = vmatpush1.msra.mxu0 %v4069
    %4095 = vmatprep.subr.mxu0 0.0
    %4096 = vmatpush1.msra.mxu0 %v4070
    %4097 = vmatprep.subr.mxu0 0.0
    %4098 = vmatpush1.msra.mxu0 %v4071
    %4099 = vmatprep.subr.mxu0 0.0
    %4100 = vmatpush1.msra.mxu0 %v4072
    %4101 = vmatprep.subr.mxu0 0.0
    %4102 = vmatpush1.msra.mxu0 %v4073
    %4103 = vmatprep.subr.mxu0 0.0
    %4104 = vmatpush1.msra.mxu0 %v4074
    %4105 = vmatprep.subr.mxu0 0.0
    %4106 = vmatpush1.msra.mxu0 %v4075
    %4107 = vmatprep.subr.mxu0 0.0
    %4108 = vmatpush1.msra.mxu0 %v4076
    %4109 = vmatprep.subr.mxu0 0.0
    %4110 = vmatpush1.msra.mxu0 0.0
    %4111 = vmatprep.subr.mxu0 0.0
    %4112 = vmatpush1.msra.mxu0 0.0
    %4113 = vmatprep.subr.mxu0 0.0
    %4114 = vmatpush1.msra.mxu0 0.0
    %4115 = vmatprep.subr.mxu0 0.0
    %4116 = vmatpush1.msra.mxu0 0.0
    %4117 = vmatprep.subr.mxu0 0.0
    %4118 = vmatpush1.msra.mxu0 0.0
    %4119 = vmatprep.subr.mxu0 0.0
    %4120 = vmatpush1.msra.mxu0 0.0
    %4121 = vmatprep.subr.mxu0 0.0
    %4122 = vmatpush1.msra.mxu0 0.0
    %4123 = vmatprep.subr.mxu0 0.0
    %4124 = vmatpush1.msra.mxu0 0.0
    %4125 = vmatprep.subr.mxu0 0.0
    %4126 = vmatpush1.msra.mxu0 0.0
    %4127 = vmatprep.subr.mxu0 0.0
    %4128 = vmatpush1.msra.mxu0 0.0
    %4129 = vmatprep.subr.mxu0 0.0
    %4130 = vmatpush1.msra.mxu0 0.0
    %4131 = vmatprep.subr.mxu0 0.0
    %4132 = vmatpush1.msra.mxu0 0.0
    %4133 = vmatprep.subr.mxu0 0.0
    %4134 = vmatpush1.msra.mxu0 0.0
    %4135 = vmatprep.subr.mxu0 0.0
    %4136 = vmatpush1.msra.mxu0 0.0
    %4137 = vmatprep.subr.mxu0 0.0
    %4138 = vmatpush1.msra.mxu0 0.0
    %4139 = vmatprep.subr.mxu0 0.0
    %4140 = vmatpush1.msra.mxu0 0.0
    %4141 = vmatprep.mubr.f32.mxu0 0.0
    %4142 = vmatmul.mubr.f32.gmra.mrb[0].mxu0 %v4057
    %v4143 = vpop.f32.mrb[0].mxu0
    %v4144 = vadd.f32 0.0, %v4143
    %v4145 = vpop.f32.mrb[0].mxu0
    %4146 = vmatprep.mubr.f32.mxu0 0.0
    %4147 = vmatmul.mubr.f32.gmra.mrb[0].mxu0 %v4058
    %v4148 = vpop.f32.mrb[0].mxu0
    %v4149 = vadd.f32 0.0, %v4148
    %v4150 = vpop.f32.mrb[0].mxu0
    %4151 = vmatprep.mubr.f32.mxu0 0.0
    %4152 = vmatmul.mubr.f32.gmra.mrb[0].mxu0 %v4059
    %v4153 = vpop.f32.mrb[0].mxu0
    %v4154 = vadd.f32 0.0, %v4153
    %v4155 = vpop.f32.mrb[0].mxu0
    %4156 = vmatprep.mubr.f32.mxu0 0.0
    %4157 = vmatmul.mubr.f32.gmra.mrb[0].mxu0 %v4060
    %v4158 = vpop.f32.mrb[0].mxu0
    %v4159 = vadd.f32 0.0, %v4158
    %v4160 = vpop.f32.mrb[0].mxu0
    %4161 = vdwg.mxu0
    %v4162 = vadd.f32 %v3855, %v4144
    %v4163 = vadd.f32 %v3856, %v4149
    %v4164 = vadd.f32 %v3857, %v4154
    %v4165 = vadd.f32 %v3858, %v4159
    %v4166 = vld [vmem:[%s45] sm:$0x1]
    %v4168 = vlaneseq
    %v4169 = vshrl.u32 %v4168, 7
    %v4170 = vsub.s32 0, %v4169
    %v4171 = vrot.slane %v4166, %v4170
    %v4173 = vadd.f32 %v4162, %v4171
    %v4174 = vadd.f32 %v4163, %v4171
    %v4175 = vadd.f32 %v4164, %v4171
    %v4176 = vadd.f32 %v4165, %v4171
    %v4177 = vld [vmem:[%s47] sm:$0x1]
    %v4178 = vld [vmem:[%s49] sm:$0x1]
    %v4179 = vsel %vm647, %v4173, 0.0
    %4180 = vadd.xlane.f32.xlu0 %v4179
    %v4181 = vpop.xlane.xlu0 %4180
    %v4182 = vsel %vm647, %v4174, 0.0
    %4183 = vadd.xlane.f32.xlu0 %v4182
    %v4184 = vpop.xlane.xlu0 %4183
    %v4185 = vsel %vm647, %v4175, 0.0
    %4186 = vadd.xlane.f32.xlu0 %v4185
    %v4187 = vpop.xlane.xlu0 %4186
    %v4188 = vsel %vm647, %v4176, 0.0
    %4189 = vadd.xlane.f32.xlu0 %v4188
    %v4190 = vpop.xlane.xlu0 %4189
    %v4191 = vmul.f32 %v4181, %v660
    %v4192 = vmul.f32 %v4184, %v660
    %v4193 = vmul.f32 %v4187, %v660
    %v4194 = vmul.f32 %v4190, %v660
    %v4195 = vsub.f32 %v4173, %v4191
    %v4196 = vsub.f32 %v4174, %v4192
    %v4197 = vsub.f32 %v4175, %v4193
    %v4198 = vsub.f32 %v4176, %v4194
    %v4199 = vmul.f32 %v4195, %v4195
    %v4200 = vmul.f32 %v4196, %v4196
    %v4201 = vmul.f32 %v4197, %v4197
    %v4202 = vmul.f32 %v4198, %v4198
    %v4203 = vsel %vm647, %v4199, 0.0
    %4204 = vadd.xlane.f32.xlu0 %v4203
    %v4205 = vpop.xlane.xlu0 %4204
    %v4206 = vsel %vm647, %v4200, 0.0
    %4207 = vadd.xlane.f32.xlu0 %v4206
    %v4208 = vpop.xlane.xlu0 %4207
    %v4209 = vsel %vm647, %v4201, 0.0
    %4210 = vadd.xlane.f32.xlu0 %v4209
    %v4211 = vpop.xlane.xlu0 %4210
    %v4212 = vsel %vm647, %v4202, 0.0
    %4213 = vadd.xlane.f32.xlu0 %v4212
    %v4214 = vpop.xlane.xlu0 %4213
    %v4215 = vmul.f32 %v4205, %v660
    %v4216 = vmul.f32 %v4208, %v660
    %v4217 = vmul.f32 %v4211, %v660
    %v4218 = vmul.f32 %v4214, %v660
    %v4219 = vadd.f32 %v4215, 1e-06
    %v4220 = vadd.f32 %v4216, 1e-06
    %v4221 = vadd.f32 %v4217, 1e-06
    %v4222 = vadd.f32 %v4218, 1e-06
    %v4223 = vrsqrt.pop %v4219
    %v4224 = vrsqrt.pop %v4220
    %v4225 = vrsqrt.pop %v4221
    %v4226 = vrsqrt.pop %v4222
    %v4227 = vmul.f32 %v4195, %v4223
    %v4228 = vmul.f32 %v4196, %v4224
    %v4229 = vmul.f32 %v4197, %v4225
    %v4230 = vmul.f32 %v4198, %v4226
    %v4232 = vlaneseq
    %v4233 = vshrl.u32 %v4232, 7
    %v4234 = vsub.s32 0, %v4233
    %v4235 = vrot.slane %v4177, %v4234
    %v4237 = vmul.f32 %v4227, %v4235
    %v4238 = vmul.f32 %v4228, %v4235
    %v4239 = vmul.f32 %v4229, %v4235
    %v4240 = vmul.f32 %v4230, %v4235
    %v4242 = vlaneseq
    %v4243 = vshrl.u32 %v4242, 7
    %v4244 = vsub.s32 0, %v4243
    %v4245 = vrot.slane %v4178, %v4244
    %v4247 = vadd.f32 %v4237, %v4245
    %v4248 = vadd.f32 %v4238, %v4245
    %v4249 = vadd.f32 %v4239, %v4245
    %v4250 = vadd.f32 %v4240, %v4245
    %v4251 = vld [vmem:[%s51] sm:$0xff]
    %v4252 = vld [vmem:[%s51 + $0x8] sm:$0xff]
    %v4253 = vld [vmem:[%s51 + $0x10] sm:$0xff]
    %v4254 = vld [vmem:[%s51 + $0x18] sm:$0xff]
    %v4255 = vld [vmem:[%s57] sm:$0x1]
    %v4257 = vlaneseq
    %v4258 = vshrl.u32 %v4257, 7
    %v4259 = vsub.s32 0, %v4258
    %v4260 = vrot.slane %v4255, %v4259
    %v4263 = vsel %vm647, %v4247, 0
    %v4266 = vsel %vm647, %v4248, 0
    %v4269 = vsel %vm647, %v4249, 0
    %v4272 = vsel %vm647, %v4250, 0
    %4274 = vmatprep.subr.mxu0 0.0
    %4275 = vmatpush1.msra.mxu0 %v4251
    %4276 = vmatprep.subr.mxu0 0.0
    %4277 = vmatpush1.msra.mxu0 %v4252
    %4278 = vmatprep.subr.mxu0 0.0
    %4279 = vmatpush1.msra.mxu0 %v4253
    %4280 = vmatprep.subr.mxu0 0.0
    %4281 = vmatpush1.msra.mxu0 %v4254
    %4282 = vmatprep.subr.mxu0 0.0
    %4283 = vmatpush1.msra.mxu0 0.0
    %4284 = vmatprep.subr.mxu0 0.0
    %4285 = vmatpush1.msra.mxu0 0.0
    %4286 = vmatprep.subr.mxu0 0.0
    %4287 = vmatpush1.msra.mxu0 0.0
    %4288 = vmatprep.subr.mxu0 0.0
    %4289 = vmatpush1.msra.mxu0 0.0
    %4290 = vmatprep.subr.mxu0 0.0
    %4291 = vmatpush1.msra.mxu0 0.0
    %4292 = vmatprep.subr.mxu0 0.0
    %4293 = vmatpush1.msra.mxu0 0.0
    %4294 = vmatprep.subr.mxu0 0.0
    %4295 = vmatpush1.msra.mxu0 0.0
    %4296 = vmatprep.subr.mxu0 0.0
    %4297 = vmatpush1.msra.mxu0 0.0
    %4298 = vmatprep.subr.mxu0 0.0
    %4299 = vmatpush1.msra.mxu0 0.0
    %4300 = vmatprep.subr.mxu0 0.0
    %4301 = vmatpush1.msra.mxu0 0.0
    %4302 = vmatprep.subr.mxu0 0.0
    %4303 = vmatpush1.msra.mxu0 0.0
    %4304 = vmatprep.subr.mxu0 0.0
    %4305 = vmatpush1.msra.mxu0 0.0
    %4306 = vmatprep.subr.mxu0 0.0
    %4307 = vmatpush1.msra.mxu0 0.0
    %4308 = vmatprep.subr.mxu0 0.0
    %4309 = vmatpush1.msra.mxu0 0.0
    %4310 = vmatprep.subr.mxu0 0.0
    %4311 = vmatpush1.msra.mxu0 0.0
    %4312 = vmatprep.subr.mxu0 0.0
    %4313 = vmatpush1.msra.mxu0 0.0
    %4314 = vmatprep.subr.mxu0 0.0
    %4315 = vmatpush1.msra.mxu0 0.0
    %4316 = vmatprep.subr.mxu0 0.0
    %4317 = vmatpush1.msra.mxu0 0.0
    %4318 = vmatprep.subr.mxu0 0.0
    %4319 = vmatpush1.msra.mxu0 0.0
    %4320 = vmatprep.subr.mxu0 0.0
    %4321 = vmatpush1.msra.mxu0 0.0
    %4322 = vmatprep.subr.mxu0 0.0
    %4323 = vmatpush1.msra.mxu0 0.0
    %4324 = vmatprep.subr.mxu0 0.0
    %4325 = vmatpush1.msra.mxu0 0.0
    %4326 = vmatprep.subr.mxu0 0.0
    %4327 = vmatpush1.msra.mxu0 0.0
    %4328 = vmatprep.subr.mxu0 0.0
    %4329 = vmatpush1.msra.mxu0 0.0
    %4330 = vmatprep.subr.mxu0 0.0
    %4331 = vmatpush1.msra.mxu0 0.0
    %4332 = vmatprep.subr.mxu0 0.0
    %4333 = vmatpush1.msra.mxu0 0.0
    %4334 = vmatprep.subr.mxu0 0.0
    %4335 = vmatpush1.msra.mxu0 0.0
    %4336 = vmatprep.subr.mxu0 0.0
    %4337 = vmatpush1.msra.mxu0 0.0
    %4338 = vmatprep.mubr.f32.mxu0 0.0
    %4339 = vmatmul.mubr.f32.gmra.mrb[0].mxu0 %v4263
    %v4340 = vpop.f32.mrb[0].mxu0
    %v4341 = vadd.f32 %v4260, %v4340
    %v4342 = vpop.f32.mrb[0].mxu0
    %4343 = vmatprep.mubr.f32.mxu0 0.0
    %4344 = vmatmul.mubr.f32.gmra.mrb[0].mxu0 %v4266
    %v4345 = vpop.f32.mrb[0].mxu0
    %v4346 = vadd.f32 %v4260, %v4345
    %v4347 = vpop.f32.mrb[0].mxu0
    %4348 = vmatprep.mubr.f32.mxu0 0.0
    %4349 = vmatmul.mubr.f32.gmra.mrb[0].mxu0 %v4269
    %v4350 = vpop.f32.mrb[0].mxu0
    %v4351 = vadd.f32 %v4260, %v4350
    %v4352 = vpop.f32.mrb[0].mxu0
    %4353 = vmatprep.mubr.f32.mxu0 0.0
    %4354 = vmatmul.mubr.f32.gmra.mrb[0].mxu0 %v4272
    %v4355 = vpop.f32.mrb[0].mxu0
    %v4356 = vadd.f32 %v4260, %v4355
    %v4357 = vpop.f32.mrb[0].mxu0
    %4358 = vdwg.mxu0
    %v4359 = vld [vmem:[%s53] sm:$0xff]
    %v4360 = vld [vmem:[%s53 + $0x8] sm:$0xff]
    %v4361 = vld [vmem:[%s53 + $0x10] sm:$0xff]
    %v4362 = vld [vmem:[%s53 + $0x18] sm:$0xff]
    %v4363 = vld [vmem:[%s59] sm:$0x1]
    %v4365 = vlaneseq
    %v4366 = vshrl.u32 %v4365, 7
    %v4367 = vsub.s32 0, %v4366
    %v4368 = vrot.slane %v4363, %v4367
    %4370 = vmatprep.subr.mxu0 0.0
    %4371 = vmatpush1.msra.mxu0 %v4359
    %4372 = vmatprep.subr.mxu0 0.0
    %4373 = vmatpush1.msra.mxu0 %v4360
    %4374 = vmatprep.subr.mxu0 0.0
    %4375 = vmatpush1.msra.mxu0 %v4361
    %4376 = vmatprep.subr.mxu0 0.0
    %4377 = vmatpush1.msra.mxu0 %v4362
    %4378 = vmatprep.subr.mxu0 0.0
    %4379 = vmatpush1.msra.mxu0 0.0
    %4380 = vmatprep.subr.mxu0 0.0
    %4381 = vmatpush1.msra.mxu0 0.0
    %4382 = vmatprep.subr.mxu0 0.0
    %4383 = vmatpush1.msra.mxu0 0.0
    %4384 = vmatprep.subr.mxu0 0.0
    %4385 = vmatpush1.msra.mxu0 0.0
    %4386 = vmatprep.subr.mxu0 0.0
    %4387 = vmatpush1.msra.mxu0 0.0
    %4388 = vmatprep.subr.mxu0 0.0
    %4389 = vmatpush1.msra.mxu0 0.0
    %4390 = vmatprep.subr.mxu0 0.0
    %4391 = vmatpush1.msra.mxu0 0.0
    %4392 = vmatprep.subr.mxu0 0.0
    %4393 = vmatpush1.msra.mxu0 0.0
    %4394 = vmatprep.subr.mxu0 0.0
    %4395 = vmatpush1.msra.mxu0 0.0
    %4396 = vmatprep.subr.mxu0 0.0
    %4397 = vmatpush1.msra.mxu0 0.0
    %4398 = vmatprep.subr.mxu0 0.0
    %4399 = vmatpush1.msra.mxu0 0.0
    %4400 = vmatprep.subr.mxu0 0.0
    %4401 = vmatpush1.msra.mxu0 0.0
    %4402 = vmatprep.subr.mxu0 0.0
    %4403 = vmatpush1.msra.mxu0 0.0
    %4404 = vmatprep.subr.mxu0 0.0
    %4405 = vmatpush1.msra.mxu0 0.0
    %4406 = vmatprep.subr.mxu0 0.0
    %4407 = vmatpush1.msra.mxu0 0.0
    %4408 = vmatprep.subr.mxu0 0.0
    %4409 = vmatpush1.msra.mxu0 0.0
    %4410 = vmatprep.subr.mxu0 0.0
    %4411 = vmatpush1.msra.mxu0 0.0
    %4412 = vmatprep.subr.mxu0 0.0
    %4413 = vmatpush1.msra.mxu0 0.0
    %4414 = vmatprep.subr.mxu0 0.0
    %4415 = vmatpush1.msra.mxu0 0.0
    %4416 = vmatprep.subr.mxu0 0.0
    %4417 = vmatpush1.msra.mxu0 0.0
    %4418 = vmatprep.subr.mxu0 0.0
    %4419 = vmatpush1.msra.mxu0 0.0
    %4420 = vmatprep.subr.mxu0 0.0
    %4421 = vmatpush1.msra.mxu0 0.0
    %4422 = vmatprep.subr.mxu0 0.0
    %4423 = vmatpush1.msra.mxu0 0.0
    %4424 = vmatprep.subr.mxu0 0.0
    %4425 = vmatpush1.msra.mxu0 0.0
    %4426 = vmatprep.subr.mxu0 0.0
    %4427 = vmatpush1.msra.mxu0 0.0
    %4428 = vmatprep.subr.mxu0 0.0
    %4429 = vmatpush1.msra.mxu0 0.0
    %4430 = vmatprep.subr.mxu0 0.0
    %4431 = vmatpush1.msra.mxu0 0.0
    %4432 = vmatprep.subr.mxu0 0.0
    %4433 = vmatpush1.msra.mxu0 0.0
    %4434 = vmatprep.mubr.f32.mxu0 0.0
    %4435 = vmatmul.mubr.f32.gmra.mrb[0].mxu0 %v4263
    %v4436 = vpop.f32.mrb[0].mxu0
    %v4437 = vadd.f32 %v4368, %v4436
    %v4438 = vpop.f32.mrb[0].mxu0
    %4439 = vmatprep.mubr.f32.mxu0 0.0
    %4440 = vmatmul.mubr.f32.gmra.mrb[0].mxu0 %v4266
    %v4441 = vpop.f32.mrb[0].mxu0
    %v4442 = vadd.f32 %v4368, %v4441
    %v4443 = vpop.f32.mrb[0].mxu0
    %4444 = vmatprep.mubr.f32.mxu0 0.0
    %4445 = vmatmul.mubr.f32.gmra.mrb[0].mxu0 %v4269
    %v4446 = vpop.f32.mrb[0].mxu0
    %v4447 = vadd.f32 %v4368, %v4446
    %v4448 = vpop.f32.mrb[0].mxu0
    %4449 = vmatprep.mubr.f32.mxu0 0.0
    %4450 = vmatmul.mubr.f32.gmra.mrb[0].mxu0 %v4272
    %v4451 = vpop.f32.mrb[0].mxu0
    %v4452 = vadd.f32 %v4368, %v4451
    %v4453 = vpop.f32.mrb[0].mxu0
    %4454 = vdwg.mxu0
    %v4455 = vld [vmem:[%s55] sm:$0xff]
    %v4456 = vld [vmem:[%s55 + $0x8] sm:$0xff]
    %v4457 = vld [vmem:[%s55 + $0x10] sm:$0xff]
    %v4458 = vld [vmem:[%s55 + $0x18] sm:$0xff]
    %v4459 = vld [vmem:[%s61] sm:$0x1]
    %v4461 = vlaneseq
    %v4462 = vshrl.u32 %v4461, 7
    %v4463 = vsub.s32 0, %v4462
    %v4464 = vrot.slane %v4459, %v4463
    %4466 = vmatprep.subr.mxu0 0.0
    %4467 = vmatpush1.msra.mxu0 %v4455
    %4468 = vmatprep.subr.mxu0 0.0
    %4469 = vmatpush1.msra.mxu0 %v4456
    %4470 = vmatprep.subr.mxu0 0.0
    %4471 = vmatpush1.msra.mxu0 %v4457
    %4472 = vmatprep.subr.mxu0 0.0
    %4473 = vmatpush1.msra.mxu0 %v4458
    %4474 = vmatprep.subr.mxu0 0.0
    %4475 = vmatpush1.msra.mxu0 0.0
    %4476 = vmatprep.subr.mxu0 0.0
    %4477 = vmatpush1.msra.mxu0 0.0
    %4478 = vmatprep.subr.mxu0 0.0
    %4479 = vmatpush1.msra.mxu0 0.0
    %4480 = vmatprep.subr.mxu0 0.0
    %4481 = vmatpush1.msra.mxu0 0.0
    %4482 = vmatprep.subr.mxu0 0.0
    %4483 = vmatpush1.msra.mxu0 0.0
    %4484 = vmatprep.subr.mxu0 0.0
    %4485 = vmatpush1.msra.mxu0 0.0
    %4486 = vmatprep.subr.mxu0 0.0
    %4487 = vmatpush1.msra.mxu0 0.0
    %4488 = vmatprep.subr.mxu0 0.0
    %4489 = vmatpush1.msra.mxu0 0.0
    %4490 = vmatprep.subr.mxu0 0.0
    %4491 = vmatpush1.msra.mxu0 0.0
    %4492 = vmatprep.subr.mxu0 0.0
    %4493 = vmatpush1.msra.mxu0 0.0
    %4494 = vmatprep.subr.mxu0 0.0
    %4495 = vmatpush1.msra.mxu0 0.0
    %4496 = vmatprep.subr.mxu0 0.0
    %4497 = vmatpush1.msra.mxu0 0.0
    %4498 = vmatprep.subr.mxu0 0.0
    %4499 = vmatpush1.msra.mxu0 0.0
    %4500 = vmatprep.subr.mxu0 0.0
    %4501 = vmatpush1.msra.mxu0 0.0
    %4502 = vmatprep.subr.mxu0 0.0
    %4503 = vmatpush1.msra.mxu0 0.0
    %4504 = vmatprep.subr.mxu0 0.0
    %4505 = vmatpush1.msra.mxu0 0.0
    %4506 = vmatprep.subr.mxu0 0.0
    %4507 = vmatpush1.msra.mxu0 0.0
    %4508 = vmatprep.subr.mxu0 0.0
    %4509 = vmatpush1.msra.mxu0 0.0
    %4510 = vmatprep.subr.mxu0 0.0
    %4511 = vmatpush1.msra.mxu0 0.0
    %4512 = vmatprep.subr.mxu0 0.0
    %4513 = vmatpush1.msra.mxu0 0.0
    %4514 = vmatprep.subr.mxu0 0.0
    %4515 = vmatpush1.msra.mxu0 0.0
    %4516 = vmatprep.subr.mxu0 0.0
    %4517 = vmatpush1.msra.mxu0 0.0
    %4518 = vmatprep.subr.mxu0 0.0
    %4519 = vmatpush1.msra.mxu0 0.0
    %4520 = vmatprep.subr.mxu0 0.0
    %4521 = vmatpush1.msra.mxu0 0.0
    %4522 = vmatprep.subr.mxu0 0.0
    %4523 = vmatpush1.msra.mxu0 0.0
    %4524 = vmatprep.subr.mxu0 0.0
    %4525 = vmatpush1.msra.mxu0 0.0
    %4526 = vmatprep.subr.mxu0 0.0
    %4527 = vmatpush1.msra.mxu0 0.0
    %4528 = vmatprep.subr.mxu0 0.0
    %4529 = vmatpush1.msra.mxu0 0.0
    %4530 = vmatprep.mubr.f32.mxu0 0.0
    %4531 = vmatmul.mubr.f32.gmra.mrb[0].mxu0 %v4263
    %v4532 = vpop.f32.mrb[0].mxu0
    %v4533 = vadd.f32 %v4464, %v4532
    %v4534 = vpop.f32.mrb[0].mxu0
    %4535 = vmatprep.mubr.f32.mxu0 0.0
    %4536 = vmatmul.mubr.f32.gmra.mrb[0].mxu0 %v4266
    %v4537 = vpop.f32.mrb[0].mxu0
    %v4538 = vadd.f32 %v4464, %v4537
    %v4539 = vpop.f32.mrb[0].mxu0
    %4540 = vmatprep.mubr.f32.mxu0 0.0
    %4541 = vmatmul.mubr.f32.gmra.mrb[0].mxu0 %v4269
    %v4542 = vpop.f32.mrb[0].mxu0
    %v4543 = vadd.f32 %v4464, %v4542
    %v4544 = vpop.f32.mrb[0].mxu0
    %4545 = vmatprep.mubr.f32.mxu0 0.0
    %4546 = vmatmul.mubr.f32.gmra.mrb[0].mxu0 %v4272
    %v4547 = vpop.f32.mrb[0].mxu0
    %v4548 = vadd.f32 %v4464, %v4547
    %v4549 = vpop.f32.mrb[0].mxu0
    %4550 = vdwg.mxu0
    %v4552 = vsel %vm1021, %v4341, 0
    %v4555 = vsel %vm1021, %v4346, 0
    %v4558 = vsel %vm1021, %v4437, 0
    %v4561 = vsel %vm1021, %v4442, 0
    %4563 = vmatprep.subr.mxu0 0.0
    %4564 = vmatpush1.xpose.msra.mxu0 %v4558
    %4565 = vmatprep.subr.mxu0 0.0
    %4566 = vmatpush1.xpose.msra.mxu0 %v4561
    %4567 = vmatprep.subr.mxu0 0.0
    %4568 = vmatpush1.xpose.msra.mxu0 0.0
    %4569 = vmatprep.subr.mxu0 0.0
    %4570 = vmatpush1.xpose.msra.mxu0 0.0
    %4571 = vmatprep.subr.mxu0 0.0
    %4572 = vmatpush1.xpose.msra.mxu0 0.0
    %4573 = vmatprep.subr.mxu0 0.0
    %4574 = vmatpush1.xpose.msra.mxu0 0.0
    %4575 = vmatprep.subr.mxu0 0.0
    %4576 = vmatpush1.xpose.msra.mxu0 0.0
    %4577 = vmatprep.subr.mxu0 0.0
    %4578 = vmatpush1.xpose.msra.mxu0 0.0
    %4579 = vmatprep.subr.mxu0 0.0
    %4580 = vmatpush1.xpose.msra.mxu0 0.0
    %4581 = vmatprep.subr.mxu0 0.0
    %4582 = vmatpush1.xpose.msra.mxu0 0.0
    %4583 = vmatprep.subr.mxu0 0.0
    %4584 = vmatpush1.xpose.msra.mxu0 0.0
    %4585 = vmatprep.subr.mxu0 0.0
    %4586 = vmatpush1.xpose.msra.mxu0 0.0
    %4587 = vmatprep.subr.mxu0 0.0
    %4588 = vmatpush1.xpose.msra.mxu0 0.0
    %4589 = vmatprep.subr.mxu0 0.0
    %4590 = vmatpush1.xpose.msra.mxu0 0.0
    %4591 = vmatprep.subr.mxu0 0.0
    %4592 = vmatpush1.xpose.msra.mxu0 0.0
    %4593 = vmatprep.subr.mxu0 0.0
    %4594 = vmatpush1.xpose.msra.mxu0 0.0
    %4595 = vmatprep.subr.mxu0 0.0
    %4596 = vmatpush1.xpose.msra.mxu0 0.0
    %4597 = vmatprep.subr.mxu0 0.0
    %4598 = vmatpush1.xpose.msra.mxu0 0.0
    %4599 = vmatprep.subr.mxu0 0.0
    %4600 = vmatpush1.xpose.msra.mxu0 0.0
    %4601 = vmatprep.subr.mxu0 0.0
    %4602 = vmatpush1.xpose.msra.mxu0 0.0
    %4603 = vmatprep.subr.mxu0 0.0
    %4604 = vmatpush1.xpose.msra.mxu0 0.0
    %4605 = vmatprep.subr.mxu0 0.0
    %4606 = vmatpush1.xpose.msra.mxu0 0.0
    %4607 = vmatprep.subr.mxu0 0.0
    %4608 = vmatpush1.xpose.msra.mxu0 0.0
    %4609 = vmatprep.subr.mxu0 0.0
    %4610 = vmatpush1.xpose.msra.mxu0 0.0
    %4611 = vmatprep.subr.mxu0 0.0
    %4612 = vmatpush1.xpose.msra.mxu0 0.0
    %4613 = vmatprep.subr.mxu0 0.0
    %4614 = vmatpush1.xpose.msra.mxu0 0.0
    %4615 = vmatprep.subr.mxu0 0.0
    %4616 = vmatpush1.xpose.msra.mxu0 0.0
    %4617 = vmatprep.subr.mxu0 0.0
    %4618 = vmatpush1.xpose.msra.mxu0 0.0
    %4619 = vmatprep.subr.mxu0 0.0
    %4620 = vmatpush1.xpose.msra.mxu0 0.0
    %4621 = vmatprep.subr.mxu0 0.0
    %4622 = vmatpush1.xpose.msra.mxu0 0.0
    %4623 = vmatprep.subr.mxu0 0.0
    %4624 = vmatpush1.xpose.msra.mxu0 0.0
    %4625 = vmatprep.subr.mxu0 0.0
    %4626 = vmatpush1.xpose.msra.mxu0 0.0
    %4627 = vmatprep.mubr.f32.mxu0 0.0
    %4628 = vmatmul.mubr.f32.gmra.mrb[0].mxu0 %v4552
    %v4629 = vpop.f32.mrb[0].mxu0
    %v4630 = vadd.f32 0.0, %v4629
    %v4631 = vpop.f32.mrb[0].mxu0
    %4632 = vmatprep.mubr.f32.mxu0 0.0
    %4633 = vmatmul.mubr.f32.gmra.mrb[0].mxu0 %v4555
    %v4634 = vpop.f32.mrb[0].mxu0
    %v4635 = vadd.f32 0.0, %v4634
    %v4636 = vpop.f32.mrb[0].mxu0
    %4637 = vdwg.mxu0
    %v4638 = vmul.f32 %v4630, 0.35355338
    %v4639 = vmul.f32 %v4635, 0.35355338
    %v4640 = vsel %vm1111, %v4638, -inf
    %4641 = vmax.xlane.f32.xlu0 %v4640
    %v4642 = vpop.xlane.xlu0 %4641
    %v4643 = vsel %vm1111, %v4639, -inf
    %4644 = vmax.xlane.f32.xlu0 %v4643
    %v4645 = vpop.xlane.xlu0 %4644
    %v4646 = vsub.f32 %v4638, %v4642
    %v4647 = vsub.f32 %v4639, %v4645
    %v4648 = vmul.f32 %v4646, 1.442695
    %v4649 = vpow.pop %v4648
    %v4650 = vmul.f32 %v4647, 1.442695
    %v4651 = vpow.pop %v4650
    %v4652 = vsel %vm1111, %v4649, 0.0
    %4653 = vadd.xlane.f32.xlu0 %v4652
    %v4654 = vpop.xlane.xlu0 %4653
    %v4655 = vsel %vm1111, %v4651, 0.0
    %4656 = vadd.xlane.f32.xlu0 %v4655
    %v4657 = vpop.xlane.xlu0 %4656
    %v4658 = vrcp.pop %v4654
    %v4659 = vrcp.pop %v4657
    %v4660 = vmul.f32 %v4649, %v4658
    %v4661 = vmul.f32 %v4651, %v4659
    %v4663 = vsel %vm1111, %v4660, 0
    %v4666 = vsel %vm1111, %v4661, 0
    %4668 = vmatprep.subr.mxu0 0.0
    %4669 = vmatpush1.msra.mxu0 %v4533
    %4670 = vmatprep.subr.mxu0 0.0
    %4671 = vmatpush1.msra.mxu0 %v4538
    %4672 = vmatprep.subr.mxu0 0.0
    %4673 = vmatpush1.msra.mxu0 0.0
    %4674 = vmatprep.subr.mxu0 0.0
    %4675 = vmatpush1.msra.mxu0 0.0
    %4676 = vmatprep.subr.mxu0 0.0
    %4677 = vmatpush1.msra.mxu0 0.0
    %4678 = vmatprep.subr.mxu0 0.0
    %4679 = vmatpush1.msra.mxu0 0.0
    %4680 = vmatprep.subr.mxu0 0.0
    %4681 = vmatpush1.msra.mxu0 0.0
    %4682 = vmatprep.subr.mxu0 0.0
    %4683 = vmatpush1.msra.mxu0 0.0
    %4684 = vmatprep.subr.mxu0 0.0
    %4685 = vmatpush1.msra.mxu0 0.0
    %4686 = vmatprep.subr.mxu0 0.0
    %4687 = vmatpush1.msra.mxu0 0.0
    %4688 = vmatprep.subr.mxu0 0.0
    %4689 = vmatpush1.msra.mxu0 0.0
    %4690 = vmatprep.subr.mxu0 0.0
    %4691 = vmatpush1.msra.mxu0 0.0
    %4692 = vmatprep.subr.mxu0 0.0
    %4693 = vmatpush1.msra.mxu0 0.0
    %4694 = vmatprep.subr.mxu0 0.0
    %4695 = vmatpush1.msra.mxu0 0.0
    %4696 = vmatprep.subr.mxu0 0.0
    %4697 = vmatpush1.msra.mxu0 0.0
    %4698 = vmatprep.subr.mxu0 0.0
    %4699 = vmatpush1.msra.mxu0 0.0
    %4700 = vmatprep.subr.mxu0 0.0
    %4701 = vmatpush1.msra.mxu0 0.0
    %4702 = vmatprep.subr.mxu0 0.0
    %4703 = vmatpush1.msra.mxu0 0.0
    %4704 = vmatprep.subr.mxu0 0.0
    %4705 = vmatpush1.msra.mxu0 0.0
    %4706 = vmatprep.subr.mxu0 0.0
    %4707 = vmatpush1.msra.mxu0 0.0
    %4708 = vmatprep.subr.mxu0 0.0
    %4709 = vmatpush1.msra.mxu0 0.0
    %4710 = vmatprep.subr.mxu0 0.0
    %4711 = vmatpush1.msra.mxu0 0.0
    %4712 = vmatprep.subr.mxu0 0.0
    %4713 = vmatpush1.msra.mxu0 0.0
    %4714 = vmatprep.subr.mxu0 0.0
    %4715 = vmatpush1.msra.mxu0 0.0
    %4716 = vmatprep.subr.mxu0 0.0
    %4717 = vmatpush1.msra.mxu0 0.0
    %4718 = vmatprep.subr.mxu0 0.0
    %4719 = vmatpush1.msra.mxu0 0.0
    %4720 = vmatprep.subr.mxu0 0.0
    %4721 = vmatpush1.msra.mxu0 0.0
    %4722 = vmatprep.subr.mxu0 0.0
    %4723 = vmatpush1.msra.mxu0 0.0
    %4724 = vmatprep.subr.mxu0 0.0
    %4725 = vmatpush1.msra.mxu0 0.0
    %4726 = vmatprep.subr.mxu0 0.0
    %4727 = vmatpush1.msra.mxu0 0.0
    %4728 = vmatprep.subr.mxu0 0.0
    %4729 = vmatpush1.msra.mxu0 0.0
    %4730 = vmatprep.subr.mxu0 0.0
    %4731 = vmatpush1.msra.mxu0 0.0
    %4732 = vmatprep.mubr.f32.mxu0 0.0
    %4733 = vmatmul.mubr.f32.gmra.mrb[0].mxu0 %v4663
    %v4734 = vpop.f32.mrb[0].mxu0
    %v4735 = vadd.f32 0.0, %v4734
    %v4736 = vpop.f32.mrb[0].mxu0
    %4737 = vmatprep.mubr.f32.mxu0 0.0
    %4738 = vmatmul.mubr.f32.gmra.mrb[0].mxu0 %v4666
    %v4739 = vpop.f32.mrb[0].mxu0
    %v4740 = vadd.f32 0.0, %v4739
    %v4741 = vpop.f32.mrb[0].mxu0
    %4742 = vdwg.mxu0
    %v4744 = vsel %vm1021, %v4351, 0
    %v4747 = vsel %vm1021, %v4356, 0
    %v4750 = vsel %vm1021, %v4447, 0
    %v4753 = vsel %vm1021, %v4452, 0
    %4755 = vmatprep.subr.mxu0 0.0
    %4756 = vmatpush1.xpose.msra.mxu0 %v4750
    %4757 = vmatprep.subr.mxu0 0.0
    %4758 = vmatpush1.xpose.msra.mxu0 %v4753
    %4759 = vmatprep.subr.mxu0 0.0
    %4760 = vmatpush1.xpose.msra.mxu0 0.0
    %4761 = vmatprep.subr.mxu0 0.0
    %4762 = vmatpush1.xpose.msra.mxu0 0.0
    %4763 = vmatprep.subr.mxu0 0.0
    %4764 = vmatpush1.xpose.msra.mxu0 0.0
    %4765 = vmatprep.subr.mxu0 0.0
    %4766 = vmatpush1.xpose.msra.mxu0 0.0
    %4767 = vmatprep.subr.mxu0 0.0
    %4768 = vmatpush1.xpose.msra.mxu0 0.0
    %4769 = vmatprep.subr.mxu0 0.0
    %4770 = vmatpush1.xpose.msra.mxu0 0.0
    %4771 = vmatprep.subr.mxu0 0.0
    %4772 = vmatpush1.xpose.msra.mxu0 0.0
    %4773 = vmatprep.subr.mxu0 0.0
    %4774 = vmatpush1.xpose.msra.mxu0 0.0
    %4775 = vmatprep.subr.mxu0 0.0
    %4776 = vmatpush1.xpose.msra.mxu0 0.0
    %4777 = vmatprep.subr.mxu0 0.0
    %4778 = vmatpush1.xpose.msra.mxu0 0.0
    %4779 = vmatprep.subr.mxu0 0.0
    %4780 = vmatpush1.xpose.msra.mxu0 0.0
    %4781 = vmatprep.subr.mxu0 0.0
    %4782 = vmatpush1.xpose.msra.mxu0 0.0
    %4783 = vmatprep.subr.mxu0 0.0
    %4784 = vmatpush1.xpose.msra.mxu0 0.0
    %4785 = vmatprep.subr.mxu0 0.0
    %4786 = vmatpush1.xpose.msra.mxu0 0.0
    %4787 = vmatprep.subr.mxu0 0.0
    %4788 = vmatpush1.xpose.msra.mxu0 0.0
    %4789 = vmatprep.subr.mxu0 0.0
    %4790 = vmatpush1.xpose.msra.mxu0 0.0
    %4791 = vmatprep.subr.mxu0 0.0
    %4792 = vmatpush1.xpose.msra.mxu0 0.0
    %4793 = vmatprep.subr.mxu0 0.0
    %4794 = vmatpush1.xpose.msra.mxu0 0.0
    %4795 = vmatprep.subr.mxu0 0.0
    %4796 = vmatpush1.xpose.msra.mxu0 0.0
    %4797 = vmatprep.subr.mxu0 0.0
    %4798 = vmatpush1.xpose.msra.mxu0 0.0
    %4799 = vmatprep.subr.mxu0 0.0
    %4800 = vmatpush1.xpose.msra.mxu0 0.0
    %4801 = vmatprep.subr.mxu0 0.0
    %4802 = vmatpush1.xpose.msra.mxu0 0.0
    %4803 = vmatprep.subr.mxu0 0.0
    %4804 = vmatpush1.xpose.msra.mxu0 0.0
    %4805 = vmatprep.subr.mxu0 0.0
    %4806 = vmatpush1.xpose.msra.mxu0 0.0
    %4807 = vmatprep.subr.mxu0 0.0
    %4808 = vmatpush1.xpose.msra.mxu0 0.0
    %4809 = vmatprep.subr.mxu0 0.0
    %4810 = vmatpush1.xpose.msra.mxu0 0.0
    %4811 = vmatprep.subr.mxu0 0.0
    %4812 = vmatpush1.xpose.msra.mxu0 0.0
    %4813 = vmatprep.subr.mxu0 0.0
    %4814 = vmatpush1.xpose.msra.mxu0 0.0
    %4815 = vmatprep.subr.mxu0 0.0
    %4816 = vmatpush1.xpose.msra.mxu0 0.0
    %4817 = vmatprep.subr.mxu0 0.0
    %4818 = vmatpush1.xpose.msra.mxu0 0.0
    %4819 = vmatprep.mubr.f32.mxu0 0.0
    %4820 = vmatmul.mubr.f32.gmra.mrb[0].mxu0 %v4744
    %v4821 = vpop.f32.mrb[0].mxu0
    %v4822 = vadd.f32 0.0, %v4821
    %v4823 = vpop.f32.mrb[0].mxu0
    %4824 = vmatprep.mubr.f32.mxu0 0.0
    %4825 = vmatmul.mubr.f32.gmra.mrb[0].mxu0 %v4747
    %v4826 = vpop.f32.mrb[0].mxu0
    %v4827 = vadd.f32 0.0, %v4826
    %v4828 = vpop.f32.mrb[0].mxu0
    %4829 = vdwg.mxu0
    %v4830 = vmul.f32 %v4822, 0.35355338
    %v4831 = vmul.f32 %v4827, 0.35355338
    %v4832 = vsel %vm1111, %v4830, -inf
    %4833 = vmax.xlane.f32.xlu0 %v4832
    %v4834 = vpop.xlane.xlu0 %4833
    %v4835 = vsel %vm1111, %v4831, -inf
    %4836 = vmax.xlane.f32.xlu0 %v4835
    %v4837 = vpop.xlane.xlu0 %4836
    %v4838 = vsub.f32 %v4830, %v4834
    %v4839 = vsub.f32 %v4831, %v4837
    %v4840 = vmul.f32 %v4838, 1.442695
    %v4841 = vpow.pop %v4840
    %v4842 = vmul.f32 %v4839, 1.442695
    %v4843 = vpow.pop %v4842
    %v4844 = vsel %vm1111, %v4841, 0.0
    %4845 = vadd.xlane.f32.xlu0 %v4844
    %v4846 = vpop.xlane.xlu0 %4845
    %v4847 = vsel %vm1111, %v4843, 0.0
    %4848 = vadd.xlane.f32.xlu0 %v4847
    %v4849 = vpop.xlane.xlu0 %4848
    %v4850 = vrcp.pop %v4846
    %v4851 = vrcp.pop %v4849
    %v4852 = vmul.f32 %v4841, %v4850
    %v4853 = vmul.f32 %v4843, %v4851
    %v4855 = vsel %vm1111, %v4852, 0
    %v4858 = vsel %vm1111, %v4853, 0
    %4860 = vmatprep.subr.mxu0 0.0
    %4861 = vmatpush1.msra.mxu0 %v4543
    %4862 = vmatprep.subr.mxu0 0.0
    %4863 = vmatpush1.msra.mxu0 %v4548
    %4864 = vmatprep.subr.mxu0 0.0
    %4865 = vmatpush1.msra.mxu0 0.0
    %4866 = vmatprep.subr.mxu0 0.0
    %4867 = vmatpush1.msra.mxu0 0.0
    %4868 = vmatprep.subr.mxu0 0.0
    %4869 = vmatpush1.msra.mxu0 0.0
    %4870 = vmatprep.subr.mxu0 0.0
    %4871 = vmatpush1.msra.mxu0 0.0
    %4872 = vmatprep.subr.mxu0 0.0
    %4873 = vmatpush1.msra.mxu0 0.0
    %4874 = vmatprep.subr.mxu0 0.0
    %4875 = vmatpush1.msra.mxu0 0.0
    %4876 = vmatprep.subr.mxu0 0.0
    %4877 = vmatpush1.msra.mxu0 0.0
    %4878 = vmatprep.subr.mxu0 0.0
    %4879 = vmatpush1.msra.mxu0 0.0
    %4880 = vmatprep.subr.mxu0 0.0
    %4881 = vmatpush1.msra.mxu0 0.0
    %4882 = vmatprep.subr.mxu0 0.0
    %4883 = vmatpush1.msra.mxu0 0.0
    %4884 = vmatprep.subr.mxu0 0.0
    %4885 = vmatpush1.msra.mxu0 0.0
    %4886 = vmatprep.subr.mxu0 0.0
    %4887 = vmatpush1.msra.mxu0 0.0
    %4888 = vmatprep.subr.mxu0 0.0
    %4889 = vmatpush1.msra.mxu0 0.0
    %4890 = vmatprep.subr.mxu0 0.0
    %4891 = vmatpush1.msra.mxu0 0.0
    %4892 = vmatprep.subr.mxu0 0.0
    %4893 = vmatpush1.msra.mxu0 0.0
    %4894 = vmatprep.subr.mxu0 0.0
    %4895 = vmatpush1.msra.mxu0 0.0
    %4896 = vmatprep.subr.mxu0 0.0
    %4897 = vmatpush1.msra.mxu0 0.0
    %4898 = vmatprep.subr.mxu0 0.0
    %4899 = vmatpush1.msra.mxu0 0.0
    %4900 = vmatprep.subr.mxu0 0.0
    %4901 = vmatpush1.msra.mxu0 0.0
    %4902 = vmatprep.subr.mxu0 0.0
    %4903 = vmatpush1.msra.mxu0 0.0
    %4904 = vmatprep.subr.mxu0 0.0
    %4905 = vmatpush1.msra.mxu0 0.0
    %4906 = vmatprep.subr.mxu0 0.0
    %4907 = vmatpush1.msra.mxu0 0.0
    %4908 = vmatprep.subr.mxu0 0.0
    %4909 = vmatpush1.msra.mxu0 0.0
    %4910 = vmatprep.subr.mxu0 0.0
    %4911 = vmatpush1.msra.mxu0 0.0
    %4912 = vmatprep.subr.mxu0 0.0
    %4913 = vmatpush1.msra.mxu0 0.0
    %4914 = vmatprep.subr.mxu0 0.0
    %4915 = vmatpush1.msra.mxu0 0.0
    %4916 = vmatprep.subr.mxu0 0.0
    %4917 = vmatpush1.msra.mxu0 0.0
    %4918 = vmatprep.subr.mxu0 0.0
    %4919 = vmatpush1.msra.mxu0 0.0
    %4920 = vmatprep.subr.mxu0 0.0
    %4921 = vmatpush1.msra.mxu0 0.0
    %4922 = vmatprep.subr.mxu0 0.0
    %4923 = vmatpush1.msra.mxu0 0.0
    %4924 = vmatprep.mubr.f32.mxu0 0.0
    %4925 = vmatmul.mubr.f32.gmra.mrb[0].mxu0 %v4855
    %v4926 = vpop.f32.mrb[0].mxu0
    %v4927 = vadd.f32 0.0, %v4926
    %v4928 = vpop.f32.mrb[0].mxu0
    %4929 = vmatprep.mubr.f32.mxu0 0.0
    %4930 = vmatmul.mubr.f32.gmra.mrb[0].mxu0 %v4858
    %v4931 = vpop.f32.mrb[0].mxu0
    %v4932 = vadd.f32 0.0, %v4931
    %v4933 = vpop.f32.mrb[0].mxu0
    %4934 = vdwg.mxu0
    %v4935 = vld [vmem:[%s63] sm:$0xff]
    %s4936 = scalar_lea.vmem %s51, 32
    %v4937 = vld [vmem:[%s4936] sm:$0xff]
    %v4938 = vld [vmem:[%s4936 + $0x8] sm:$0xff]
    %v4939 = vld [vmem:[%s4936 + $0x10] sm:$0xff]
    %v4940 = vld [vmem:[%s4936 + $0x18] sm:$0xff]
    %s4941 = scalar_lea.vmem %s57, 1
    %v4942 = vld [vmem:[%s4941] sm:$0x1]
    %v4944 = vlaneseq
    %v4945 = vshrl.u32 %v4944, 7
    %v4946 = vsub.s32 0, %v4945
    %v4947 = vrot.slane %v4942, %v4946
    %4949 = vmatprep.subr.mxu0 0.0
    %4950 = vmatpush1.msra.mxu0 %v4937
    %4951 = vmatprep.subr.mxu0 0.0
    %4952 = vmatpush1.msra.mxu0 %v4938
    %4953 = vmatprep.subr.mxu0 0.0
    %4954 = vmatpush1.msra.mxu0 %v4939
    %4955 = vmatprep.subr.mxu0 0.0
    %4956 = vmatpush1.msra.mxu0 %v4940
    %4957 = vmatprep.subr.mxu0 0.0
    %4958 = vmatpush1.msra.mxu0 0.0
    %4959 = vmatprep.subr.mxu0 0.0
    %4960 = vmatpush1.msra.mxu0 0.0
    %4961 = vmatprep.subr.mxu0 0.0
    %4962 = vmatpush1.msra.mxu0 0.0
    %4963 = vmatprep.subr.mxu0 0.0
    %4964 = vmatpush1.msra.mxu0 0.0
    %4965 = vmatprep.subr.mxu0 0.0
    %4966 = vmatpush1.msra.mxu0 0.0
    %4967 = vmatprep.subr.mxu0 0.0
    %4968 = vmatpush1.msra.mxu0 0.0
    %4969 = vmatprep.subr.mxu0 0.0
    %4970 = vmatpush1.msra.mxu0 0.0
    %4971 = vmatprep.subr.mxu0 0.0
    %4972 = vmatpush1.msra.mxu0 0.0
    %4973 = vmatprep.subr.mxu0 0.0
    %4974 = vmatpush1.msra.mxu0 0.0
    %4975 = vmatprep.subr.mxu0 0.0
    %4976 = vmatpush1.msra.mxu0 0.0
    %4977 = vmatprep.subr.mxu0 0.0
    %4978 = vmatpush1.msra.mxu0 0.0
    %4979 = vmatprep.subr.mxu0 0.0
    %4980 = vmatpush1.msra.mxu0 0.0
    %4981 = vmatprep.subr.mxu0 0.0
    %4982 = vmatpush1.msra.mxu0 0.0
    %4983 = vmatprep.subr.mxu0 0.0
    %4984 = vmatpush1.msra.mxu0 0.0
    %4985 = vmatprep.subr.mxu0 0.0
    %4986 = vmatpush1.msra.mxu0 0.0
    %4987 = vmatprep.subr.mxu0 0.0
    %4988 = vmatpush1.msra.mxu0 0.0
    %4989 = vmatprep.subr.mxu0 0.0
    %4990 = vmatpush1.msra.mxu0 0.0
    %4991 = vmatprep.subr.mxu0 0.0
    %4992 = vmatpush1.msra.mxu0 0.0
    %4993 = vmatprep.subr.mxu0 0.0
    %4994 = vmatpush1.msra.mxu0 0.0
    %4995 = vmatprep.subr.mxu0 0.0
    %4996 = vmatpush1.msra.mxu0 0.0
    %4997 = vmatprep.subr.mxu0 0.0
    %4998 = vmatpush1.msra.mxu0 0.0
    %4999 = vmatprep.subr.mxu0 0.0
    %5000 = vmatpush1.msra.mxu0 0.0
    %5001 = vmatprep.subr.mxu0 0.0
    %5002 = vmatpush1.msra.mxu0 0.0
    %5003 = vmatprep.subr.mxu0 0.0
    %5004 = vmatpush1.msra.mxu0 0.0
    %5005 = vmatprep.subr.mxu0 0.0
    %5006 = vmatpush1.msra.mxu0 0.0
    %5007 = vmatprep.subr.mxu0 0.0
    %5008 = vmatpush1.msra.mxu0 0.0
    %5009 = vmatprep.subr.mxu0 0.0
    %5010 = vmatpush1.msra.mxu0 0.0
    %5011 = vmatprep.subr.mxu0 0.0
    %5012 = vmatpush1.msra.mxu0 0.0
    %5013 = vmatprep.mubr.f32.mxu0 0.0
    %5014 = vmatmul.mubr.f32.gmra.mrb[0].mxu0 %v4263
    %v5015 = vpop.f32.mrb[0].mxu0
    %v5016 = vadd.f32 %v4947, %v5015
    %v5017 = vpop.f32.mrb[0].mxu0
    %5018 = vmatprep.mubr.f32.mxu0 0.0
    %5019 = vmatmul.mubr.f32.gmra.mrb[0].mxu0 %v4266
    %v5020 = vpop.f32.mrb[0].mxu0
    %v5021 = vadd.f32 %v4947, %v5020
    %v5022 = vpop.f32.mrb[0].mxu0
    %5023 = vmatprep.mubr.f32.mxu0 0.0
    %5024 = vmatmul.mubr.f32.gmra.mrb[0].mxu0 %v4269
    %v5025 = vpop.f32.mrb[0].mxu0
    %v5026 = vadd.f32 %v4947, %v5025
    %v5027 = vpop.f32.mrb[0].mxu0
    %5028 = vmatprep.mubr.f32.mxu0 0.0
    %5029 = vmatmul.mubr.f32.gmra.mrb[0].mxu0 %v4272
    %v5030 = vpop.f32.mrb[0].mxu0
    %v5031 = vadd.f32 %v4947, %v5030
    %v5032 = vpop.f32.mrb[0].mxu0
    %5033 = vdwg.mxu0
    %s5034 = scalar_lea.vmem %s53, 32
    %v5035 = vld [vmem:[%s5034] sm:$0xff]
    %v5036 = vld [vmem:[%s5034 + $0x8] sm:$0xff]
    %v5037 = vld [vmem:[%s5034 + $0x10] sm:$0xff]
    %v5038 = vld [vmem:[%s5034 + $0x18] sm:$0xff]
    %s5039 = scalar_lea.vmem %s59, 1
    %v5040 = vld [vmem:[%s5039] sm:$0x1]
    %v5042 = vlaneseq
    %v5043 = vshrl.u32 %v5042, 7
    %v5044 = vsub.s32 0, %v5043
    %v5045 = vrot.slane %v5040, %v5044
    %5047 = vmatprep.subr.mxu0 0.0
    %5048 = vmatpush1.msra.mxu0 %v5035
    %5049 = vmatprep.subr.mxu0 0.0
    %5050 = vmatpush1.msra.mxu0 %v5036
    %5051 = vmatprep.subr.mxu0 0.0
    %5052 = vmatpush1.msra.mxu0 %v5037
    %5053 = vmatprep.subr.mxu0 0.0
    %5054 = vmatpush1.msra.mxu0 %v5038
    %5055 = vmatprep.subr.mxu0 0.0
    %5056 = vmatpush1.msra.mxu0 0.0
    %5057 = vmatprep.subr.mxu0 0.0
    %5058 = vmatpush1.msra.mxu0 0.0
    %5059 = vmatprep.subr.mxu0 0.0
    %5060 = vmatpush1.msra.mxu0 0.0
    %5061 = vmatprep.subr.mxu0 0.0
    %5062 = vmatpush1.msra.mxu0 0.0
    %5063 = vmatprep.subr.mxu0 0.0
    %5064 = vmatpush1.msra.mxu0 0.0
    %5065 = vmatprep.subr.mxu0 0.0
    %5066 = vmatpush1.msra.mxu0 0.0
    %5067 = vmatprep.subr.mxu0 0.0
    %5068 = vmatpush1.msra.mxu0 0.0
    %5069 = vmatprep.subr.mxu0 0.0
    %5070 = vmatpush1.msra.mxu0 0.0
    %5071 = vmatprep.subr.mxu0 0.0
    %5072 = vmatpush1.msra.mxu0 0.0
    %5073 = vmatprep.subr.mxu0 0.0
    %5074 = vmatpush1.msra.mxu0 0.0
    %5075 = vmatprep.subr.mxu0 0.0
    %5076 = vmatpush1.msra.mxu0 0.0
    %5077 = vmatprep.subr.mxu0 0.0
    %5078 = vmatpush1.msra.mxu0 0.0
    %5079 = vmatprep.subr.mxu0 0.0
    %5080 = vmatpush1.msra.mxu0 0.0
    %5081 = vmatprep.subr.mxu0 0.0
    %5082 = vmatpush1.msra.mxu0 0.0
    %5083 = vmatprep.subr.mxu0 0.0
    %5084 = vmatpush1.msra.mxu0 0.0
    %5085 = vmatprep.subr.mxu0 0.0
    %5086 = vmatpush1.msra.mxu0 0.0
    %5087 = vmatprep.subr.mxu0 0.0
    %5088 = vmatpush1.msra.mxu0 0.0
    %5089 = vmatprep.subr.mxu0 0.0
    %5090 = vmatpush1.msra.mxu0 0.0
    %5091 = vmatprep.subr.mxu0 0.0
    %5092 = vmatpush1.msra.mxu0 0.0
    %5093 = vmatprep.subr.mxu0 0.0
    %5094 = vmatpush1.msra.mxu0 0.0
    %5095 = vmatprep.subr.mxu0 0.0
    %5096 = vmatpush1.msra.mxu0 0.0
    %5097 = vmatprep.subr.mxu0 0.0
    %5098 = vmatpush1.msra.mxu0 0.0
    %5099 = vmatprep.subr.mxu0 0.0
    %5100 = vmatpush1.msra.mxu0 0.0
    %5101 = vmatprep.subr.mxu0 0.0
    %5102 = vmatpush1.msra.mxu0 0.0
    %5103 = vmatprep.subr.mxu0 0.0
    %5104 = vmatpush1.msra.mxu0 0.0
    %5105 = vmatprep.subr.mxu0 0.0
    %5106 = vmatpush1.msra.mxu0 0.0
    %5107 = vmatprep.subr.mxu0 0.0
    %5108 = vmatpush1.msra.mxu0 0.0
    %5109 = vmatprep.subr.mxu0 0.0
    %5110 = vmatpush1.msra.mxu0 0.0
    %5111 = vmatprep.mubr.f32.mxu0 0.0
    %5112 = vmatmul.mubr.f32.gmra.mrb[0].mxu0 %v4263
    %v5113 = vpop.f32.mrb[0].mxu0
    %v5114 = vadd.f32 %v5045, %v5113
    %v5115 = vpop.f32.mrb[0].mxu0
    %5116 = vmatprep.mubr.f32.mxu0 0.0
    %5117 = vmatmul.mubr.f32.gmra.mrb[0].mxu0 %v4266
    %v5118 = vpop.f32.mrb[0].mxu0
    %v5119 = vadd.f32 %v5045, %v5118
    %v5120 = vpop.f32.mrb[0].mxu0
    %5121 = vmatprep.mubr.f32.mxu0 0.0
    %5122 = vmatmul.mubr.f32.gmra.mrb[0].mxu0 %v4269
    %v5123 = vpop.f32.mrb[0].mxu0
    %v5124 = vadd.f32 %v5045, %v5123
    %v5125 = vpop.f32.mrb[0].mxu0
    %5126 = vmatprep.mubr.f32.mxu0 0.0
    %5127 = vmatmul.mubr.f32.gmra.mrb[0].mxu0 %v4272
    %v5128 = vpop.f32.mrb[0].mxu0
    %v5129 = vadd.f32 %v5045, %v5128
    %v5130 = vpop.f32.mrb[0].mxu0
    %5131 = vdwg.mxu0
    %s5132 = scalar_lea.vmem %s55, 32
    %v5133 = vld [vmem:[%s5132] sm:$0xff]
    %v5134 = vld [vmem:[%s5132 + $0x8] sm:$0xff]
    %v5135 = vld [vmem:[%s5132 + $0x10] sm:$0xff]
    %v5136 = vld [vmem:[%s5132 + $0x18] sm:$0xff]
    %s5137 = scalar_lea.vmem %s61, 1
    %v5138 = vld [vmem:[%s5137] sm:$0x1]
    %v5140 = vlaneseq
    %v5141 = vshrl.u32 %v5140, 7
    %v5142 = vsub.s32 0, %v5141
    %v5143 = vrot.slane %v5138, %v5142
    %5145 = vmatprep.subr.mxu0 0.0
    %5146 = vmatpush1.msra.mxu0 %v5133
    %5147 = vmatprep.subr.mxu0 0.0
    %5148 = vmatpush1.msra.mxu0 %v5134
    %5149 = vmatprep.subr.mxu0 0.0
    %5150 = vmatpush1.msra.mxu0 %v5135
    %5151 = vmatprep.subr.mxu0 0.0
    %5152 = vmatpush1.msra.mxu0 %v5136
    %5153 = vmatprep.subr.mxu0 0.0
    %5154 = vmatpush1.msra.mxu0 0.0
    %5155 = vmatprep.subr.mxu0 0.0
    %5156 = vmatpush1.msra.mxu0 0.0
    %5157 = vmatprep.subr.mxu0 0.0
    %5158 = vmatpush1.msra.mxu0 0.0
    %5159 = vmatprep.subr.mxu0 0.0
    %5160 = vmatpush1.msra.mxu0 0.0
    %5161 = vmatprep.subr.mxu0 0.0
    %5162 = vmatpush1.msra.mxu0 0.0
    %5163 = vmatprep.subr.mxu0 0.0
    %5164 = vmatpush1.msra.mxu0 0.0
    %5165 = vmatprep.subr.mxu0 0.0
    %5166 = vmatpush1.msra.mxu0 0.0
    %5167 = vmatprep.subr.mxu0 0.0
    %5168 = vmatpush1.msra.mxu0 0.0
    %5169 = vmatprep.subr.mxu0 0.0
    %5170 = vmatpush1.msra.mxu0 0.0
    %5171 = vmatprep.subr.mxu0 0.0
    %5172 = vmatpush1.msra.mxu0 0.0
    %5173 = vmatprep.subr.mxu0 0.0
    %5174 = vmatpush1.msra.mxu0 0.0
    %5175 = vmatprep.subr.mxu0 0.0
    %5176 = vmatpush1.msra.mxu0 0.0
    %5177 = vmatprep.subr.mxu0 0.0
    %5178 = vmatpush1.msra.mxu0 0.0
    %5179 = vmatprep.subr.mxu0 0.0
    %5180 = vmatpush1.msra.mxu0 0.0
    %5181 = vmatprep.subr.mxu0 0.0
    %5182 = vmatpush1.msra.mxu0 0.0
    %5183 = vmatprep.subr.mxu0 0.0
    %5184 = vmatpush1.msra.mxu0 0.0
    %5185 = vmatprep.subr.mxu0 0.0
    %5186 = vmatpush1.msra.mxu0 0.0
    %5187 = vmatprep.subr.mxu0 0.0
    %5188 = vmatpush1.msra.mxu0 0.0
    %5189 = vmatprep.subr.mxu0 0.0
    %5190 = vmatpush1.msra.mxu0 0.0
    %5191 = vmatprep.subr.mxu0 0.0
    %5192 = vmatpush1.msra.mxu0 0.0
    %5193 = vmatprep.subr.mxu0 0.0
    %5194 = vmatpush1.msra.mxu0 0.0
    %5195 = vmatprep.subr.mxu0 0.0
    %5196 = vmatpush1.msra.mxu0 0.0
    %5197 = vmatprep.subr.mxu0 0.0
    %5198 = vmatpush1.msra.mxu0 0.0
    %5199 = vmatprep.subr.mxu0 0.0
    %5200 = vmatpush1.msra.mxu0 0.0
    %5201 = vmatprep.subr.mxu0 0.0
    %5202 = vmatpush1.msra.mxu0 0.0
    %5203 = vmatprep.subr.mxu0 0.0
    %5204 = vmatpush1.msra.mxu0 0.0
    %5205 = vmatprep.subr.mxu0 0.0
    %5206 = vmatpush1.msra.mxu0 0.0
    %5207 = vmatprep.subr.mxu0 0.0
    %5208 = vmatpush1.msra.mxu0 0.0
    %5209 = vmatprep.mubr.f32.mxu0 0.0
    %5210 = vmatmul.mubr.f32.gmra.mrb[0].mxu0 %v4263
    %v5211 = vpop.f32.mrb[0].mxu0
    %v5212 = vadd.f32 %v5143, %v5211
    %v5213 = vpop.f32.mrb[0].mxu0
    %5214 = vmatprep.mubr.f32.mxu0 0.0
    %5215 = vmatmul.mubr.f32.gmra.mrb[0].mxu0 %v4266
    %v5216 = vpop.f32.mrb[0].mxu0
    %v5217 = vadd.f32 %v5143, %v5216
    %v5218 = vpop.f32.mrb[0].mxu0
    %5219 = vmatprep.mubr.f32.mxu0 0.0
    %5220 = vmatmul.mubr.f32.gmra.mrb[0].mxu0 %v4269
    %v5221 = vpop.f32.mrb[0].mxu0
    %v5222 = vadd.f32 %v5143, %v5221
    %v5223 = vpop.f32.mrb[0].mxu0
    %5224 = vmatprep.mubr.f32.mxu0 0.0
    %5225 = vmatmul.mubr.f32.gmra.mrb[0].mxu0 %v4272
    %v5226 = vpop.f32.mrb[0].mxu0
    %v5227 = vadd.f32 %v5143, %v5226
    %v5228 = vpop.f32.mrb[0].mxu0
    %5229 = vdwg.mxu0
    %v5231 = vsel %vm1021, %v5016, 0
    %v5234 = vsel %vm1021, %v5021, 0
    %v5237 = vsel %vm1021, %v5114, 0
    %v5240 = vsel %vm1021, %v5119, 0
    %5242 = vmatprep.subr.mxu0 0.0
    %5243 = vmatpush1.xpose.msra.mxu0 %v5237
    %5244 = vmatprep.subr.mxu0 0.0
    %5245 = vmatpush1.xpose.msra.mxu0 %v5240
    %5246 = vmatprep.subr.mxu0 0.0
    %5247 = vmatpush1.xpose.msra.mxu0 0.0
    %5248 = vmatprep.subr.mxu0 0.0
    %5249 = vmatpush1.xpose.msra.mxu0 0.0
    %5250 = vmatprep.subr.mxu0 0.0
    %5251 = vmatpush1.xpose.msra.mxu0 0.0
    %5252 = vmatprep.subr.mxu0 0.0
    %5253 = vmatpush1.xpose.msra.mxu0 0.0
    %5254 = vmatprep.subr.mxu0 0.0
    %5255 = vmatpush1.xpose.msra.mxu0 0.0
    %5256 = vmatprep.subr.mxu0 0.0
    %5257 = vmatpush1.xpose.msra.mxu0 0.0
    %5258 = vmatprep.subr.mxu0 0.0
    %5259 = vmatpush1.xpose.msra.mxu0 0.0
    %5260 = vmatprep.subr.mxu0 0.0
    %5261 = vmatpush1.xpose.msra.mxu0 0.0
    %5262 = vmatprep.subr.mxu0 0.0
    %5263 = vmatpush1.xpose.msra.mxu0 0.0
    %5264 = vmatprep.subr.mxu0 0.0
    %5265 = vmatpush1.xpose.msra.mxu0 0.0
    %5266 = vmatprep.subr.mxu0 0.0
    %5267 = vmatpush1.xpose.msra.mxu0 0.0
    %5268 = vmatprep.subr.mxu0 0.0
    %5269 = vmatpush1.xpose.msra.mxu0 0.0
    %5270 = vmatprep.subr.mxu0 0.0
    %5271 = vmatpush1.xpose.msra.mxu0 0.0
    %5272 = vmatprep.subr.mxu0 0.0
    %5273 = vmatpush1.xpose.msra.mxu0 0.0
    %5274 = vmatprep.subr.mxu0 0.0
    %5275 = vmatpush1.xpose.msra.mxu0 0.0
    %5276 = vmatprep.subr.mxu0 0.0
    %5277 = vmatpush1.xpose.msra.mxu0 0.0
    %5278 = vmatprep.subr.mxu0 0.0
    %5279 = vmatpush1.xpose.msra.mxu0 0.0
    %5280 = vmatprep.subr.mxu0 0.0
    %5281 = vmatpush1.xpose.msra.mxu0 0.0
    %5282 = vmatprep.subr.mxu0 0.0
    %5283 = vmatpush1.xpose.msra.mxu0 0.0
    %5284 = vmatprep.subr.mxu0 0.0
    %5285 = vmatpush1.xpose.msra.mxu0 0.0
    %5286 = vmatprep.subr.mxu0 0.0
    %5287 = vmatpush1.xpose.msra.mxu0 0.0
    %5288 = vmatprep.subr.mxu0 0.0
    %5289 = vmatpush1.xpose.msra.mxu0 0.0
    %5290 = vmatprep.subr.mxu0 0.0
    %5291 = vmatpush1.xpose.msra.mxu0 0.0
    %5292 = vmatprep.subr.mxu0 0.0
    %5293 = vmatpush1.xpose.msra.mxu0 0.0
    %5294 = vmatprep.subr.mxu0 0.0
    %5295 = vmatpush1.xpose.msra.mxu0 0.0
    %5296 = vmatprep.subr.mxu0 0.0
    %5297 = vmatpush1.xpose.msra.mxu0 0.0
    %5298 = vmatprep.subr.mxu0 0.0
    %5299 = vmatpush1.xpose.msra.mxu0 0.0
    %5300 = vmatprep.subr.mxu0 0.0
    %5301 = vmatpush1.xpose.msra.mxu0 0.0
    %5302 = vmatprep.subr.mxu0 0.0
    %5303 = vmatpush1.xpose.msra.mxu0 0.0
    %5304 = vmatprep.subr.mxu0 0.0
    %5305 = vmatpush1.xpose.msra.mxu0 0.0
    %5306 = vmatprep.mubr.f32.mxu0 0.0
    %5307 = vmatmul.mubr.f32.gmra.mrb[0].mxu0 %v5231
    %v5308 = vpop.f32.mrb[0].mxu0
    %v5309 = vadd.f32 0.0, %v5308
    %v5310 = vpop.f32.mrb[0].mxu0
    %5311 = vmatprep.mubr.f32.mxu0 0.0
    %5312 = vmatmul.mubr.f32.gmra.mrb[0].mxu0 %v5234
    %v5313 = vpop.f32.mrb[0].mxu0
    %v5314 = vadd.f32 0.0, %v5313
    %v5315 = vpop.f32.mrb[0].mxu0
    %5316 = vdwg.mxu0
    %v5317 = vmul.f32 %v5309, 0.35355338
    %v5318 = vmul.f32 %v5314, 0.35355338
    %v5319 = vsel %vm1111, %v5317, -inf
    %5320 = vmax.xlane.f32.xlu0 %v5319
    %v5321 = vpop.xlane.xlu0 %5320
    %v5322 = vsel %vm1111, %v5318, -inf
    %5323 = vmax.xlane.f32.xlu0 %v5322
    %v5324 = vpop.xlane.xlu0 %5323
    %v5325 = vsub.f32 %v5317, %v5321
    %v5326 = vsub.f32 %v5318, %v5324
    %v5327 = vmul.f32 %v5325, 1.442695
    %v5328 = vpow.pop %v5327
    %v5329 = vmul.f32 %v5326, 1.442695
    %v5330 = vpow.pop %v5329
    %v5331 = vsel %vm1111, %v5328, 0.0
    %5332 = vadd.xlane.f32.xlu0 %v5331
    %v5333 = vpop.xlane.xlu0 %5332
    %v5334 = vsel %vm1111, %v5330, 0.0
    %5335 = vadd.xlane.f32.xlu0 %v5334
    %v5336 = vpop.xlane.xlu0 %5335
    %v5337 = vrcp.pop %v5333
    %v5338 = vrcp.pop %v5336
    %v5339 = vmul.f32 %v5328, %v5337
    %v5340 = vmul.f32 %v5330, %v5338
    %v5342 = vsel %vm1111, %v5339, 0
    %v5345 = vsel %vm1111, %v5340, 0
    %5347 = vmatprep.subr.mxu0 0.0
    %5348 = vmatpush1.msra.mxu0 %v5212
    %5349 = vmatprep.subr.mxu0 0.0
    %5350 = vmatpush1.msra.mxu0 %v5217
    %5351 = vmatprep.subr.mxu0 0.0
    %5352 = vmatpush1.msra.mxu0 0.0
    %5353 = vmatprep.subr.mxu0 0.0
    %5354 = vmatpush1.msra.mxu0 0.0
    %5355 = vmatprep.subr.mxu0 0.0
    %5356 = vmatpush1.msra.mxu0 0.0
    %5357 = vmatprep.subr.mxu0 0.0
    %5358 = vmatpush1.msra.mxu0 0.0
    %5359 = vmatprep.subr.mxu0 0.0
    %5360 = vmatpush1.msra.mxu0 0.0
    %5361 = vmatprep.subr.mxu0 0.0
    %5362 = vmatpush1.msra.mxu0 0.0
    %5363 = vmatprep.subr.mxu0 0.0
    %5364 = vmatpush1.msra.mxu0 0.0
    %5365 = vmatprep.subr.mxu0 0.0
    %5366 = vmatpush1.msra.mxu0 0.0
    %5367 = vmatprep.subr.mxu0 0.0
    %5368 = vmatpush1.msra.mxu0 0.0
    %5369 = vmatprep.subr.mxu0 0.0
    %5370 = vmatpush1.msra.mxu0 0.0
    %5371 = vmatprep.subr.mxu0 0.0
    %5372 = vmatpush1.msra.mxu0 0.0
    %5373 = vmatprep.subr.mxu0 0.0
    %5374 = vmatpush1.msra.mxu0 0.0
    %5375 = vmatprep.subr.mxu0 0.0
    %5376 = vmatpush1.msra.mxu0 0.0
    %5377 = vmatprep.subr.mxu0 0.0
    %5378 = vmatpush1.msra.mxu0 0.0
    %5379 = vmatprep.subr.mxu0 0.0
    %5380 = vmatpush1.msra.mxu0 0.0
    %5381 = vmatprep.subr.mxu0 0.0
    %5382 = vmatpush1.msra.mxu0 0.0
    %5383 = vmatprep.subr.mxu0 0.0
    %5384 = vmatpush1.msra.mxu0 0.0
    %5385 = vmatprep.subr.mxu0 0.0
    %5386 = vmatpush1.msra.mxu0 0.0
    %5387 = vmatprep.subr.mxu0 0.0
    %5388 = vmatpush1.msra.mxu0 0.0
    %5389 = vmatprep.subr.mxu0 0.0
    %5390 = vmatpush1.msra.mxu0 0.0
    %5391 = vmatprep.subr.mxu0 0.0
    %5392 = vmatpush1.msra.mxu0 0.0
    %5393 = vmatprep.subr.mxu0 0.0
    %5394 = vmatpush1.msra.mxu0 0.0
    %5395 = vmatprep.subr.mxu0 0.0
    %5396 = vmatpush1.msra.mxu0 0.0
    %5397 = vmatprep.subr.mxu0 0.0
    %5398 = vmatpush1.msra.mxu0 0.0
    %5399 = vmatprep.subr.mxu0 0.0
    %5400 = vmatpush1.msra.mxu0 0.0
    %5401 = vmatprep.subr.mxu0 0.0
    %5402 = vmatpush1.msra.mxu0 0.0
    %5403 = vmatprep.subr.mxu0 0.0
    %5404 = vmatpush1.msra.mxu0 0.0
    %5405 = vmatprep.subr.mxu0 0.0
    %5406 = vmatpush1.msra.mxu0 0.0
    %5407 = vmatprep.subr.mxu0 0.0
    %5408 = vmatpush1.msra.mxu0 0.0
    %5409 = vmatprep.subr.mxu0 0.0
    %5410 = vmatpush1.msra.mxu0 0.0
    %5411 = vmatprep.mubr.f32.mxu0 0.0
    %5412 = vmatmul.mubr.f32.gmra.mrb[0].mxu0 %v5342
    %v5413 = vpop.f32.mrb[0].mxu0
    %v5414 = vadd.f32 0.0, %v5413
    %v5415 = vpop.f32.mrb[0].mxu0
    %5416 = vmatprep.mubr.f32.mxu0 0.0
    %5417 = vmatmul.mubr.f32.gmra.mrb[0].mxu0 %v5345
    %v5418 = vpop.f32.mrb[0].mxu0
    %v5419 = vadd.f32 0.0, %v5418
    %v5420 = vpop.f32.mrb[0].mxu0
    %5421 = vdwg.mxu0
    %v5423 = vsel %vm1021, %v5026, 0
    %v5426 = vsel %vm1021, %v5031, 0
    %v5429 = vsel %vm1021, %v5124, 0
    %v5432 = vsel %vm1021, %v5129, 0
    %5434 = vmatprep.subr.mxu0 0.0
    %5435 = vmatpush1.xpose.msra.mxu0 %v5429
    %5436 = vmatprep.subr.mxu0 0.0
    %5437 = vmatpush1.xpose.msra.mxu0 %v5432
    %5438 = vmatprep.subr.mxu0 0.0
    %5439 = vmatpush1.xpose.msra.mxu0 0.0
    %5440 = vmatprep.subr.mxu0 0.0
    %5441 = vmatpush1.xpose.msra.mxu0 0.0
    %5442 = vmatprep.subr.mxu0 0.0
    %5443 = vmatpush1.xpose.msra.mxu0 0.0
    %5444 = vmatprep.subr.mxu0 0.0
    %5445 = vmatpush1.xpose.msra.mxu0 0.0
    %5446 = vmatprep.subr.mxu0 0.0
    %5447 = vmatpush1.xpose.msra.mxu0 0.0
    %5448 = vmatprep.subr.mxu0 0.0
    %5449 = vmatpush1.xpose.msra.mxu0 0.0
    %5450 = vmatprep.subr.mxu0 0.0
    %5451 = vmatpush1.xpose.msra.mxu0 0.0
    %5452 = vmatprep.subr.mxu0 0.0
    %5453 = vmatpush1.xpose.msra.mxu0 0.0
    %5454 = vmatprep.subr.mxu0 0.0
    %5455 = vmatpush1.xpose.msra.mxu0 0.0
    %5456 = vmatprep.subr.mxu0 0.0
    %5457 = vmatpush1.xpose.msra.mxu0 0.0
    %5458 = vmatprep.subr.mxu0 0.0
    %5459 = vmatpush1.xpose.msra.mxu0 0.0
    %5460 = vmatprep.subr.mxu0 0.0
    %5461 = vmatpush1.xpose.msra.mxu0 0.0
    %5462 = vmatprep.subr.mxu0 0.0
    %5463 = vmatpush1.xpose.msra.mxu0 0.0
    %5464 = vmatprep.subr.mxu0 0.0
    %5465 = vmatpush1.xpose.msra.mxu0 0.0
    %5466 = vmatprep.subr.mxu0 0.0
    %5467 = vmatpush1.xpose.msra.mxu0 0.0
    %5468 = vmatprep.subr.mxu0 0.0
    %5469 = vmatpush1.xpose.msra.mxu0 0.0
    %5470 = vmatprep.subr.mxu0 0.0
    %5471 = vmatpush1.xpose.msra.mxu0 0.0
    %5472 = vmatprep.subr.mxu0 0.0
    %5473 = vmatpush1.xpose.msra.mxu0 0.0
    %5474 = vmatprep.subr.mxu0 0.0
    %5475 = vmatpush1.xpose.msra.mxu0 0.0
    %5476 = vmatprep.subr.mxu0 0.0
    %5477 = vmatpush1.xpose.msra.mxu0 0.0
    %5478 = vmatprep.subr.mxu0 0.0
    %5479 = vmatpush1.xpose.msra.mxu0 0.0
    %5480 = vmatprep.subr.mxu0 0.0
    %5481 = vmatpush1.xpose.msra.mxu0 0.0
    %5482 = vmatprep.subr.mxu0 0.0
    %5483 = vmatpush1.xpose.msra.mxu0 0.0
    %5484 = vmatprep.subr.mxu0 0.0
    %5485 = vmatpush1.xpose.msra.mxu0 0.0
    %5486 = vmatprep.subr.mxu0 0.0
    %5487 = vmatpush1.xpose.msra.mxu0 0.0
    %5488 = vmatprep.subr.mxu0 0.0
    %5489 = vmatpush1.xpose.msra.mxu0 0.0
    %5490 = vmatprep.subr.mxu0 0.0
    %5491 = vmatpush1.xpose.msra.mxu0 0.0
    %5492 = vmatprep.subr.mxu0 0.0
    %5493 = vmatpush1.xpose.msra.mxu0 0.0
    %5494 = vmatprep.subr.mxu0 0.0
    %5495 = vmatpush1.xpose.msra.mxu0 0.0
    %5496 = vmatprep.subr.mxu0 0.0
    %5497 = vmatpush1.xpose.msra.mxu0 0.0
    %5498 = vmatprep.mubr.f32.mxu0 0.0
    %5499 = vmatmul.mubr.f32.gmra.mrb[0].mxu0 %v5423
    %v5500 = vpop.f32.mrb[0].mxu0
    %v5501 = vadd.f32 0.0, %v5500
    %v5502 = vpop.f32.mrb[0].mxu0
    %5503 = vmatprep.mubr.f32.mxu0 0.0
    %5504 = vmatmul.mubr.f32.gmra.mrb[0].mxu0 %v5426
    %v5505 = vpop.f32.mrb[0].mxu0
    %v5506 = vadd.f32 0.0, %v5505
    %v5507 = vpop.f32.mrb[0].mxu0
    %5508 = vdwg.mxu0
    %v5509 = vmul.f32 %v5501, 0.35355338
    %v5510 = vmul.f32 %v5506, 0.35355338
    %v5511 = vsel %vm1111, %v5509, -inf
    %5512 = vmax.xlane.f32.xlu0 %v5511
    %v5513 = vpop.xlane.xlu0 %5512
    %v5514 = vsel %vm1111, %v5510, -inf
    %5515 = vmax.xlane.f32.xlu0 %v5514
    %v5516 = vpop.xlane.xlu0 %5515
    %v5517 = vsub.f32 %v5509, %v5513
    %v5518 = vsub.f32 %v5510, %v5516
    %v5519 = vmul.f32 %v5517, 1.442695
    %v5520 = vpow.pop %v5519
    %v5521 = vmul.f32 %v5518, 1.442695
    %v5522 = vpow.pop %v5521
    %v5523 = vsel %vm1111, %v5520, 0.0
    %5524 = vadd.xlane.f32.xlu0 %v5523
    %v5525 = vpop.xlane.xlu0 %5524
    %v5526 = vsel %vm1111, %v5522, 0.0
    %5527 = vadd.xlane.f32.xlu0 %v5526
    %v5528 = vpop.xlane.xlu0 %5527
    %v5529 = vrcp.pop %v5525
    %v5530 = vrcp.pop %v5528
    %v5531 = vmul.f32 %v5520, %v5529
    %v5532 = vmul.f32 %v5522, %v5530
    %v5534 = vsel %vm1111, %v5531, 0
    %v5537 = vsel %vm1111, %v5532, 0
    %5539 = vmatprep.subr.mxu0 0.0
    %5540 = vmatpush1.msra.mxu0 %v5222
    %5541 = vmatprep.subr.mxu0 0.0
    %5542 = vmatpush1.msra.mxu0 %v5227
    %5543 = vmatprep.subr.mxu0 0.0
    %5544 = vmatpush1.msra.mxu0 0.0
    %5545 = vmatprep.subr.mxu0 0.0
    %5546 = vmatpush1.msra.mxu0 0.0
    %5547 = vmatprep.subr.mxu0 0.0
    %5548 = vmatpush1.msra.mxu0 0.0
    %5549 = vmatprep.subr.mxu0 0.0
    %5550 = vmatpush1.msra.mxu0 0.0
    %5551 = vmatprep.subr.mxu0 0.0
    %5552 = vmatpush1.msra.mxu0 0.0
    %5553 = vmatprep.subr.mxu0 0.0
    %5554 = vmatpush1.msra.mxu0 0.0
    %5555 = vmatprep.subr.mxu0 0.0
    %5556 = vmatpush1.msra.mxu0 0.0
    %5557 = vmatprep.subr.mxu0 0.0
    %5558 = vmatpush1.msra.mxu0 0.0
    %5559 = vmatprep.subr.mxu0 0.0
    %5560 = vmatpush1.msra.mxu0 0.0
    %5561 = vmatprep.subr.mxu0 0.0
    %5562 = vmatpush1.msra.mxu0 0.0
    %5563 = vmatprep.subr.mxu0 0.0
    %5564 = vmatpush1.msra.mxu0 0.0
    %5565 = vmatprep.subr.mxu0 0.0
    %5566 = vmatpush1.msra.mxu0 0.0
    %5567 = vmatprep.subr.mxu0 0.0
    %5568 = vmatpush1.msra.mxu0 0.0
    %5569 = vmatprep.subr.mxu0 0.0
    %5570 = vmatpush1.msra.mxu0 0.0
    %5571 = vmatprep.subr.mxu0 0.0
    %5572 = vmatpush1.msra.mxu0 0.0
    %5573 = vmatprep.subr.mxu0 0.0
    %5574 = vmatpush1.msra.mxu0 0.0
    %5575 = vmatprep.subr.mxu0 0.0
    %5576 = vmatpush1.msra.mxu0 0.0
    %5577 = vmatprep.subr.mxu0 0.0
    %5578 = vmatpush1.msra.mxu0 0.0
    %5579 = vmatprep.subr.mxu0 0.0
    %5580 = vmatpush1.msra.mxu0 0.0
    %5581 = vmatprep.subr.mxu0 0.0
    %5582 = vmatpush1.msra.mxu0 0.0
    %5583 = vmatprep.subr.mxu0 0.0
    %5584 = vmatpush1.msra.mxu0 0.0
    %5585 = vmatprep.subr.mxu0 0.0
    %5586 = vmatpush1.msra.mxu0 0.0
    %5587 = vmatprep.subr.mxu0 0.0
    %5588 = vmatpush1.msra.mxu0 0.0
    %5589 = vmatprep.subr.mxu0 0.0
    %5590 = vmatpush1.msra.mxu0 0.0
    %5591 = vmatprep.subr.mxu0 0.0
    %5592 = vmatpush1.msra.mxu0 0.0
    %5593 = vmatprep.subr.mxu0 0.0
    %5594 = vmatpush1.msra.mxu0 0.0
    %5595 = vmatprep.subr.mxu0 0.0
    %5596 = vmatpush1.msra.mxu0 0.0
    %5597 = vmatprep.subr.mxu0 0.0
    %5598 = vmatpush1.msra.mxu0 0.0
    %5599 = vmatprep.subr.mxu0 0.0
    %5600 = vmatpush1.msra.mxu0 0.0
    %5601 = vmatprep.subr.mxu0 0.0
    %5602 = vmatpush1.msra.mxu0 0.0
    %5603 = vmatprep.mubr.f32.mxu0 0.0
    %5604 = vmatmul.mubr.f32.gmra.mrb[0].mxu0 %v5534
    %v5605 = vpop.f32.mrb[0].mxu0
    %v5606 = vadd.f32 0.0, %v5605
    %v5607 = vpop.f32.mrb[0].mxu0
    %5608 = vmatprep.mubr.f32.mxu0 0.0
    %5609 = vmatmul.mubr.f32.gmra.mrb[0].mxu0 %v5537
    %v5610 = vpop.f32.mrb[0].mxu0
    %v5611 = vadd.f32 0.0, %v5610
    %v5612 = vpop.f32.mrb[0].mxu0
    %5613 = vdwg.mxu0
    %s5614 = scalar_lea.vmem %s63, 8
    %v5615 = vld [vmem:[%s5614] sm:$0xff]
    %v5617 = vsel %vm1021, %v5414, 0
    %v5620 = vsel %vm1021, %v5419, 0
    %v5623 = vsel %vm1021, %v5606, 0
    %v5626 = vsel %vm1021, %v5611, 0
    %5628 = vmatprep.subr.mxu0 0.0
    %5629 = vmatpush1.msra.mxu0 %v5615
    %5630 = vmatprep.subr.mxu0 0.0
    %5631 = vmatpush1.msra.mxu0 0.0
    %5632 = vmatprep.subr.mxu0 0.0
    %5633 = vmatpush1.msra.mxu0 0.0
    %5634 = vmatprep.subr.mxu0 0.0
    %5635 = vmatpush1.msra.mxu0 0.0
    %5636 = vmatprep.subr.mxu0 0.0
    %5637 = vmatpush1.msra.mxu0 0.0
    %5638 = vmatprep.subr.mxu0 0.0
    %5639 = vmatpush1.msra.mxu0 0.0
    %5640 = vmatprep.subr.mxu0 0.0
    %5641 = vmatpush1.msra.mxu0 0.0
    %5642 = vmatprep.subr.mxu0 0.0
    %5643 = vmatpush1.msra.mxu0 0.0
    %5644 = vmatprep.subr.mxu0 0.0
    %5645 = vmatpush1.msra.mxu0 0.0
    %5646 = vmatprep.subr.mxu0 0.0
    %5647 = vmatpush1.msra.mxu0 0.0
    %5648 = vmatprep.subr.mxu0 0.0
    %5649 = vmatpush1.msra.mxu0 0.0
    %5650 = vmatprep.subr.mxu0 0.0
    %5651 = vmatpush1.msra.mxu0 0.0
    %5652 = vmatprep.subr.mxu0 0.0
    %5653 = vmatpush1.msra.mxu0 0.0
    %5654 = vmatprep.subr.mxu0 0.0
    %5655 = vmatpush1.msra.mxu0 0.0
    %5656 = vmatprep.subr.mxu0 0.0
    %5657 = vmatpush1.msra.mxu0 0.0
    %5658 = vmatprep.subr.mxu0 0.0
    %5659 = vmatpush1.msra.mxu0 0.0
    %5660 = vmatprep.subr.mxu0 0.0
    %5661 = vmatpush1.msra.mxu0 0.0
    %5662 = vmatprep.subr.mxu0 0.0
    %5663 = vmatpush1.msra.mxu0 0.0
    %5664 = vmatprep.subr.mxu0 0.0
    %5665 = vmatpush1.msra.mxu0 0.0
    %5666 = vmatprep.subr.mxu0 0.0
    %5667 = vmatpush1.msra.mxu0 0.0
    %5668 = vmatprep.subr.mxu0 0.0
    %5669 = vmatpush1.msra.mxu0 0.0
    %5670 = vmatprep.subr.mxu0 0.0
    %5671 = vmatpush1.msra.mxu0 0.0
    %5672 = vmatprep.subr.mxu0 0.0
    %5673 = vmatpush1.msra.mxu0 0.0
    %5674 = vmatprep.subr.mxu0 0.0
    %5675 = vmatpush1.msra.mxu0 0.0
    %5676 = vmatprep.subr.mxu0 0.0
    %5677 = vmatpush1.msra.mxu0 0.0
    %5678 = vmatprep.subr.mxu0 0.0
    %5679 = vmatpush1.msra.mxu0 0.0
    %5680 = vmatprep.subr.mxu0 0.0
    %5681 = vmatpush1.msra.mxu0 0.0
    %5682 = vmatprep.subr.mxu0 0.0
    %5683 = vmatpush1.msra.mxu0 0.0
    %5684 = vmatprep.subr.mxu0 0.0
    %5685 = vmatpush1.msra.mxu0 0.0
    %5686 = vmatprep.subr.mxu0 0.0
    %5687 = vmatpush1.msra.mxu0 0.0
    %5688 = vmatprep.subr.mxu0 0.0
    %5689 = vmatpush1.msra.mxu0 0.0
    %5690 = vmatprep.subr.mxu0 0.0
    %5691 = vmatpush1.msra.mxu0 0.0
    %5692 = vmatprep.mubr.f32.mxu0 0.0
    %5693 = vmatmul.mubr.f32.gmra.mrb[0].mxu0 %v5617
    %v5694 = vpop.f32.mrb[0].mxu0
    %v5695 = vadd.f32 0.0, %v5694
    %v5696 = vpop.f32.mrb[0].mxu0
    %5697 = vmatprep.mubr.f32.mxu0 0.0
    %5698 = vmatmul.mubr.f32.gmra.mrb[0].mxu0 %v5620
    %v5699 = vpop.f32.mrb[0].mxu0
    %v5700 = vadd.f32 0.0, %v5699
    %v5701 = vpop.f32.mrb[0].mxu0
    %5702 = vmatprep.mubr.f32.mxu0 0.0
    %5703 = vmatmul.mubr.f32.gmra.mrb[0].mxu0 %v5623
    %v5704 = vpop.f32.mrb[0].mxu0
    %v5705 = vadd.f32 0.0, %v5704
    %v5706 = vpop.f32.mrb[0].mxu0
    %5707 = vmatprep.mubr.f32.mxu0 0.0
    %5708 = vmatmul.mubr.f32.gmra.mrb[0].mxu0 %v5626
    %v5709 = vpop.f32.mrb[0].mxu0
    %v5710 = vadd.f32 0.0, %v5709
    %v5711 = vpop.f32.mrb[0].mxu0
    %5712 = vdwg.mxu0
    %v5714 = vsel %vm1021, %v4735, 0
    %v5717 = vsel %vm1021, %v4740, 0
    %v5720 = vsel %vm1021, %v4927, 0
    %v5723 = vsel %vm1021, %v4932, 0
    %5725 = vmatprep.subr.mxu0 0.0
    %5726 = vmatpush1.msra.mxu0 %v4935
    %5727 = vmatprep.subr.mxu0 0.0
    %5728 = vmatpush1.msra.mxu0 0.0
    %5729 = vmatprep.subr.mxu0 0.0
    %5730 = vmatpush1.msra.mxu0 0.0
    %5731 = vmatprep.subr.mxu0 0.0
    %5732 = vmatpush1.msra.mxu0 0.0
    %5733 = vmatprep.subr.mxu0 0.0
    %5734 = vmatpush1.msra.mxu0 0.0
    %5735 = vmatprep.subr.mxu0 0.0
    %5736 = vmatpush1.msra.mxu0 0.0
    %5737 = vmatprep.subr.mxu0 0.0
    %5738 = vmatpush1.msra.mxu0 0.0
    %5739 = vmatprep.subr.mxu0 0.0
    %5740 = vmatpush1.msra.mxu0 0.0
    %5741 = vmatprep.subr.mxu0 0.0
    %5742 = vmatpush1.msra.mxu0 0.0
    %5743 = vmatprep.subr.mxu0 0.0
    %5744 = vmatpush1.msra.mxu0 0.0
    %5745 = vmatprep.subr.mxu0 0.0
    %5746 = vmatpush1.msra.mxu0 0.0
    %5747 = vmatprep.subr.mxu0 0.0
    %5748 = vmatpush1.msra.mxu0 0.0
    %5749 = vmatprep.subr.mxu0 0.0
    %5750 = vmatpush1.msra.mxu0 0.0
    %5751 = vmatprep.subr.mxu0 0.0
    %5752 = vmatpush1.msra.mxu0 0.0
    %5753 = vmatprep.subr.mxu0 0.0
    %5754 = vmatpush1.msra.mxu0 0.0
    %5755 = vmatprep.subr.mxu0 0.0
    %5756 = vmatpush1.msra.mxu0 0.0
    %5757 = vmatprep.subr.mxu0 0.0
    %5758 = vmatpush1.msra.mxu0 0.0
    %5759 = vmatprep.subr.mxu0 0.0
    %5760 = vmatpush1.msra.mxu0 0.0
    %5761 = vmatprep.subr.mxu0 0.0
    %5762 = vmatpush1.msra.mxu0 0.0
    %5763 = vmatprep.subr.mxu0 0.0
    %5764 = vmatpush1.msra.mxu0 0.0
    %5765 = vmatprep.subr.mxu0 0.0
    %5766 = vmatpush1.msra.mxu0 0.0
    %5767 = vmatprep.subr.mxu0 0.0
    %5768 = vmatpush1.msra.mxu0 0.0
    %5769 = vmatprep.subr.mxu0 0.0
    %5770 = vmatpush1.msra.mxu0 0.0
    %5771 = vmatprep.subr.mxu0 0.0
    %5772 = vmatpush1.msra.mxu0 0.0
    %5773 = vmatprep.subr.mxu0 0.0
    %5774 = vmatpush1.msra.mxu0 0.0
    %5775 = vmatprep.subr.mxu0 0.0
    %5776 = vmatpush1.msra.mxu0 0.0
    %5777 = vmatprep.subr.mxu0 0.0
    %5778 = vmatpush1.msra.mxu0 0.0
    %5779 = vmatprep.subr.mxu0 0.0
    %5780 = vmatpush1.msra.mxu0 0.0
    %5781 = vmatprep.subr.mxu0 0.0
    %5782 = vmatpush1.msra.mxu0 0.0
    %5783 = vmatprep.subr.mxu0 0.0
    %5784 = vmatpush1.msra.mxu0 0.0
    %5785 = vmatprep.subr.mxu0 0.0
    %5786 = vmatpush1.msra.mxu0 0.0
    %5787 = vmatprep.subr.mxu0 0.0
    %5788 = vmatpush1.msra.mxu0 0.0
    %5789 = vmatprep.mubr.f32.mxu0 0.0
    %5790 = vmatmul.mubr.f32.gmra.mrb[0].mxu0 %v5714
    %v5791 = vpop.f32.mrb[0].mxu0
    %v5792 = vadd.f32 %v5695, %v5791
    %v5793 = vpop.f32.mrb[0].mxu0
    %5794 = vmatprep.mubr.f32.mxu0 0.0
    %5795 = vmatmul.mubr.f32.gmra.mrb[0].mxu0 %v5717
    %v5796 = vpop.f32.mrb[0].mxu0
    %v5797 = vadd.f32 %v5700, %v5796
    %v5798 = vpop.f32.mrb[0].mxu0
    %5799 = vmatprep.mubr.f32.mxu0 0.0
    %5800 = vmatmul.mubr.f32.gmra.mrb[0].mxu0 %v5720
    %v5801 = vpop.f32.mrb[0].mxu0
    %v5802 = vadd.f32 %v5705, %v5801
    %v5803 = vpop.f32.mrb[0].mxu0
    %5804 = vmatprep.mubr.f32.mxu0 0.0
    %5805 = vmatmul.mubr.f32.gmra.mrb[0].mxu0 %v5723
    %v5806 = vpop.f32.mrb[0].mxu0
    %v5807 = vadd.f32 %v5710, %v5806
    %v5808 = vpop.f32.mrb[0].mxu0
    %5809 = vdwg.mxu0
    %s5810 = scalar_lea.vmem %s51, 64
    %v5811 = vld [vmem:[%s5810] sm:$0xff]
    %v5812 = vld [vmem:[%s5810 + $0x8] sm:$0xff]
    %v5813 = vld [vmem:[%s5810 + $0x10] sm:$0xff]
    %v5814 = vld [vmem:[%s5810 + $0x18] sm:$0xff]
    %s5815 = scalar_lea.vmem %s57, 2
    %v5816 = vld [vmem:[%s5815] sm:$0x1]
    %v5818 = vlaneseq
    %v5819 = vshrl.u32 %v5818, 7
    %v5820 = vsub.s32 0, %v5819
    %v5821 = vrot.slane %v5816, %v5820
    %5823 = vmatprep.subr.mxu0 0.0
    %5824 = vmatpush1.msra.mxu0 %v5811
    %5825 = vmatprep.subr.mxu0 0.0
    %5826 = vmatpush1.msra.mxu0 %v5812
    %5827 = vmatprep.subr.mxu0 0.0
    %5828 = vmatpush1.msra.mxu0 %v5813
    %5829 = vmatprep.subr.mxu0 0.0
    %5830 = vmatpush1.msra.mxu0 %v5814
    %5831 = vmatprep.subr.mxu0 0.0
    %5832 = vmatpush1.msra.mxu0 0.0
    %5833 = vmatprep.subr.mxu0 0.0
    %5834 = vmatpush1.msra.mxu0 0.0
    %5835 = vmatprep.subr.mxu0 0.0
    %5836 = vmatpush1.msra.mxu0 0.0
    %5837 = vmatprep.subr.mxu0 0.0
    %5838 = vmatpush1.msra.mxu0 0.0
    %5839 = vmatprep.subr.mxu0 0.0
    %5840 = vmatpush1.msra.mxu0 0.0
    %5841 = vmatprep.subr.mxu0 0.0
    %5842 = vmatpush1.msra.mxu0 0.0
    %5843 = vmatprep.subr.mxu0 0.0
    %5844 = vmatpush1.msra.mxu0 0.0
    %5845 = vmatprep.subr.mxu0 0.0
    %5846 = vmatpush1.msra.mxu0 0.0
    %5847 = vmatprep.subr.mxu0 0.0
    %5848 = vmatpush1.msra.mxu0 0.0
    %5849 = vmatprep.subr.mxu0 0.0
    %5850 = vmatpush1.msra.mxu0 0.0
    %5851 = vmatprep.subr.mxu0 0.0
    %5852 = vmatpush1.msra.mxu0 0.0
    %5853 = vmatprep.subr.mxu0 0.0
    %5854 = vmatpush1.msra.mxu0 0.0
    %5855 = vmatprep.subr.mxu0 0.0
    %5856 = vmatpush1.msra.mxu0 0.0
    %5857 = vmatprep.subr.mxu0 0.0
    %5858 = vmatpush1.msra.mxu0 0.0
    %5859 = vmatprep.subr.mxu0 0.0
    %5860 = vmatpush1.msra.mxu0 0.0
    %5861 = vmatprep.subr.mxu0 0.0
    %5862 = vmatpush1.msra.mxu0 0.0
    %5863 = vmatprep.subr.mxu0 0.0
    %5864 = vmatpush1.msra.mxu0 0.0
    %5865 = vmatprep.subr.mxu0 0.0
    %5866 = vmatpush1.msra.mxu0 0.0
    %5867 = vmatprep.subr.mxu0 0.0
    %5868 = vmatpush1.msra.mxu0 0.0
    %5869 = vmatprep.subr.mxu0 0.0
    %5870 = vmatpush1.msra.mxu0 0.0
    %5871 = vmatprep.subr.mxu0 0.0
    %5872 = vmatpush1.msra.mxu0 0.0
    %5873 = vmatprep.subr.mxu0 0.0
    %5874 = vmatpush1.msra.mxu0 0.0
    %5875 = vmatprep.subr.mxu0 0.0
    %5876 = vmatpush1.msra.mxu0 0.0
    %5877 = vmatprep.subr.mxu0 0.0
    %5878 = vmatpush1.msra.mxu0 0.0
    %5879 = vmatprep.subr.mxu0 0.0
    %5880 = vmatpush1.msra.mxu0 0.0
    %5881 = vmatprep.subr.mxu0 0.0
    %5882 = vmatpush1.msra.mxu0 0.0
    %5883 = vmatprep.subr.mxu0 0.0
    %5884 = vmatpush1.msra.mxu0 0.0
    %5885 = vmatprep.subr.mxu0 0.0
    %5886 = vmatpush1.msra.mxu0 0.0
    %5887 = vmatprep.mubr.f32.mxu0 0.0
    %5888 = vmatmul.mubr.f32.gmra.mrb[0].mxu0 %v4263
    %v5889 = vpop.f32.mrb[0].mxu0
    %v5890 = vadd.f32 %v5821, %v5889
    %v5891 = vpop.f32.mrb[0].mxu0
    %5892 = vmatprep.mubr.f32.mxu0 0.0
    %5893 = vmatmul.mubr.f32.gmra.mrb[0].mxu0 %v4266
    %v5894 = vpop.f32.mrb[0].mxu0
    %v5895 = vadd.f32 %v5821, %v5894
    %v5896 = vpop.f32.mrb[0].mxu0
    %5897 = vmatprep.mubr.f32.mxu0 0.0
    %5898 = vmatmul.mubr.f32.gmra.mrb[0].mxu0 %v4269
    %v5899 = vpop.f32.mrb[0].mxu0
    %v5900 = vadd.f32 %v5821, %v5899
    %v5901 = vpop.f32.mrb[0].mxu0
    %5902 = vmatprep.mubr.f32.mxu0 0.0
    %5903 = vmatmul.mubr.f32.gmra.mrb[0].mxu0 %v4272
    %v5904 = vpop.f32.mrb[0].mxu0
    %v5905 = vadd.f32 %v5821, %v5904
    %v5906 = vpop.f32.mrb[0].mxu0
    %5907 = vdwg.mxu0
    %s5908 = scalar_lea.vmem %s53, 64
    %v5909 = vld [vmem:[%s5908] sm:$0xff]
    %v5910 = vld [vmem:[%s5908 + $0x8] sm:$0xff]
    %v5911 = vld [vmem:[%s5908 + $0x10] sm:$0xff]
    %v5912 = vld [vmem:[%s5908 + $0x18] sm:$0xff]
    %s5913 = scalar_lea.vmem %s59, 2
    %v5914 = vld [vmem:[%s5913] sm:$0x1]
    %v5916 = vlaneseq
    %v5917 = vshrl.u32 %v5916, 7
    %v5918 = vsub.s32 0, %v5917
    %v5919 = vrot.slane %v5914, %v5918
    %5921 = vmatprep.subr.mxu0 0.0
    %5922 = vmatpush1.msra.mxu0 %v5909
    %5923 = vmatprep.subr.mxu0 0.0
    %5924 = vmatpush1.msra.mxu0 %v5910
    %5925 = vmatprep.subr.mxu0 0.0
    %5926 = vmatpush1.msra.mxu0 %v5911
    %5927 = vmatprep.subr.mxu0 0.0
    %5928 = vmatpush1.msra.mxu0 %v5912
    %5929 = vmatprep.subr.mxu0 0.0
    %5930 = vmatpush1.msra.mxu0 0.0
    %5931 = vmatprep.subr.mxu0 0.0
    %5932 = vmatpush1.msra.mxu0 0.0
    %5933 = vmatprep.subr.mxu0 0.0
    %5934 = vmatpush1.msra.mxu0 0.0
    %5935 = vmatprep.subr.mxu0 0.0
    %5936 = vmatpush1.msra.mxu0 0.0
    %5937 = vmatprep.subr.mxu0 0.0
    %5938 = vmatpush1.msra.mxu0 0.0
    %5939 = vmatprep.subr.mxu0 0.0
    %5940 = vmatpush1.msra.mxu0 0.0
    %5941 = vmatprep.subr.mxu0 0.0
    %5942 = vmatpush1.msra.mxu0 0.0
    %5943 = vmatprep.subr.mxu0 0.0
    %5944 = vmatpush1.msra.mxu0 0.0
    %5945 = vmatprep.subr.mxu0 0.0
    %5946 = vmatpush1.msra.mxu0 0.0
    %5947 = vmatprep.subr.mxu0 0.0
    %5948 = vmatpush1.msra.mxu0 0.0
    %5949 = vmatprep.subr.mxu0 0.0
    %5950 = vmatpush1.msra.mxu0 0.0
    %5951 = vmatprep.subr.mxu0 0.0
    %5952 = vmatpush1.msra.mxu0 0.0
    %5953 = vmatprep.subr.mxu0 0.0
    %5954 = vmatpush1.msra.mxu0 0.0
    %5955 = vmatprep.subr.mxu0 0.0
    %5956 = vmatpush1.msra.mxu0 0.0
    %5957 = vmatprep.subr.mxu0 0.0
    %5958 = vmatpush1.msra.mxu0 0.0
    %5959 = vmatprep.subr.mxu0 0.0
    %5960 = vmatpush1.msra.mxu0 0.0
    %5961 = vmatprep.subr.mxu0 0.0
    %5962 = vmatpush1.msra.mxu0 0.0
    %5963 = vmatprep.subr.mxu0 0.0
    %5964 = vmatpush1.msra.mxu0 0.0
    %5965 = vmatprep.subr.mxu0 0.0
    %5966 = vmatpush1.msra.mxu0 0.0
    %5967 = vmatprep.subr.mxu0 0.0
    %5968 = vmatpush1.msra.mxu0 0.0
    %5969 = vmatprep.subr.mxu0 0.0
    %5970 = vmatpush1.msra.mxu0 0.0
    %5971 = vmatprep.subr.mxu0 0.0
    %5972 = vmatpush1.msra.mxu0 0.0
    %5973 = vmatprep.subr.mxu0 0.0
    %5974 = vmatpush1.msra.mxu0 0.0
    %5975 = vmatprep.subr.mxu0 0.0
    %5976 = vmatpush1.msra.mxu0 0.0
    %5977 = vmatprep.subr.mxu0 0.0
    %5978 = vmatpush1.msra.mxu0 0.0
    %5979 = vmatprep.subr.mxu0 0.0
    %5980 = vmatpush1.msra.mxu0 0.0
    %5981 = vmatprep.subr.mxu0 0.0
    %5982 = vmatpush1.msra.mxu0 0.0
    %5983 = vmatprep.subr.mxu0 0.0
    %5984 = vmatpush1.msra.mxu0 0.0
    %5985 = vmatprep.mubr.f32.mxu0 0.0
    %5986 = vmatmul.mubr.f32.gmra.mrb[0].mxu0 %v4263
    %v5987 = vpop.f32.mrb[0].mxu0
    %v5988 = vadd.f32 %v5919, %v5987
    %v5989 = vpop.f32.mrb[0].mxu0
    %5990 = vmatprep.mubr.f32.mxu0 0.0
    %5991 = vmatmul.mubr.f32.gmra.mrb[0].mxu0 %v4266
    %v5992 = vpop.f32.mrb[0].mxu0
    %v5993 = vadd.f32 %v5919, %v5992
    %v5994 = vpop.f32.mrb[0].mxu0
    %5995 = vmatprep.mubr.f32.mxu0 0.0
    %5996 = vmatmul.mubr.f32.gmra.mrb[0].mxu0 %v4269
    %v5997 = vpop.f32.mrb[0].mxu0
    %v5998 = vadd.f32 %v5919, %v5997
    %v5999 = vpop.f32.mrb[0].mxu0
    %6000 = vmatprep.mubr.f32.mxu0 0.0
    %6001 = vmatmul.mubr.f32.gmra.mrb[0].mxu0 %v4272
    %v6002 = vpop.f32.mrb[0].mxu0
    %v6003 = vadd.f32 %v5919, %v6002
    %v6004 = vpop.f32.mrb[0].mxu0
    %6005 = vdwg.mxu0
    %s6006 = scalar_lea.vmem %s55, 64
    %v6007 = vld [vmem:[%s6006] sm:$0xff]
    %v6008 = vld [vmem:[%s6006 + $0x8] sm:$0xff]
    %v6009 = vld [vmem:[%s6006 + $0x10] sm:$0xff]
    %v6010 = vld [vmem:[%s6006 + $0x18] sm:$0xff]
    %s6011 = scalar_lea.vmem %s61, 2
    %v6012 = vld [vmem:[%s6011] sm:$0x1]
    %v6014 = vlaneseq
    %v6015 = vshrl.u32 %v6014, 7
    %v6016 = vsub.s32 0, %v6015
    %v6017 = vrot.slane %v6012, %v6016
    %6019 = vmatprep.subr.mxu0 0.0
    %6020 = vmatpush1.msra.mxu0 %v6007
    %6021 = vmatprep.subr.mxu0 0.0
    %6022 = vmatpush1.msra.mxu0 %v6008
    %6023 = vmatprep.subr.mxu0 0.0
    %6024 = vmatpush1.msra.mxu0 %v6009
    %6025 = vmatprep.subr.mxu0 0.0
    %6026 = vmatpush1.msra.mxu0 %v6010
    %6027 = vmatprep.subr.mxu0 0.0
    %6028 = vmatpush1.msra.mxu0 0.0
    %6029 = vmatprep.subr.mxu0 0.0
    %6030 = vmatpush1.msra.mxu0 0.0
    %6031 = vmatprep.subr.mxu0 0.0
    %6032 = vmatpush1.msra.mxu0 0.0
    %6033 = vmatprep.subr.mxu0 0.0
    %6034 = vmatpush1.msra.mxu0 0.0
    %6035 = vmatprep.subr.mxu0 0.0
    %6036 = vmatpush1.msra.mxu0 0.0
    %6037 = vmatprep.subr.mxu0 0.0
    %6038 = vmatpush1.msra.mxu0 0.0
    %6039 = vmatprep.subr.mxu0 0.0
    %6040 = vmatpush1.msra.mxu0 0.0
    %6041 = vmatprep.subr.mxu0 0.0
    %6042 = vmatpush1.msra.mxu0 0.0
    %6043 = vmatprep.subr.mxu0 0.0
    %6044 = vmatpush1.msra.mxu0 0.0
    %6045 = vmatprep.subr.mxu0 0.0
    %6046 = vmatpush1.msra.mxu0 0.0
    %6047 = vmatprep.subr.mxu0 0.0
    %6048 = vmatpush1.msra.mxu0 0.0
    %6049 = vmatprep.subr.mxu0 0.0
    %6050 = vmatpush1.msra.mxu0 0.0
    %6051 = vmatprep.subr.mxu0 0.0
    %6052 = vmatpush1.msra.mxu0 0.0
    %6053 = vmatprep.subr.mxu0 0.0
    %6054 = vmatpush1.msra.mxu0 0.0
    %6055 = vmatprep.subr.mxu0 0.0
    %6056 = vmatpush1.msra.mxu0 0.0
    %6057 = vmatprep.subr.mxu0 0.0
    %6058 = vmatpush1.msra.mxu0 0.0
    %6059 = vmatprep.subr.mxu0 0.0
    %6060 = vmatpush1.msra.mxu0 0.0
    %6061 = vmatprep.subr.mxu0 0.0
    %6062 = vmatpush1.msra.mxu0 0.0
    %6063 = vmatprep.subr.mxu0 0.0
    %6064 = vmatpush1.msra.mxu0 0.0
    %6065 = vmatprep.subr.mxu0 0.0
    %6066 = vmatpush1.msra.mxu0 0.0
    %6067 = vmatprep.subr.mxu0 0.0
    %6068 = vmatpush1.msra.mxu0 0.0
    %6069 = vmatprep.subr.mxu0 0.0
    %6070 = vmatpush1.msra.mxu0 0.0
    %6071 = vmatprep.subr.mxu0 0.0
    %6072 = vmatpush1.msra.mxu0 0.0
    %6073 = vmatprep.subr.mxu0 0.0
    %6074 = vmatpush1.msra.mxu0 0.0
    %6075 = vmatprep.subr.mxu0 0.0
    %6076 = vmatpush1.msra.mxu0 0.0
    %6077 = vmatprep.subr.mxu0 0.0
    %6078 = vmatpush1.msra.mxu0 0.0
    %6079 = vmatprep.subr.mxu0 0.0
    %6080 = vmatpush1.msra.mxu0 0.0
    %6081 = vmatprep.subr.mxu0 0.0
    %6082 = vmatpush1.msra.mxu0 0.0
    %6083 = vmatprep.mubr.f32.mxu0 0.0
    %6084 = vmatmul.mubr.f32.gmra.mrb[0].mxu0 %v4263
    %v6085 = vpop.f32.mrb[0].mxu0
    %v6086 = vadd.f32 %v6017, %v6085
    %v6087 = vpop.f32.mrb[0].mxu0
    %6088 = vmatprep.mubr.f32.mxu0 0.0
    %6089 = vmatmul.mubr.f32.gmra.mrb[0].mxu0 %v4266
    %v6090 = vpop.f32.mrb[0].mxu0
    %v6091 = vadd.f32 %v6017, %v6090
    %v6092 = vpop.f32.mrb[0].mxu0
    %6093 = vmatprep.mubr.f32.mxu0 0.0
    %6094 = vmatmul.mubr.f32.gmra.mrb[0].mxu0 %v4269
    %v6095 = vpop.f32.mrb[0].mxu0
    %v6096 = vadd.f32 %v6017, %v6095
    %v6097 = vpop.f32.mrb[0].mxu0
    %6098 = vmatprep.mubr.f32.mxu0 0.0
    %6099 = vmatmul.mubr.f32.gmra.mrb[0].mxu0 %v4272
    %v6100 = vpop.f32.mrb[0].mxu0
    %v6101 = vadd.f32 %v6017, %v6100
    %v6102 = vpop.f32.mrb[0].mxu0
    %6103 = vdwg.mxu0
    %v6105 = vsel %vm1021, %v5890, 0
    %v6108 = vsel %vm1021, %v5895, 0
    %v6111 = vsel %vm1021, %v5988, 0
    %v6114 = vsel %vm1021, %v5993, 0
    %6116 = vmatprep.subr.mxu0 0.0
    %6117 = vmatpush1.xpose.msra.mxu0 %v6111
    %6118 = vmatprep.subr.mxu0 0.0
    %6119 = vmatpush1.xpose.msra.mxu0 %v6114
    %6120 = vmatprep.subr.mxu0 0.0
    %6121 = vmatpush1.xpose.msra.mxu0 0.0
    %6122 = vmatprep.subr.mxu0 0.0
    %6123 = vmatpush1.xpose.msra.mxu0 0.0
    %6124 = vmatprep.subr.mxu0 0.0
    %6125 = vmatpush1.xpose.msra.mxu0 0.0
    %6126 = vmatprep.subr.mxu0 0.0
    %6127 = vmatpush1.xpose.msra.mxu0 0.0
    %6128 = vmatprep.subr.mxu0 0.0
    %6129 = vmatpush1.xpose.msra.mxu0 0.0
    %6130 = vmatprep.subr.mxu0 0.0
    %6131 = vmatpush1.xpose.msra.mxu0 0.0
    %6132 = vmatprep.subr.mxu0 0.0
    %6133 = vmatpush1.xpose.msra.mxu0 0.0
    %6134 = vmatprep.subr.mxu0 0.0
    %6135 = vmatpush1.xpose.msra.mxu0 0.0
    %6136 = vmatprep.subr.mxu0 0.0
    %6137 = vmatpush1.xpose.msra.mxu0 0.0
    %6138 = vmatprep.subr.mxu0 0.0
    %6139 = vmatpush1.xpose.msra.mxu0 0.0
    %6140 = vmatprep.subr.mxu0 0.0
    %6141 = vmatpush1.xpose.msra.mxu0 0.0
    %6142 = vmatprep.subr.mxu0 0.0
    %6143 = vmatpush1.xpose.msra.mxu0 0.0
    %6144 = vmatprep.subr.mxu0 0.0
    %6145 = vmatpush1.xpose.msra.mxu0 0.0
    %6146 = vmatprep.subr.mxu0 0.0
    %6147 = vmatpush1.xpose.msra.mxu0 0.0
    %6148 = vmatprep.subr.mxu0 0.0
    %6149 = vmatpush1.xpose.msra.mxu0 0.0
    %6150 = vmatprep.subr.mxu0 0.0
    %6151 = vmatpush1.xpose.msra.mxu0 0.0
    %6152 = vmatprep.subr.mxu0 0.0
    %6153 = vmatpush1.xpose.msra.mxu0 0.0
    %6154 = vmatprep.subr.mxu0 0.0
    %6155 = vmatpush1.xpose.msra.mxu0 0.0
    %6156 = vmatprep.subr.mxu0 0.0
    %6157 = vmatpush1.xpose.msra.mxu0 0.0
    %6158 = vmatprep.subr.mxu0 0.0
    %6159 = vmatpush1.xpose.msra.mxu0 0.0
    %6160 = vmatprep.subr.mxu0 0.0
    %6161 = vmatpush1.xpose.msra.mxu0 0.0
    %6162 = vmatprep.subr.mxu0 0.0
    %6163 = vmatpush1.xpose.msra.mxu0 0.0
    %6164 = vmatprep.subr.mxu0 0.0
    %6165 = vmatpush1.xpose.msra.mxu0 0.0
    %6166 = vmatprep.subr.mxu0 0.0
    %6167 = vmatpush1.xpose.msra.mxu0 0.0
    %6168 = vmatprep.subr.mxu0 0.0
    %6169 = vmatpush1.xpose.msra.mxu0 0.0
    %6170 = vmatprep.subr.mxu0 0.0
    %6171 = vmatpush1.xpose.msra.mxu0 0.0
    %6172 = vmatprep.subr.mxu0 0.0
    %6173 = vmatpush1.xpose.msra.mxu0 0.0
    %6174 = vmatprep.subr.mxu0 0.0
    %6175 = vmatpush1.xpose.msra.mxu0 0.0
    %6176 = vmatprep.subr.mxu0 0.0
    %6177 = vmatpush1.xpose.msra.mxu0 0.0
    %6178 = vmatprep.subr.mxu0 0.0
    %6179 = vmatpush1.xpose.msra.mxu0 0.0
    %6180 = vmatprep.mubr.f32.mxu0 0.0
    %6181 = vmatmul.mubr.f32.gmra.mrb[0].mxu0 %v6105
    %v6182 = vpop.f32.mrb[0].mxu0
    %v6183 = vadd.f32 0.0, %v6182
    %v6184 = vpop.f32.mrb[0].mxu0
    %6185 = vmatprep.mubr.f32.mxu0 0.0
    %6186 = vmatmul.mubr.f32.gmra.mrb[0].mxu0 %v6108
    %v6187 = vpop.f32.mrb[0].mxu0
    %v6188 = vadd.f32 0.0, %v6187
    %v6189 = vpop.f32.mrb[0].mxu0
    %6190 = vdwg.mxu0
    %v6191 = vmul.f32 %v6183, 0.35355338
    %v6192 = vmul.f32 %v6188, 0.35355338
    %v6193 = vsel %vm1111, %v6191, -inf
    %6194 = vmax.xlane.f32.xlu0 %v6193
    %v6195 = vpop.xlane.xlu0 %6194
    %v6196 = vsel %vm1111, %v6192, -inf
    %6197 = vmax.xlane.f32.xlu0 %v6196
    %v6198 = vpop.xlane.xlu0 %6197
    %v6199 = vsub.f32 %v6191, %v6195
    %v6200 = vsub.f32 %v6192, %v6198
    %v6201 = vmul.f32 %v6199, 1.442695
    %v6202 = vpow.pop %v6201
    %v6203 = vmul.f32 %v6200, 1.442695
    %v6204 = vpow.pop %v6203
    %v6205 = vsel %vm1111, %v6202, 0.0
    %6206 = vadd.xlane.f32.xlu0 %v6205
    %v6207 = vpop.xlane.xlu0 %6206
    %v6208 = vsel %vm1111, %v6204, 0.0
    %6209 = vadd.xlane.f32.xlu0 %v6208
    %v6210 = vpop.xlane.xlu0 %6209
    %v6211 = vrcp.pop %v6207
    %v6212 = vrcp.pop %v6210
    %v6213 = vmul.f32 %v6202, %v6211
    %v6214 = vmul.f32 %v6204, %v6212
    %v6216 = vsel %vm1111, %v6213, 0
    %v6219 = vsel %vm1111, %v6214, 0
    %6221 = vmatprep.subr.mxu0 0.0
    %6222 = vmatpush1.msra.mxu0 %v6086
    %6223 = vmatprep.subr.mxu0 0.0
    %6224 = vmatpush1.msra.mxu0 %v6091
    %6225 = vmatprep.subr.mxu0 0.0
    %6226 = vmatpush1.msra.mxu0 0.0
    %6227 = vmatprep.subr.mxu0 0.0
    %6228 = vmatpush1.msra.mxu0 0.0
    %6229 = vmatprep.subr.mxu0 0.0
    %6230 = vmatpush1.msra.mxu0 0.0
    %6231 = vmatprep.subr.mxu0 0.0
    %6232 = vmatpush1.msra.mxu0 0.0
    %6233 = vmatprep.subr.mxu0 0.0
    %6234 = vmatpush1.msra.mxu0 0.0
    %6235 = vmatprep.subr.mxu0 0.0
    %6236 = vmatpush1.msra.mxu0 0.0
    %6237 = vmatprep.subr.mxu0 0.0
    %6238 = vmatpush1.msra.mxu0 0.0
    %6239 = vmatprep.subr.mxu0 0.0
    %6240 = vmatpush1.msra.mxu0 0.0
    %6241 = vmatprep.subr.mxu0 0.0
    %6242 = vmatpush1.msra.mxu0 0.0
    %6243 = vmatprep.subr.mxu0 0.0
    %6244 = vmatpush1.msra.mxu0 0.0
    %6245 = vmatprep.subr.mxu0 0.0
    %6246 = vmatpush1.msra.mxu0 0.0
    %6247 = vmatprep.subr.mxu0 0.0
    %6248 = vmatpush1.msra.mxu0 0.0
    %6249 = vmatprep.subr.mxu0 0.0
    %6250 = vmatpush1.msra.mxu0 0.0
    %6251 = vmatprep.subr.mxu0 0.0
    %6252 = vmatpush1.msra.mxu0 0.0
    %6253 = vmatprep.subr.mxu0 0.0
    %6254 = vmatpush1.msra.mxu0 0.0
    %6255 = vmatprep.subr.mxu0 0.0
    %6256 = vmatpush1.msra.mxu0 0.0
    %6257 = vmatprep.subr.mxu0 0.0
    %6258 = vmatpush1.msra.mxu0 0.0
    %6259 = vmatprep.subr.mxu0 0.0
    %6260 = vmatpush1.msra.mxu0 0.0
    %6261 = vmatprep.subr.mxu0 0.0
    %6262 = vmatpush1.msra.mxu0 0.0
    %6263 = vmatprep.subr.mxu0 0.0
    %6264 = vmatpush1.msra.mxu0 0.0
    %6265 = vmatprep.subr.mxu0 0.0
    %6266 = vmatpush1.msra.mxu0 0.0
    %6267 = vmatprep.subr.mxu0 0.0
    %6268 = vmatpush1.msra.mxu0 0.0
    %6269 = vmatprep.subr.mxu0 0.0
    %6270 = vmatpush1.msra.mxu0 0.0
    %6271 = vmatprep.subr.mxu0 0.0
    %6272 = vmatpush1.msra.mxu0 0.0
    %6273 = vmatprep.subr.mxu0 0.0
    %6274 = vmatpush1.msra.mxu0 0.0
    %6275 = vmatprep.subr.mxu0 0.0
    %6276 = vmatpush1.msra.mxu0 0.0
    %6277 = vmatprep.subr.mxu0 0.0
    %6278 = vmatpush1.msra.mxu0 0.0
    %6279 = vmatprep.subr.mxu0 0.0
    %6280 = vmatpush1.msra.mxu0 0.0
    %6281 = vmatprep.subr.mxu0 0.0
    %6282 = vmatpush1.msra.mxu0 0.0
    %6283 = vmatprep.subr.mxu0 0.0
    %6284 = vmatpush1.msra.mxu0 0.0
    %6285 = vmatprep.mubr.f32.mxu0 0.0
    %6286 = vmatmul.mubr.f32.gmra.mrb[0].mxu0 %v6216
    %v6287 = vpop.f32.mrb[0].mxu0
    %v6288 = vadd.f32 0.0, %v6287
    %v6289 = vpop.f32.mrb[0].mxu0
    %6290 = vmatprep.mubr.f32.mxu0 0.0
    %6291 = vmatmul.mubr.f32.gmra.mrb[0].mxu0 %v6219
    %v6292 = vpop.f32.mrb[0].mxu0
    %v6293 = vadd.f32 0.0, %v6292
    %v6294 = vpop.f32.mrb[0].mxu0
    %6295 = vdwg.mxu0
    %v6297 = vsel %vm1021, %v5900, 0
    %v6300 = vsel %vm1021, %v5905, 0
    %v6303 = vsel %vm1021, %v5998, 0
    %v6306 = vsel %vm1021, %v6003, 0
    %6308 = vmatprep.subr.mxu0 0.0
    %6309 = vmatpush1.xpose.msra.mxu0 %v6303
    %6310 = vmatprep.subr.mxu0 0.0
    %6311 = vmatpush1.xpose.msra.mxu0 %v6306
    %6312 = vmatprep.subr.mxu0 0.0
    %6313 = vmatpush1.xpose.msra.mxu0 0.0
    %6314 = vmatprep.subr.mxu0 0.0
    %6315 = vmatpush1.xpose.msra.mxu0 0.0
    %6316 = vmatprep.subr.mxu0 0.0
    %6317 = vmatpush1.xpose.msra.mxu0 0.0
    %6318 = vmatprep.subr.mxu0 0.0
    %6319 = vmatpush1.xpose.msra.mxu0 0.0
    %6320 = vmatprep.subr.mxu0 0.0
    %6321 = vmatpush1.xpose.msra.mxu0 0.0
    %6322 = vmatprep.subr.mxu0 0.0
    %6323 = vmatpush1.xpose.msra.mxu0 0.0
    %6324 = vmatprep.subr.mxu0 0.0
    %6325 = vmatpush1.xpose.msra.mxu0 0.0
    %6326 = vmatprep.subr.mxu0 0.0
    %6327 = vmatpush1.xpose.msra.mxu0 0.0
    %6328 = vmatprep.subr.mxu0 0.0
    %6329 = vmatpush1.xpose.msra.mxu0 0.0
    %6330 = vmatprep.subr.mxu0 0.0
    %6331 = vmatpush1.xpose.msra.mxu0 0.0
    %6332 = vmatprep.subr.mxu0 0.0
    %6333 = vmatpush1.xpose.msra.mxu0 0.0
    %6334 = vmatprep.subr.mxu0 0.0
    %6335 = vmatpush1.xpose.msra.mxu0 0.0
    %6336 = vmatprep.subr.mxu0 0.0
    %6337 = vmatpush1.xpose.msra.mxu0 0.0
    %6338 = vmatprep.subr.mxu0 0.0
    %6339 = vmatpush1.xpose.msra.mxu0 0.0
    %6340 = vmatprep.subr.mxu0 0.0
    %6341 = vmatpush1.xpose.msra.mxu0 0.0
    %6342 = vmatprep.subr.mxu0 0.0
    %6343 = vmatpush1.xpose.msra.mxu0 0.0
    %6344 = vmatprep.subr.mxu0 0.0
    %6345 = vmatpush1.xpose.msra.mxu0 0.0
    %6346 = vmatprep.subr.mxu0 0.0
    %6347 = vmatpush1.xpose.msra.mxu0 0.0
    %6348 = vmatprep.subr.mxu0 0.0
    %6349 = vmatpush1.xpose.msra.mxu0 0.0
    %6350 = vmatprep.subr.mxu0 0.0
    %6351 = vmatpush1.xpose.msra.mxu0 0.0
    %6352 = vmatprep.subr.mxu0 0.0
    %6353 = vmatpush1.xpose.msra.mxu0 0.0
    %6354 = vmatprep.subr.mxu0 0.0
    %6355 = vmatpush1.xpose.msra.mxu0 0.0
    %6356 = vmatprep.subr.mxu0 0.0
    %6357 = vmatpush1.xpose.msra.mxu0 0.0
    %6358 = vmatprep.subr.mxu0 0.0
    %6359 = vmatpush1.xpose.msra.mxu0 0.0
    %6360 = vmatprep.subr.mxu0 0.0
    %6361 = vmatpush1.xpose.msra.mxu0 0.0
    %6362 = vmatprep.subr.mxu0 0.0
    %6363 = vmatpush1.xpose.msra.mxu0 0.0
    %6364 = vmatprep.subr.mxu0 0.0
    %6365 = vmatpush1.xpose.msra.mxu0 0.0
    %6366 = vmatprep.subr.mxu0 0.0
    %6367 = vmatpush1.xpose.msra.mxu0 0.0
    %6368 = vmatprep.subr.mxu0 0.0
    %6369 = vmatpush1.xpose.msra.mxu0 0.0
    %6370 = vmatprep.subr.mxu0 0.0
    %6371 = vmatpush1.xpose.msra.mxu0 0.0
    %6372 = vmatprep.mubr.f32.mxu0 0.0
    %6373 = vmatmul.mubr.f32.gmra.mrb[0].mxu0 %v6297
    %v6374 = vpop.f32.mrb[0].mxu0
    %v6375 = vadd.f32 0.0, %v6374
    %v6376 = vpop.f32.mrb[0].mxu0
    %6377 = vmatprep.mubr.f32.mxu0 0.0
    %6378 = vmatmul.mubr.f32.gmra.mrb[0].mxu0 %v6300
    %v6379 = vpop.f32.mrb[0].mxu0
    %v6380 = vadd.f32 0.0, %v6379
    %v6381 = vpop.f32.mrb[0].mxu0
    %6382 = vdwg.mxu0
    %v6383 = vmul.f32 %v6375, 0.35355338
    %v6384 = vmul.f32 %v6380, 0.35355338
    %v6385 = vsel %vm1111, %v6383, -inf
    %6386 = vmax.xlane.f32.xlu0 %v6385
    %v6387 = vpop.xlane.xlu0 %6386
    %v6388 = vsel %vm1111, %v6384, -inf
    %6389 = vmax.xlane.f32.xlu0 %v6388
    %v6390 = vpop.xlane.xlu0 %6389
    %v6391 = vsub.f32 %v6383, %v6387
    %v6392 = vsub.f32 %v6384, %v6390
    %v6393 = vmul.f32 %v6391, 1.442695
    %v6394 = vpow.pop %v6393
    %v6395 = vmul.f32 %v6392, 1.442695
    %v6396 = vpow.pop %v6395
    %v6397 = vsel %vm1111, %v6394, 0.0
    %6398 = vadd.xlane.f32.xlu0 %v6397
    %v6399 = vpop.xlane.xlu0 %6398
    %v6400 = vsel %vm1111, %v6396, 0.0
    %6401 = vadd.xlane.f32.xlu0 %v6400
    %v6402 = vpop.xlane.xlu0 %6401
    %v6403 = vrcp.pop %v6399
    %v6404 = vrcp.pop %v6402
    %v6405 = vmul.f32 %v6394, %v6403
    %v6406 = vmul.f32 %v6396, %v6404
    %v6408 = vsel %vm1111, %v6405, 0
    %v6411 = vsel %vm1111, %v6406, 0
    %6413 = vmatprep.subr.mxu0 0.0
    %6414 = vmatpush1.msra.mxu0 %v6096
    %6415 = vmatprep.subr.mxu0 0.0
    %6416 = vmatpush1.msra.mxu0 %v6101
    %6417 = vmatprep.subr.mxu0 0.0
    %6418 = vmatpush1.msra.mxu0 0.0
    %6419 = vmatprep.subr.mxu0 0.0
    %6420 = vmatpush1.msra.mxu0 0.0
    %6421 = vmatprep.subr.mxu0 0.0
    %6422 = vmatpush1.msra.mxu0 0.0
    %6423 = vmatprep.subr.mxu0 0.0
    %6424 = vmatpush1.msra.mxu0 0.0
    %6425 = vmatprep.subr.mxu0 0.0
    %6426 = vmatpush1.msra.mxu0 0.0
    %6427 = vmatprep.subr.mxu0 0.0
    %6428 = vmatpush1.msra.mxu0 0.0
    %6429 = vmatprep.subr.mxu0 0.0
    %6430 = vmatpush1.msra.mxu0 0.0
    %6431 = vmatprep.subr.mxu0 0.0
    %6432 = vmatpush1.msra.mxu0 0.0
    %6433 = vmatprep.subr.mxu0 0.0
    %6434 = vmatpush1.msra.mxu0 0.0
    %6435 = vmatprep.subr.mxu0 0.0
    %6436 = vmatpush1.msra.mxu0 0.0
    %6437 = vmatprep.subr.mxu0 0.0
    %6438 = vmatpush1.msra.mxu0 0.0
    %6439 = vmatprep.subr.mxu0 0.0
    %6440 = vmatpush1.msra.mxu0 0.0
    %6441 = vmatprep.subr.mxu0 0.0
    %6442 = vmatpush1.msra.mxu0 0.0
    %6443 = vmatprep.subr.mxu0 0.0
    %6444 = vmatpush1.msra.mxu0 0.0
    %6445 = vmatprep.subr.mxu0 0.0
    %6446 = vmatpush1.msra.mxu0 0.0
    %6447 = vmatprep.subr.mxu0 0.0
    %6448 = vmatpush1.msra.mxu0 0.0
    %6449 = vmatprep.subr.mxu0 0.0
    %6450 = vmatpush1.msra.mxu0 0.0
    %6451 = vmatprep.subr.mxu0 0.0
    %6452 = vmatpush1.msra.mxu0 0.0
    %6453 = vmatprep.subr.mxu0 0.0
    %6454 = vmatpush1.msra.mxu0 0.0
    %6455 = vmatprep.subr.mxu0 0.0
    %6456 = vmatpush1.msra.mxu0 0.0
    %6457 = vmatprep.subr.mxu0 0.0
    %6458 = vmatpush1.msra.mxu0 0.0
    %6459 = vmatprep.subr.mxu0 0.0
    %6460 = vmatpush1.msra.mxu0 0.0
    %6461 = vmatprep.subr.mxu0 0.0
    %6462 = vmatpush1.msra.mxu0 0.0
    %6463 = vmatprep.subr.mxu0 0.0
    %6464 = vmatpush1.msra.mxu0 0.0
    %6465 = vmatprep.subr.mxu0 0.0
    %6466 = vmatpush1.msra.mxu0 0.0
    %6467 = vmatprep.subr.mxu0 0.0
    %6468 = vmatpush1.msra.mxu0 0.0
    %6469 = vmatprep.subr.mxu0 0.0
    %6470 = vmatpush1.msra.mxu0 0.0
    %6471 = vmatprep.subr.mxu0 0.0
    %6472 = vmatpush1.msra.mxu0 0.0
    %6473 = vmatprep.subr.mxu0 0.0
    %6474 = vmatpush1.msra.mxu0 0.0
    %6475 = vmatprep.subr.mxu0 0.0
    %6476 = vmatpush1.msra.mxu0 0.0
    %6477 = vmatprep.mubr.f32.mxu0 0.0
    %6478 = vmatmul.mubr.f32.gmra.mrb[0].mxu0 %v6408
    %v6479 = vpop.f32.mrb[0].mxu0
    %v6480 = vadd.f32 0.0, %v6479
    %v6481 = vpop.f32.mrb[0].mxu0
    %6482 = vmatprep.mubr.f32.mxu0 0.0
    %6483 = vmatmul.mubr.f32.gmra.mrb[0].mxu0 %v6411
    %v6484 = vpop.f32.mrb[0].mxu0
    %v6485 = vadd.f32 0.0, %v6484
    %v6486 = vpop.f32.mrb[0].mxu0
    %6487 = vdwg.mxu0
    %s6488 = scalar_lea.vmem %s63, 16
    %v6489 = vld [vmem:[%s6488] sm:$0xff]
    %v6491 = vsel %vm1021, %v6288, 0
    %v6494 = vsel %vm1021, %v6293, 0
    %v6497 = vsel %vm1021, %v6480, 0
    %v6500 = vsel %vm1021, %v6485, 0
    %6502 = vmatprep.subr.mxu0 0.0
    %6503 = vmatpush1.msra.mxu0 %v6489
    %6504 = vmatprep.subr.mxu0 0.0
    %6505 = vmatpush1.msra.mxu0 0.0
    %6506 = vmatprep.subr.mxu0 0.0
    %6507 = vmatpush1.msra.mxu0 0.0
    %6508 = vmatprep.subr.mxu0 0.0
    %6509 = vmatpush1.msra.mxu0 0.0
    %6510 = vmatprep.subr.mxu0 0.0
    %6511 = vmatpush1.msra.mxu0 0.0
    %6512 = vmatprep.subr.mxu0 0.0
    %6513 = vmatpush1.msra.mxu0 0.0
    %6514 = vmatprep.subr.mxu0 0.0
    %6515 = vmatpush1.msra.mxu0 0.0
    %6516 = vmatprep.subr.mxu0 0.0
    %6517 = vmatpush1.msra.mxu0 0.0
    %6518 = vmatprep.subr.mxu0 0.0
    %6519 = vmatpush1.msra.mxu0 0.0
    %6520 = vmatprep.subr.mxu0 0.0
    %6521 = vmatpush1.msra.mxu0 0.0
    %6522 = vmatprep.subr.mxu0 0.0
    %6523 = vmatpush1.msra.mxu0 0.0
    %6524 = vmatprep.subr.mxu0 0.0
    %6525 = vmatpush1.msra.mxu0 0.0
    %6526 = vmatprep.subr.mxu0 0.0
    %6527 = vmatpush1.msra.mxu0 0.0
    %6528 = vmatprep.subr.mxu0 0.0
    %6529 = vmatpush1.msra.mxu0 0.0
    %6530 = vmatprep.subr.mxu0 0.0
    %6531 = vmatpush1.msra.mxu0 0.0
    %6532 = vmatprep.subr.mxu0 0.0
    %6533 = vmatpush1.msra.mxu0 0.0
    %6534 = vmatprep.subr.mxu0 0.0
    %6535 = vmatpush1.msra.mxu0 0.0
    %6536 = vmatprep.subr.mxu0 0.0
    %6537 = vmatpush1.msra.mxu0 0.0
    %6538 = vmatprep.subr.mxu0 0.0
    %6539 = vmatpush1.msra.mxu0 0.0
    %6540 = vmatprep.subr.mxu0 0.0
    %6541 = vmatpush1.msra.mxu0 0.0
    %6542 = vmatprep.subr.mxu0 0.0
    %6543 = vmatpush1.msra.mxu0 0.0
    %6544 = vmatprep.subr.mxu0 0.0
    %6545 = vmatpush1.msra.mxu0 0.0
    %6546 = vmatprep.subr.mxu0 0.0
    %6547 = vmatpush1.msra.mxu0 0.0
    %6548 = vmatprep.subr.mxu0 0.0
    %6549 = vmatpush1.msra.mxu0 0.0
    %6550 = vmatprep.subr.mxu0 0.0
    %6551 = vmatpush1.msra.mxu0 0.0
    %6552 = vmatprep.subr.mxu0 0.0
    %6553 = vmatpush1.msra.mxu0 0.0
    %6554 = vmatprep.subr.mxu0 0.0
    %6555 = vmatpush1.msra.mxu0 0.0
    %6556 = vmatprep.subr.mxu0 0.0
    %6557 = vmatpush1.msra.mxu0 0.0
    %6558 = vmatprep.subr.mxu0 0.0
    %6559 = vmatpush1.msra.mxu0 0.0
    %6560 = vmatprep.subr.mxu0 0.0
    %6561 = vmatpush1.msra.mxu0 0.0
    %6562 = vmatprep.subr.mxu0 0.0
    %6563 = vmatpush1.msra.mxu0 0.0
    %6564 = vmatprep.subr.mxu0 0.0
    %6565 = vmatpush1.msra.mxu0 0.0
    %6566 = vmatprep.mubr.f32.mxu0 0.0
    %6567 = vmatmul.mubr.f32.gmra.mrb[0].mxu0 %v6491
    %v6568 = vpop.f32.mrb[0].mxu0
    %v6569 = vadd.f32 0.0, %v6568
    %v6570 = vpop.f32.mrb[0].mxu0
    %6571 = vmatprep.mubr.f32.mxu0 0.0
    %6572 = vmatmul.mubr.f32.gmra.mrb[0].mxu0 %v6494
    %v6573 = vpop.f32.mrb[0].mxu0
    %v6574 = vadd.f32 0.0, %v6573
    %v6575 = vpop.f32.mrb[0].mxu0
    %6576 = vmatprep.mubr.f32.mxu0 0.0
    %6577 = vmatmul.mubr.f32.gmra.mrb[0].mxu0 %v6497
    %v6578 = vpop.f32.mrb[0].mxu0
    %v6579 = vadd.f32 0.0, %v6578
    %v6580 = vpop.f32.mrb[0].mxu0
    %6581 = vmatprep.mubr.f32.mxu0 0.0
    %6582 = vmatmul.mubr.f32.gmra.mrb[0].mxu0 %v6500
    %v6583 = vpop.f32.mrb[0].mxu0
    %v6584 = vadd.f32 0.0, %v6583
    %v6585 = vpop.f32.mrb[0].mxu0
    %6586 = vdwg.mxu0
    %v6587 = vadd.f32 %v5792, %v6569
    %v6588 = vadd.f32 %v5797, %v6574
    %v6589 = vadd.f32 %v5802, %v6579
    %v6590 = vadd.f32 %v5807, %v6584
    %s6591 = scalar_lea.vmem %s51, 96
    %v6592 = vld [vmem:[%s6591] sm:$0xff]
    %v6593 = vld [vmem:[%s6591 + $0x8] sm:$0xff]
    %v6594 = vld [vmem:[%s6591 + $0x10] sm:$0xff]
    %v6595 = vld [vmem:[%s6591 + $0x18] sm:$0xff]
    %s6596 = scalar_lea.vmem %s57, 3
    %v6597 = vld [vmem:[%s6596] sm:$0x1]
    %v6599 = vlaneseq
    %v6600 = vshrl.u32 %v6599, 7
    %v6601 = vsub.s32 0, %v6600
    %v6602 = vrot.slane %v6597, %v6601
    %6604 = vmatprep.subr.mxu0 0.0
    %6605 = vmatpush1.msra.mxu0 %v6592
    %6606 = vmatprep.subr.mxu0 0.0
    %6607 = vmatpush1.msra.mxu0 %v6593
    %6608 = vmatprep.subr.mxu0 0.0
    %6609 = vmatpush1.msra.mxu0 %v6594
    %6610 = vmatprep.subr.mxu0 0.0
    %6611 = vmatpush1.msra.mxu0 %v6595
    %6612 = vmatprep.subr.mxu0 0.0
    %6613 = vmatpush1.msra.mxu0 0.0
    %6614 = vmatprep.subr.mxu0 0.0
    %6615 = vmatpush1.msra.mxu0 0.0
    %6616 = vmatprep.subr.mxu0 0.0
    %6617 = vmatpush1.msra.mxu0 0.0
    %6618 = vmatprep.subr.mxu0 0.0
    %6619 = vmatpush1.msra.mxu0 0.0
    %6620 = vmatprep.subr.mxu0 0.0
    %6621 = vmatpush1.msra.mxu0 0.0
    %6622 = vmatprep.subr.mxu0 0.0
    %6623 = vmatpush1.msra.mxu0 0.0
    %6624 = vmatprep.subr.mxu0 0.0
    %6625 = vmatpush1.msra.mxu0 0.0
    %6626 = vmatprep.subr.mxu0 0.0
    %6627 = vmatpush1.msra.mxu0 0.0
    %6628 = vmatprep.subr.mxu0 0.0
    %6629 = vmatpush1.msra.mxu0 0.0
    %6630 = vmatprep.subr.mxu0 0.0
    %6631 = vmatpush1.msra.mxu0 0.0
    %6632 = vmatprep.subr.mxu0 0.0
    %6633 = vmatpush1.msra.mxu0 0.0
    %6634 = vmatprep.subr.mxu0 0.0
    %6635 = vmatpush1.msra.mxu0 0.0
    %6636 = vmatprep.subr.mxu0 0.0
    %6637 = vmatpush1.msra.mxu0 0.0
    %6638 = vmatprep.subr.mxu0 0.0
    %6639 = vmatpush1.msra.mxu0 0.0
    %6640 = vmatprep.subr.mxu0 0.0
    %6641 = vmatpush1.msra.mxu0 0.0
    %6642 = vmatprep.subr.mxu0 0.0
    %6643 = vmatpush1.msra.mxu0 0.0
    %6644 = vmatprep.subr.mxu0 0.0
    %6645 = vmatpush1.msra.mxu0 0.0
    %6646 = vmatprep.subr.mxu0 0.0
    %6647 = vmatpush1.msra.mxu0 0.0
    %6648 = vmatprep.subr.mxu0 0.0
    %6649 = vmatpush1.msra.mxu0 0.0
    %6650 = vmatprep.subr.mxu0 0.0
    %6651 = vmatpush1.msra.mxu0 0.0
    %6652 = vmatprep.subr.mxu0 0.0
    %6653 = vmatpush1.msra.mxu0 0.0
    %6654 = vmatprep.subr.mxu0 0.0
    %6655 = vmatpush1.msra.mxu0 0.0
    %6656 = vmatprep.subr.mxu0 0.0
    %6657 = vmatpush1.msra.mxu0 0.0
    %6658 = vmatprep.subr.mxu0 0.0
    %6659 = vmatpush1.msra.mxu0 0.0
    %6660 = vmatprep.subr.mxu0 0.0
    %6661 = vmatpush1.msra.mxu0 0.0
    %6662 = vmatprep.subr.mxu0 0.0
    %6663 = vmatpush1.msra.mxu0 0.0
    %6664 = vmatprep.subr.mxu0 0.0
    %6665 = vmatpush1.msra.mxu0 0.0
    %6666 = vmatprep.subr.mxu0 0.0
    %6667 = vmatpush1.msra.mxu0 0.0
    %6668 = vmatprep.mubr.f32.mxu0 0.0
    %6669 = vmatmul.mubr.f32.gmra.mrb[0].mxu0 %v4263
    %v6670 = vpop.f32.mrb[0].mxu0
    %v6671 = vadd.f32 %v6602, %v6670
    %v6672 = vpop.f32.mrb[0].mxu0
    %6673 = vmatprep.mubr.f32.mxu0 0.0
    %6674 = vmatmul.mubr.f32.gmra.mrb[0].mxu0 %v4266
    %v6675 = vpop.f32.mrb[0].mxu0
    %v6676 = vadd.f32 %v6602, %v6675
    %v6677 = vpop.f32.mrb[0].mxu0
    %6678 = vmatprep.mubr.f32.mxu0 0.0
    %6679 = vmatmul.mubr.f32.gmra.mrb[0].mxu0 %v4269
    %v6680 = vpop.f32.mrb[0].mxu0
    %v6681 = vadd.f32 %v6602, %v6680
    %v6682 = vpop.f32.mrb[0].mxu0
    %6683 = vmatprep.mubr.f32.mxu0 0.0
    %6684 = vmatmul.mubr.f32.gmra.mrb[0].mxu0 %v4272
    %v6685 = vpop.f32.mrb[0].mxu0
    %v6686 = vadd.f32 %v6602, %v6685
    %v6687 = vpop.f32.mrb[0].mxu0
    %6688 = vdwg.mxu0
    %s6689 = scalar_lea.vmem %s53, 96
    %v6690 = vld [vmem:[%s6689] sm:$0xff]
    %v6691 = vld [vmem:[%s6689 + $0x8] sm:$0xff]
    %v6692 = vld [vmem:[%s6689 + $0x10] sm:$0xff]
    %v6693 = vld [vmem:[%s6689 + $0x18] sm:$0xff]
    %s6694 = scalar_lea.vmem %s59, 3
    %v6695 = vld [vmem:[%s6694] sm:$0x1]
    %v6697 = vlaneseq
    %v6698 = vshrl.u32 %v6697, 7
    %v6699 = vsub.s32 0, %v6698
    %v6700 = vrot.slane %v6695, %v6699
    %6702 = vmatprep.subr.mxu0 0.0
    %6703 = vmatpush1.msra.mxu0 %v6690
    %6704 = vmatprep.subr.mxu0 0.0
    %6705 = vmatpush1.msra.mxu0 %v6691
    %6706 = vmatprep.subr.mxu0 0.0
    %6707 = vmatpush1.msra.mxu0 %v6692
    %6708 = vmatprep.subr.mxu0 0.0
    %6709 = vmatpush1.msra.mxu0 %v6693
    %6710 = vmatprep.subr.mxu0 0.0
    %6711 = vmatpush1.msra.mxu0 0.0
    %6712 = vmatprep.subr.mxu0 0.0
    %6713 = vmatpush1.msra.mxu0 0.0
    %6714 = vmatprep.subr.mxu0 0.0
    %6715 = vmatpush1.msra.mxu0 0.0
    %6716 = vmatprep.subr.mxu0 0.0
    %6717 = vmatpush1.msra.mxu0 0.0
    %6718 = vmatprep.subr.mxu0 0.0
    %6719 = vmatpush1.msra.mxu0 0.0
    %6720 = vmatprep.subr.mxu0 0.0
    %6721 = vmatpush1.msra.mxu0 0.0
    %6722 = vmatprep.subr.mxu0 0.0
    %6723 = vmatpush1.msra.mxu0 0.0
    %6724 = vmatprep.subr.mxu0 0.0
    %6725 = vmatpush1.msra.mxu0 0.0
    %6726 = vmatprep.subr.mxu0 0.0
    %6727 = vmatpush1.msra.mxu0 0.0
    %6728 = vmatprep.subr.mxu0 0.0
    %6729 = vmatpush1.msra.mxu0 0.0
    %6730 = vmatprep.subr.mxu0 0.0
    %6731 = vmatpush1.msra.mxu0 0.0
    %6732 = vmatprep.subr.mxu0 0.0
    %6733 = vmatpush1.msra.mxu0 0.0
    %6734 = vmatprep.subr.mxu0 0.0
    %6735 = vmatpush1.msra.mxu0 0.0
    %6736 = vmatprep.subr.mxu0 0.0
    %6737 = vmatpush1.msra.mxu0 0.0
    %6738 = vmatprep.subr.mxu0 0.0
    %6739 = vmatpush1.msra.mxu0 0.0
    %6740 = vmatprep.subr.mxu0 0.0
    %6741 = vmatpush1.msra.mxu0 0.0
    %6742 = vmatprep.subr.mxu0 0.0
    %6743 = vmatpush1.msra.mxu0 0.0
    %6744 = vmatprep.subr.mxu0 0.0
    %6745 = vmatpush1.msra.mxu0 0.0
    %6746 = vmatprep.subr.mxu0 0.0
    %6747 = vmatpush1.msra.mxu0 0.0
    %6748 = vmatprep.subr.mxu0 0.0
    %6749 = vmatpush1.msra.mxu0 0.0
    %6750 = vmatprep.subr.mxu0 0.0
    %6751 = vmatpush1.msra.mxu0 0.0
    %6752 = vmatprep.subr.mxu0 0.0
    %6753 = vmatpush1.msra.mxu0 0.0
    %6754 = vmatprep.subr.mxu0 0.0
    %6755 = vmatpush1.msra.mxu0 0.0
    %6756 = vmatprep.subr.mxu0 0.0
    %6757 = vmatpush1.msra.mxu0 0.0
    %6758 = vmatprep.subr.mxu0 0.0
    %6759 = vmatpush1.msra.mxu0 0.0
    %6760 = vmatprep.subr.mxu0 0.0
    %6761 = vmatpush1.msra.mxu0 0.0
    %6762 = vmatprep.subr.mxu0 0.0
    %6763 = vmatpush1.msra.mxu0 0.0
    %6764 = vmatprep.subr.mxu0 0.0
    %6765 = vmatpush1.msra.mxu0 0.0
    %6766 = vmatprep.mubr.f32.mxu0 0.0
    %6767 = vmatmul.mubr.f32.gmra.mrb[0].mxu0 %v4263
    %v6768 = vpop.f32.mrb[0].mxu0
    %v6769 = vadd.f32 %v6700, %v6768
    %v6770 = vpop.f32.mrb[0].mxu0
    %6771 = vmatprep.mubr.f32.mxu0 0.0
    %6772 = vmatmul.mubr.f32.gmra.mrb[0].mxu0 %v4266
    %v6773 = vpop.f32.mrb[0].mxu0
    %v6774 = vadd.f32 %v6700, %v6773
    %v6775 = vpop.f32.mrb[0].mxu0
    %6776 = vmatprep.mubr.f32.mxu0 0.0
    %6777 = vmatmul.mubr.f32.gmra.mrb[0].mxu0 %v4269
    %v6778 = vpop.f32.mrb[0].mxu0
    %v6779 = vadd.f32 %v6700, %v6778
    %v6780 = vpop.f32.mrb[0].mxu0
    %6781 = vmatprep.mubr.f32.mxu0 0.0
    %6782 = vmatmul.mubr.f32.gmra.mrb[0].mxu0 %v4272
    %v6783 = vpop.f32.mrb[0].mxu0
    %v6784 = vadd.f32 %v6700, %v6783
    %v6785 = vpop.f32.mrb[0].mxu0
    %6786 = vdwg.mxu0
    %s6787 = scalar_lea.vmem %s55, 96
    %v6788 = vld [vmem:[%s6787] sm:$0xff]
    %v6789 = vld [vmem:[%s6787 + $0x8] sm:$0xff]
    %v6790 = vld [vmem:[%s6787 + $0x10] sm:$0xff]
    %v6791 = vld [vmem:[%s6787 + $0x18] sm:$0xff]
    %s6792 = scalar_lea.vmem %s61, 3
    %v6793 = vld [vmem:[%s6792] sm:$0x1]
    %v6795 = vlaneseq
    %v6796 = vshrl.u32 %v6795, 7
    %v6797 = vsub.s32 0, %v6796
    %v6798 = vrot.slane %v6793, %v6797
    %6800 = vmatprep.subr.mxu0 0.0
    %6801 = vmatpush1.msra.mxu0 %v6788
    %6802 = vmatprep.subr.mxu0 0.0
    %6803 = vmatpush1.msra.mxu0 %v6789
    %6804 = vmatprep.subr.mxu0 0.0
    %6805 = vmatpush1.msra.mxu0 %v6790
    %6806 = vmatprep.subr.mxu0 0.0
    %6807 = vmatpush1.msra.mxu0 %v6791
    %6808 = vmatprep.subr.mxu0 0.0
    %6809 = vmatpush1.msra.mxu0 0.0
    %6810 = vmatprep.subr.mxu0 0.0
    %6811 = vmatpush1.msra.mxu0 0.0
    %6812 = vmatprep.subr.mxu0 0.0
    %6813 = vmatpush1.msra.mxu0 0.0
    %6814 = vmatprep.subr.mxu0 0.0
    %6815 = vmatpush1.msra.mxu0 0.0
    %6816 = vmatprep.subr.mxu0 0.0
    %6817 = vmatpush1.msra.mxu0 0.0
    %6818 = vmatprep.subr.mxu0 0.0
    %6819 = vmatpush1.msra.mxu0 0.0
    %6820 = vmatprep.subr.mxu0 0.0
    %6821 = vmatpush1.msra.mxu0 0.0
    %6822 = vmatprep.subr.mxu0 0.0
    %6823 = vmatpush1.msra.mxu0 0.0
    %6824 = vmatprep.subr.mxu0 0.0
    %6825 = vmatpush1.msra.mxu0 0.0
    %6826 = vmatprep.subr.mxu0 0.0
    %6827 = vmatpush1.msra.mxu0 0.0
    %6828 = vmatprep.subr.mxu0 0.0
    %6829 = vmatpush1.msra.mxu0 0.0
    %6830 = vmatprep.subr.mxu0 0.0
    %6831 = vmatpush1.msra.mxu0 0.0
    %6832 = vmatprep.subr.mxu0 0.0
    %6833 = vmatpush1.msra.mxu0 0.0
    %6834 = vmatprep.subr.mxu0 0.0
    %6835 = vmatpush1.msra.mxu0 0.0
    %6836 = vmatprep.subr.mxu0 0.0
    %6837 = vmatpush1.msra.mxu0 0.0
    %6838 = vmatprep.subr.mxu0 0.0
    %6839 = vmatpush1.msra.mxu0 0.0
    %6840 = vmatprep.subr.mxu0 0.0
    %6841 = vmatpush1.msra.mxu0 0.0
    %6842 = vmatprep.subr.mxu0 0.0
    %6843 = vmatpush1.msra.mxu0 0.0
    %6844 = vmatprep.subr.mxu0 0.0
    %6845 = vmatpush1.msra.mxu0 0.0
    %6846 = vmatprep.subr.mxu0 0.0
    %6847 = vmatpush1.msra.mxu0 0.0
    %6848 = vmatprep.subr.mxu0 0.0
    %6849 = vmatpush1.msra.mxu0 0.0
    %6850 = vmatprep.subr.mxu0 0.0
    %6851 = vmatpush1.msra.mxu0 0.0
    %6852 = vmatprep.subr.mxu0 0.0
    %6853 = vmatpush1.msra.mxu0 0.0
    %6854 = vmatprep.subr.mxu0 0.0
    %6855 = vmatpush1.msra.mxu0 0.0
    %6856 = vmatprep.subr.mxu0 0.0
    %6857 = vmatpush1.msra.mxu0 0.0
    %6858 = vmatprep.subr.mxu0 0.0
    %6859 = vmatpush1.msra.mxu0 0.0
    %6860 = vmatprep.subr.mxu0 0.0
    %6861 = vmatpush1.msra.mxu0 0.0
    %6862 = vmatprep.subr.mxu0 0.0
    %6863 = vmatpush1.msra.mxu0 0.0
    %6864 = vmatprep.mubr.f32.mxu0 0.0
    %6865 = vmatmul.mubr.f32.gmra.mrb[0].mxu0 %v4263
    %v6866 = vpop.f32.mrb[0].mxu0
    %v6867 = vadd.f32 %v6798, %v6866
    %v6868 = vpop.f32.mrb[0].mxu0
    %6869 = vmatprep.mubr.f32.mxu0 0.0
    %6870 = vmatmul.mubr.f32.gmra.mrb[0].mxu0 %v4266
    %v6871 = vpop.f32.mrb[0].mxu0
    %v6872 = vadd.f32 %v6798, %v6871
    %v6873 = vpop.f32.mrb[0].mxu0
    %6874 = vmatprep.mubr.f32.mxu0 0.0
    %6875 = vmatmul.mubr.f32.gmra.mrb[0].mxu0 %v4269
    %v6876 = vpop.f32.mrb[0].mxu0
    %v6877 = vadd.f32 %v6798, %v6876
    %v6878 = vpop.f32.mrb[0].mxu0
    %6879 = vmatprep.mubr.f32.mxu0 0.0
    %6880 = vmatmul.mubr.f32.gmra.mrb[0].mxu0 %v4272
    %v6881 = vpop.f32.mrb[0].mxu0
    %v6882 = vadd.f32 %v6798, %v6881
    %v6883 = vpop.f32.mrb[0].mxu0
    %6884 = vdwg.mxu0
    %v6886 = vsel %vm1021, %v6671, 0
    %v6889 = vsel %vm1021, %v6676, 0
    %v6892 = vsel %vm1021, %v6769, 0
    %v6895 = vsel %vm1021, %v6774, 0
    %6897 = vmatprep.subr.mxu0 0.0
    %6898 = vmatpush1.xpose.msra.mxu0 %v6892
    %6899 = vmatprep.subr.mxu0 0.0
    %6900 = vmatpush1.xpose.msra.mxu0 %v6895
    %6901 = vmatprep.subr.mxu0 0.0
    %6902 = vmatpush1.xpose.msra.mxu0 0.0
    %6903 = vmatprep.subr.mxu0 0.0
    %6904 = vmatpush1.xpose.msra.mxu0 0.0
    %6905 = vmatprep.subr.mxu0 0.0
    %6906 = vmatpush1.xpose.msra.mxu0 0.0
    %6907 = vmatprep.subr.mxu0 0.0
    %6908 = vmatpush1.xpose.msra.mxu0 0.0
    %6909 = vmatprep.subr.mxu0 0.0
    %6910 = vmatpush1.xpose.msra.mxu0 0.0
    %6911 = vmatprep.subr.mxu0 0.0
    %6912 = vmatpush1.xpose.msra.mxu0 0.0
    %6913 = vmatprep.subr.mxu0 0.0
    %6914 = vmatpush1.xpose.msra.mxu0 0.0
    %6915 = vmatprep.subr.mxu0 0.0
    %6916 = vmatpush1.xpose.msra.mxu0 0.0
    %6917 = vmatprep.subr.mxu0 0.0
    %6918 = vmatpush1.xpose.msra.mxu0 0.0
    %6919 = vmatprep.subr.mxu0 0.0
    %6920 = vmatpush1.xpose.msra.mxu0 0.0
    %6921 = vmatprep.subr.mxu0 0.0
    %6922 = vmatpush1.xpose.msra.mxu0 0.0
    %6923 = vmatprep.subr.mxu0 0.0
    %6924 = vmatpush1.xpose.msra.mxu0 0.0
    %6925 = vmatprep.subr.mxu0 0.0
    %6926 = vmatpush1.xpose.msra.mxu0 0.0
    %6927 = vmatprep.subr.mxu0 0.0
    %6928 = vmatpush1.xpose.msra.mxu0 0.0
    %6929 = vmatprep.subr.mxu0 0.0
    %6930 = vmatpush1.xpose.msra.mxu0 0.0
    %6931 = vmatprep.subr.mxu0 0.0
    %6932 = vmatpush1.xpose.msra.mxu0 0.0
    %6933 = vmatprep.subr.mxu0 0.0
    %6934 = vmatpush1.xpose.msra.mxu0 0.0
    %6935 = vmatprep.subr.mxu0 0.0
    %6936 = vmatpush1.xpose.msra.mxu0 0.0
    %6937 = vmatprep.subr.mxu0 0.0
    %6938 = vmatpush1.xpose.msra.mxu0 0.0
    %6939 = vmatprep.subr.mxu0 0.0
    %6940 = vmatpush1.xpose.msra.mxu0 0.0
    %6941 = vmatprep.subr.mxu0 0.0
    %6942 = vmatpush1.xpose.msra.mxu0 0.0
    %6943 = vmatprep.subr.mxu0 0.0
    %6944 = vmatpush1.xpose.msra.mxu0 0.0
    %6945 = vmatprep.subr.mxu0 0.0
    %6946 = vmatpush1.xpose.msra.mxu0 0.0
    %6947 = vmatprep.subr.mxu0 0.0
    %6948 = vmatpush1.xpose.msra.mxu0 0.0
    %6949 = vmatprep.subr.mxu0 0.0
    %6950 = vmatpush1.xpose.msra.mxu0 0.0
    %6951 = vmatprep.subr.mxu0 0.0
    %6952 = vmatpush1.xpose.msra.mxu0 0.0
    %6953 = vmatprep.subr.mxu0 0.0
    %6954 = vmatpush1.xpose.msra.mxu0 0.0
    %6955 = vmatprep.subr.mxu0 0.0
    %6956 = vmatpush1.xpose.msra.mxu0 0.0
    %6957 = vmatprep.subr.mxu0 0.0
    %6958 = vmatpush1.xpose.msra.mxu0 0.0
    %6959 = vmatprep.subr.mxu0 0.0
    %6960 = vmatpush1.xpose.msra.mxu0 0.0
    %6961 = vmatprep.mubr.f32.mxu0 0.0
    %6962 = vmatmul.mubr.f32.gmra.mrb[0].mxu0 %v6886
    %v6963 = vpop.f32.mrb[0].mxu0
    %v6964 = vadd.f32 0.0, %v6963
    %v6965 = vpop.f32.mrb[0].mxu0
    %6966 = vmatprep.mubr.f32.mxu0 0.0
    %6967 = vmatmul.mubr.f32.gmra.mrb[0].mxu0 %v6889
    %v6968 = vpop.f32.mrb[0].mxu0
    %v6969 = vadd.f32 0.0, %v6968
    %v6970 = vpop.f32.mrb[0].mxu0
    %6971 = vdwg.mxu0
    %v6972 = vmul.f32 %v6964, 0.35355338
    %v6973 = vmul.f32 %v6969, 0.35355338
    %v6974 = vsel %vm1111, %v6972, -inf
    %6975 = vmax.xlane.f32.xlu0 %v6974
    %v6976 = vpop.xlane.xlu0 %6975
    %v6977 = vsel %vm1111, %v6973, -inf
    %6978 = vmax.xlane.f32.xlu0 %v6977
    %v6979 = vpop.xlane.xlu0 %6978
    %v6980 = vsub.f32 %v6972, %v6976
    %v6981 = vsub.f32 %v6973, %v6979
    %v6982 = vmul.f32 %v6980, 1.442695
    %v6983 = vpow.pop %v6982
    %v6984 = vmul.f32 %v6981, 1.442695
    %v6985 = vpow.pop %v6984
    %v6986 = vsel %vm1111, %v6983, 0.0
    %6987 = vadd.xlane.f32.xlu0 %v6986
    %v6988 = vpop.xlane.xlu0 %6987
    %v6989 = vsel %vm1111, %v6985, 0.0
    %6990 = vadd.xlane.f32.xlu0 %v6989
    %v6991 = vpop.xlane.xlu0 %6990
    %v6992 = vrcp.pop %v6988
    %v6993 = vrcp.pop %v6991
    %v6994 = vmul.f32 %v6983, %v6992
    %v6995 = vmul.f32 %v6985, %v6993
    %v6997 = vsel %vm1111, %v6994, 0
    %v7000 = vsel %vm1111, %v6995, 0
    %7002 = vmatprep.subr.mxu0 0.0
    %7003 = vmatpush1.msra.mxu0 %v6867
    %7004 = vmatprep.subr.mxu0 0.0
    %7005 = vmatpush1.msra.mxu0 %v6872
    %7006 = vmatprep.subr.mxu0 0.0
    %7007 = vmatpush1.msra.mxu0 0.0
    %7008 = vmatprep.subr.mxu0 0.0
    %7009 = vmatpush1.msra.mxu0 0.0
    %7010 = vmatprep.subr.mxu0 0.0
    %7011 = vmatpush1.msra.mxu0 0.0
    %7012 = vmatprep.subr.mxu0 0.0
    %7013 = vmatpush1.msra.mxu0 0.0
    %7014 = vmatprep.subr.mxu0 0.0
    %7015 = vmatpush1.msra.mxu0 0.0
    %7016 = vmatprep.subr.mxu0 0.0
    %7017 = vmatpush1.msra.mxu0 0.0
    %7018 = vmatprep.subr.mxu0 0.0
    %7019 = vmatpush1.msra.mxu0 0.0
    %7020 = vmatprep.subr.mxu0 0.0
    %7021 = vmatpush1.msra.mxu0 0.0
    %7022 = vmatprep.subr.mxu0 0.0
    %7023 = vmatpush1.msra.mxu0 0.0
    %7024 = vmatprep.subr.mxu0 0.0
    %7025 = vmatpush1.msra.mxu0 0.0
    %7026 = vmatprep.subr.mxu0 0.0
    %7027 = vmatpush1.msra.mxu0 0.0
    %7028 = vmatprep.subr.mxu0 0.0
    %7029 = vmatpush1.msra.mxu0 0.0
    %7030 = vmatprep.subr.mxu0 0.0
    %7031 = vmatpush1.msra.mxu0 0.0
    %7032 = vmatprep.subr.mxu0 0.0
    %7033 = vmatpush1.msra.mxu0 0.0
    %7034 = vmatprep.subr.mxu0 0.0
    %7035 = vmatpush1.msra.mxu0 0.0
    %7036 = vmatprep.subr.mxu0 0.0
    %7037 = vmatpush1.msra.mxu0 0.0
    %7038 = vmatprep.subr.mxu0 0.0
    %7039 = vmatpush1.msra.mxu0 0.0
    %7040 = vmatprep.subr.mxu0 0.0
    %7041 = vmatpush1.msra.mxu0 0.0
    %7042 = vmatprep.subr.mxu0 0.0
    %7043 = vmatpush1.msra.mxu0 0.0
    %7044 = vmatprep.subr.mxu0 0.0
    %7045 = vmatpush1.msra.mxu0 0.0
    %7046 = vmatprep.subr.mxu0 0.0
    %7047 = vmatpush1.msra.mxu0 0.0
    %7048 = vmatprep.subr.mxu0 0.0
    %7049 = vmatpush1.msra.mxu0 0.0
    %7050 = vmatprep.subr.mxu0 0.0
    %7051 = vmatpush1.msra.mxu0 0.0
    %7052 = vmatprep.subr.mxu0 0.0
    %7053 = vmatpush1.msra.mxu0 0.0
    %7054 = vmatprep.subr.mxu0 0.0
    %7055 = vmatpush1.msra.mxu0 0.0
    %7056 = vmatprep.subr.mxu0 0.0
    %7057 = vmatpush1.msra.mxu0 0.0
    %7058 = vmatprep.subr.mxu0 0.0
    %7059 = vmatpush1.msra.mxu0 0.0
    %7060 = vmatprep.subr.mxu0 0.0
    %7061 = vmatpush1.msra.mxu0 0.0
    %7062 = vmatprep.subr.mxu0 0.0
    %7063 = vmatpush1.msra.mxu0 0.0
    %7064 = vmatprep.subr.mxu0 0.0
    %7065 = vmatpush1.msra.mxu0 0.0
    %7066 = vmatprep.mubr.f32.mxu0 0.0
    %7067 = vmatmul.mubr.f32.gmra.mrb[0].mxu0 %v6997
    %v7068 = vpop.f32.mrb[0].mxu0
    %v7069 = vadd.f32 0.0, %v7068
    %v7070 = vpop.f32.mrb[0].mxu0
    %7071 = vmatprep.mubr.f32.mxu0 0.0
    %7072 = vmatmul.mubr.f32.gmra.mrb[0].mxu0 %v7000
    %v7073 = vpop.f32.mrb[0].mxu0
    %v7074 = vadd.f32 0.0, %v7073
    %v7075 = vpop.f32.mrb[0].mxu0
    %7076 = vdwg.mxu0
    %v7078 = vsel %vm1021, %v6681, 0
    %v7081 = vsel %vm1021, %v6686, 0
    %v7084 = vsel %vm1021, %v6779, 0
    %v7087 = vsel %vm1021, %v6784, 0
    %7089 = vmatprep.subr.mxu0 0.0
    %7090 = vmatpush1.xpose.msra.mxu0 %v7084
    %7091 = vmatprep.subr.mxu0 0.0
    %7092 = vmatpush1.xpose.msra.mxu0 %v7087
    %7093 = vmatprep.subr.mxu0 0.0
    %7094 = vmatpush1.xpose.msra.mxu0 0.0
    %7095 = vmatprep.subr.mxu0 0.0
    %7096 = vmatpush1.xpose.msra.mxu0 0.0
    %7097 = vmatprep.subr.mxu0 0.0
    %7098 = vmatpush1.xpose.msra.mxu0 0.0
    %7099 = vmatprep.subr.mxu0 0.0
    %7100 = vmatpush1.xpose.msra.mxu0 0.0
    %7101 = vmatprep.subr.mxu0 0.0
    %7102 = vmatpush1.xpose.msra.mxu0 0.0
    %7103 = vmatprep.subr.mxu0 0.0
    %7104 = vmatpush1.xpose.msra.mxu0 0.0
    %7105 = vmatprep.subr.mxu0 0.0
    %7106 = vmatpush1.xpose.msra.mxu0 0.0
    %7107 = vmatprep.subr.mxu0 0.0
    %7108 = vmatpush1.xpose.msra.mxu0 0.0
    %7109 = vmatprep.subr.mxu0 0.0
    %7110 = vmatpush1.xpose.msra.mxu0 0.0
    %7111 = vmatprep.subr.mxu0 0.0
    %7112 = vmatpush1.xpose.msra.mxu0 0.0
    %7113 = vmatprep.subr.mxu0 0.0
    %7114 = vmatpush1.xpose.msra.mxu0 0.0
    %7115 = vmatprep.subr.mxu0 0.0
    %7116 = vmatpush1.xpose.msra.mxu0 0.0
    %7117 = vmatprep.subr.mxu0 0.0
    %7118 = vmatpush1.xpose.msra.mxu0 0.0
    %7119 = vmatprep.subr.mxu0 0.0
    %7120 = vmatpush1.xpose.msra.mxu0 0.0
    %7121 = vmatprep.subr.mxu0 0.0
    %7122 = vmatpush1.xpose.msra.mxu0 0.0
    %7123 = vmatprep.subr.mxu0 0.0
    %7124 = vmatpush1.xpose.msra.mxu0 0.0
    %7125 = vmatprep.subr.mxu0 0.0
    %7126 = vmatpush1.xpose.msra.mxu0 0.0
    %7127 = vmatprep.subr.mxu0 0.0
    %7128 = vmatpush1.xpose.msra.mxu0 0.0
    %7129 = vmatprep.subr.mxu0 0.0
    %7130 = vmatpush1.xpose.msra.mxu0 0.0
    %7131 = vmatprep.subr.mxu0 0.0
    %7132 = vmatpush1.xpose.msra.mxu0 0.0
    %7133 = vmatprep.subr.mxu0 0.0
    %7134 = vmatpush1.xpose.msra.mxu0 0.0
    %7135 = vmatprep.subr.mxu0 0.0
    %7136 = vmatpush1.xpose.msra.mxu0 0.0
    %7137 = vmatprep.subr.mxu0 0.0
    %7138 = vmatpush1.xpose.msra.mxu0 0.0
    %7139 = vmatprep.subr.mxu0 0.0
    %7140 = vmatpush1.xpose.msra.mxu0 0.0
    %7141 = vmatprep.subr.mxu0 0.0
    %7142 = vmatpush1.xpose.msra.mxu0 0.0
    %7143 = vmatprep.subr.mxu0 0.0
    %7144 = vmatpush1.xpose.msra.mxu0 0.0
    %7145 = vmatprep.subr.mxu0 0.0
    %7146 = vmatpush1.xpose.msra.mxu0 0.0
    %7147 = vmatprep.subr.mxu0 0.0
    %7148 = vmatpush1.xpose.msra.mxu0 0.0
    %7149 = vmatprep.subr.mxu0 0.0
    %7150 = vmatpush1.xpose.msra.mxu0 0.0
    %7151 = vmatprep.subr.mxu0 0.0
    %7152 = vmatpush1.xpose.msra.mxu0 0.0
    %7153 = vmatprep.mubr.f32.mxu0 0.0
    %7154 = vmatmul.mubr.f32.gmra.mrb[0].mxu0 %v7078
    %v7155 = vpop.f32.mrb[0].mxu0
    %v7156 = vadd.f32 0.0, %v7155
    %v7157 = vpop.f32.mrb[0].mxu0
    %7158 = vmatprep.mubr.f32.mxu0 0.0
    %7159 = vmatmul.mubr.f32.gmra.mrb[0].mxu0 %v7081
    %v7160 = vpop.f32.mrb[0].mxu0
    %v7161 = vadd.f32 0.0, %v7160
    %v7162 = vpop.f32.mrb[0].mxu0
    %7163 = vdwg.mxu0
    %v7164 = vmul.f32 %v7156, 0.35355338
    %v7165 = vmul.f32 %v7161, 0.35355338
    %v7166 = vsel %vm1111, %v7164, -inf
    %7167 = vmax.xlane.f32.xlu0 %v7166
    %v7168 = vpop.xlane.xlu0 %7167
    %v7169 = vsel %vm1111, %v7165, -inf
    %7170 = vmax.xlane.f32.xlu0 %v7169
    %v7171 = vpop.xlane.xlu0 %7170
    %v7172 = vsub.f32 %v7164, %v7168
    %v7173 = vsub.f32 %v7165, %v7171
    %v7174 = vmul.f32 %v7172, 1.442695
    %v7175 = vpow.pop %v7174
    %v7176 = vmul.f32 %v7173, 1.442695
    %v7177 = vpow.pop %v7176
    %v7178 = vsel %vm1111, %v7175, 0.0
    %7179 = vadd.xlane.f32.xlu0 %v7178
    %v7180 = vpop.xlane.xlu0 %7179
    %v7181 = vsel %vm1111, %v7177, 0.0
    %7182 = vadd.xlane.f32.xlu0 %v7181
    %v7183 = vpop.xlane.xlu0 %7182
    %v7184 = vrcp.pop %v7180
    %v7185 = vrcp.pop %v7183
    %v7186 = vmul.f32 %v7175, %v7184
    %v7187 = vmul.f32 %v7177, %v7185
    %v7189 = vsel %vm1111, %v7186, 0
    %v7192 = vsel %vm1111, %v7187, 0
    %7194 = vmatprep.subr.mxu0 0.0
    %7195 = vmatpush1.msra.mxu0 %v6877
    %7196 = vmatprep.subr.mxu0 0.0
    %7197 = vmatpush1.msra.mxu0 %v6882
    %7198 = vmatprep.subr.mxu0 0.0
    %7199 = vmatpush1.msra.mxu0 0.0
    %7200 = vmatprep.subr.mxu0 0.0
    %7201 = vmatpush1.msra.mxu0 0.0
    %7202 = vmatprep.subr.mxu0 0.0
    %7203 = vmatpush1.msra.mxu0 0.0
    %7204 = vmatprep.subr.mxu0 0.0
    %7205 = vmatpush1.msra.mxu0 0.0
    %7206 = vmatprep.subr.mxu0 0.0
    %7207 = vmatpush1.msra.mxu0 0.0
    %7208 = vmatprep.subr.mxu0 0.0
    %7209 = vmatpush1.msra.mxu0 0.0
    %7210 = vmatprep.subr.mxu0 0.0
    %7211 = vmatpush1.msra.mxu0 0.0
    %7212 = vmatprep.subr.mxu0 0.0
    %7213 = vmatpush1.msra.mxu0 0.0
    %7214 = vmatprep.subr.mxu0 0.0
    %7215 = vmatpush1.msra.mxu0 0.0
    %7216 = vmatprep.subr.mxu0 0.0
    %7217 = vmatpush1.msra.mxu0 0.0
    %7218 = vmatprep.subr.mxu0 0.0
    %7219 = vmatpush1.msra.mxu0 0.0
    %7220 = vmatprep.subr.mxu0 0.0
    %7221 = vmatpush1.msra.mxu0 0.0
    %7222 = vmatprep.subr.mxu0 0.0
    %7223 = vmatpush1.msra.mxu0 0.0
    %7224 = vmatprep.subr.mxu0 0.0
    %7225 = vmatpush1.msra.mxu0 0.0
    %7226 = vmatprep.subr.mxu0 0.0
    %7227 = vmatpush1.msra.mxu0 0.0
    %7228 = vmatprep.subr.mxu0 0.0
    %7229 = vmatpush1.msra.mxu0 0.0
    %7230 = vmatprep.subr.mxu0 0.0
    %7231 = vmatpush1.msra.mxu0 0.0
    %7232 = vmatprep.subr.mxu0 0.0
    %7233 = vmatpush1.msra.mxu0 0.0
    %7234 = vmatprep.subr.mxu0 0.0
    %7235 = vmatpush1.msra.mxu0 0.0
    %7236 = vmatprep.subr.mxu0 0.0
    %7237 = vmatpush1.msra.mxu0 0.0
    %7238 = vmatprep.subr.mxu0 0.0
    %7239 = vmatpush1.msra.mxu0 0.0
    %7240 = vmatprep.subr.mxu0 0.0
    %7241 = vmatpush1.msra.mxu0 0.0
    %7242 = vmatprep.subr.mxu0 0.0
    %7243 = vmatpush1.msra.mxu0 0.0
    %7244 = vmatprep.subr.mxu0 0.0
    %7245 = vmatpush1.msra.mxu0 0.0
    %7246 = vmatprep.subr.mxu0 0.0
    %7247 = vmatpush1.msra.mxu0 0.0
    %7248 = vmatprep.subr.mxu0 0.0
    %7249 = vmatpush1.msra.mxu0 0.0
    %7250 = vmatprep.subr.mxu0 0.0
    %7251 = vmatpush1.msra.mxu0 0.0
    %7252 = vmatprep.subr.mxu0 0.0
    %7253 = vmatpush1.msra.mxu0 0.0
    %7254 = vmatprep.subr.mxu0 0.0
    %7255 = vmatpush1.msra.mxu0 0.0
    %7256 = vmatprep.subr.mxu0 0.0
    %7257 = vmatpush1.msra.mxu0 0.0
    %7258 = vmatprep.mubr.f32.mxu0 0.0
    %7259 = vmatmul.mubr.f32.gmra.mrb[0].mxu0 %v7189
    %v7260 = vpop.f32.mrb[0].mxu0
    %v7261 = vadd.f32 0.0, %v7260
    %v7262 = vpop.f32.mrb[0].mxu0
    %7263 = vmatprep.mubr.f32.mxu0 0.0
    %7264 = vmatmul.mubr.f32.gmra.mrb[0].mxu0 %v7192
    %v7265 = vpop.f32.mrb[0].mxu0
    %v7266 = vadd.f32 0.0, %v7265
    %v7267 = vpop.f32.mrb[0].mxu0
    %7268 = vdwg.mxu0
    %s7269 = scalar_lea.vmem %s63, 24
    %v7270 = vld [vmem:[%s7269] sm:$0xff]
    %v7272 = vsel %vm1021, %v7069, 0
    %v7275 = vsel %vm1021, %v7074, 0
    %v7278 = vsel %vm1021, %v7261, 0
    %v7281 = vsel %vm1021, %v7266, 0
    %7283 = vmatprep.subr.mxu0 0.0
    %7284 = vmatpush1.msra.mxu0 %v7270
    %7285 = vmatprep.subr.mxu0 0.0
    %7286 = vmatpush1.msra.mxu0 0.0
    %7287 = vmatprep.subr.mxu0 0.0
    %7288 = vmatpush1.msra.mxu0 0.0
    %7289 = vmatprep.subr.mxu0 0.0
    %7290 = vmatpush1.msra.mxu0 0.0
    %7291 = vmatprep.subr.mxu0 0.0
    %7292 = vmatpush1.msra.mxu0 0.0
    %7293 = vmatprep.subr.mxu0 0.0
    %7294 = vmatpush1.msra.mxu0 0.0
    %7295 = vmatprep.subr.mxu0 0.0
    %7296 = vmatpush1.msra.mxu0 0.0
    %7297 = vmatprep.subr.mxu0 0.0
    %7298 = vmatpush1.msra.mxu0 0.0
    %7299 = vmatprep.subr.mxu0 0.0
    %7300 = vmatpush1.msra.mxu0 0.0
    %7301 = vmatprep.subr.mxu0 0.0
    %7302 = vmatpush1.msra.mxu0 0.0
    %7303 = vmatprep.subr.mxu0 0.0
    %7304 = vmatpush1.msra.mxu0 0.0
    %7305 = vmatprep.subr.mxu0 0.0
    %7306 = vmatpush1.msra.mxu0 0.0
    %7307 = vmatprep.subr.mxu0 0.0
    %7308 = vmatpush1.msra.mxu0 0.0
    %7309 = vmatprep.subr.mxu0 0.0
    %7310 = vmatpush1.msra.mxu0 0.0
    %7311 = vmatprep.subr.mxu0 0.0
    %7312 = vmatpush1.msra.mxu0 0.0
    %7313 = vmatprep.subr.mxu0 0.0
    %7314 = vmatpush1.msra.mxu0 0.0
    %7315 = vmatprep.subr.mxu0 0.0
    %7316 = vmatpush1.msra.mxu0 0.0
    %7317 = vmatprep.subr.mxu0 0.0
    %7318 = vmatpush1.msra.mxu0 0.0
    %7319 = vmatprep.subr.mxu0 0.0
    %7320 = vmatpush1.msra.mxu0 0.0
    %7321 = vmatprep.subr.mxu0 0.0
    %7322 = vmatpush1.msra.mxu0 0.0
    %7323 = vmatprep.subr.mxu0 0.0
    %7324 = vmatpush1.msra.mxu0 0.0
    %7325 = vmatprep.subr.mxu0 0.0
    %7326 = vmatpush1.msra.mxu0 0.0
    %7327 = vmatprep.subr.mxu0 0.0
    %7328 = vmatpush1.msra.mxu0 0.0
    %7329 = vmatprep.subr.mxu0 0.0
    %7330 = vmatpush1.msra.mxu0 0.0
    %7331 = vmatprep.subr.mxu0 0.0
    %7332 = vmatpush1.msra.mxu0 0.0
    %7333 = vmatprep.subr.mxu0 0.0
    %7334 = vmatpush1.msra.mxu0 0.0
    %7335 = vmatprep.subr.mxu0 0.0
    %7336 = vmatpush1.msra.mxu0 0.0
    %7337 = vmatprep.subr.mxu0 0.0
    %7338 = vmatpush1.msra.mxu0 0.0
    %7339 = vmatprep.subr.mxu0 0.0
    %7340 = vmatpush1.msra.mxu0 0.0
    %7341 = vmatprep.subr.mxu0 0.0
    %7342 = vmatpush1.msra.mxu0 0.0
    %7343 = vmatprep.subr.mxu0 0.0
    %7344 = vmatpush1.msra.mxu0 0.0
    %7345 = vmatprep.subr.mxu0 0.0
    %7346 = vmatpush1.msra.mxu0 0.0
    %7347 = vmatprep.mubr.f32.mxu0 0.0
    %7348 = vmatmul.mubr.f32.gmra.mrb[0].mxu0 %v7272
    %v7349 = vpop.f32.mrb[0].mxu0
    %v7350 = vadd.f32 0.0, %v7349
    %v7351 = vpop.f32.mrb[0].mxu0
    %7352 = vmatprep.mubr.f32.mxu0 0.0
    %7353 = vmatmul.mubr.f32.gmra.mrb[0].mxu0 %v7275
    %v7354 = vpop.f32.mrb[0].mxu0
    %v7355 = vadd.f32 0.0, %v7354
    %v7356 = vpop.f32.mrb[0].mxu0
    %7357 = vmatprep.mubr.f32.mxu0 0.0
    %7358 = vmatmul.mubr.f32.gmra.mrb[0].mxu0 %v7278
    %v7359 = vpop.f32.mrb[0].mxu0
    %v7360 = vadd.f32 0.0, %v7359
    %v7361 = vpop.f32.mrb[0].mxu0
    %7362 = vmatprep.mubr.f32.mxu0 0.0
    %7363 = vmatmul.mubr.f32.gmra.mrb[0].mxu0 %v7281
    %v7364 = vpop.f32.mrb[0].mxu0
    %v7365 = vadd.f32 0.0, %v7364
    %v7366 = vpop.f32.mrb[0].mxu0
    %7367 = vdwg.mxu0
    %v7368 = vadd.f32 %v6587, %v7350
    %v7369 = vadd.f32 %v6588, %v7355
    %v7370 = vadd.f32 %v6589, %v7360
    %v7371 = vadd.f32 %v6590, %v7365
    %v7372 = vadd.f32 %v4173, %v7368
    %v7373 = vadd.f32 %v4174, %v7369
    %v7374 = vadd.f32 %v4175, %v7370
    %v7375 = vadd.f32 %v4176, %v7371
    %v7376 = vld [vmem:[%s65] sm:$0x1]
    %v7378 = vlaneseq
    %v7379 = vshrl.u32 %v7378, 7
    %v7380 = vsub.s32 0, %v7379
    %v7381 = vrot.slane %v7376, %v7380
    %v7383 = vadd.f32 %v7372, %v7381
    %v7384 = vadd.f32 %v7373, %v7381
    %v7385 = vadd.f32 %v7374, %v7381
    %v7386 = vadd.f32 %v7375, %v7381
    %v7387 = vld [vmem:[%s67] sm:$0x1]
    %v7388 = vld [vmem:[%s69] sm:$0x1]
    %v7389 = vsel %vm647, %v7383, 0.0
    %7390 = vadd.xlane.f32.xlu0 %v7389
    %v7391 = vpop.xlane.xlu0 %7390
    %v7392 = vsel %vm647, %v7384, 0.0
    %7393 = vadd.xlane.f32.xlu0 %v7392
    %v7394 = vpop.xlane.xlu0 %7393
    %v7395 = vsel %vm647, %v7385, 0.0
    %7396 = vadd.xlane.f32.xlu0 %v7395
    %v7397 = vpop.xlane.xlu0 %7396
    %v7398 = vsel %vm647, %v7386, 0.0
    %7399 = vadd.xlane.f32.xlu0 %v7398
    %v7400 = vpop.xlane.xlu0 %7399
    %v7401 = vmul.f32 %v7391, %v660
    %v7402 = vmul.f32 %v7394, %v660
    %v7403 = vmul.f32 %v7397, %v660
    %v7404 = vmul.f32 %v7400, %v660
    %v7405 = vsub.f32 %v7383, %v7401
    %v7406 = vsub.f32 %v7384, %v7402
    %v7407 = vsub.f32 %v7385, %v7403
    %v7408 = vsub.f32 %v7386, %v7404
    %v7409 = vmul.f32 %v7405, %v7405
    %v7410 = vmul.f32 %v7406, %v7406
    %v7411 = vmul.f32 %v7407, %v7407
    %v7412 = vmul.f32 %v7408, %v7408
    %v7413 = vsel %vm647, %v7409, 0.0
    %7414 = vadd.xlane.f32.xlu0 %v7413
    %v7415 = vpop.xlane.xlu0 %7414
    %v7416 = vsel %vm647, %v7410, 0.0
    %7417 = vadd.xlane.f32.xlu0 %v7416
    %v7418 = vpop.xlane.xlu0 %7417
    %v7419 = vsel %vm647, %v7411, 0.0
    %7420 = vadd.xlane.f32.xlu0 %v7419
    %v7421 = vpop.xlane.xlu0 %7420
    %v7422 = vsel %vm647, %v7412, 0.0
    %7423 = vadd.xlane.f32.xlu0 %v7422
    %v7424 = vpop.xlane.xlu0 %7423
    %v7425 = vmul.f32 %v7415, %v660
    %v7426 = vmul.f32 %v7418, %v660
    %v7427 = vmul.f32 %v7421, %v660
    %v7428 = vmul.f32 %v7424, %v660
    %v7429 = vadd.f32 %v7425, 1e-06
    %v7430 = vadd.f32 %v7426, 1e-06
    %v7431 = vadd.f32 %v7427, 1e-06
    %v7432 = vadd.f32 %v7428, 1e-06
    %v7433 = vrsqrt.pop %v7429
    %v7434 = vrsqrt.pop %v7430
    %v7435 = vrsqrt.pop %v7431
    %v7436 = vrsqrt.pop %v7432
    %v7437 = vmul.f32 %v7405, %v7433
    %v7438 = vmul.f32 %v7406, %v7434
    %v7439 = vmul.f32 %v7407, %v7435
    %v7440 = vmul.f32 %v7408, %v7436
    %v7442 = vlaneseq
    %v7443 = vshrl.u32 %v7442, 7
    %v7444 = vsub.s32 0, %v7443
    %v7445 = vrot.slane %v7387, %v7444
    %v7447 = vmul.f32 %v7437, %v7445
    %v7448 = vmul.f32 %v7438, %v7445
    %v7449 = vmul.f32 %v7439, %v7445
    %v7450 = vmul.f32 %v7440, %v7445
    %v7452 = vlaneseq
    %v7453 = vshrl.u32 %v7452, 7
    %v7454 = vsub.s32 0, %v7453
    %v7455 = vrot.slane %v7388, %v7454
    %v7457 = vadd.f32 %v7447, %v7455
    %v7458 = vadd.f32 %v7448, %v7455
    %v7459 = vadd.f32 %v7449, %v7455
    %v7460 = vadd.f32 %v7450, %v7455
    %v7461 = vld [vmem:[#allocation10] sm:$0xff]
    %v7462 = vld [vmem:[#allocation10 + $0x8] sm:$0xff]
    %v7463 = vld [vmem:[#allocation10 + $0x10] sm:$0xff]
    %v7464 = vld [vmem:[#allocation10 + $0x18] sm:$0xff]
    %v7465 = vld [vmem:[%s73] sm:$0x1]
    %v7467 = vlaneseq
    %v7468 = vshrl.u32 %v7467, 7
    %v7469 = vsub.s32 0, %v7468
    %v7470 = vrot.slane %v7465, %v7469
    %v7473 = vsel %vm647, %v7457, 0
    %v7476 = vsel %vm647, %v7458, 0
    %v7479 = vsel %vm647, %v7459, 0
    %v7482 = vsel %vm647, %v7460, 0
    %7484 = vmatprep.subr.mxu0 0.0
    %7485 = vmatpush1.msra.mxu0 %v7461
    %7486 = vmatprep.subr.mxu0 0.0
    %7487 = vmatpush1.msra.mxu0 %v7462
    %7488 = vmatprep.subr.mxu0 0.0
    %7489 = vmatpush1.msra.mxu0 %v7463
    %7490 = vmatprep.subr.mxu0 0.0
    %7491 = vmatpush1.msra.mxu0 %v7464
    %7492 = vmatprep.subr.mxu0 0.0
    %7493 = vmatpush1.msra.mxu0 0.0
    %7494 = vmatprep.subr.mxu0 0.0
    %7495 = vmatpush1.msra.mxu0 0.0
    %7496 = vmatprep.subr.mxu0 0.0
    %7497 = vmatpush1.msra.mxu0 0.0
    %7498 = vmatprep.subr.mxu0 0.0
    %7499 = vmatpush1.msra.mxu0 0.0
    %7500 = vmatprep.subr.mxu0 0.0
    %7501 = vmatpush1.msra.mxu0 0.0
    %7502 = vmatprep.subr.mxu0 0.0
    %7503 = vmatpush1.msra.mxu0 0.0
    %7504 = vmatprep.subr.mxu0 0.0
    %7505 = vmatpush1.msra.mxu0 0.0
    %7506 = vmatprep.subr.mxu0 0.0
    %7507 = vmatpush1.msra.mxu0 0.0
    %7508 = vmatprep.subr.mxu0 0.0
    %7509 = vmatpush1.msra.mxu0 0.0
    %7510 = vmatprep.subr.mxu0 0.0
    %7511 = vmatpush1.msra.mxu0 0.0
    %7512 = vmatprep.subr.mxu0 0.0
    %7513 = vmatpush1.msra.mxu0 0.0
    %7514 = vmatprep.subr.mxu0 0.0
    %7515 = vmatpush1.msra.mxu0 0.0
    %7516 = vmatprep.subr.mxu0 0.0
    %7517 = vmatpush1.msra.mxu0 0.0
    %7518 = vmatprep.subr.mxu0 0.0
    %7519 = vmatpush1.msra.mxu0 0.0
    %7520 = vmatprep.subr.mxu0 0.0
    %7521 = vmatpush1.msra.mxu0 0.0
    %7522 = vmatprep.subr.mxu0 0.0
    %7523 = vmatpush1.msra.mxu0 0.0
    %7524 = vmatprep.subr.mxu0 0.0
    %7525 = vmatpush1.msra.mxu0 0.0
    %7526 = vmatprep.subr.mxu0 0.0
    %7527 = vmatpush1.msra.mxu0 0.0
    %7528 = vmatprep.subr.mxu0 0.0
    %7529 = vmatpush1.msra.mxu0 0.0
    %7530 = vmatprep.subr.mxu0 0.0
    %7531 = vmatpush1.msra.mxu0 0.0
    %7532 = vmatprep.subr.mxu0 0.0
    %7533 = vmatpush1.msra.mxu0 0.0
    %7534 = vmatprep.subr.mxu0 0.0
    %7535 = vmatpush1.msra.mxu0 0.0
    %7536 = vmatprep.subr.mxu0 0.0
    %7537 = vmatpush1.msra.mxu0 0.0
    %7538 = vmatprep.subr.mxu0 0.0
    %7539 = vmatpush1.msra.mxu0 0.0
    %7540 = vmatprep.subr.mxu0 0.0
    %7541 = vmatpush1.msra.mxu0 0.0
    %7542 = vmatprep.subr.mxu0 0.0
    %7543 = vmatpush1.msra.mxu0 0.0
    %7544 = vmatprep.subr.mxu0 0.0
    %7545 = vmatpush1.msra.mxu0 0.0
    %7546 = vmatprep.subr.mxu0 0.0
    %7547 = vmatpush1.msra.mxu0 0.0
    %7548 = vmatprep.mubr.f32.mxu0 0.0
    %7549 = vmatmul.mubr.f32.gmra.mrb[0].mxu0 %v7473
    %v7550 = vpop.f32.mrb[0].mxu0
    %v7551 = vadd.f32 %v7470, %v7550
    %v7552 = vpop.f32.mrb[0].mxu0
    %7553 = vmatprep.mubr.f32.mxu0 0.0
    %7554 = vmatmul.mubr.f32.gmra.mrb[0].mxu0 %v7476
    %v7555 = vpop.f32.mrb[0].mxu0
    %v7556 = vadd.f32 %v7470, %v7555
    %v7557 = vpop.f32.mrb[0].mxu0
    %7558 = vmatprep.mubr.f32.mxu0 0.0
    %7559 = vmatmul.mubr.f32.gmra.mrb[0].mxu0 %v7479
    %v7560 = vpop.f32.mrb[0].mxu0
    %v7561 = vadd.f32 %v7470, %v7560
    %v7562 = vpop.f32.mrb[0].mxu0
    %7563 = vmatprep.mubr.f32.mxu0 0.0
    %7564 = vmatmul.mubr.f32.gmra.mrb[0].mxu0 %v7482
    %v7565 = vpop.f32.mrb[0].mxu0
    %v7566 = vadd.f32 %v7470, %v7565
    %v7567 = vpop.f32.mrb[0].mxu0
    %7568 = vdwg.mxu0
    %v7569 = vmul.f32 %v7551, 0.5
    %v7570 = vmul.f32 %v7556, 0.5
    %v7571 = vmul.f32 %v7561, 0.5
    %v7572 = vmul.f32 %v7566, 0.5
    %v7573 = vmul.f32 %v7551, 0.70710677
    %v7574 = vmul.f32 %v7556, 0.70710677
    %v7575 = vmul.f32 %v7561, 0.70710677
    %v7576 = vmul.f32 %v7566, 0.70710677
    %v7577 = verf.f32.pop %v7573
    %v7578 = verf.f32.pop %v7574
    %v7579 = verf.f32.pop %v7575
    %v7580 = verf.f32.pop %v7576
    %v7581 = vadd.f32 %v7577, 1.0
    %v7582 = vadd.f32 %v7578, 1.0
    %v7583 = vadd.f32 %v7579, 1.0
    %v7584 = vadd.f32 %v7580, 1.0
    %v7585 = vmul.f32 %v7569, %v7581
    %v7586 = vmul.f32 %v7570, %v7582
    %v7587 = vmul.f32 %v7571, %v7583
    %v7588 = vmul.f32 %v7572, %v7584
    %v7589 = vld [vmem:[%s75] sm:$0xff]
    %v7590 = vld [vmem:[%s75 + $0x8] sm:$0xff]
    %v7591 = vld [vmem:[%s75 + $0x10] sm:$0xff]
    %v7592 = vld [vmem:[%s75 + $0x18] sm:$0xff]
    %v7593 = vld [vmem:[%s75 + $0x20] sm:$0xff]
    %v7594 = vld [vmem:[%s75 + $0x28] sm:$0xff]
    %v7595 = vld [vmem:[%s75 + $0x30] sm:$0xff]
    %v7596 = vld [vmem:[%s75 + $0x38] sm:$0xff]
    %v7597 = vld [vmem:[%s75 + $0x40] sm:$0xff]
    %v7598 = vld [vmem:[%s75 + $0x48] sm:$0xff]
    %v7599 = vld [vmem:[%s75 + $0x50] sm:$0xff]
    %v7600 = vld [vmem:[%s75 + $0x58] sm:$0xff]
    %v7601 = vld [vmem:[%s75 + $0x60] sm:$0xff]
    %v7602 = vld [vmem:[%s75 + $0x68] sm:$0xff]
    %v7603 = vld [vmem:[%s75 + $0x70] sm:$0xff]
    %v7604 = vld [vmem:[%s75 + $0x78] sm:$0xff]
    %7605 = vmatprep.subr.mxu0 0.0
    %7606 = vmatpush1.msra.mxu0 %v7589
    %7607 = vmatprep.subr.mxu0 0.0
    %7608 = vmatpush1.msra.mxu0 %v7590
    %7609 = vmatprep.subr.mxu0 0.0
    %7610 = vmatpush1.msra.mxu0 %v7591
    %7611 = vmatprep.subr.mxu0 0.0
    %7612 = vmatpush1.msra.mxu0 %v7592
    %7613 = vmatprep.subr.mxu0 0.0
    %7614 = vmatpush1.msra.mxu0 %v7593
    %7615 = vmatprep.subr.mxu0 0.0
    %7616 = vmatpush1.msra.mxu0 %v7594
    %7617 = vmatprep.subr.mxu0 0.0
    %7618 = vmatpush1.msra.mxu0 %v7595
    %7619 = vmatprep.subr.mxu0 0.0
    %7620 = vmatpush1.msra.mxu0 %v7596
    %7621 = vmatprep.subr.mxu0 0.0
    %7622 = vmatpush1.msra.mxu0 %v7597
    %7623 = vmatprep.subr.mxu0 0.0
    %7624 = vmatpush1.msra.mxu0 %v7598
    %7625 = vmatprep.subr.mxu0 0.0
    %7626 = vmatpush1.msra.mxu0 %v7599
    %7627 = vmatprep.subr.mxu0 0.0
    %7628 = vmatpush1.msra.mxu0 %v7600
    %7629 = vmatprep.subr.mxu0 0.0
    %7630 = vmatpush1.msra.mxu0 %v7601
    %7631 = vmatprep.subr.mxu0 0.0
    %7632 = vmatpush1.msra.mxu0 %v7602
    %7633 = vmatprep.subr.mxu0 0.0
    %7634 = vmatpush1.msra.mxu0 %v7603
    %7635 = vmatprep.subr.mxu0 0.0
    %7636 = vmatpush1.msra.mxu0 %v7604
    %7637 = vmatprep.subr.mxu0 0.0
    %7638 = vmatpush1.msra.mxu0 0.0
    %7639 = vmatprep.subr.mxu0 0.0
    %7640 = vmatpush1.msra.mxu0 0.0
    %7641 = vmatprep.subr.mxu0 0.0
    %7642 = vmatpush1.msra.mxu0 0.0
    %7643 = vmatprep.subr.mxu0 0.0
    %7644 = vmatpush1.msra.mxu0 0.0
    %7645 = vmatprep.subr.mxu0 0.0
    %7646 = vmatpush1.msra.mxu0 0.0
    %7647 = vmatprep.subr.mxu0 0.0
    %7648 = vmatpush1.msra.mxu0 0.0
    %7649 = vmatprep.subr.mxu0 0.0
    %7650 = vmatpush1.msra.mxu0 0.0
    %7651 = vmatprep.subr.mxu0 0.0
    %7652 = vmatpush1.msra.mxu0 0.0
    %7653 = vmatprep.subr.mxu0 0.0
    %7654 = vmatpush1.msra.mxu0 0.0
    %7655 = vmatprep.subr.mxu0 0.0
    %7656 = vmatpush1.msra.mxu0 0.0
    %7657 = vmatprep.subr.mxu0 0.0
    %7658 = vmatpush1.msra.mxu0 0.0
    %7659 = vmatprep.subr.mxu0 0.0
    %7660 = vmatpush1.msra.mxu0 0.0
    %7661 = vmatprep.subr.mxu0 0.0
    %7662 = vmatpush1.msra.mxu0 0.0
    %7663 = vmatprep.subr.mxu0 0.0
    %7664 = vmatpush1.msra.mxu0 0.0
    %7665 = vmatprep.subr.mxu0 0.0
    %7666 = vmatpush1.msra.mxu0 0.0
    %7667 = vmatprep.subr.mxu0 0.0
    %7668 = vmatpush1.msra.mxu0 0.0
    %7669 = vmatprep.mubr.f32.mxu0 0.0
    %7670 = vmatmul.mubr.f32.gmra.mrb[0].mxu0 %v7585
    %v7671 = vpop.f32.mrb[0].mxu0
    %v7672 = vadd.f32 0.0, %v7671
    %v7673 = vpop.f32.mrb[0].mxu0
    %7674 = vmatprep.mubr.f32.mxu0 0.0
    %7675 = vmatmul.mubr.f32.gmra.mrb[0].mxu0 %v7586
    %v7676 = vpop.f32.mrb[0].mxu0
    %v7677 = vadd.f32 0.0, %v7676
    %v7678 = vpop.f32.mrb[0].mxu0
    %7679 = vmatprep.mubr.f32.mxu0 0.0
    %7680 = vmatmul.mubr.f32.gmra.mrb[0].mxu0 %v7587
    %v7681 = vpop.f32.mrb[0].mxu0
    %v7682 = vadd.f32 0.0, %v7681
    %v7683 = vpop.f32.mrb[0].mxu0
    %7684 = vmatprep.mubr.f32.mxu0 0.0
    %7685 = vmatmul.mubr.f32.gmra.mrb[0].mxu0 %v7588
    %v7686 = vpop.f32.mrb[0].mxu0
    %v7687 = vadd.f32 0.0, %v7686
    %v7688 = vpop.f32.mrb[0].mxu0
    %7689 = vdwg.mxu0
    %v7690 = vadd.f32 %v7383, %v7672
    %v7691 = vadd.f32 %v7384, %v7677
    %v7692 = vadd.f32 %v7385, %v7682
    %v7693 = vadd.f32 %v7386, %v7687
    %v7694 = vld [vmem:[%s77] sm:$0x1]
    %v7696 = vlaneseq
    %v7697 = vshrl.u32 %v7696, 7
    %v7698 = vsub.s32 0, %v7697
    %v7699 = vrot.slane %v7694, %v7698
    %v7701 = vadd.f32 %v7690, %v7699
    %v7702 = vadd.f32 %v7691, %v7699
    %v7703 = vadd.f32 %v7692, %v7699
    %v7704 = vadd.f32 %v7693, %v7699
    %v7705 = vld [vmem:[%s79] sm:$0x1]
    %v7706 = vld [vmem:[%s81] sm:$0x1]
    %v7707 = vsel %vm647, %v7701, 0.0
    %7708 = vadd.xlane.f32.xlu0 %v7707
    %v7709 = vpop.xlane.xlu0 %7708
    %v7710 = vsel %vm647, %v7702, 0.0
    %7711 = vadd.xlane.f32.xlu0 %v7710
    %v7712 = vpop.xlane.xlu0 %7711
    %v7713 = vsel %vm647, %v7703, 0.0
    %7714 = vadd.xlane.f32.xlu0 %v7713
    %v7715 = vpop.xlane.xlu0 %7714
    %v7716 = vsel %vm647, %v7704, 0.0
    %7717 = vadd.xlane.f32.xlu0 %v7716
    %v7718 = vpop.xlane.xlu0 %7717
    %v7719 = vmul.f32 %v7709, %v660
    %v7720 = vmul.f32 %v7712, %v660
    %v7721 = vmul.f32 %v7715, %v660
    %v7722 = vmul.f32 %v7718, %v660
    %v7723 = vsub.f32 %v7701, %v7719
    %v7724 = vsub.f32 %v7702, %v7720
    %v7725 = vsub.f32 %v7703, %v7721
    %v7726 = vsub.f32 %v7704, %v7722
    %v7727 = vmul.f32 %v7723, %v7723
    %v7728 = vmul.f32 %v7724, %v7724
    %v7729 = vmul.f32 %v7725, %v7725
    %v7730 = vmul.f32 %v7726, %v7726
    %v7731 = vsel %vm647, %v7727, 0.0
    %7732 = vadd.xlane.f32.xlu0 %v7731
    %v7733 = vpop.xlane.xlu0 %7732
    %v7734 = vsel %vm647, %v7728, 0.0
    %7735 = vadd.xlane.f32.xlu0 %v7734
    %v7736 = vpop.xlane.xlu0 %7735
    %v7737 = vsel %vm647, %v7729, 0.0
    %7738 = vadd.xlane.f32.xlu0 %v7737
    %v7739 = vpop.xlane.xlu0 %7738
    %v7740 = vsel %vm647, %v7730, 0.0
    %7741 = vadd.xlane.f32.xlu0 %v7740
    %v7742 = vpop.xlane.xlu0 %7741
    %v7743 = vmul.f32 %v7733, %v660
    %v7744 = vmul.f32 %v7736, %v660
    %v7745 = vmul.f32 %v7739, %v660
    %v7746 = vmul.f32 %v7742, %v660
    %v7747 = vadd.f32 %v7743, 1e-06
    %v7748 = vadd.f32 %v7744, 1e-06
    %v7749 = vadd.f32 %v7745, 1e-06
    %v7750 = vadd.f32 %v7746, 1e-06
    %v7751 = vrsqrt.pop %v7747
    %v7752 = vrsqrt.pop %v7748
    %v7753 = vrsqrt.pop %v7749
    %v7754 = vrsqrt.pop %v7750
    %v7755 = vmul.f32 %v7723, %v7751
    %v7756 = vmul.f32 %v7724, %v7752
    %v7757 = vmul.f32 %v7725, %v7753
    %v7758 = vmul.f32 %v7726, %v7754
    %v7760 = vlaneseq
    %v7761 = vshrl.u32 %v7760, 7
    %v7762 = vsub.s32 0, %v7761
    %v7763 = vrot.slane %v7705, %v7762
    %v7765 = vmul.f32 %v7755, %v7763
    %v7766 = vmul.f32 %v7756, %v7763
    %v7767 = vmul.f32 %v7757, %v7763
    %v7768 = vmul.f32 %v7758, %v7763
    %v7770 = vlaneseq
    %v7771 = vshrl.u32 %v7770, 7
    %v7772 = vsub.s32 0, %v7771
    %v7773 = vrot.slane %v7706, %v7772
    %v7775 = vadd.f32 %v7765, %v7773
    %v7776 = vadd.f32 %v7766, %v7773
    %v7777 = vadd.f32 %v7767, %v7773
    %v7778 = vadd.f32 %v7768, %v7773
    %v7779 = vld [vmem:[#allocation11] sm:$0xff]
    %v7780 = vld [vmem:[#allocation11 + $0x8] sm:$0xff]
    %v7781 = vld [vmem:[#allocation11 + $0x10] sm:$0xff]
    %v7782 = vld [vmem:[#allocation11 + $0x18] sm:$0xff]
    %v7783 = vld [vmem:[%s85] sm:$0x1]
    %v7785 = vlaneseq
    %v7786 = vshrl.u32 %v7785, 7
    %v7787 = vsub.s32 0, %v7786
    %v7788 = vrot.slane %v7783, %v7787
    %v7791 = vsel %vm647, %v7775, 0
    %v7794 = vsel %vm647, %v7776, 0
    %7796 = vmatprep.subr.mxu0 0.0
    %7797 = vmatpush1.msra.mxu0 %v7779
    %7798 = vmatprep.subr.mxu0 0.0
    %7799 = vmatpush1.msra.mxu0 %v7780
    %7800 = vmatprep.subr.mxu0 0.0
    %7801 = vmatpush1.msra.mxu0 %v7781
    %7802 = vmatprep.subr.mxu0 0.0
    %7803 = vmatpush1.msra.mxu0 %v7782
    %7804 = vmatprep.subr.mxu0 0.0
    %7805 = vmatpush1.msra.mxu0 0.0
    %7806 = vmatprep.subr.mxu0 0.0
    %7807 = vmatpush1.msra.mxu0 0.0
    %7808 = vmatprep.subr.mxu0 0.0
    %7809 = vmatpush1.msra.mxu0 0.0
    %7810 = vmatprep.subr.mxu0 0.0
    %7811 = vmatpush1.msra.mxu0 0.0
    %7812 = vmatprep.subr.mxu0 0.0
    %7813 = vmatpush1.msra.mxu0 0.0
    %7814 = vmatprep.subr.mxu0 0.0
    %7815 = vmatpush1.msra.mxu0 0.0
    %7816 = vmatprep.subr.mxu0 0.0
    %7817 = vmatpush1.msra.mxu0 0.0
    %7818 = vmatprep.subr.mxu0 0.0
    %7819 = vmatpush1.msra.mxu0 0.0
    %7820 = vmatprep.subr.mxu0 0.0
    %7821 = vmatpush1.msra.mxu0 0.0
    %7822 = vmatprep.subr.mxu0 0.0
    %7823 = vmatpush1.msra.mxu0 0.0
    %7824 = vmatprep.subr.mxu0 0.0
    %7825 = vmatpush1.msra.mxu0 0.0
    %7826 = vmatprep.subr.mxu0 0.0
    %7827 = vmatpush1.msra.mxu0 0.0
    %7828 = vmatprep.subr.mxu0 0.0
    %7829 = vmatpush1.msra.mxu0 0.0
    %7830 = vmatprep.subr.mxu0 0.0
    %7831 = vmatpush1.msra.mxu0 0.0
    %7832 = vmatprep.subr.mxu0 0.0
    %7833 = vmatpush1.msra.mxu0 0.0
    %7834 = vmatprep.subr.mxu0 0.0
    %7835 = vmatpush1.msra.mxu0 0.0
    %7836 = vmatprep.subr.mxu0 0.0
    %7837 = vmatpush1.msra.mxu0 0.0
    %7838 = vmatprep.subr.mxu0 0.0
    %7839 = vmatpush1.msra.mxu0 0.0
    %7840 = vmatprep.subr.mxu0 0.0
    %7841 = vmatpush1.msra.mxu0 0.0
    %7842 = vmatprep.subr.mxu0 0.0
    %7843 = vmatpush1.msra.mxu0 0.0
    %7844 = vmatprep.subr.mxu0 0.0
    %7845 = vmatpush1.msra.mxu0 0.0
    %7846 = vmatprep.subr.mxu0 0.0
    %7847 = vmatpush1.msra.mxu0 0.0
    %7848 = vmatprep.subr.mxu0 0.0
    %7849 = vmatpush1.msra.mxu0 0.0
    %7850 = vmatprep.subr.mxu0 0.0
    %7851 = vmatpush1.msra.mxu0 0.0
    %7852 = vmatprep.subr.mxu0 0.0
    %7853 = vmatpush1.msra.mxu0 0.0
    %7854 = vmatprep.subr.mxu0 0.0
    %7855 = vmatpush1.msra.mxu0 0.0
    %7856 = vmatprep.subr.mxu0 0.0
    %7857 = vmatpush1.msra.mxu0 0.0
    %7858 = vmatprep.subr.mxu0 0.0
    %7859 = vmatpush1.msra.mxu0 0.0
    %7860 = vmatprep.mubr.f32.mxu0 0.0
    %7861 = vmatmul.mubr.f32.gmra.mrb[0].mxu0 %v7791
    %v7862 = vpop.f32.mrb[0].mxu0
    %v7863 = vadd.f32 %v7788, %v7862
    %v7864 = vpop.f32.mrb[0].mxu0
    %7865 = vmatprep.mubr.f32.mxu0 0.0
    %7866 = vmatmul.mubr.f32.gmra.mrb[0].mxu0 %v7794
    %v7867 = vpop.f32.mrb[0].mxu0
    %v7868 = vadd.f32 %v7788, %v7867
    %v7869 = vpop.f32.mrb[0].mxu0
    %7870 = vdwg.mxu0
    %v7871 = vld [vmem:[%s87] sm:$0x1]
    %v7872 = vld [vmem:[%s89] sm:$0x1]
    %vm7873 = vcmask 523264
    %v7874 = vsel %vm7873, %v7863, 0.0
    %7875 = vadd.xlane.f32.xlu0 %v7874
    %v7876 = vpop.xlane.xlu0 %7875
    %v7877 = vsel %vm7873, %v7868, 0.0
    %7878 = vadd.xlane.f32.xlu0 %v7877
    %v7879 = vpop.xlane.xlu0 %7878
    %v7880 = vrcp.pop 64.0
    %v7881 = vmul.f32 %v7876, %v7880
    %v7882 = vmul.f32 %v7879, %v7880
    %v7883 = vsub.f32 %v7863, %v7881
    %v7884 = vsub.f32 %v7868, %v7882
    %v7885 = vmul.f32 %v7883, %v7883
    %v7886 = vmul.f32 %v7884, %v7884
    %v7887 = vsel %vm7873, %v7885, 0.0
    %7888 = vadd.xlane.f32.xlu0 %v7887
    %v7889 = vpop.xlane.xlu0 %7888
    %v7890 = vsel %vm7873, %v7886, 0.0
    %7891 = vadd.xlane.f32.xlu0 %v7890
    %v7892 = vpop.xlane.xlu0 %7891
    %v7893 = vmul.f32 %v7889, %v7880
    %v7894 = vmul.f32 %v7892, %v7880
    %v7895 = vadd.f32 %v7893, 1e-06
    %v7896 = vadd.f32 %v7894, 1e-06
    %v7897 = vrsqrt.pop %v7895
    %v7898 = vrsqrt.pop %v7896
    %v7899 = vmul.f32 %v7883, %v7897
    %v7900 = vmul.f32 %v7884, %v7898
    %v7902 = vlaneseq
    %v7903 = vshrl.u32 %v7902, 7
    %v7904 = vsub.s32 0, %v7903
    %v7905 = vrot.slane %v7871, %v7904
    %v7907 = vmul.f32 %v7899, %v7905
    %v7908 = vmul.f32 %v7900, %v7905
    %v7910 = vlaneseq
    %v7911 = vshrl.u32 %v7910, 7
    %v7912 = vsub.s32 0, %v7911
    %v7913 = vrot.slane %v7872, %v7912
    %v7915 = vadd.f32 %v7907, %v7913
    %v7916 = vadd.f32 %v7908, %v7913
    %v7917 = vmul.f32 %v7915, 0.5
    %v7918 = vmul.f32 %v7916, 0.5
    %v7919 = vmul.f32 %v7915, 0.70710677
    %v7920 = vmul.f32 %v7916, 0.70710677
    %v7921 = verf.f32.pop %v7919
    %v7922 = verf.f32.pop %v7920
    %v7923 = vadd.f32 %v7921, 1.0
    %v7924 = vadd.f32 %v7922, 1.0
    %v7925 = vmul.f32 %v7917, %v7923
    %v7926 = vmul.f32 %v7918, %v7924
    %v7927 = vld [vmem:[%s91] sm:$0xff]
    %v7928 = vld [vmem:[%s91 + $0x8] sm:$0xff]
    %v7929 = vld [vmem:[%s91 + $0x10] sm:$0xff]
    %v7930 = vld [vmem:[%s91 + $0x18] sm:$0xff]
    %v7931 = vld [vmem:[%s91 + $0x20] sm:$0xff]
    %v7932 = vld [vmem:[%s91 + $0x28] sm:$0xff]
    %v7933 = vld [vmem:[%s91 + $0x30] sm:$0xff]
    %v7934 = vld [vmem:[%s91 + $0x38] sm:$0xff]
    %v7935 = vld [vmem:[%s93] sm:$0x1]
    %v7937 = vlaneseq
    %v7938 = vshrl.u32 %v7937, 7
    %v7939 = vsub.s32 0, %v7938
    %v7940 = vrot.slane %v7935, %v7939
    %v7943 = vsel %vm7873, %v7925, 0
    %v7946 = vsel %vm7873, %v7926, 0
    %7948 = vmatprep.subr.mxu0 0.0
    %7949 = vmatpush1.msra.mxu0 %v7927
    %7950 = vmatprep.subr.mxu0 0.0
    %7951 = vmatpush1.msra.mxu0 %v7928
    %7952 = vmatprep.subr.mxu0 0.0
    %7953 = vmatpush1.msra.mxu0 %v7929
    %7954 = vmatprep.subr.mxu0 0.0
    %7955 = vmatpush1.msra.mxu0 %v7930
    %7956 = vmatprep.subr.mxu0 0.0
    %7957 = vmatpush1.msra.mxu0 %v7931
    %7958 = vmatprep.subr.mxu0 0.0
    %7959 = vmatpush1.msra.mxu0 %v7932
    %7960 = vmatprep.subr.mxu0 0.0
    %7961 = vmatpush1.msra.mxu0 %v7933
    %7962 = vmatprep.subr.mxu0 0.0
    %7963 = vmatpush1.msra.mxu0 %v7934
    %7964 = vmatprep.subr.mxu0 0.0
    %7965 = vmatpush1.msra.mxu0 0.0
    %7966 = vmatprep.subr.mxu0 0.0
    %7967 = vmatpush1.msra.mxu0 0.0
    %7968 = vmatprep.subr.mxu0 0.0
    %7969 = vmatpush1.msra.mxu0 0.0
    %7970 = vmatprep.subr.mxu0 0.0
    %7971 = vmatpush1.msra.mxu0 0.0
    %7972 = vmatprep.subr.mxu0 0.0
    %7973 = vmatpush1.msra.mxu0 0.0
    %7974 = vmatprep.subr.mxu0 0.0
    %7975 = vmatpush1.msra.mxu0 0.0
    %7976 = vmatprep.subr.mxu0 0.0
    %7977 = vmatpush1.msra.mxu0 0.0
    %7978 = vmatprep.subr.mxu0 0.0
    %7979 = vmatpush1.msra.mxu0 0.0
    %7980 = vmatprep.subr.mxu0 0.0
    %7981 = vmatpush1.msra.mxu0 0.0
    %7982 = vmatprep.subr.mxu0 0.0
    %7983 = vmatpush1.msra.mxu0 0.0
    %7984 = vmatprep.subr.mxu0 0.0
    %7985 = vmatpush1.msra.mxu0 0.0
    %7986 = vmatprep.subr.mxu0 0.0
    %7987 = vmatpush1.msra.mxu0 0.0
    %7988 = vmatprep.subr.mxu0 0.0
    %7989 = vmatpush1.msra.mxu0 0.0
    %7990 = vmatprep.subr.mxu0 0.0
    %7991 = vmatpush1.msra.mxu0 0.0
    %7992 = vmatprep.subr.mxu0 0.0
    %7993 = vmatpush1.msra.mxu0 0.0
    %7994 = vmatprep.subr.mxu0 0.0
    %7995 = vmatpush1.msra.mxu0 0.0
    %7996 = vmatprep.subr.mxu0 0.0
    %7997 = vmatpush1.msra.mxu0 0.0
    %7998 = vmatprep.subr.mxu0 0.0
    %7999 = vmatpush1.msra.mxu0 0.0
    %8000 = vmatprep.subr.mxu0 0.0
    %8001 = vmatpush1.msra.mxu0 0.0
    %8002 = vmatprep.subr.mxu0 0.0
    %8003 = vmatpush1.msra.mxu0 0.0
    %8004 = vmatprep.subr.mxu0 0.0
    %8005 = vmatpush1.msra.mxu0 0.0
    %8006 = vmatprep.subr.mxu0 0.0
    %8007 = vmatpush1.msra.mxu0 0.0
    %8008 = vmatprep.subr.mxu0 0.0
    %8009 = vmatpush1.msra.mxu0 0.0
    %8010 = vmatprep.subr.mxu0 0.0
    %8011 = vmatpush1.msra.mxu0 0.0
    %8012 = vmatprep.mubr.f32.mxu0 0.0
    %8013 = vmatmul.mubr.f32.gmra.mrb[0].mxu0 %v7943
    %v8014 = vpop.f32.mrb[0].mxu0
    %v8015 = vadd.f32 %v7940, %v8014
    %v8016 = vpop.f32.mrb[0].mxu0
    %8017 = vmatprep.mubr.f32.mxu0 0.0
    %8018 = vmatmul.mubr.f32.gmra.mrb[0].mxu0 %v7946
    %v8019 = vpop.f32.mrb[0].mxu0
    %v8020 = vadd.f32 %v7940, %v8019
    %v8021 = vpop.f32.mrb[0].mxu0
    %8022 = vdwg.mxu0
    %v8023 = vld [vmem:[%s95] sm:$0x1]
    %v8024 = vld [vmem:[%s97] sm:$0x1]
    %v8025 = vsel %vm647, %v8015, 0.0
    %8026 = vadd.xlane.f32.xlu0 %v8025
    %v8027 = vpop.xlane.xlu0 %8026
    %v8028 = vsel %vm647, %v8020, 0.0
    %8029 = vadd.xlane.f32.xlu0 %v8028
    %v8030 = vpop.xlane.xlu0 %8029
    %v8031 = vmul.f32 %v8027, %v660
    %v8032 = vmul.f32 %v8030, %v660
    %v8033 = vsub.f32 %v8015, %v8031
    %v8034 = vsub.f32 %v8020, %v8032
    %v8035 = vmul.f32 %v8033, %v8033
    %v8036 = vmul.f32 %v8034, %v8034
    %v8037 = vsel %vm647, %v8035, 0.0
    %8038 = vadd.xlane.f32.xlu0 %v8037
    %v8039 = vpop.xlane.xlu0 %8038
    %v8040 = vsel %vm647, %v8036, 0.0
    %8041 = vadd.xlane.f32.xlu0 %v8040
    %v8042 = vpop.xlane.xlu0 %8041
    %v8043 = vmul.f32 %v8039, %v660
    %v8044 = vmul.f32 %v8042, %v660
    %v8045 = vadd.f32 %v8043, 1e-06
    %v8046 = vadd.f32 %v8044, 1e-06
    %v8047 = vrsqrt.pop %v8045
    %v8048 = vrsqrt.pop %v8046
    %v8049 = vmul.f32 %v8033, %v8047
    %v8050 = vmul.f32 %v8034, %v8048
    %v8052 = vlaneseq
    %v8053 = vshrl.u32 %v8052, 7
    %v8054 = vsub.s32 0, %v8053
    %v8055 = vrot.slane %v8023, %v8054
    %v8057 = vmul.f32 %v8049, %v8055
    %v8058 = vmul.f32 %v8050, %v8055
    %v8060 = vlaneseq
    %v8061 = vshrl.u32 %v8060, 7
    %v8062 = vsub.s32 0, %v8061
    %v8063 = vrot.slane %v8024, %v8062
    %v8065 = vadd.f32 %v8057, %v8063
    %v8066 = vadd.f32 %v8058, %v8063
    %v8067 = vld [vmem:[#allocation13] sm:$0xff]
    %v8068 = vld [vmem:[#allocation13 + $0x8] sm:$0xff]
    %v8069 = vld [vmem:[#allocation13 + $0x10] sm:$0xff]
    %v8070 = vld [vmem:[#allocation13 + $0x18] sm:$0xff]
    %v8071 = vld [vmem:[#allocation13 + $0x20] sm:$0xff]
    %v8072 = vld [vmem:[#allocation13 + $0x28] sm:$0xff]
    %v8073 = vld [vmem:[#allocation13 + $0x30] sm:$0xff]
    %v8074 = vld [vmem:[#allocation13 + $0x38] sm:$0xff]
    %v8076 = vsel %vm647, %v7777, 0
    %v8079 = vsel %vm647, %v7778, 0
    %8081 = vmatprep.subr.mxu0 %v8068
    %8082 = vmatpush1.msra.mxu0 %v8067
    %8083 = vmatprep.subr.mxu0 %v8070
    %8084 = vmatpush1.msra.mxu0 %v8069
    %8085 = vmatprep.subr.mxu0 %v8072
    %8086 = vmatpush1.msra.mxu0 %v8071
    %8087 = vmatprep.subr.mxu0 %v8074
    %8088 = vmatpush1.msra.mxu0 %v8073
    %8089 = vmatprep.subr.mxu0 0.0
    %8090 = vmatpush1.msra.mxu0 0.0
    %8091 = vmatprep.subr.mxu0 0.0
    %8092 = vmatpush1.msra.mxu0 0.0
    %8093 = vmatprep.subr.mxu0 0.0
    %8094 = vmatpush1.msra.mxu0 0.0
    %8095 = vmatprep.subr.mxu0 0.0
    %8096 = vmatpush1.msra.mxu0 0.0
    %8097 = vmatprep.subr.mxu0 0.0
    %8098 = vmatpush1.msra.mxu0 0.0
    %8099 = vmatprep.subr.mxu0 0.0
    %8100 = vmatpush1.msra.mxu0 0.0
    %8101 = vmatprep.subr.mxu0 0.0
    %8102 = vmatpush1.msra.mxu0 0.0
    %8103 = vmatprep.subr.mxu0 0.0
    %8104 = vmatpush1.msra.mxu0 0.0
    %8105 = vmatprep.subr.mxu0 0.0
    %8106 = vmatpush1.msra.mxu0 0.0
    %8107 = vmatprep.subr.mxu0 0.0
    %8108 = vmatpush1.msra.mxu0 0.0
    %8109 = vmatprep.subr.mxu0 0.0
    %8110 = vmatpush1.msra.mxu0 0.0
    %8111 = vmatprep.subr.mxu0 0.0
    %8112 = vmatpush1.msra.mxu0 0.0
    %8113 = vmatprep.subr.mxu0 0.0
    %8114 = vmatpush1.msra.mxu0 0.0
    %8115 = vmatprep.subr.mxu0 0.0
    %8116 = vmatpush1.msra.mxu0 0.0
    %8117 = vmatprep.subr.mxu0 0.0
    %8118 = vmatpush1.msra.mxu0 0.0
    %8119 = vmatprep.subr.mxu0 0.0
    %8120 = vmatpush1.msra.mxu0 0.0
    %8121 = vmatprep.subr.mxu0 0.0
    %8122 = vmatpush1.msra.mxu0 0.0
    %8123 = vmatprep.subr.mxu0 0.0
    %8124 = vmatpush1.msra.mxu0 0.0
    %8125 = vmatprep.subr.mxu0 0.0
    %8126 = vmatpush1.msra.mxu0 0.0
    %8127 = vmatprep.subr.mxu0 0.0
    %8128 = vmatpush1.msra.mxu0 0.0
    %8129 = vmatprep.subr.mxu0 0.0
    %8130 = vmatpush1.msra.mxu0 0.0
    %8131 = vmatprep.subr.mxu0 0.0
    %8132 = vmatpush1.msra.mxu0 0.0
    %8133 = vmatprep.subr.mxu0 0.0
    %8134 = vmatpush1.msra.mxu0 0.0
    %8135 = vmatprep.subr.mxu0 0.0
    %8136 = vmatpush1.msra.mxu0 0.0
    %8137 = vmatprep.subr.mxu0 0.0
    %8138 = vmatpush1.msra.mxu0 0.0
    %8139 = vmatprep.subr.mxu0 0.0
    %8140 = vmatpush1.msra.mxu0 0.0
    %8141 = vmatprep.subr.mxu0 0.0
    %8142 = vmatpush1.msra.mxu0 0.0
    %8143 = vmatprep.subr.mxu0 0.0
    %8144 = vmatpush1.msra.mxu0 0.0
    %8145 = vmatprep.mubr.f32.mxu0 0.0
    %8146 = vmatmul.mubr.f32.gmra.mrb[0].mxu0 %v7791
    %v8147 = vpop.f32.mrb[0].mxu0
    %v8148 = vadd.f32 0.0, %v8147
    %v8149 = vpop.f32.mrb[0].mxu0
    %v8150 = vadd.f32 0.0, %v8149
    %8151 = vmatprep.mubr.f32.mxu0 0.0
    %8152 = vmatmul.mubr.f32.gmra.mrb[0].mxu0 %v7794
    %v8153 = vpop.f32.mrb[0].mxu0
    %v8154 = vadd.f32 0.0, %v8153
    %v8155 = vpop.f32.mrb[0].mxu0
    %v8156 = vadd.f32 0.0, %v8155
    %8157 = vmatprep.mubr.f32.mxu0 0.0
    %8158 = vmatmul.mubr.f32.gmra.mrb[0].mxu0 %v8076
    %v8159 = vpop.f32.mrb[0].mxu0
    %v8160 = vadd.f32 0.0, %v8159
    %v8161 = vpop.f32.mrb[0].mxu0
    %v8162 = vadd.f32 0.0, %v8161
    %8163 = vmatprep.mubr.f32.mxu0 0.0
    %8164 = vmatmul.mubr.f32.gmra.mrb[0].mxu0 %v8079
    %v8165 = vpop.f32.mrb[0].mxu0
    %v8166 = vadd.f32 0.0, %v8165
    %v8167 = vpop.f32.mrb[0].mxu0
    %v8168 = vadd.f32 0.0, %v8167
    %8169 = vdwg.mxu0
    %v8170 = vld [vmem:[%s101] sm:$0xff]
    %v8171 = vld [vmem:[%s101 + $0x8] sm:$0xff]
    %v8172 = vld [vmem:[%s101 + $0x10] sm:$0xff]
    %v8173 = vld [vmem:[%s101 + $0x18] sm:$0xff]
    %v8174 = vld [vmem:[%s101 + $0x20] sm:$0xff]
    %v8175 = vld [vmem:[%s101 + $0x28] sm:$0xff]
    %v8176 = vld [vmem:[%s101 + $0x30] sm:$0xff]
    %v8177 = vld [vmem:[%s101 + $0x38] sm:$0xff]
    %v8178 = vld [vmem:[%s101 + $0x40] sm:$0xff]
    %v8179 = vld [vmem:[%s101 + $0x48] sm:$0xff]
    %v8180 = vld [vmem:[%s101 + $0x50] sm:$0xff]
    %v8181 = vld [vmem:[%s101 + $0x58] sm:$0xff]
    %v8182 = vld [vmem:[%s101 + $0x60] sm:$0xff]
    %v8183 = vld [vmem:[%s101 + $0x68] sm:$0xff]
    %v8184 = vld [vmem:[%s101 + $0x70] sm:$0xff]
    %v8185 = vld [vmem:[%s101 + $0x78] sm:$0xff]
    %v8186 = vld [vmem:[%s101 + $0x80] sm:$0xff]
    %v8187 = vld [vmem:[%s101 + $0x88] sm:$0xff]
    %v8188 = vld [vmem:[%s101 + $0x90] sm:$0xff]
    %v8189 = vld [vmem:[%s101 + $0x98] sm:$0xff]
    %v8190 = vld [vmem:[%s101 + $0xa0] sm:$0xff]
    %v8191 = vld [vmem:[%s101 + $0xa8] sm:$0xff]
    %v8192 = vld [vmem:[%s101 + $0xb0] sm:$0xff]
    %v8193 = vld [vmem:[%s101 + $0xb8] sm:$0xff]
    %v8194 = vld [vmem:[%s101 + $0xc0] sm:$0xff]
    %v8195 = vld [vmem:[%s101 + $0xc8] sm:$0xff]
    %v8196 = vld [vmem:[%s101 + $0xd0] sm:$0xff]
    %v8197 = vld [vmem:[%s101 + $0xd8] sm:$0xff]
    %v8198 = vld [vmem:[%s101 + $0xe0] sm:$0xff]
    %v8199 = vld [vmem:[%s101 + $0xe8] sm:$0xff]
    %v8200 = vld [vmem:[%s101 + $0xf0] sm:$0xff]
    %v8201 = vld [vmem:[%s101 + $0xf8] sm:$0xff]
    %v8202 = vld [vmem:[%s101 + $0x100] sm:$0xff]
    %v8203 = vld [vmem:[%s101 + $0x108] sm:$0xff]
    %v8204 = vld [vmem:[%s101 + $0x110] sm:$0xff]
    %v8205 = vld [vmem:[%s101 + $0x118] sm:$0xff]
    %v8206 = vld [vmem:[%s101 + $0x120] sm:$0xff]
    %v8207 = vld [vmem:[%s101 + $0x128] sm:$0xff]
    %v8208 = vld [vmem:[%s101 + $0x130] sm:$0xff]
    %v8209 = vld [vmem:[%s101 + $0x138] sm:$0xff]
    %v8210 = vld [vmem:[%s101 + $0x140] sm:$0xff]
    %v8211 = vld [vmem:[%s101 + $0x148] sm:$0xff]
    %v8212 = vld [vmem:[%s101 + $0x150] sm:$0xff]
    %v8213 = vld [vmem:[%s101 + $0x158] sm:$0xff]
    %v8214 = vld [vmem:[%s101 + $0x160] sm:$0xff]
    %v8215 = vld [vmem:[%s101 + $0x168] sm:$0xff]
    %v8216 = vld [vmem:[%s101 + $0x170] sm:$0xff]
    %v8217 = vld [vmem:[%s101 + $0x178] sm:$0xff]
    %v8219 = vsel %vm7873, %v8150, 0
    %v8222 = vsel %vm7873, %v8156, 0
    %v8225 = vsel %vm7873, %v8162, 0
    %v8228 = vsel %vm7873, %v8168, 0
    %8230 = vmatprep.subr.mxu0 %v8171
    %8231 = vmatpush1.msra.mxu0 %v8170
    %8232 = vmatprep.subr.mxu0 %v8173
    %8233 = vmatpush1.msra.mxu0 %v8172
    %8234 = vmatprep.subr.mxu0 %v8175
    %8235 = vmatpush1.msra.mxu0 %v8174
    %8236 = vmatprep.subr.mxu0 %v8177
    %8237 = vmatpush1.msra.mxu0 %v8176
    %8238 = vmatprep.subr.mxu0 %v8179
    %8239 = vmatpush1.msra.mxu0 %v8178
    %8240 = vmatprep.subr.mxu0 %v8181
    %8241 = vmatpush1.msra.mxu0 %v8180
    %8242 = vmatprep.subr.mxu0 %v8183
    %8243 = vmatpush1.msra.mxu0 %v8182
    %8244 = vmatprep.subr.mxu0 %v8185
    %8245 = vmatpush1.msra.mxu0 %v8184
    %8246 = vmatprep.subr.mxu0 %v8187
    %8247 = vmatpush1.msra.mxu0 %v8186
    %8248 = vmatprep.subr.mxu0 %v8189
    %8249 = vmatpush1.msra.mxu0 %v8188
    %8250 = vmatprep.subr.mxu0 %v8191
    %8251 = vmatpush1.msra.mxu0 %v8190
    %8252 = vmatprep.subr.mxu0 %v8193
    %8253 = vmatpush1.msra.mxu0 %v8192
    %8254 = vmatprep.subr.mxu0 %v8195
    %8255 = vmatpush1.msra.mxu0 %v8194
    %8256 = vmatprep.subr.mxu0 %v8197
    %8257 = vmatpush1.msra.mxu0 %v8196
    %8258 = vmatprep.subr.mxu0 %v8199
    %8259 = vmatpush1.msra.mxu0 %v8198
    %8260 = vmatprep.subr.mxu0 %v8201
    %8261 = vmatpush1.msra.mxu0 %v8200
    %8262 = vmatprep.subr.mxu0 %v8203
    %8263 = vmatpush1.msra.mxu0 %v8202
    %8264 = vmatprep.subr.mxu0 %v8205
    %8265 = vmatpush1.msra.mxu0 %v8204
    %8266 = vmatprep.subr.mxu0 %v8207
    %8267 = vmatpush1.msra.mxu0 %v8206
    %8268 = vmatprep.subr.mxu0 %v8209
    %8269 = vmatpush1.msra.mxu0 %v8208
    %8270 = vmatprep.subr.mxu0 %v8211
    %8271 = vmatpush1.msra.mxu0 %v8210
    %8272 = vmatprep.subr.mxu0 %v8213
    %8273 = vmatpush1.msra.mxu0 %v8212
    %8274 = vmatprep.subr.mxu0 %v8215
    %8275 = vmatpush1.msra.mxu0 %v8214
    %8276 = vmatprep.subr.mxu0 %v8217
    %8277 = vmatpush1.msra.mxu0 %v8216
    %8278 = vmatprep.subr.mxu0 0.0
    %8279 = vmatpush1.msra.mxu0 0.0
    %8280 = vmatprep.subr.mxu0 0.0
    %8281 = vmatpush1.msra.mxu0 0.0
    %8282 = vmatprep.subr.mxu0 0.0
    %8283 = vmatpush1.msra.mxu0 0.0
    %8284 = vmatprep.subr.mxu0 0.0
    %8285 = vmatpush1.msra.mxu0 0.0
    %8286 = vmatprep.subr.mxu0 0.0
    %8287 = vmatpush1.msra.mxu0 0.0
    %8288 = vmatprep.subr.mxu0 0.0
    %8289 = vmatpush1.msra.mxu0 0.0
    %8290 = vmatprep.subr.mxu0 0.0
    %8291 = vmatpush1.msra.mxu0 0.0
    %8292 = vmatprep.subr.mxu0 0.0
    %8293 = vmatpush1.msra.mxu0 0.0
    %8294 = vmatprep.mubr.f32.mxu0 %v8219
    %8295 = vmatmul.mubr.f32.gmra.mrb[0].mxu0 %v8148
    %v8296 = vpop.f32.mrb[0].mxu0
    %v8297 = vadd.f32 0.0, %v8296
    %v8298 = vpop.f32.mrb[0].mxu0
    %v8299 = vadd.f32 0.0, %v8298
    %8300 = vmatprep.mubr.f32.mxu0 %v8222
    %8301 = vmatmul.mubr.f32.gmra.mrb[0].mxu0 %v8154
    %v8302 = vpop.f32.mrb[0].mxu0
    %v8303 = vadd.f32 0.0, %v8302
    %v8304 = vpop.f32.mrb[0].mxu0
    %v8305 = vadd.f32 0.0, %v8304
    %8306 = vmatprep.mubr.f32.mxu0 %v8225
    %8307 = vmatmul.mubr.f32.gmra.mrb[0].mxu0 %v8160
    %v8308 = vpop.f32.mrb[0].mxu0
    %v8309 = vadd.f32 0.0, %v8308
    %v8310 = vpop.f32.mrb[0].mxu0
    %v8311 = vadd.f32 0.0, %v8310
    %8312 = vmatprep.mubr.f32.mxu0 %v8228
    %8313 = vmatmul.mubr.f32.gmra.mrb[0].mxu0 %v8166
    %v8314 = vpop.f32.mrb[0].mxu0
    %v8315 = vadd.f32 0.0, %v8314
    %v8316 = vpop.f32.mrb[0].mxu0
    %v8317 = vadd.f32 0.0, %v8316
    %8318 = vdwg.mxu0
    %v8319 = vld [vmem:[%s103] sm:$0x3]
    %v8320 = vld [vmem:[%s105] sm:$0x3]
    %v8321 = vsel %vm7873, %v8299, 0.0
    %v8322 = vadd.f32 %v8297, %v8321
    %8323 = vadd.xlane.f32.xlu0 %v8322
    %v8324 = vpop.xlane.xlu0 %8323
    %v8325 = vsel %vm7873, %v8305, 0.0
    %v8326 = vadd.f32 %v8303, %v8325
    %8327 = vadd.xlane.f32.xlu0 %v8326
    %v8328 = vpop.xlane.xlu0 %8327
    %v8329 = vsel %vm7873, %v8311, 0.0
    %v8330 = vadd.f32 %v8309, %v8329
    %8331 = vadd.xlane.f32.xlu0 %v8330
    %v8332 = vpop.xlane.xlu0 %8331
    %v8333 = vsel %vm7873, %v8317, 0.0
    %v8334 = vadd.f32 %v8315, %v8333
    %8335 = vadd.xlane.f32.xlu0 %v8334
    %v8336 = vpop.xlane.xlu0 %8335
    %v8337 = vrcp.pop 192.0
    %v8338 = vmul.f32 %v8324, %v8337
    %v8339 = vmul.f32 %v8328, %v8337
    %v8340 = vmul.f32 %v8332, %v8337
    %v8341 = vmul.f32 %v8336, %v8337
    %v8342 = vsub.f32 %v8297, %v8338
    %v8343 = vsub.f32 %v8299, %v8338
    %v8344 = vsub.f32 %v8303, %v8339
    %v8345 = vsub.f32 %v8305, %v8339
    %v8346 = vsub.f32 %v8309, %v8340
    %v8347 = vsub.f32 %v8311, %v8340
    %v8348 = vsub.f32 %v8315, %v8341
    %v8349 = vsub.f32 %v8317, %v8341
    %v8350 = vmul.f32 %v8342, %v8342
    %v8351 = vmul.f32 %v8343, %v8343
    %v8352 = vmul.f32 %v8344, %v8344
    %v8353 = vmul.f32 %v8345, %v8345
    %v8354 = vmul.f32 %v8346, %v8346
    %v8355 = vmul.f32 %v8347, %v8347
    %v8356 = vmul.f32 %v8348, %v8348
    %v8357 = vmul.f32 %v8349, %v8349
    %v8358 = vsel %vm7873, %v8351, 0.0
    %v8359 = vadd.f32 %v8350, %v8358
    %8360 = vadd.xlane.f32.xlu0 %v8359
    %v8361 = vpop.xlane.xlu0 %8360
    %v8362 = vsel %vm7873, %v8353, 0.0
    %v8363 = vadd.f32 %v8352, %v8362
    %8364 = vadd.xlane.f32.xlu0 %v8363
    %v8365 = vpop.xlane.xlu0 %8364
    %v8366 = vsel %vm7873, %v8355, 0.0
    %v8367 = vadd.f32 %v8354, %v8366
    %8368 = vadd.xlane.f32.xlu0 %v8367
    %v8369 = vpop.xlane.xlu0 %8368
    %v8370 = vsel %vm7873, %v8357, 0.0
    %v8371 = vadd.f32 %v8356, %v8370
    %8372 = vadd.xlane.f32.xlu0 %v8371
    %v8373 = vpop.xlane.xlu0 %8372
    %v8374 = vmul.f32 %v8361, %v8337
    %v8375 = vmul.f32 %v8365, %v8337
    %v8376 = vmul.f32 %v8369, %v8337
    %v8377 = vmul.f32 %v8373, %v8337
    %v8378 = vadd.f32 %v8374, 1e-06
    %v8379 = vadd.f32 %v8375, 1e-06
    %v8380 = vadd.f32 %v8376, 1e-06
    %v8381 = vadd.f32 %v8377, 1e-06
    %v8382 = vrsqrt.pop %v8378
    %v8383 = vrsqrt.pop %v8379
    %v8384 = vrsqrt.pop %v8380
    %v8385 = vrsqrt.pop %v8381
    %v8386 = vmul.f32 %v8342, %v8382
    %v8387 = vmul.f32 %v8343, %v8382
    %v8388 = vmul.f32 %v8344, %v8383
    %v8389 = vmul.f32 %v8345, %v8383
    %v8390 = vmul.f32 %v8346, %v8384
    %v8391 = vmul.f32 %v8347, %v8384
    %v8392 = vmul.f32 %v8348, %v8385
    %v8393 = vmul.f32 %v8349, %v8385
    %v8395 = vlaneseq
    %v8396 = vshrl.u32 %v8395, 7
    %v8397 = vsub.s32 0, %v8396
    %v8398 = vrot.slane %v8319, %v8397
    %v8399 = vlaneseq
    %v8400 = vshrl.u32 %v8399, 7
    %v8401 = vsub.s32 1, %v8400
    %v8402 = vrot.slane %v8319, %v8401
    %v8405 = vmul.f32 %v8386, %v8398
    %v8406 = vmul.f32 %v8387, %v8402
    %v8407 = vmul.f32 %v8388, %v8398
    %v8408 = vmul.f32 %v8389, %v8402
    %v8409 = vmul.f32 %v8390, %v8398
    %v8410 = vmul.f32 %v8391, %v8402
    %v8411 = vmul.f32 %v8392, %v8398
    %v8412 = vmul.f32 %v8393, %v8402
    %v8414 = vlaneseq
    %v8415 = vshrl.u32 %v8414, 7
    %v8416 = vsub.s32 0, %v8415
    %v8417 = vrot.slane %v8320, %v8416
    %v8418 = vlaneseq
    %v8419 = vshrl.u32 %v8418, 7
    %v8420 = vsub.s32 1, %v8419
    %v8421 = vrot.slane %v8320, %v8420
    %v8424 = vadd.f32 %v8405, %v8417
    %v8425 = vadd.f32 %v8406, %v8421
    %v8426 = vadd.f32 %v8407, %v8417
    %v8427 = vadd.f32 %v8408, %v8421
    %v8428 = vadd.f32 %v8409, %v8417
    %v8429 = vadd.f32 %v8410, %v8421
    %v8430 = vadd.f32 %v8411, %v8417
    %v8431 = vadd.f32 %v8412, %v8421
    %v8432 = vmul.f32 %v8424, 0.5
    %v8433 = vmul.f32 %v8425, 0.5
    %v8434 = vmul.f32 %v8426, 0.5
    %v8435 = vmul.f32 %v8427, 0.5
    %v8436 = vmul.f32 %v8428, 0.5
    %v8437 = vmul.f32 %v8429, 0.5
    %v8438 = vmul.f32 %v8430, 0.5
    %v8439 = vmul.f32 %v8431, 0.5
    %v8440 = vmul.f32 %v8424, 0.70710677
    %v8441 = vmul.f32 %v8425, 0.70710677
    %v8442 = vmul.f32 %v8426, 0.70710677
    %v8443 = vmul.f32 %v8427, 0.70710677
    %v8444 = vmul.f32 %v8428, 0.70710677
    %v8445 = vmul.f32 %v8429, 0.70710677
    %v8446 = vmul.f32 %v8430, 0.70710677
    %v8447 = vmul.f32 %v8431, 0.70710677
    %v8448 = verf.f32.pop %v8440
    %v8449 = verf.f32.pop %v8441
    %v8450 = verf.f32.pop %v8442
    %v8451 = verf.f32.pop %v8443
    %v8452 = verf.f32.pop %v8444
    %v8453 = verf.f32.pop %v8445
    %v8454 = verf.f32.pop %v8446
    %v8455 = verf.f32.pop %v8447
    %v8456 = vadd.f32 %v8448, 1.0
    %v8457 = vadd.f32 %v8449, 1.0
    %v8458 = vadd.f32 %v8450, 1.0
    %v8459 = vadd.f32 %v8451, 1.0
    %v8460 = vadd.f32 %v8452, 1.0
    %v8461 = vadd.f32 %v8453, 1.0
    %v8462 = vadd.f32 %v8454, 1.0
    %v8463 = vadd.f32 %v8455, 1.0
    %v8464 = vmul.f32 %v8432, %v8456
    %v8465 = vmul.f32 %v8433, %v8457
    %v8466 = vmul.f32 %v8434, %v8458
    %v8467 = vmul.f32 %v8435, %v8459
    %v8468 = vmul.f32 %v8436, %v8460
    %v8469 = vmul.f32 %v8437, %v8461
    %v8470 = vmul.f32 %v8438, %v8462
    %v8471 = vmul.f32 %v8439, %v8463
    %v8472 = vld [vmem:[%s107] sm:$0xff]
    %v8473 = vld [vmem:[%s107 + $0x8] sm:$0xff]
    %v8474 = vld [vmem:[%s107 + $0x10] sm:$0xff]
    %v8475 = vld [vmem:[%s107 + $0x18] sm:$0xff]
    %v8476 = vld [vmem:[%s107 + $0x20] sm:$0xff]
    %v8477 = vld [vmem:[%s107 + $0x28] sm:$0xff]
    %v8478 = vld [vmem:[%s107 + $0x30] sm:$0xff]
    %v8479 = vld [vmem:[%s107 + $0x38] sm:$0xff]
    %v8480 = vld [vmem:[%s107 + $0x40] sm:$0xff]
    %v8481 = vld [vmem:[%s107 + $0x48] sm:$0xff]
    %v8482 = vld [vmem:[%s107 + $0x50] sm:$0xff]
    %v8483 = vld [vmem:[%s107 + $0x58] sm:$0xff]
    %v8484 = vld [vmem:[%s107 + $0x60] sm:$0xff]
    %v8485 = vld [vmem:[%s107 + $0x68] sm:$0xff]
    %v8486 = vld [vmem:[%s107 + $0x70] sm:$0xff]
    %v8487 = vld [vmem:[%s107 + $0x78] sm:$0xff]
    %v8488 = vld [vmem:[%s107 + $0x80] sm:$0xff]
    %v8489 = vld [vmem:[%s107 + $0x88] sm:$0xff]
    %v8490 = vld [vmem:[%s107 + $0x90] sm:$0xff]
    %v8491 = vld [vmem:[%s107 + $0x98] sm:$0xff]
    %v8492 = vld [vmem:[%s107 + $0xa0] sm:$0xff]
    %v8493 = vld [vmem:[%s107 + $0xa8] sm:$0xff]
    %v8494 = vld [vmem:[%s107 + $0xb0] sm:$0xff]
    %v8495 = vld [vmem:[%s107 + $0xb8] sm:$0xff]
    %v8496 = vld [vmem:[%s109] sm:$0x1]
    %v8498 = vlaneseq
    %v8499 = vshrl.u32 %v8498, 7
    %v8500 = vsub.s32 0, %v8499
    %v8501 = vrot.slane %v8496, %v8500
    %v8504 = vsel %vm7873, %v8465, 0
    %v8507 = vsel %vm7873, %v8467, 0
    %v8510 = vsel %vm7873, %v8469, 0
    %v8513 = vsel %vm7873, %v8471, 0
    %8515 = vmatprep.subr.mxu0 0.0
    %8516 = vmatpush1.msra.mxu0 %v8472
    %8517 = vmatprep.subr.mxu0 0.0
    %8518 = vmatpush1.msra.mxu0 %v8473
    %8519 = vmatprep.subr.mxu0 0.0
    %8520 = vmatpush1.msra.mxu0 %v8474
    %8521 = vmatprep.subr.mxu0 0.0
    %8522 = vmatpush1.msra.mxu0 %v8475
    %8523 = vmatprep.subr.mxu0 0.0
    %8524 = vmatpush1.msra.mxu0 %v8476
    %8525 = vmatprep.subr.mxu0 0.0
    %8526 = vmatpush1.msra.mxu0 %v8477
    %8527 = vmatprep.subr.mxu0 0.0
    %8528 = vmatpush1.msra.mxu0 %v8478
    %8529 = vmatprep.subr.mxu0 0.0
    %8530 = vmatpush1.msra.mxu0 %v8479
    %8531 = vmatprep.subr.mxu0 0.0
    %8532 = vmatpush1.msra.mxu0 %v8480
    %8533 = vmatprep.subr.mxu0 0.0
    %8534 = vmatpush1.msra.mxu0 %v8481
    %8535 = vmatprep.subr.mxu0 0.0
    %8536 = vmatpush1.msra.mxu0 %v8482
    %8537 = vmatprep.subr.mxu0 0.0
    %8538 = vmatpush1.msra.mxu0 %v8483
    %8539 = vmatprep.subr.mxu0 0.0
    %8540 = vmatpush1.msra.mxu0 %v8484
    %8541 = vmatprep.subr.mxu0 0.0
    %8542 = vmatpush1.msra.mxu0 %v8485
    %8543 = vmatprep.subr.mxu0 0.0
    %8544 = vmatpush1.msra.mxu0 %v8486
    %8545 = vmatprep.subr.mxu0 0.0
    %8546 = vmatpush1.msra.mxu0 %v8487
    %8547 = vmatprep.subr.mxu0 0.0
    %8548 = vmatpush1.msra.mxu0 %v8488
    %8549 = vmatprep.subr.mxu0 0.0
    %8550 = vmatpush1.msra.mxu0 %v8489
    %8551 = vmatprep.subr.mxu0 0.0
    %8552 = vmatpush1.msra.mxu0 %v8490
    %8553 = vmatprep.subr.mxu0 0.0
    %8554 = vmatpush1.msra.mxu0 %v8491
    %8555 = vmatprep.subr.mxu0 0.0
    %8556 = vmatpush1.msra.mxu0 %v8492
    %8557 = vmatprep.subr.mxu0 0.0
    %8558 = vmatpush1.msra.mxu0 %v8493
    %8559 = vmatprep.subr.mxu0 0.0
    %8560 = vmatpush1.msra.mxu0 %v8494
    %8561 = vmatprep.subr.mxu0 0.0
    %8562 = vmatpush1.msra.mxu0 %v8495
    %8563 = vmatprep.subr.mxu0 0.0
    %8564 = vmatpush1.msra.mxu0 0.0
    %8565 = vmatprep.subr.mxu0 0.0
    %8566 = vmatpush1.msra.mxu0 0.0
    %8567 = vmatprep.subr.mxu0 0.0
    %8568 = vmatpush1.msra.mxu0 0.0
    %8569 = vmatprep.subr.mxu0 0.0
    %8570 = vmatpush1.msra.mxu0 0.0
    %8571 = vmatprep.subr.mxu0 0.0
    %8572 = vmatpush1.msra.mxu0 0.0
    %8573 = vmatprep.subr.mxu0 0.0
    %8574 = vmatpush1.msra.mxu0 0.0
    %8575 = vmatprep.subr.mxu0 0.0
    %8576 = vmatpush1.msra.mxu0 0.0
    %8577 = vmatprep.subr.mxu0 0.0
    %8578 = vmatpush1.msra.mxu0 0.0
    %8579 = vmatprep.mubr.f32.mxu0 %v8504
    %8580 = vmatmul.mubr.f32.gmra.mrb[0].mxu0 %v8464
    %v8581 = vpop.f32.mrb[0].mxu0
    %v8582 = vadd.f32 %v8501, %v8581
    %v8583 = vpop.f32.mrb[0].mxu0
    %8584 = vmatprep.mubr.f32.mxu0 %v8507
    %8585 = vmatmul.mubr.f32.gmra.mrb[0].mxu0 %v8466
    %v8586 = vpop.f32.mrb[0].mxu0
    %v8587 = vadd.f32 %v8501, %v8586
    %v8588 = vpop.f32.mrb[0].mxu0
    %8589 = vmatprep.mubr.f32.mxu0 %v8510
    %8590 = vmatmul.mubr.f32.gmra.mrb[0].mxu0 %v8468
    %v8591 = vpop.f32.mrb[0].mxu0
    %v8592 = vadd.f32 %v8501, %v8591
    %v8593 = vpop.f32.mrb[0].mxu0
    %8594 = vmatprep.mubr.f32.mxu0 %v8513
    %8595 = vmatmul.mubr.f32.gmra.mrb[0].mxu0 %v8470
    %v8596 = vpop.f32.mrb[0].mxu0
    %v8597 = vadd.f32 %v8501, %v8596
    %v8598 = vpop.f32.mrb[0].mxu0
    %8599 = vdwg.mxu0
    %8600 = vst.msk [vmem:[#allocation23] sm:$0xff] %vm472, %v8582
    %8601 = vst.msk [vmem:[#allocation23 + $0x8] sm:$0xff] %vm472, %v8587
    %8602 = vst.msk [vmem:[#allocation23 + $0x10] sm:$0xff] %vm472, %v8592
    %8603 = vst.msk [vmem:[#allocation23 + $0x18] sm:$0xff] %vm472, %v8597
    %v8604 = vld [vmem:[#allocation14] sm:$0xff]
    %v8605 = vld [vmem:[#allocation14 + $0x8] sm:$0xff]
    %v8606 = vld [vmem:[#allocation14 + $0x10] sm:$0xff]
    %v8607 = vld [vmem:[#allocation14 + $0x18] sm:$0xff]
    %v8608 = vld [vmem:[%s113] sm:$0x1]
    %v8610 = vlaneseq
    %v8611 = vshrl.u32 %v8610, 7
    %v8612 = vsub.s32 0, %v8611
    %v8613 = vrot.slane %v8608, %v8612
    %v8616 = vsel %vm647, %v8065, 0
    %v8619 = vsel %vm647, %v8066, 0
    %8621 = vmatprep.subr.mxu0 0.0
    %8622 = vmatpush1.msra.mxu0 %v8604
    %8623 = vmatprep.subr.mxu0 0.0
    %8624 = vmatpush1.msra.mxu0 %v8605
    %8625 = vmatprep.subr.mxu0 0.0
    %8626 = vmatpush1.msra.mxu0 %v8606
    %8627 = vmatprep.subr.mxu0 0.0
    %8628 = vmatpush1.msra.mxu0 %v8607
    %8629 = vmatprep.subr.mxu0 0.0
    %8630 = vmatpush1.msra.mxu0 0.0
    %8631 = vmatprep.subr.mxu0 0.0
    %8632 = vmatpush1.msra.mxu0 0.0
    %8633 = vmatprep.subr.mxu0 0.0
    %8634 = vmatpush1.msra.mxu0 0.0
    %8635 = vmatprep.subr.mxu0 0.0
    %8636 = vmatpush1.msra.mxu0 0.0
    %8637 = vmatprep.subr.mxu0 0.0
    %8638 = vmatpush1.msra.mxu0 0.0
    %8639 = vmatprep.subr.mxu0 0.0
    %8640 = vmatpush1.msra.mxu0 0.0
    %8641 = vmatprep.subr.mxu0 0.0
    %8642 = vmatpush1.msra.mxu0 0.0
    %8643 = vmatprep.subr.mxu0 0.0
    %8644 = vmatpush1.msra.mxu0 0.0
    %8645 = vmatprep.subr.mxu0 0.0
    %8646 = vmatpush1.msra.mxu0 0.0
    %8647 = vmatprep.subr.mxu0 0.0
    %8648 = vmatpush1.msra.mxu0 0.0
    %8649 = vmatprep.subr.mxu0 0.0
    %8650 = vmatpush1.msra.mxu0 0.0
    %8651 = vmatprep.subr.mxu0 0.0
    %8652 = vmatpush1.msra.mxu0 0.0
    %8653 = vmatprep.subr.mxu0 0.0
    %8654 = vmatpush1.msra.mxu0 0.0
    %8655 = vmatprep.subr.mxu0 0.0
    %8656 = vmatpush1.msra.mxu0 0.0
    %8657 = vmatprep.subr.mxu0 0.0
    %8658 = vmatpush1.msra.mxu0 0.0
    %8659 = vmatprep.subr.mxu0 0.0
    %8660 = vmatpush1.msra.mxu0 0.0
    %8661 = vmatprep.subr.mxu0 0.0
    %8662 = vmatpush1.msra.mxu0 0.0
    %8663 = vmatprep.subr.mxu0 0.0
    %8664 = vmatpush1.msra.mxu0 0.0
    %8665 = vmatprep.subr.mxu0 0.0
    %8666 = vmatpush1.msra.mxu0 0.0
    %8667 = vmatprep.subr.mxu0 0.0
    %8668 = vmatpush1.msra.mxu0 0.0
    %8669 = vmatprep.subr.mxu0 0.0
    %8670 = vmatpush1.msra.mxu0 0.0
    %8671 = vmatprep.subr.mxu0 0.0
    %8672 = vmatpush1.msra.mxu0 0.0
    %8673 = vmatprep.subr.mxu0 0.0
    %8674 = vmatpush1.msra.mxu0 0.0
    %8675 = vmatprep.subr.mxu0 0.0
    %8676 = vmatpush1.msra.mxu0 0.0
    %8677 = vmatprep.subr.mxu0 0.0
    %8678 = vmatpush1.msra.mxu0 0.0
    %8679 = vmatprep.subr.mxu0 0.0
    %8680 = vmatpush1.msra.mxu0 0.0
    %8681 = vmatprep.subr.mxu0 0.0
    %8682 = vmatpush1.msra.mxu0 0.0
    %8683 = vmatprep.subr.mxu0 0.0
    %8684 = vmatpush1.msra.mxu0 0.0
    %8685 = vmatprep.mubr.f32.mxu0 0.0
    %8686 = vmatmul.mubr.f32.gmra.mrb[0].mxu0 %v8616
    %v8687 = vpop.f32.mrb[0].mxu0
    %v8688 = vadd.f32 %v8613, %v8687
    %v8689 = vpop.f32.mrb[0].mxu0
    %8690 = vmatprep.mubr.f32.mxu0 0.0
    %8691 = vmatmul.mubr.f32.gmra.mrb[0].mxu0 %v8619
    %v8692 = vpop.f32.mrb[0].mxu0
    %v8693 = vadd.f32 %v8613, %v8692
    %v8694 = vpop.f32.mrb[0].mxu0
    %8695 = vmatprep.mubr.f32.mxu0 0.0
    %8696 = vmatmul.mubr.f32.gmra.mrb[0].mxu0 %v8076
    %v8697 = vpop.f32.mrb[0].mxu0
    %v8698 = vadd.f32 %v8613, %v8697
    %v8699 = vpop.f32.mrb[0].mxu0
    %8700 = vmatprep.mubr.f32.mxu0 0.0
    %8701 = vmatmul.mubr.f32.gmra.mrb[0].mxu0 %v8079
    %v8702 = vpop.f32.mrb[0].mxu0
    %v8703 = vadd.f32 %v8613, %v8702
    %v8704 = vpop.f32.mrb[0].mxu0
    %8705 = vdwg.mxu0
    %v8706 = vld [vmem:[%s115] sm:$0x1]
    %v8707 = vld [vmem:[%s117] sm:$0x1]
    %v8708 = vsel %vm647, %v8688, 0.0
    %8709 = vadd.xlane.f32.xlu0 %v8708
    %v8710 = vpop.xlane.xlu0 %8709
    %v8711 = vsel %vm647, %v8693, 0.0
    %8712 = vadd.xlane.f32.xlu0 %v8711
    %v8713 = vpop.xlane.xlu0 %8712
    %v8714 = vsel %vm647, %v8698, 0.0
    %8715 = vadd.xlane.f32.xlu0 %v8714
    %v8716 = vpop.xlane.xlu0 %8715
    %v8717 = vsel %vm647, %v8703, 0.0
    %8718 = vadd.xlane.f32.xlu0 %v8717
    %v8719 = vpop.xlane.xlu0 %8718
    %v8720 = vmul.f32 %v8710, %v660
    %v8721 = vmul.f32 %v8713, %v660
    %v8722 = vmul.f32 %v8716, %v660
    %v8723 = vmul.f32 %v8719, %v660
    %v8724 = vsub.f32 %v8688, %v8720
    %v8725 = vsub.f32 %v8693, %v8721
    %v8726 = vsub.f32 %v8698, %v8722
    %v8727 = vsub.f32 %v8703, %v8723
    %v8728 = vmul.f32 %v8724, %v8724
    %v8729 = vmul.f32 %v8725, %v8725
    %v8730 = vmul.f32 %v8726, %v8726
    %v8731 = vmul.f32 %v8727, %v8727
    %v8732 = vsel %vm647, %v8728, 0.0
    %8733 = vadd.xlane.f32.xlu0 %v8732
    %v8734 = vpop.xlane.xlu0 %8733
    %v8735 = vsel %vm647, %v8729, 0.0
    %8736 = vadd.xlane.f32.xlu0 %v8735
    %v8737 = vpop.xlane.xlu0 %8736
    %v8738 = vsel %vm647, %v8730, 0.0
    %8739 = vadd.xlane.f32.xlu0 %v8738
    %v8740 = vpop.xlane.xlu0 %8739
    %v8741 = vsel %vm647, %v8731, 0.0
    %8742 = vadd.xlane.f32.xlu0 %v8741
    %v8743 = vpop.xlane.xlu0 %8742
    %v8744 = vmul.f32 %v8734, %v660
    %v8745 = vmul.f32 %v8737, %v660
    %v8746 = vmul.f32 %v8740, %v660
    %v8747 = vmul.f32 %v8743, %v660
    %v8748 = vadd.f32 %v8744, 1e-05
    %v8749 = vadd.f32 %v8745, 1e-05
    %v8750 = vadd.f32 %v8746, 1e-05
    %v8751 = vadd.f32 %v8747, 1e-05
    %v8752 = vrsqrt.pop %v8748
    %v8753 = vrsqrt.pop %v8749
    %v8754 = vrsqrt.pop %v8750
    %v8755 = vrsqrt.pop %v8751
    %v8756 = vmul.f32 %v8724, %v8752
    %v8757 = vmul.f32 %v8725, %v8753
    %v8758 = vmul.f32 %v8726, %v8754
    %v8759 = vmul.f32 %v8727, %v8755
    %v8761 = vlaneseq
    %v8762 = vshrl.u32 %v8761, 7
    %v8763 = vsub.s32 0, %v8762
    %v8764 = vrot.slane %v8706, %v8763
    %v8766 = vmul.f32 %v8756, %v8764
    %v8767 = vmul.f32 %v8757, %v8764
    %v8768 = vmul.f32 %v8758, %v8764
    %v8769 = vmul.f32 %v8759, %v8764
    %v8771 = vlaneseq
    %v8772 = vshrl.u32 %v8771, 7
    %v8773 = vsub.s32 0, %v8772
    %v8774 = vrot.slane %v8707, %v8773
    %v8776 = vadd.f32 %v8766, %v8774
    %v8777 = vadd.f32 %v8767, %v8774
    %v8778 = vadd.f32 %v8768, %v8774
    %v8779 = vadd.f32 %v8769, %v8774
    %v8780 = vld [vmem:[%s5] sm:$0xff]
    %v8781 = vld [vmem:[%s5 + $0x8] sm:$0xff]
    %v8782 = vld [vmem:[#allocation16] sm:$0xff]
    %v8783 = vld [vmem:[#allocation16 + $0x8] sm:$0xff]
    %v8784 = vld [vmem:[#allocation16 + $0x10] sm:$0xff]
    %v8785 = vld [vmem:[#allocation16 + $0x18] sm:$0xff]
    %v8787 = vsel %vm647, %v8780, 0
    %v8790 = vsel %vm647, %v8781, 0
    %8792 = vmatprep.subr.mxu0 0.0
    %8793 = vmatpush1.msra.mxu0 %v8782
    %8794 = vmatprep.subr.mxu0 0.0
    %8795 = vmatpush1.msra.mxu0 %v8783
    %8796 = vmatprep.subr.mxu0 0.0
    %8797 = vmatpush1.msra.mxu0 %v8784
    %8798 = vmatprep.subr.mxu0 0.0
    %8799 = vmatpush1.msra.mxu0 %v8785
    %8800 = vmatprep.subr.mxu0 0.0
    %8801 = vmatpush1.msra.mxu0 0.0
    %8802 = vmatprep.subr.mxu0 0.0
    %8803 = vmatpush1.msra.mxu0 0.0
    %8804 = vmatprep.subr.mxu0 0.0
    %8805 = vmatpush1.msra.mxu0 0.0
    %8806 = vmatprep.subr.mxu0 0.0
    %8807 = vmatpush1.msra.mxu0 0.0
    %8808 = vmatprep.subr.mxu0 0.0
    %8809 = vmatpush1.msra.mxu0 0.0
    %8810 = vmatprep.subr.mxu0 0.0
    %8811 = vmatpush1.msra.mxu0 0.0
    %8812 = vmatprep.subr.mxu0 0.0
    %8813 = vmatpush1.msra.mxu0 0.0
    %8814 = vmatprep.subr.mxu0 0.0
    %8815 = vmatpush1.msra.mxu0 0.0
    %8816 = vmatprep.subr.mxu0 0.0
    %8817 = vmatpush1.msra.mxu0 0.0
    %8818 = vmatprep.subr.mxu0 0.0
    %8819 = vmatpush1.msra.mxu0 0.0
    %8820 = vmatprep.subr.mxu0 0.0
    %8821 = vmatpush1.msra.mxu0 0.0
    %8822 = vmatprep.subr.mxu0 0.0
    %8823 = vmatpush1.msra.mxu0 0.0
    %8824 = vmatprep.subr.mxu0 0.0
    %8825 = vmatpush1.msra.mxu0 0.0
    %8826 = vmatprep.subr.mxu0 0.0
    %8827 = vmatpush1.msra.mxu0 0.0
    %8828 = vmatprep.subr.mxu0 0.0
    %8829 = vmatpush1.msra.mxu0 0.0
    %8830 = vmatprep.subr.mxu0 0.0
    %8831 = vmatpush1.msra.mxu0 0.0
    %8832 = vmatprep.subr.mxu0 0.0
    %8833 = vmatpush1.msra.mxu0 0.0
    %8834 = vmatprep.subr.mxu0 0.0
    %8835 = vmatpush1.msra.mxu0 0.0
    %8836 = vmatprep.subr.mxu0 0.0
    %8837 = vmatpush1.msra.mxu0 0.0
    %8838 = vmatprep.subr.mxu0 0.0
    %8839 = vmatpush1.msra.mxu0 0.0
    %8840 = vmatprep.subr.mxu0 0.0
    %8841 = vmatpush1.msra.mxu0 0.0
    %8842 = vmatprep.subr.mxu0 0.0
    %8843 = vmatpush1.msra.mxu0 0.0
    %8844 = vmatprep.subr.mxu0 0.0
    %8845 = vmatpush1.msra.mxu0 0.0
    %8846 = vmatprep.subr.mxu0 0.0
    %8847 = vmatpush1.msra.mxu0 0.0
    %8848 = vmatprep.subr.mxu0 0.0
    %8849 = vmatpush1.msra.mxu0 0.0
    %8850 = vmatprep.subr.mxu0 0.0
    %8851 = vmatpush1.msra.mxu0 0.0
    %8852 = vmatprep.subr.mxu0 0.0
    %8853 = vmatpush1.msra.mxu0 0.0
    %8854 = vmatprep.subr.mxu0 0.0
    %8855 = vmatpush1.msra.mxu0 0.0
    %8856 = vmatprep.mubr.f32.mxu0 0.0
    %8857 = vmatmul.mubr.f32.gmra.mrb[0].mxu0 %v8787
    %v8858 = vpop.f32.mrb[0].mxu0
    %v8859 = vadd.f32 0.0, %v8858
    %v8860 = vpop.f32.mrb[0].mxu0
    %8861 = vmatprep.mubr.f32.mxu0 0.0
    %8862 = vmatmul.mubr.f32.gmra.mrb[0].mxu0 %v8790
    %v8863 = vpop.f32.mrb[0].mxu0
    %v8864 = vadd.f32 0.0, %v8863
    %v8865 = vpop.f32.mrb[0].mxu0
    %8866 = vdwg.mxu0
    %v8867 = vld [vmem:[#allocation17] sm:$0xff]
    %v8868 = vld [vmem:[#allocation17 + $0x8] sm:$0xff]
    %v8869 = vld [vmem:[#allocation17 + $0x10] sm:$0xff]
    %v8870 = vld [vmem:[#allocation17 + $0x18] sm:$0xff]
    %v8872 = vsel %vm647, %v8776, 0
    %v8875 = vsel %vm647, %v8777, 0
    %v8878 = vsel %vm647, %v8778, 0
    %v8881 = vsel %vm647, %v8779, 0
    %8883 = vmatprep.subr.mxu0 0.0
    %8884 = vmatpush1.msra.mxu0 %v8867
    %8885 = vmatprep.subr.mxu0 0.0
    %8886 = vmatpush1.msra.mxu0 %v8868
    %8887 = vmatprep.subr.mxu0 0.0
    %8888 = vmatpush1.msra.mxu0 %v8869
    %8889 = vmatprep.subr.mxu0 0.0
    %8890 = vmatpush1.msra.mxu0 %v8870
    %8891 = vmatprep.subr.mxu0 0.0
    %8892 = vmatpush1.msra.mxu0 0.0
    %8893 = vmatprep.subr.mxu0 0.0
    %8894 = vmatpush1.msra.mxu0 0.0
    %8895 = vmatprep.subr.mxu0 0.0
    %8896 = vmatpush1.msra.mxu0 0.0
    %8897 = vmatprep.subr.mxu0 0.0
    %8898 = vmatpush1.msra.mxu0 0.0
    %8899 = vmatprep.subr.mxu0 0.0
    %8900 = vmatpush1.msra.mxu0 0.0
    %8901 = vmatprep.subr.mxu0 0.0
    %8902 = vmatpush1.msra.mxu0 0.0
    %8903 = vmatprep.subr.mxu0 0.0
    %8904 = vmatpush1.msra.mxu0 0.0
    %8905 = vmatprep.subr.mxu0 0.0
    %8906 = vmatpush1.msra.mxu0 0.0
    %8907 = vmatprep.subr.mxu0 0.0
    %8908 = vmatpush1.msra.mxu0 0.0
    %8909 = vmatprep.subr.mxu0 0.0
    %8910 = vmatpush1.msra.mxu0 0.0
    %8911 = vmatprep.subr.mxu0 0.0
    %8912 = vmatpush1.msra.mxu0 0.0
    %8913 = vmatprep.subr.mxu0 0.0
    %8914 = vmatpush1.msra.mxu0 0.0
    %8915 = vmatprep.subr.mxu0 0.0
    %8916 = vmatpush1.msra.mxu0 0.0
    %8917 = vmatprep.subr.mxu0 0.0
    %8918 = vmatpush1.msra.mxu0 0.0
    %8919 = vmatprep.subr.mxu0 0.0
    %8920 = vmatpush1.msra.mxu0 0.0
    %8921 = vmatprep.subr.mxu0 0.0
    %8922 = vmatpush1.msra.mxu0 0.0
    %8923 = vmatprep.subr.mxu0 0.0
    %8924 = vmatpush1.msra.mxu0 0.0
    %8925 = vmatprep.subr.mxu0 0.0
    %8926 = vmatpush1.msra.mxu0 0.0
    %8927 = vmatprep.subr.mxu0 0.0
    %8928 = vmatpush1.msra.mxu0 0.0
    %8929 = vmatprep.subr.mxu0 0.0
    %8930 = vmatpush1.msra.mxu0 0.0
    %8931 = vmatprep.subr.mxu0 0.0
    %8932 = vmatpush1.msra.mxu0 0.0
    %8933 = vmatprep.subr.mxu0 0.0
    %8934 = vmatpush1.msra.mxu0 0.0
    %8935 = vmatprep.subr.mxu0 0.0
    %8936 = vmatpush1.msra.mxu0 0.0
    %8937 = vmatprep.subr.mxu0 0.0
    %8938 = vmatpush1.msra.mxu0 0.0
    %8939 = vmatprep.subr.mxu0 0.0
    %8940 = vmatpush1.msra.mxu0 0.0
    %8941 = vmatprep.subr.mxu0 0.0
    %8942 = vmatpush1.msra.mxu0 0.0
    %8943 = vmatprep.subr.mxu0 0.0
    %8944 = vmatpush1.msra.mxu0 0.0
    %8945 = vmatprep.subr.mxu0 0.0
    %8946 = vmatpush1.msra.mxu0 0.0
    %8947 = vmatprep.mubr.f32.mxu0 0.0
    %8948 = vmatmul.mubr.f32.gmra.mrb[0].mxu0 %v8872
    %v8949 = vpop.f32.mrb[0].mxu0
    %v8950 = vadd.f32 0.0, %v8949
    %v8951 = vpop.f32.mrb[0].mxu0
    %8952 = vmatprep.mubr.f32.mxu0 0.0
    %8953 = vmatmul.mubr.f32.gmra.mrb[0].mxu0 %v8875
    %v8954 = vpop.f32.mrb[0].mxu0
    %v8955 = vadd.f32 0.0, %v8954
    %v8956 = vpop.f32.mrb[0].mxu0
    %8957 = vmatprep.mubr.f32.mxu0 0.0
    %8958 = vmatmul.mubr.f32.gmra.mrb[0].mxu0 %v8878
    %v8959 = vpop.f32.mrb[0].mxu0
    %v8960 = vadd.f32 0.0, %v8959
    %v8961 = vpop.f32.mrb[0].mxu0
    %8962 = vmatprep.mubr.f32.mxu0 0.0
    %8963 = vmatmul.mubr.f32.gmra.mrb[0].mxu0 %v8881
    %v8964 = vpop.f32.mrb[0].mxu0
    %v8965 = vadd.f32 0.0, %v8964
    %v8966 = vpop.f32.mrb[0].mxu0
    %8967 = vdwg.mxu0
    %v8968 = vld [vmem:[#allocation19] sm:$0xff]
    %v8969 = vld [vmem:[#allocation19 + $0x8] sm:$0xff]
    %v8970 = vld [vmem:[#allocation19 + $0x10] sm:$0xff]
    %v8971 = vld [vmem:[#allocation19 + $0x18] sm:$0xff]
    %8972 = vmatprep.subr.mxu0 0.0
    %8973 = vmatpush1.msra.mxu0 %v8968
    %8974 = vmatprep.subr.mxu0 0.0
    %8975 = vmatpush1.msra.mxu0 %v8969
    %8976 = vmatprep.subr.mxu0 0.0
    %8977 = vmatpush1.msra.mxu0 %v8970
    %8978 = vmatprep.subr.mxu0 0.0
    %8979 = vmatpush1.msra.mxu0 %v8971
    %8980 = vmatprep.subr.mxu0 0.0
    %8981 = vmatpush1.msra.mxu0 0.0
    %8982 = vmatprep.subr.mxu0 0.0
    %8983 = vmatpush1.msra.mxu0 0.0
    %8984 = vmatprep.subr.mxu0 0.0
    %8985 = vmatpush1.msra.mxu0 0.0
    %8986 = vmatprep.subr.mxu0 0.0
    %8987 = vmatpush1.msra.mxu0 0.0
    %8988 = vmatprep.subr.mxu0 0.0
    %8989 = vmatpush1.msra.mxu0 0.0
    %8990 = vmatprep.subr.mxu0 0.0
    %8991 = vmatpush1.msra.mxu0 0.0
    %8992 = vmatprep.subr.mxu0 0.0
    %8993 = vmatpush1.msra.mxu0 0.0
    %8994 = vmatprep.subr.mxu0 0.0
    %8995 = vmatpush1.msra.mxu0 0.0
    %8996 = vmatprep.subr.mxu0 0.0
    %8997 = vmatpush1.msra.mxu0 0.0
    %8998 = vmatprep.subr.mxu0 0.0
    %8999 = vmatpush1.msra.mxu0 0.0
    %9000 = vmatprep.subr.mxu0 0.0
    %9001 = vmatpush1.msra.mxu0 0.0
    %9002 = vmatprep.subr.mxu0 0.0
    %9003 = vmatpush1.msra.mxu0 0.0
    %9004 = vmatprep.subr.mxu0 0.0
    %9005 = vmatpush1.msra.mxu0 0.0
    %9006 = vmatprep.subr.mxu0 0.0
    %9007 = vmatpush1.msra.mxu0 0.0
    %9008 = vmatprep.subr.mxu0 0.0
    %9009 = vmatpush1.msra.mxu0 0.0
    %9010 = vmatprep.subr.mxu0 0.0
    %9011 = vmatpush1.msra.mxu0 0.0
    %9012 = vmatprep.subr.mxu0 0.0
    %9013 = vmatpush1.msra.mxu0 0.0
    %9014 = vmatprep.subr.mxu0 0.0
    %9015 = vmatpush1.msra.mxu0 0.0
    %9016 = vmatprep.subr.mxu0 0.0
    %9017 = vmatpush1.msra.mxu0 0.0
    %9018 = vmatprep.subr.mxu0 0.0
    %9019 = vmatpush1.msra.mxu0 0.0
    %9020 = vmatprep.subr.mxu0 0.0
    %9021 = vmatpush1.msra.mxu0 0.0
    %9022 = vmatprep.subr.mxu0 0.0
    %9023 = vmatpush1.msra.mxu0 0.0
    %9024 = vmatprep.subr.mxu0 0.0
    %9025 = vmatpush1.msra.mxu0 0.0
    %9026 = vmatprep.subr.mxu0 0.0
    %9027 = vmatpush1.msra.mxu0 0.0
    %9028 = vmatprep.subr.mxu0 0.0
    %9029 = vmatpush1.msra.mxu0 0.0
    %9030 = vmatprep.subr.mxu0 0.0
    %9031 = vmatpush1.msra.mxu0 0.0
    %9032 = vmatprep.subr.mxu0 0.0
    %9033 = vmatpush1.msra.mxu0 0.0
    %9034 = vmatprep.subr.mxu0 0.0
    %9035 = vmatpush1.msra.mxu0 0.0
    %9036 = vmatprep.mubr.f32.mxu0 0.0
    %9037 = vmatmul.mubr.f32.gmra.mrb[0].mxu0 %v8872
    %v9038 = vpop.f32.mrb[0].mxu0
    %v9039 = vadd.f32 0.0, %v9038
    %v9040 = vpop.f32.mrb[0].mxu0
    %9041 = vmatprep.mubr.f32.mxu0 0.0
    %9042 = vmatmul.mubr.f32.gmra.mrb[0].mxu0 %v8875
    %v9043 = vpop.f32.mrb[0].mxu0
    %v9044 = vadd.f32 0.0, %v9043
    %v9045 = vpop.f32.mrb[0].mxu0
    %9046 = vmatprep.mubr.f32.mxu0 0.0
    %9047 = vmatmul.mubr.f32.gmra.mrb[0].mxu0 %v8878
    %v9048 = vpop.f32.mrb[0].mxu0
    %v9049 = vadd.f32 0.0, %v9048
    %v9050 = vpop.f32.mrb[0].mxu0
    %9051 = vmatprep.mubr.f32.mxu0 0.0
    %9052 = vmatmul.mubr.f32.gmra.mrb[0].mxu0 %v8881
    %v9053 = vpop.f32.mrb[0].mxu0
    %v9054 = vadd.f32 0.0, %v9053
    %v9055 = vpop.f32.mrb[0].mxu0
    %9056 = vdwg.mxu0
    %v9058 = vsel %vm647, %v8859, 0
    %v9061 = vsel %vm647, %v8950, 0
    %v9064 = vsel %vm647, %v8955, 0
    %9066 = vmatprep.subr.mxu0 0.0
    %9067 = vmatpush1.xpose.msra.mxu0 %v9061
    %9068 = vmatprep.subr.mxu0 0.0
    %9069 = vmatpush1.xpose.msra.mxu0 %v9064
    %9070 = vmatprep.subr.mxu0 0.0
    %9071 = vmatpush1.xpose.msra.mxu0 0.0
    %9072 = vmatprep.subr.mxu0 0.0
    %9073 = vmatpush1.xpose.msra.mxu0 0.0
    %9074 = vmatprep.subr.mxu0 0.0
    %9075 = vmatpush1.xpose.msra.mxu0 0.0
    %9076 = vmatprep.subr.mxu0 0.0
    %9077 = vmatpush1.xpose.msra.mxu0 0.0
    %9078 = vmatprep.subr.mxu0 0.0
    %9079 = vmatpush1.xpose.msra.mxu0 0.0
    %9080 = vmatprep.subr.mxu0 0.0
    %9081 = vmatpush1.xpose.msra.mxu0 0.0
    %9082 = vmatprep.subr.mxu0 0.0
    %9083 = vmatpush1.xpose.msra.mxu0 0.0
    %9084 = vmatprep.subr.mxu0 0.0
    %9085 = vmatpush1.xpose.msra.mxu0 0.0
    %9086 = vmatprep.subr.mxu0 0.0
    %9087 = vmatpush1.xpose.msra.mxu0 0.0
    %9088 = vmatprep.subr.mxu0 0.0
    %9089 = vmatpush1.xpose.msra.mxu0 0.0
    %9090 = vmatprep.subr.mxu0 0.0
    %9091 = vmatpush1.xpose.msra.mxu0 0.0
    %9092 = vmatprep.subr.mxu0 0.0
    %9093 = vmatpush1.xpose.msra.mxu0 0.0
    %9094 = vmatprep.subr.mxu0 0.0
    %9095 = vmatpush1.xpose.msra.mxu0 0.0
    %9096 = vmatprep.subr.mxu0 0.0
    %9097 = vmatpush1.xpose.msra.mxu0 0.0
    %9098 = vmatprep.subr.mxu0 0.0
    %9099 = vmatpush1.xpose.msra.mxu0 0.0
    %9100 = vmatprep.subr.mxu0 0.0
    %9101 = vmatpush1.xpose.msra.mxu0 0.0
    %9102 = vmatprep.subr.mxu0 0.0
    %9103 = vmatpush1.xpose.msra.mxu0 0.0
    %9104 = vmatprep.subr.mxu0 0.0
    %9105 = vmatpush1.xpose.msra.mxu0 0.0
    %9106 = vmatprep.subr.mxu0 0.0
    %9107 = vmatpush1.xpose.msra.mxu0 0.0
    %9108 = vmatprep.subr.mxu0 0.0
    %9109 = vmatpush1.xpose.msra.mxu0 0.0
    %9110 = vmatprep.subr.mxu0 0.0
    %9111 = vmatpush1.xpose.msra.mxu0 0.0
    %9112 = vmatprep.subr.mxu0 0.0
    %9113 = vmatpush1.xpose.msra.mxu0 0.0
    %9114 = vmatprep.subr.mxu0 0.0
    %9115 = vmatpush1.xpose.msra.mxu0 0.0
    %9116 = vmatprep.subr.mxu0 0.0
    %9117 = vmatpush1.xpose.msra.mxu0 0.0
    %9118 = vmatprep.subr.mxu0 0.0
    %9119 = vmatpush1.xpose.msra.mxu0 0.0
    %9120 = vmatprep.subr.mxu0 0.0
    %9121 = vmatpush1.xpose.msra.mxu0 0.0
    %9122 = vmatprep.subr.mxu0 0.0
    %9123 = vmatpush1.xpose.msra.mxu0 0.0
    %9124 = vmatprep.subr.mxu0 0.0
    %9125 = vmatpush1.xpose.msra.mxu0 0.0
    %9126 = vmatprep.subr.mxu0 0.0
    %9127 = vmatpush1.xpose.msra.mxu0 0.0
    %9128 = vmatprep.subr.mxu0 0.0
    %9129 = vmatpush1.xpose.msra.mxu0 0.0
    %9130 = vmatprep.mubr.f32.mxu0 0.0
    %9131 = vmatmul.mubr.f32.gmra.mrb[0].mxu0 %v9058
    %v9132 = vpop.f32.mrb[0].mxu0
    %v9133 = vadd.f32 0.0, %v9132
    %v9134 = vpop.f32.mrb[0].mxu0
    %9135 = vdwg.mxu0
    %v9136 = vmul.f32 %v9133, 0.17677669
    %v9137 = vsel %vm1111, %v9136, -inf
    %9138 = vmax.xlane.f32.xlu0 %v9137
    %v9139 = vpop.xlane.xlu0 %9138
    %v9140 = vsub.f32 %v9136, %v9139
    %v9141 = vmul.f32 %v9140, 1.442695
    %v9142 = vpow.pop %v9141
    %v9143 = vsel %vm1111, %v9142, 0.0
    %9144 = vadd.xlane.f32.xlu0 %v9143
    %v9145 = vpop.xlane.xlu0 %9144
    %v9146 = vrcp.pop %v9145
    %v9147 = vmul.f32 %v9142, %v9146
    %v9149 = vsel %vm1111, %v9147, 0
    %9151 = vmatprep.subr.mxu0 0.0
    %9152 = vmatpush1.msra.mxu0 %v9039
    %9153 = vmatprep.subr.mxu0 0.0
    %9154 = vmatpush1.msra.mxu0 %v9044
    %9155 = vmatprep.subr.mxu0 0.0
    %9156 = vmatpush1.msra.mxu0 0.0
    %9157 = vmatprep.subr.mxu0 0.0
    %9158 = vmatpush1.msra.mxu0 0.0
    %9159 = vmatprep.subr.mxu0 0.0
    %9160 = vmatpush1.msra.mxu0 0.0
    %9161 = vmatprep.subr.mxu0 0.0
    %9162 = vmatpush1.msra.mxu0 0.0
    %9163 = vmatprep.subr.mxu0 0.0
    %9164 = vmatpush1.msra.mxu0 0.0
    %9165 = vmatprep.subr.mxu0 0.0
    %9166 = vmatpush1.msra.mxu0 0.0
    %9167 = vmatprep.subr.mxu0 0.0
    %9168 = vmatpush1.msra.mxu0 0.0
    %9169 = vmatprep.subr.mxu0 0.0
    %9170 = vmatpush1.msra.mxu0 0.0
    %9171 = vmatprep.subr.mxu0 0.0
    %9172 = vmatpush1.msra.mxu0 0.0
    %9173 = vmatprep.subr.mxu0 0.0
    %9174 = vmatpush1.msra.mxu0 0.0
    %9175 = vmatprep.subr.mxu0 0.0
    %9176 = vmatpush1.msra.mxu0 0.0
    %9177 = vmatprep.subr.mxu0 0.0
    %9178 = vmatpush1.msra.mxu0 0.0
    %9179 = vmatprep.subr.mxu0 0.0
    %9180 = vmatpush1.msra.mxu0 0.0
    %9181 = vmatprep.subr.mxu0 0.0
    %9182 = vmatpush1.msra.mxu0 0.0
    %9183 = vmatprep.subr.mxu0 0.0
    %9184 = vmatpush1.msra.mxu0 0.0
    %9185 = vmatprep.subr.mxu0 0.0
    %9186 = vmatpush1.msra.mxu0 0.0
    %9187 = vmatprep.subr.mxu0 0.0
    %9188 = vmatpush1.msra.mxu0 0.0
    %9189 = vmatprep.subr.mxu0 0.0
    %9190 = vmatpush1.msra.mxu0 0.0
    %9191 = vmatprep.subr.mxu0 0.0
    %9192 = vmatpush1.msra.mxu0 0.0
    %9193 = vmatprep.subr.mxu0 0.0
    %9194 = vmatpush1.msra.mxu0 0.0
    %9195 = vmatprep.subr.mxu0 0.0
    %9196 = vmatpush1.msra.mxu0 0.0
    %9197 = vmatprep.subr.mxu0 0.0
    %9198 = vmatpush1.msra.mxu0 0.0
    %9199 = vmatprep.subr.mxu0 0.0
    %9200 = vmatpush1.msra.mxu0 0.0
    %9201 = vmatprep.subr.mxu0 0.0
    %9202 = vmatpush1.msra.mxu0 0.0
    %9203 = vmatprep.subr.mxu0 0.0
    %9204 = vmatpush1.msra.mxu0 0.0
    %9205 = vmatprep.subr.mxu0 0.0
    %9206 = vmatpush1.msra.mxu0 0.0
    %9207 = vmatprep.subr.mxu0 0.0
    %9208 = vmatpush1.msra.mxu0 0.0
    %9209 = vmatprep.subr.mxu0 0.0
    %9210 = vmatpush1.msra.mxu0 0.0
    %9211 = vmatprep.subr.mxu0 0.0
    %9212 = vmatpush1.msra.mxu0 0.0
    %9213 = vmatprep.subr.mxu0 0.0
    %9214 = vmatpush1.msra.mxu0 0.0
    %9215 = vmatprep.mubr.f32.mxu0 0.0
    %9216 = vmatmul.mubr.f32.gmra.mrb[0].mxu0 %v9149
    %v9217 = vpop.f32.mrb[0].mxu0
    %v9218 = vadd.f32 0.0, %v9217
    %v9219 = vpop.f32.mrb[0].mxu0
    %9220 = vdwg.mxu0
    %v9222 = vsel %vm647, %v8864, 0
    %v9225 = vsel %vm647, %v8960, 0
    %v9228 = vsel %vm647, %v8965, 0
    %9230 = vmatprep.subr.mxu0 0.0
    %9231 = vmatpush1.xpose.msra.mxu0 %v9225
    %9232 = vmatprep.subr.mxu0 0.0
    %9233 = vmatpush1.xpose.msra.mxu0 %v9228
    %9234 = vmatprep.subr.mxu0 0.0
    %9235 = vmatpush1.xpose.msra.mxu0 0.0
    %9236 = vmatprep.subr.mxu0 0.0
    %9237 = vmatpush1.xpose.msra.mxu0 0.0
    %9238 = vmatprep.subr.mxu0 0.0
    %9239 = vmatpush1.xpose.msra.mxu0 0.0
    %9240 = vmatprep.subr.mxu0 0.0
    %9241 = vmatpush1.xpose.msra.mxu0 0.0
    %9242 = vmatprep.subr.mxu0 0.0
    %9243 = vmatpush1.xpose.msra.mxu0 0.0
    %9244 = vmatprep.subr.mxu0 0.0
    %9245 = vmatpush1.xpose.msra.mxu0 0.0
    %9246 = vmatprep.subr.mxu0 0.0
    %9247 = vmatpush1.xpose.msra.mxu0 0.0
    %9248 = vmatprep.subr.mxu0 0.0
    %9249 = vmatpush1.xpose.msra.mxu0 0.0
    %9250 = vmatprep.subr.mxu0 0.0
    %9251 = vmatpush1.xpose.msra.mxu0 0.0
    %9252 = vmatprep.subr.mxu0 0.0
    %9253 = vmatpush1.xpose.msra.mxu0 0.0
    %9254 = vmatprep.subr.mxu0 0.0
    %9255 = vmatpush1.xpose.msra.mxu0 0.0
    %9256 = vmatprep.subr.mxu0 0.0
    %9257 = vmatpush1.xpose.msra.mxu0 0.0
    %9258 = vmatprep.subr.mxu0 0.0
    %9259 = vmatpush1.xpose.msra.mxu0 0.0
    %9260 = vmatprep.subr.mxu0 0.0
    %9261 = vmatpush1.xpose.msra.mxu0 0.0
    %9262 = vmatprep.subr.mxu0 0.0
    %9263 = vmatpush1.xpose.msra.mxu0 0.0
    %9264 = vmatprep.subr.mxu0 0.0
    %9265 = vmatpush1.xpose.msra.mxu0 0.0
    %9266 = vmatprep.subr.mxu0 0.0
    %9267 = vmatpush1.xpose.msra.mxu0 0.0
    %9268 = vmatprep.subr.mxu0 0.0
    %9269 = vmatpush1.xpose.msra.mxu0 0.0
    %9270 = vmatprep.subr.mxu0 0.0
    %9271 = vmatpush1.xpose.msra.mxu0 0.0
    %9272 = vmatprep.subr.mxu0 0.0
    %9273 = vmatpush1.xpose.msra.mxu0 0.0
    %9274 = vmatprep.subr.mxu0 0.0
    %9275 = vmatpush1.xpose.msra.mxu0 0.0
    %9276 = vmatprep.subr.mxu0 0.0
    %9277 = vmatpush1.xpose.msra.mxu0 0.0
    %9278 = vmatprep.subr.mxu0 0.0
    %9279 = vmatpush1.xpose.msra.mxu0 0.0
    %9280 = vmatprep.subr.mxu0 0.0
    %9281 = vmatpush1.xpose.msra.mxu0 0.0
    %9282 = vmatprep.subr.mxu0 0.0
    %9283 = vmatpush1.xpose.msra.mxu0 0.0
    %9284 = vmatprep.subr.mxu0 0.0
    %9285 = vmatpush1.xpose.msra.mxu0 0.0
    %9286 = vmatprep.subr.mxu0 0.0
    %9287 = vmatpush1.xpose.msra.mxu0 0.0
    %9288 = vmatprep.subr.mxu0 0.0
    %9289 = vmatpush1.xpose.msra.mxu0 0.0
    %9290 = vmatprep.subr.mxu0 0.0
    %9291 = vmatpush1.xpose.msra.mxu0 0.0
    %9292 = vmatprep.subr.mxu0 0.0
    %9293 = vmatpush1.xpose.msra.mxu0 0.0
    %9294 = vmatprep.mubr.f32.mxu0 0.0
    %9295 = vmatmul.mubr.f32.gmra.mrb[0].mxu0 %v9222
    %v9296 = vpop.f32.mrb[0].mxu0
    %v9297 = vadd.f32 0.0, %v9296
    %v9298 = vpop.f32.mrb[0].mxu0
    %9299 = vdwg.mxu0
    %v9300 = vmul.f32 %v9297, 0.17677669
    %v9301 = vsel %vm1111, %v9300, -inf
    %9302 = vmax.xlane.f32.xlu0 %v9301
    %v9303 = vpop.xlane.xlu0 %9302
    %v9304 = vsub.f32 %v9300, %v9303
    %v9305 = vmul.f32 %v9304, 1.442695
    %v9306 = vpow.pop %v9305
    %v9307 = vsel %vm1111, %v9306, 0.0
    %9308 = vadd.xlane.f32.xlu0 %v9307
    %v9309 = vpop.xlane.xlu0 %9308
    %v9310 = vrcp.pop %v9309
    %v9311 = vmul.f32 %v9306, %v9310
    %v9313 = vsel %vm1111, %v9311, 0
    %9315 = vmatprep.subr.mxu0 0.0
    %9316 = vmatpush1.msra.mxu0 %v9049
    %9317 = vmatprep.subr.mxu0 0.0
    %9318 = vmatpush1.msra.mxu0 %v9054
    %9319 = vmatprep.subr.mxu0 0.0
    %9320 = vmatpush1.msra.mxu0 0.0
    %9321 = vmatprep.subr.mxu0 0.0
    %9322 = vmatpush1.msra.mxu0 0.0
    %9323 = vmatprep.subr.mxu0 0.0
    %9324 = vmatpush1.msra.mxu0 0.0
    %9325 = vmatprep.subr.mxu0 0.0
    %9326 = vmatpush1.msra.mxu0 0.0
    %9327 = vmatprep.subr.mxu0 0.0
    %9328 = vmatpush1.msra.mxu0 0.0
    %9329 = vmatprep.subr.mxu0 0.0
    %9330 = vmatpush1.msra.mxu0 0.0
    %9331 = vmatprep.subr.mxu0 0.0
    %9332 = vmatpush1.msra.mxu0 0.0
    %9333 = vmatprep.subr.mxu0 0.0
    %9334 = vmatpush1.msra.mxu0 0.0
    %9335 = vmatprep.subr.mxu0 0.0
    %9336 = vmatpush1.msra.mxu0 0.0
    %9337 = vmatprep.subr.mxu0 0.0
    %9338 = vmatpush1.msra.mxu0 0.0
    %9339 = vmatprep.subr.mxu0 0.0
    %9340 = vmatpush1.msra.mxu0 0.0
    %9341 = vmatprep.subr.mxu0 0.0
    %9342 = vmatpush1.msra.mxu0 0.0
    %9343 = vmatprep.subr.mxu0 0.0
    %9344 = vmatpush1.msra.mxu0 0.0
    %9345 = vmatprep.subr.mxu0 0.0
    %9346 = vmatpush1.msra.mxu0 0.0
    %9347 = vmatprep.subr.mxu0 0.0
    %9348 = vmatpush1.msra.mxu0 0.0
    %9349 = vmatprep.subr.mxu0 0.0
    %9350 = vmatpush1.msra.mxu0 0.0
    %9351 = vmatprep.subr.mxu0 0.0
    %9352 = vmatpush1.msra.mxu0 0.0
    %9353 = vmatprep.subr.mxu0 0.0
    %9354 = vmatpush1.msra.mxu0 0.0
    %9355 = vmatprep.subr.mxu0 0.0
    %9356 = vmatpush1.msra.mxu0 0.0
    %9357 = vmatprep.subr.mxu0 0.0
    %9358 = vmatpush1.msra.mxu0 0.0
    %9359 = vmatprep.subr.mxu0 0.0
    %9360 = vmatpush1.msra.mxu0 0.0
    %9361 = vmatprep.subr.mxu0 0.0
    %9362 = vmatpush1.msra.mxu0 0.0
    %9363 = vmatprep.subr.mxu0 0.0
    %9364 = vmatpush1.msra.mxu0 0.0
    %9365 = vmatprep.subr.mxu0 0.0
    %9366 = vmatpush1.msra.mxu0 0.0
    %9367 = vmatprep.subr.mxu0 0.0
    %9368 = vmatpush1.msra.mxu0 0.0
    %9369 = vmatprep.subr.mxu0 0.0
    %9370 = vmatpush1.msra.mxu0 0.0
    %9371 = vmatprep.subr.mxu0 0.0
    %9372 = vmatpush1.msra.mxu0 0.0
    %9373 = vmatprep.subr.mxu0 0.0
    %9374 = vmatpush1.msra.mxu0 0.0
    %9375 = vmatprep.subr.mxu0 0.0
    %9376 = vmatpush1.msra.mxu0 0.0
    %9377 = vmatprep.subr.mxu0 0.0
    %9378 = vmatpush1.msra.mxu0 0.0
    %9379 = vmatprep.mubr.f32.mxu0 0.0
    %9380 = vmatmul.mubr.f32.gmra.mrb[0].mxu0 %v9313
    %v9381 = vpop.f32.mrb[0].mxu0
    %v9382 = vadd.f32 0.0, %v9381
    %v9383 = vpop.f32.mrb[0].mxu0
    %9384 = vdwg.mxu0
    %v9385 = vld [vmem:[#allocation20] sm:$0xff]
    %v9386 = vld [vmem:[#allocation20 + $0x8] sm:$0xff]
    %v9387 = vld [vmem:[#allocation20 + $0x10] sm:$0xff]
    %v9388 = vld [vmem:[#allocation20 + $0x18] sm:$0xff]
    %v9390 = vsel %vm647, %v9218, 0
    %v9393 = vsel %vm647, %v9382, 0
    %9395 = vmatprep.subr.mxu0 0.0
    %9396 = vmatpush1.msra.mxu0 %v9385
    %9397 = vmatprep.subr.mxu0 0.0
    %9398 = vmatpush1.msra.mxu0 %v9386
    %9399 = vmatprep.subr.mxu0 0.0
    %9400 = vmatpush1.msra.mxu0 %v9387
    %9401 = vmatprep.subr.mxu0 0.0
    %9402 = vmatpush1.msra.mxu0 %v9388
    %9403 = vmatprep.subr.mxu0 0.0
    %9404 = vmatpush1.msra.mxu0 0.0
    %9405 = vmatprep.subr.mxu0 0.0
    %9406 = vmatpush1.msra.mxu0 0.0
    %9407 = vmatprep.subr.mxu0 0.0
    %9408 = vmatpush1.msra.mxu0 0.0
    %9409 = vmatprep.subr.mxu0 0.0
    %9410 = vmatpush1.msra.mxu0 0.0
    %9411 = vmatprep.subr.mxu0 0.0
    %9412 = vmatpush1.msra.mxu0 0.0
    %9413 = vmatprep.subr.mxu0 0.0
    %9414 = vmatpush1.msra.mxu0 0.0
    %9415 = vmatprep.subr.mxu0 0.0
    %9416 = vmatpush1.msra.mxu0 0.0
    %9417 = vmatprep.subr.mxu0 0.0
    %9418 = vmatpush1.msra.mxu0 0.0
    %9419 = vmatprep.subr.mxu0 0.0
    %9420 = vmatpush1.msra.mxu0 0.0
    %9421 = vmatprep.subr.mxu0 0.0
    %9422 = vmatpush1.msra.mxu0 0.0
    %9423 = vmatprep.subr.mxu0 0.0
    %9424 = vmatpush1.msra.mxu0 0.0
    %9425 = vmatprep.subr.mxu0 0.0
    %9426 = vmatpush1.msra.mxu0 0.0
    %9427 = vmatprep.subr.mxu0 0.0
    %9428 = vmatpush1.msra.mxu0 0.0
    %9429 = vmatprep.subr.mxu0 0.0
    %9430 = vmatpush1.msra.mxu0 0.0
    %9431 = vmatprep.subr.mxu0 0.0
    %9432 = vmatpush1.msra.mxu0 0.0
    %9433 = vmatprep.subr.mxu0 0.0
    %9434 = vmatpush1.msra.mxu0 0.0
    %9435 = vmatprep.subr.mxu0 0.0
    %9436 = vmatpush1.msra.mxu0 0.0
    %9437 = vmatprep.subr.mxu0 0.0
    %9438 = vmatpush1.msra.mxu0 0.0
    %9439 = vmatprep.subr.mxu0 0.0
    %9440 = vmatpush1.msra.mxu0 0.0
    %9441 = vmatprep.subr.mxu0 0.0
    %9442 = vmatpush1.msra.mxu0 0.0
    %9443 = vmatprep.subr.mxu0 0.0
    %9444 = vmatpush1.msra.mxu0 0.0
    %9445 = vmatprep.subr.mxu0 0.0
    %9446 = vmatpush1.msra.mxu0 0.0
    %9447 = vmatprep.subr.mxu0 0.0
    %9448 = vmatpush1.msra.mxu0 0.0
    %9449 = vmatprep.subr.mxu0 0.0
    %9450 = vmatpush1.msra.mxu0 0.0
    %9451 = vmatprep.subr.mxu0 0.0
    %9452 = vmatpush1.msra.mxu0 0.0
    %9453 = vmatprep.subr.mxu0 0.0
    %9454 = vmatpush1.msra.mxu0 0.0
    %9455 = vmatprep.subr.mxu0 0.0
    %9456 = vmatpush1.msra.mxu0 0.0
    %9457 = vmatprep.subr.mxu0 0.0
    %9458 = vmatpush1.msra.mxu0 0.0
    %9459 = vmatprep.mubr.f32.mxu0 0.0
    %9460 = vmatmul.mubr.f32.gmra.mrb[0].mxu0 %v9390
    %v9461 = vpop.f32.mrb[0].mxu0
    %v9462 = vadd.f32 0.0, %v9461
    %v9463 = vpop.f32.mrb[0].mxu0
    %9464 = vmatprep.mubr.f32.mxu0 0.0
    %9465 = vmatmul.mubr.f32.gmra.mrb[0].mxu0 %v9393
    %v9466 = vpop.f32.mrb[0].mxu0
    %v9467 = vadd.f32 0.0, %v9466
    %v9468 = vpop.f32.mrb[0].mxu0
    %9469 = vdwg.mxu0
    %v9470 = vadd.f32 %v8780, %v9462
    %v9471 = vadd.f32 %v8781, %v9467
    %v9472 = vld [vmem:[%s127] sm:$0x1]
    %v9473 = vld [vmem:[%s129] sm:$0x1]
    %v9474 = vsel %vm647, %v9470, 0.0
    %9475 = vadd.xlane.f32.xlu0 %v9474
    %v9476 = vpop.xlane.xlu0 %9475
    %v9477 = vsel %vm647, %v9471, 0.0
    %9478 = vadd.xlane.f32.xlu0 %v9477
    %v9479 = vpop.xlane.xlu0 %9478
    %v9480 = vmul.f32 %v9476, %v660
    %v9481 = vmul.f32 %v9479, %v660
    %v9482 = vsub.f32 %v9470, %v9480
    %v9483 = vsub.f32 %v9471, %v9481
    %v9484 = vmul.f32 %v9482, %v9482
    %v9485 = vmul.f32 %v9483, %v9483
    %v9486 = vsel %vm647, %v9484, 0.0
    %9487 = vadd.xlane.f32.xlu0 %v9486
    %v9488 = vpop.xlane.xlu0 %9487
    %v9489 = vsel %vm647, %v9485, 0.0
    %9490 = vadd.xlane.f32.xlu0 %v9489
    %v9491 = vpop.xlane.xlu0 %9490
    %v9492 = vmul.f32 %v9488, %v660
    %v9493 = vmul.f32 %v9491, %v660
    %v9494 = vadd.f32 %v9492, 1e-06
    %v9495 = vadd.f32 %v9493, 1e-06
    %v9496 = vrsqrt.pop %v9494
    %v9497 = vrsqrt.pop %v9495
    %v9498 = vmul.f32 %v9482, %v9496
    %v9499 = vmul.f32 %v9483, %v9497
    %v9501 = vlaneseq
    %v9502 = vshrl.u32 %v9501, 7
    %v9503 = vsub.s32 0, %v9502
    %v9504 = vrot.slane %v9472, %v9503
    %v9506 = vmul.f32 %v9498, %v9504
    %v9507 = vmul.f32 %v9499, %v9504
    %v9509 = vlaneseq
    %v9510 = vshrl.u32 %v9509, 7
    %v9511 = vsub.s32 0, %v9510
    %v9512 = vrot.slane %v9473, %v9511
    %v9514 = vadd.f32 %v9506, %v9512
    %v9515 = vadd.f32 %v9507, %v9512
    %v9516 = vld [vmem:[#allocation22] sm:$0xff]
    %v9517 = vld [vmem:[#allocation22 + $0x8] sm:$0xff]
    %v9518 = vld [vmem:[#allocation22 + $0x10] sm:$0xff]
    %v9519 = vld [vmem:[#allocation22 + $0x18] sm:$0xff]
    %v9520 = vld [vmem:[%s133] sm:$0x1]
    %v9522 = vlaneseq
    %v9523 = vshrl.u32 %v9522, 7
    %v9524 = vsub.s32 0, %v9523
    %v9525 = vrot.slane %v9520, %v9524
    %v9528 = vsel %vm647, %v9514, 0
    %v9531 = vsel %vm647, %v9515, 0
    %9533 = vmatprep.subr.mxu0 0.0
    %9534 = vmatpush1.msra.mxu0 %v9516
    %9535 = vmatprep.subr.mxu0 0.0
    %9536 = vmatpush1.msra.mxu0 %v9517
    %9537 = vmatprep.subr.mxu0 0.0
    %9538 = vmatpush1.msra.mxu0 %v9518
    %9539 = vmatprep.subr.mxu0 0.0
    %9540 = vmatpush1.msra.mxu0 %v9519
    %9541 = vmatprep.subr.mxu0 0.0
    %9542 = vmatpush1.msra.mxu0 0.0
    %9543 = vmatprep.subr.mxu0 0.0
    %9544 = vmatpush1.msra.mxu0 0.0
    %9545 = vmatprep.subr.mxu0 0.0
    %9546 = vmatpush1.msra.mxu0 0.0
    %9547 = vmatprep.subr.mxu0 0.0
    %9548 = vmatpush1.msra.mxu0 0.0
    %9549 = vmatprep.subr.mxu0 0.0
    %9550 = vmatpush1.msra.mxu0 0.0
    %9551 = vmatprep.subr.mxu0 0.0
    %9552 = vmatpush1.msra.mxu0 0.0
    %9553 = vmatprep.subr.mxu0 0.0
    %9554 = vmatpush1.msra.mxu0 0.0
    %9555 = vmatprep.subr.mxu0 0.0
    %9556 = vmatpush1.msra.mxu0 0.0
    %9557 = vmatprep.subr.mxu0 0.0
    %9558 = vmatpush1.msra.mxu0 0.0
    %9559 = vmatprep.subr.mxu0 0.0
    %9560 = vmatpush1.msra.mxu0 0.0
    %9561 = vmatprep.subr.mxu0 0.0
    %9562 = vmatpush1.msra.mxu0 0.0
    %9563 = vmatprep.subr.mxu0 0.0
    %9564 = vmatpush1.msra.mxu0 0.0
    %9565 = vmatprep.subr.mxu0 0.0
    %9566 = vmatpush1.msra.mxu0 0.0
    %9567 = vmatprep.subr.mxu0 0.0
    %9568 = vmatpush1.msra.mxu0 0.0
    %9569 = vmatprep.subr.mxu0 0.0
    %9570 = vmatpush1.msra.mxu0 0.0
    %9571 = vmatprep.subr.mxu0 0.0
    %9572 = vmatpush1.msra.mxu0 0.0
    %9573 = vmatprep.subr.mxu0 0.0
    %9574 = vmatpush1.msra.mxu0 0.0
    %9575 = vmatprep.subr.mxu0 0.0
    %9576 = vmatpush1.msra.mxu0 0.0
    %9577 = vmatprep.subr.mxu0 0.0
    %9578 = vmatpush1.msra.mxu0 0.0
    %9579 = vmatprep.subr.mxu0 0.0
    %9580 = vmatpush1.msra.mxu0 0.0
    %9581 = vmatprep.subr.mxu0 0.0
    %9582 = vmatpush1.msra.mxu0 0.0
    %9583 = vmatprep.subr.mxu0 0.0
    %9584 = vmatpush1.msra.mxu0 0.0
    %9585 = vmatprep.subr.mxu0 0.0
    %9586 = vmatpush1.msra.mxu0 0.0
    %9587 = vmatprep.subr.mxu0 0.0
    %9588 = vmatpush1.msra.mxu0 0.0
    %9589 = vmatprep.subr.mxu0 0.0
    %9590 = vmatpush1.msra.mxu0 0.0
    %9591 = vmatprep.subr.mxu0 0.0
    %9592 = vmatpush1.msra.mxu0 0.0
    %9593 = vmatprep.subr.mxu0 0.0
    %9594 = vmatpush1.msra.mxu0 0.0
    %9595 = vmatprep.subr.mxu0 0.0
    %9596 = vmatpush1.msra.mxu0 0.0
    %9597 = vmatprep.mubr.f32.mxu0 0.0
    %9598 = vmatmul.mubr.f32.gmra.mrb[0].mxu0 %v9528
    %v9599 = vpop.f32.mrb[0].mxu0
    %v9600 = vadd.f32 %v9525, %v9599
    %v9601 = vpop.f32.mrb[0].mxu0
    %9602 = vmatprep.mubr.f32.mxu0 0.0
    %9603 = vmatmul.mubr.f32.gmra.mrb[0].mxu0 %v9531
    %v9604 = vpop.f32.mrb[0].mxu0
    %v9605 = vadd.f32 %v9525, %v9604
    %v9606 = vpop.f32.mrb[0].mxu0
    %9607 = vdwg.mxu0
    %vm9608 = vcmask 80896
    %9609 = vst.msk [vmem:[#allocation24] sm:$0xff] %vm9608, %v9600
    %9610 = vst.msk [vmem:[#allocation24 + $0x8] sm:$0xff] %vm9608, %v9605
    %9611 = vst.msk [vmem:[#allocation26] sm:$0xff] %vm1111, %v9147
    %9612 = vst.msk [vmem:[#allocation26 + $0x8] sm:$0xff] %vm1111, %v9311
    // Predicated region
    $region322: #{mim_rec_forward.1} parent=1 // pred_check
      _
    $region323: #{mim_rec_forward.1} parent=1 // pred_check_branch
      %9614 = sbr.rel (0) target = $region325
    $region324: #{mim_rec_forward.1} parent=1 // pred_region
      %s9616 = ssub.s32 512, 512
      %9617 = vsyncadd [#allocation4], %s9616
      %s9618 = sshll.u32 [#allocation23], 4
      %s9619 = int_to_ptr.vmem [resolvable:$true] %s9618
      %9624 = dma.vmem_to_hbm [thread:$0]  %s9619, 512, %s135, [#allocation4], 128, 128, 8
    $region325: #{mim_rec_forward.1} parent=1 // pred_fallthru
      _
    // Predicated region
    $region326: #{mim_rec_forward.1} parent=1 // pred_check
      _
    $region327: #{mim_rec_forward.1} parent=1 // pred_check_branch
      %9626 = sbr.rel (0) target = $region329
    $region328: #{mim_rec_forward.1} parent=1 // pred_region
      %s9628 = ssub.s32 256, 256
      %9629 = vsyncadd [#allocation25], %s9628
      %s9630 = sshll.u32 [#allocation24], 4
      %s9631 = int_to_ptr.vmem [resolvable:$true] %s9630
      %9636 = dma.vmem_to_hbm [thread:$0]  %s9631, 256, %s137, [#allocation25], 128, 128, 8
    $region329: #{mim_rec_forward.1} parent=1 // pred_fallthru
      _
    // Predicated region
    $region330: #{mim_rec_forward.1} parent=1 // pred_check
      _
    $region331: #{mim_rec_forward.1} parent=1 // pred_check_branch
      %9638 = sbr.rel (0) target = $region333
    $region332: #{mim_rec_forward.1} parent=1 // pred_region
      %s9640 = ssub.s32 256, 256
      %9641 = vsyncadd [#allocation25], %s9640
      %s9642 = sshll.u32 [#allocation26], 4
      %s9643 = int_to_ptr.vmem [resolvable:$true] %s9642
      %9648 = dma.vmem_to_hbm [thread:$0]  %s9643, 256, %s139, [#allocation25], 128, 128, 8
    $region333: #{mim_rec_forward.1} parent=1 // pred_fallthru
      _
    // Predicated region
    $region334: #{mim_rec_forward.1} parent=1 // pred_check
      _
    $region335: #{mim_rec_forward.1} parent=1 // pred_check_branch
      %9650 = sbr.rel (0) target = $region337
    $region336: #{mim_rec_forward.1} parent=1 // pred_region
      %9651 = dma.done [#allocation4], 512
    $region337: #{mim_rec_forward.1} parent=1 // pred_fallthru
      _
    // Predicated region
    $region338: #{mim_rec_forward.1} parent=1 // pred_check
      _
    $region339: #{mim_rec_forward.1} parent=1 // pred_check_branch
      %9653 = sbr.rel (0) target = $region341
    $region340: #{mim_rec_forward.1} parent=1 // pred_region
      %9654 = dma.done [#allocation25], 256
    $region341: #{mim_rec_forward.1} parent=1 // pred_fallthru
      _
    // Predicated region
    $region342: #{mim_rec_forward.1} parent=1 // pred_check
      _
    $region343: #{mim_rec_forward.1} parent=1 // pred_check_branch
      %9656 = sbr.rel (0) target = $region345
    $region344: #{mim_rec_forward.1} parent=1 // pred_region
      %9657 = dma.done [#allocation25], 256
    $region345: #{mim_rec_forward.1} parent=1 // pred_fallthru
      _
    %9658 = vsyncpa [#allocation3], 1
    %9659 = vsyncpa [#allocation6], 1
    %9660 = vsyncpa [#allocation9], 1
    %9661 = vsyncpa [#allocation12], 1
    %9662 = vsyncpa [#allocation15], 1
    %9663 = vsyncpa [#allocation18], 1
    %9664 = vsyncpa [#allocation21], 1
    %9665 = vsyncpa [#allocation4], 1
    %9666 = vsyncpa [#allocation25], 1

</llo_original>
